<compile_context>
chip_gen: v7x
topology: tpu7x:2x2x1
jax: 0.10.0
libtpu: 0.0.40
codegen_flags: <defaults>
</compile_context>

<pallas_src>
import math

import jax
import jax.numpy as jnp
from jax import lax
from jax.experimental import pallas as pl
from jax.experimental.pallas import tpu as pltpu

_CONV_K = 7
_CONV_P = 3


def _sigmoid(v):
    # Manual logistic (exp on EUP, divide on VPU) -- lowers cleanly in Mosaic.
    return 1.0 / (1.0 + jnp.exp(-v))


def masked_cbam1d_kernel(
    x_ref,      # (Bt, C, S)   f32  input block (VMEM)
    mask_ref,   # (Bt, 1, S)   int8 1 == padded (VMEM)
    aw_ref,     # (C, 1)       f32  attention-pooling weights
    w1_ref,     # (Cr, C)      f32  fc1 weight (no bias)
    w2_ref,     # (C, Cr)      f32  fc2 weight (no bias)
    cw1_ref,    # (Cr, C, 7)   f32  conv1 weight
    cw2_ref,    # (Cr, 7)      f32  conv2 weight (out-channel squeezed)
    cb1_ref,    # (Cr,)        f32  conv1 bias   (SMEM scalars)
    cb2_ref,    # (1,)         f32  conv2 bias   (SMEM scalar)
    out_ref,    # (Bt, C, S)   f32  output block
    xp_ref,     # VMEM scratch (Bt, C, S + 6)   zero-padded conv1 input
    hp_ref,     # VMEM scratch (Cr, Bt, S + 6)  zero-padded conv2 input
):
    f32 = jnp.float32
    Bt, C, S = x_ref.shape
    Cr = w1_ref.shape[0]
    K, P = _CONV_K, _CONV_P

    x = x_ref[...].astype(f32)                        # (Bt, C, S)

    # Mask hoisted once (int8 DMA, single convert; broadcasts reused below).
    m_f = mask_ref[...].astype(f32)                   # (Bt, 1, S)
    masked_b1s = m_f > 0.5                            # (Bt, 1, S) bool
    masked_row = m_f[:, 0, :] > 0.5                   # (Bt, S)    bool

    # ---- AttentionPooling: lane-dense (Bt, S) scores, VPU/XLU only ----------
    aw = aw_ref[...]                                  # (C, 1)
    scores = jnp.sum(x * aw[None, :, :], axis=1)      # (Bt, S)
    # Finite fill instead of -inf: masked terms underflow to exactly 0 after
    # exp; a fully-masked row degrades to uniform weights (torch would NaN).
    scores = jnp.where(masked_row, -1e30, scores)
    mx = jnp.max(scores, axis=-1, keepdims=True)      # (Bt, 1)
    e = jnp.exp(scores - mx)                          # (Bt, S)
    denom = jnp.sum(e, axis=-1, keepdims=True)        # (Bt, 1)
    attw = e * pl.reciprocal(denom, approx=True)      # softmax weights (Bt, S)
    context = jnp.sum(attw[:, None, :] * x, axis=2)   # (Bt, C)

    # ---- Squeeze-excite MLP (tiny): VPU broadcast-mul + lane reduces --------
    w1 = w1_ref[...]                                  # (Cr, C)
    w2 = w2_ref[...]                                  # (C, Cr)
    se = jnp.sum(context[:, None, :] * w1[None, :, :], axis=-1)   # (Bt, Cr)
    se = jnp.maximum(se, 0.0)
    g = _sigmoid(jnp.sum(se[:, None, :] * w2[None, :, :], axis=-1,
                         keepdims=True))              # (Bt, C, 1)

    # ---- Channel gate: y.view(B,C,1).masked_fill(mask, 0); x_out = x * y ----
    gate_c = jnp.where(masked_b1s, 0.0, g)            # (Bt, C, S)
    x_out = x * gate_c

    # ---- Spatial branch ------------------------------------------------------
    # Stage the zero-padded conv1 input.  Only the 2*P pad columns are zeroed
    # (interior is fully overwritten right after); done every step so it is
    # megacore-safe: each core initializes its own scratch pads on the first
    # step it actually runs.
    zc = jnp.zeros((Bt, C, P), f32)
    xp_ref[:, :, 0:P] = zc
    xp_ref[:, :, P + S:P + S + P] = zc
    xp_ref[:, :, P:P + S] = x_out
    # x_out is re-read from xp_ref at the end, so its value can die here; the
    # conv-loop live set is one tap plus Cr small (Bt, S) accumulators.

    cw1 = cw1_ref[...]                                # (Cr, C, 7)
    cw2 = cw2_ref[...]                                # (Cr, 7)

    # conv1: k-outer / o-inner -> each of the 7 shifted taps of the padded
    # slab is materialized exactly once (instead of Cr*7 times).
    acc1 = [jnp.zeros((Bt, S), f32) + cb1_ref[o] for o in range(Cr)]
    for k in range(K):
        tap = xp_ref[:, :, k:k + S]                   # (Bt, C, S)
        for o in range(Cr):
            wk = cw1[o, :, k:k + 1]                   # (C, 1) per-channel taps
            acc1[o] = acc1[o] + jnp.sum(tap * wk[None, :, :], axis=1)

    # masked_fill(mask, 0) -> ReLU, staged ONCE into the padded conv2 slab
    # (leading-axis writes; no per-o VMEM round trip inside the tap loops).
    zh = jnp.zeros((Cr, Bt, P), f32)
    hp_ref[:, :, 0:P] = zh
    hp_ref[:, :, P + S:P + S + P] = zh
    for o in range(Cr):
        h_o = jnp.maximum(jnp.where(masked_row, 0.0, acc1[o]), 0.0)   # (Bt, S)
        hp_ref[o, :, P:P + S] = h_o

    # conv2: 7 taps of the (Cr, Bt, S+6) slab, reduce over the leading Cr axis.
    acc2 = jnp.zeros((Bt, S), f32) + cb2_ref[0]
    for k in range(K):
        htap = hp_ref[:, :, k:k + S]                  # (Cr, Bt, S)
        wk2 = cw2[:, k:k + 1][:, :, None]             # (Cr, 1, 1)
        acc2 = acc2 + jnp.sum(htap * wk2, axis=0)

    gate_s = _sigmoid(jnp.where(masked_row, -10.0, acc2))   # (Bt, S)

    x_out_v = xp_ref[:, :, P:P + S]                   # (Bt, C, S) re-read
    out_ref[...] = (x_out_v * gate_s[:, None, :]).astype(out_ref.dtype)


def _pick_block_b(batch, requested):
    """Largest divisor of `batch` <= requested, shrunk further (when possible)
    so the grid has >= 4 steps (>= 2 per TensorCore under v7x megacore)."""
    divisors = [d for d in range(1, batch + 1) if batch % d == 0]
    fitting = [d for d in divisors if d <= max(1, requested)]
    bb = max(fitting)
    while batch // bb < 4:
        smaller = [d for d in fitting if d < bb]
        if not smaller:
            break
        bb = max(smaller)
    return bb


def masked_cbam1d(x, mask, params, *, block_b=4):
    """MaskedCBAM1d forward (pooling='att').

    x:    (B, C, S) float32
    mask: (B, S) bool, True == padded position
    """
    B, C, S = x.shape
    Cr = params["w1"].shape[0]
    bb = _pick_block_b(B, block_b)
    grid = (B // bb,)

    # int8 mask shipped as (B, 1, S): quarter the DMA bytes vs f32, and the
    # size-1 second-to-last dim keeps the (8,128) block rule valid for any bb.
    mask_i8 = mask.reshape(B, 1, S).astype(jnp.int8)
    cw2_2d = params["cw2"].reshape(Cr, _CONV_K)
    cb1 = params["cb1"].reshape(Cr).astype(jnp.float32)
    cb2 = params["cb2"].reshape(1).astype(jnp.float32)

    # Explicit scoped-VMEM budget (v5e default is only 16 MiB; v7x physical
    # VMEM is 64 MiB): double-buffered x/out blocks + weights + padded scratch
    # with 4x headroom, clamped to [16 MiB, 48 MiB].  For big C*S shrink
    # block_b (roughly halve on v7x) rather than raising the cap.
    blk = bb * C * S * 4
    scratch = (bb * C + Cr * bb) * (S + 2 * _CONV_P) * 4
    wts = 4 * (C + Cr * C + C * Cr + Cr * C * _CONV_K + Cr * _CONV_K)
    est = 4 * blk + 2 * (bb * S) + 2 * wts + scratch
    vmem_limit = int(min(max(4 * est, 16 << 20), 48 << 20))

    return pl.pallas_call(
        masked_cbam1d_kernel,
        out_shape=jax.ShapeDtypeStruct((B, C, S), x.dtype),
        grid_spec=pltpu.PrefetchScalarGridSpec(
            num_scalar_prefetch=0,
            grid=grid,
            in_specs=[
                pl.BlockSpec((bb, C, S), lambda b: (b, 0, 0)),        # x
                pl.BlockSpec((bb, 1, S), lambda b: (b, 0, 0)),        # mask i8
                pl.BlockSpec((C, 1), lambda b: (0, 0)),               # att w
                pl.BlockSpec((Cr, C), lambda b: (0, 0)),              # fc1
                pl.BlockSpec((C, Cr), lambda b: (0, 0)),              # fc2
                pl.BlockSpec((Cr, C, _CONV_K), lambda b: (0, 0, 0)),  # conv1 w
                pl.BlockSpec((Cr, _CONV_K), lambda b: (0, 0)),        # conv2 w
                pl.BlockSpec(memory_space=pltpu.MemorySpace.SMEM),    # conv1 b
                pl.BlockSpec(memory_space=pltpu.MemorySpace.SMEM),    # conv2 b
            ],
            out_specs=pl.BlockSpec((bb, C, S), lambda b: (b, 0, 0)),
            scratch_shapes=[
                pltpu.VMEM((bb, C, S + 2 * _CONV_P), jnp.float32),
                pltpu.VMEM((Cr, bb, S + 2 * _CONV_P), jnp.float32),
            ],
        ),
        compiler_params=pltpu.CompilerParams(
            dimension_semantics=("parallel",),        # batch blocks over TCs
            vmem_limit_bytes=vmem_limit,
        ),
    )(x, mask_i8, params["aw"], params["w1"], params["w2"],
      params["cw1"], cw2_2d, cb1, cb2)


def reference_cbam(x, mask, params):
    """Pure-JAX reference for MaskedCBAM1d (pooling='att')."""
    aw, w1, w2 = params["aw"], params["w1"], params["w2"]
    cw1, cb1, cw2, cb2 = params["cw1"], params["cb1"], params["cw2"], params["cb2"]

    xt = jnp.swapaxes(x, 1, 2)                                   # (B, S, C)
    scores = jnp.squeeze(xt @ aw, -1)                            # (B, S)
    scores = jnp.where(mask, -jnp.inf, scores)
    attw = jax.nn.softmax(scores, axis=-1)
    context = jnp.einsum("bs,bsc->bc", attw, xt)                 # (B, C)

    h1 = jax.nn.relu(context @ w1.T)
    g = jax.nn.sigmoid(h1 @ w2.T)                                # (B, C)
    gate_c = jnp.where(mask[:, None, :], 0.0, g[:, :, None])     # (B, C, S)
    x_out = x * gate_c

    y1 = lax.conv_general_dilated(x_out, cw1, (1,), [(3, 3)],
                                  dimension_numbers=("NCH", "OIH", "NCH"))
    y1 = y1 + cb1[None, :, None]
    y1 = jnp.where(mask[:, None, :], 0.0, y1)
    y1 = jax.nn.relu(y1)
    y2 = lax.conv_general_dilated(y1, cw2, (1,), [(3, 3)],
                                  dimension_numbers=("NCH", "OIH", "NCH"))
    y2 = y2 + cb2[None, :, None]
    y2 = jnp.where(mask[:, None, :], -10.0, y2)
    gate_s = jax.nn.sigmoid(y2)                                  # (B, 1, S)
    return x_out * gate_s


if __name__ == "__main__":
    B, C, S = 16, 64, 16          # batch, channels (hidden), sequence
    reduction = 16
    Cr = C // reduction           # 4

    key = jax.random.PRNGKey(0)
    ks = jax.random.split(key, 9)

    x = jax.random.normal(ks[0], (B, C, S), dtype=jnp.float32)
    mask = jax.random.bernoulli(ks[1], 0.3, (B, S))
    mask = mask.at[:, 0].set(False)            # >= 1 valid position per row

    # AttentionPooling weight: xavier_uniform_ for (C, 1)
    bound = math.sqrt(6.0 / (C + 1))
    aw = jax.random.uniform(ks[2], (C, 1), minval=-bound, maxval=bound,
                            dtype=jnp.float32)
    # SE MLP weights (bias-free Linear layers)
    b1 = 1.0 / math.sqrt(C)
    w1 = jax.random.uniform(ks[3], (Cr, C), minval=-b1, maxval=b1,
                            dtype=jnp.float32)
    b2 = 1.0 / math.sqrt(Cr)
    w2 = jax.random.uniform(ks[4], (C, Cr), minval=-b2, maxval=b2,
                            dtype=jnp.float32)
    # Spatial conv weights/biases (kernel 7, padding 3)
    bc1 = 1.0 / math.sqrt(C * _CONV_K)
    cw1 = jax.random.uniform(ks[5], (Cr, C, _CONV_K), minval=-bc1, maxval=bc1,
                             dtype=jnp.float32)
    cb1 = jax.random.uniform(ks[6], (Cr,), minval=-bc1, maxval=bc1,
                             dtype=jnp.float32)
    bc2 = 1.0 / math.sqrt(Cr * _CONV_K)
    cw2 = jax.random.uniform(ks[7], (1, Cr, _CONV_K), minval=-bc2, maxval=bc2,
                             dtype=jnp.float32)
    cb2 = jax.random.uniform(ks[8], (1,), minval=-bc2, maxval=bc2,
                             dtype=jnp.float32)

    params = dict(aw=aw, w1=w1, w2=w2, cw1=cw1, cb1=cb1, cw2=cw2, cb2=cb2)

    out = masked_cbam1d(x, mask, params, block_b=4)
    out = jax.block_until_ready(out)

    ref = reference_cbam(x, mask, params)
    assert out.shape == (B, C, S)
    err = float(jnp.max(jnp.abs(out - ref)))
    # Loose-ish tolerance: the approximate EUP reciprocal in the softmax is the
    # only intended numerical deviation from the f32 reference.
    assert err < 1e-2, f"max abs err {err}"

    print("KERNEL_OK")
</pallas_src>

<mosaic_0001>
module attributes {stable_mosaic.version = 11 : i64} {
  func.func @masked_cbam1d_kernel(%arg0: i32, %arg1: memref<4x64x16xf32, #tpu.memory_space<vmem>>, %arg2: memref<4x1x16xi8, #tpu.memory_space<vmem>>, %arg3: memref<64x1xf32, #tpu.memory_space<vmem>>, %arg4: memref<4x64xf32, #tpu.memory_space<vmem>>, %arg5: memref<64x4xf32, #tpu.memory_space<vmem>>, %arg6: memref<4x64x7xf32, #tpu.memory_space<vmem>>, %arg7: memref<4x7xf32, #tpu.memory_space<vmem>>, %arg8: memref<4xf32, #tpu.memory_space<smem>>, %arg9: memref<1xf32, #tpu.memory_space<smem>>, %arg10: memref<4x64x16xf32, #tpu.memory_space<vmem>>, %arg11: memref<4x64x22xf32, #tpu.memory_space<vmem>>, %arg12: memref<4x4x22xf32, #tpu.memory_space<vmem>>) attributes {dimension_semantics = [#tpu.dimension_semantics<parallel>], iteration_bounds = array<i64: 4>, scalar_prefetch = 0 : i64, scratch_operands = 2 : i64, tpu.core_type = #tpu.core_type<tc>, window_params = [{transform_indices = @transform_0, window_bounds = array<i64: 4, 64, 16>}, {transform_indices = @transform_1, window_bounds = array<i64: 4, 1, 16>}, {pipeline_mode = #tpu.pipeline_mode<synchronous>, transform_indices = @transform_2, window_bounds = array<i64: 64, 1>}, {pipeline_mode = #tpu.pipeline_mode<synchronous>, transform_indices = @transform_3, window_bounds = array<i64: 4, 64>}, {pipeline_mode = #tpu.pipeline_mode<synchronous>, transform_indices = @transform_4, window_bounds = array<i64: 64, 4>}, {pipeline_mode = #tpu.pipeline_mode<synchronous>, transform_indices = @transform_5, window_bounds = array<i64: 4, 64, 7>}, {pipeline_mode = #tpu.pipeline_mode<synchronous>, transform_indices = @transform_6, window_bounds = array<i64: 4, 7>}, {transform_indices = @transform_7, window_bounds = array<i64: 4>}, {transform_indices = @transform_8, window_bounds = array<i64: 1>}, {transform_indices = @transform_9, window_bounds = array<i64: 4, 64, 16>}]} {
    %c0 = arith.constant 0 : index
    %c0_0 = arith.constant 0 : index
    %c0_1 = arith.constant 0 : index
    %0 = vector.load %arg1[%c0, %c0_0, %c0_1] : memref<4x64x16xf32, #tpu.memory_space<vmem>>, vector<4x64x16xf32>
    %c0_2 = arith.constant 0 : index
    %c0_3 = arith.constant 0 : index
    %c0_4 = arith.constant 0 : index
    %1 = vector.load %arg2[%c0_2, %c0_3, %c0_4] : memref<4x1x16xi8, #tpu.memory_space<vmem>>, vector<4x1x16xi8>
    %2 = arith.sitofp %1 : vector<4x1x16xi8> to vector<4x1x16xf32>
    %cst = arith.constant 5.000000e-01 : f32
    %3 = vector.broadcast %cst : f32 to vector<4x1x16xf32>
    %4 = arith.cmpf ogt, %2, %3 : vector<4x1x16xf32>
    %5 = vector.shape_cast %2 : vector<4x1x16xf32> to vector<4x16xf32>
    %cst_5 = arith.constant 5.000000e-01 : f32
    %6 = vector.broadcast %cst_5 : f32 to vector<4x16xf32>
    %7 = arith.cmpf ogt, %5, %6 : vector<4x16xf32>
    %c0_6 = arith.constant 0 : index
    %c0_7 = arith.constant 0 : index
    %8 = vector.load %arg3[%c0_6, %c0_7] : memref<64x1xf32, #tpu.memory_space<vmem>>, vector<64x1xf32>
    %9 = vector.shape_cast %8 : vector<64x1xf32> to vector<1x64x1xf32>
    %10 = vector.broadcast %9 : vector<1x64x1xf32> to vector<4x64x16xf32>
    %11 = arith.mulf %0, %10 : vector<4x64x16xf32>
    %cst_8 = arith.constant dense<0.000000e+00> : vector<4x16xf32>
    %12 = vector.multi_reduction <add>, %11, %cst_8 [1] : vector<4x64x16xf32> to vector<4x16xf32>
    %cst_9 = arith.constant -1.000000e+30 : f32
    %13 = vector.broadcast %cst_9 : f32 to vector<4x16xf32>
    %14 = arith.select %7, %13, %12 : vector<4x16xi1>, vector<4x16xf32>
    %cst_10 = arith.constant dense<0xFF800000> : vector<4xf32>
    %15 = vector.multi_reduction <maximumf>, %14, %cst_10 [1] : vector<4x16xf32> to vector<4xf32>
    %16 = vector.shape_cast %15 : vector<4xf32> to vector<4x1xf32>
    %17 = vector.broadcast %16 : vector<4x1xf32> to vector<4x16xf32>
    %18 = arith.subf %14, %17 : vector<4x16xf32>
    %19 = math.exp %18 : vector<4x16xf32>
    %cst_11 = arith.constant dense<0.000000e+00> : vector<4xf32>
    %20 = vector.multi_reduction <add>, %19, %cst_11 [1] : vector<4x16xf32> to vector<4xf32>
    %21 = vector.shape_cast %20 : vector<4xf32> to vector<4x1xf32>
    %22 = tpu.reciprocal %21 {approx = true} : vector<4x1xf32> -> vector<4x1xf32>
    %23 = vector.broadcast %22 : vector<4x1xf32> to vector<4x16xf32>
    %24 = arith.mulf %19, %23 : vector<4x16xf32>
    %25 = vector.shape_cast %24 : vector<4x16xf32> to vector<4x1x16xf32>
    %26 = vector.broadcast %25 : vector<4x1x16xf32> to vector<4x64x16xf32>
    %27 = arith.mulf %26, %0 : vector<4x64x16xf32>
    %cst_12 = arith.constant dense<0.000000e+00> : vector<4x64xf32>
    %28 = vector.multi_reduction <add>, %27, %cst_12 [2] : vector<4x64x16xf32> to vector<4x64xf32>
    %c0_13 = arith.constant 0 : index
    %c0_14 = arith.constant 0 : index
    %29 = vector.load %arg4[%c0_13, %c0_14] : memref<4x64xf32, #tpu.memory_space<vmem>>, vector<4x64xf32>
    %c0_15 = arith.constant 0 : index
    %c0_16 = arith.constant 0 : index
    %30 = vector.load %arg5[%c0_15, %c0_16] : memref<64x4xf32, #tpu.memory_space<vmem>>, vector<64x4xf32>
    %31 = vector.shape_cast %28 : vector<4x64xf32> to vector<4x1x64xf32>
    %32 = vector.shape_cast %29 : vector<4x64xf32> to vector<1x4x64xf32>
    %33 = vector.broadcast %31 : vector<4x1x64xf32> to vector<4x4x64xf32>
    %34 = vector.broadcast %32 : vector<1x4x64xf32> to vector<4x4x64xf32>
    %35 = arith.mulf %33, %34 : vector<4x4x64xf32>
    %cst_17 = arith.constant dense<0.000000e+00> : vector<4x4xf32>
    %36 = vector.multi_reduction <add>, %35, %cst_17 [2] : vector<4x4x64xf32> to vector<4x4xf32>
    %cst_18 = arith.constant 0.000000e+00 : f32
    %37 = vector.broadcast %cst_18 : f32 to vector<4x4xf32>
    %38 = arith.maximumf %36, %37 : vector<4x4xf32>
    %39 = vector.shape_cast %38 : vector<4x4xf32> to vector<4x1x4xf32>
    %40 = vector.shape_cast %30 : vector<64x4xf32> to vector<1x64x4xf32>
    %41 = vector.broadcast %39 : vector<4x1x4xf32> to vector<4x64x4xf32>
    %42 = vector.broadcast %40 : vector<1x64x4xf32> to vector<4x64x4xf32>
    %43 = arith.mulf %41, %42 : vector<4x64x4xf32>
    %cst_19 = arith.constant dense<0.000000e+00> : vector<4x64xf32>
    %44 = vector.multi_reduction <add>, %43, %cst_19 [2] : vector<4x64x4xf32> to vector<4x64xf32>
    %45 = vector.shape_cast %44 : vector<4x64xf32> to vector<4x64x1xf32>
    %cst_20 = arith.constant 0.000000e+00 : f32
    %46 = vector.broadcast %cst_20 : f32 to vector<4x64x1xf32>
    %47 = arith.subf %46, %45 : vector<4x64x1xf32>
    %48 = math.exp %47 : vector<4x64x1xf32>
    %cst_21 = arith.constant 1.000000e+00 : f32
    %49 = vector.broadcast %cst_21 : f32 to vector<4x64x1xf32>
    %50 = arith.addf %49, %48 : vector<4x64x1xf32>
    %cst_22 = arith.constant 1.000000e+00 : f32
    %51 = vector.broadcast %cst_22 : f32 to vector<4x64x1xf32>
    %52 = arith.divf %51, %50 : vector<4x64x1xf32>
    %cst_23 = arith.constant 0.000000e+00 : f32
    %53 = vector.shape_cast %4 : vector<4x1x16xi1> to vector<4x1x16xi1>
    %54 = vector.broadcast %53 : vector<4x1x16xi1> to vector<4x64x16xi1>
    %55 = vector.broadcast %cst_23 : f32 to vector<4x64x16xf32>
    %56 = vector.shape_cast %52 : vector<4x64x1xf32> to vector<4x64x1xf32>
    %57 = vector.broadcast %56 : vector<4x64x1xf32> to vector<4x64x16xf32>
    %58 = arith.select %54, %55, %57 : vector<4x64x16xi1>, vector<4x64x16xf32>
    %59 = arith.mulf %0, %58 : vector<4x64x16xf32>
    %cst_24 = arith.constant 0.000000e+00 : f32
    %60 = vector.broadcast %cst_24 : f32 to vector<4x64x3xf32>
    %c0_25 = arith.constant 0 : index
    %c0_26 = arith.constant 0 : index
    %c0_27 = arith.constant 0 : index
    %61 = vector.load %arg11[%c0_25, %c0_26, %c0_27] : memref<4x64x22xf32, #tpu.memory_space<vmem>>, vector<4x64x3xf32>
    tpu.vector_store %arg11[%c0_25, %c0_26, %c0_27], %60 {strides = array<i32>} : memref<4x64x22xf32, #tpu.memory_space<vmem>>, vector<4x64x3xf32>,
    %c0_28 = arith.constant 0 : index
    %c0_29 = arith.constant 0 : index
    %c19 = arith.constant 19 : index
    %62 = vector.load %arg11[%c0_28, %c0_29, %c19] : memref<4x64x22xf32, #tpu.memory_space<vmem>>, vector<4x64x3xf32>
    tpu.vector_store %arg11[%c0_28, %c0_29, %c19], %60 {strides = array<i32>} : memref<4x64x22xf32, #tpu.memory_space<vmem>>, vector<4x64x3xf32>,
    %c0_30 = arith.constant 0 : index
    %c0_31 = arith.constant 0 : index
    %c3 = arith.constant 3 : index
    %63 = vector.load %arg11[%c0_30, %c0_31, %c3] : memref<4x64x22xf32, #tpu.memory_space<vmem>>, vector<4x64x16xf32>
    tpu.vector_store %arg11[%c0_30, %c0_31, %c3], %59 {strides = array<i32>} : memref<4x64x22xf32, #tpu.memory_space<vmem>>, vector<4x64x16xf32>,
    %c0_32 = arith.constant 0 : index
    %c0_33 = arith.constant 0 : index
    %c0_34 = arith.constant 0 : index
    %64 = vector.load %arg6[%c0_32, %c0_33, %c0_34] : memref<4x64x7xf32, #tpu.memory_space<vmem>>, vector<4x64x7xf32>
    %c0_35 = arith.constant 0 : index
    %c0_36 = arith.constant 0 : index
    %65 = vector.load %arg7[%c0_35, %c0_36] : memref<4x7xf32, #tpu.memory_space<vmem>>, vector<4x7xf32>
    %cst_37 = arith.constant 0.000000e+00 : f32
    %66 = vector.broadcast %cst_37 : f32 to vector<4x16xf32>
    %c0_38 = arith.constant 0 : index
    %67 = memref.load %arg8[%c0_38] : memref<4xf32, #tpu.memory_space<smem>>
    %68 = vector.broadcast %67 : f32 to vector<4x16xf32>
    %69 = arith.addf %66, %68 : vector<4x16xf32>
    %cst_39 = arith.constant 0.000000e+00 : f32
    %70 = vector.broadcast %cst_39 : f32 to vector<4x16xf32>
    %c1 = arith.constant 1 : index
    %71 = memref.load %arg8[%c1] : memref<4xf32, #tpu.memory_space<smem>>
    %72 = vector.broadcast %71 : f32 to vector<4x16xf32>
    %73 = arith.addf %70, %72 : vector<4x16xf32>
    %cst_40 = arith.constant 0.000000e+00 : f32
    %74 = vector.broadcast %cst_40 : f32 to vector<4x16xf32>
    %c2 = arith.constant 2 : index
    %75 = memref.load %arg8[%c2] : memref<4xf32, #tpu.memory_space<smem>>
    %76 = vector.broadcast %75 : f32 to vector<4x16xf32>
    %77 = arith.addf %74, %76 : vector<4x16xf32>
    %cst_41 = arith.constant 0.000000e+00 : f32
    %78 = vector.broadcast %cst_41 : f32 to vector<4x16xf32>
    %c3_42 = arith.constant 3 : index
    %79 = memref.load %arg8[%c3_42] : memref<4xf32, #tpu.memory_space<smem>>
    %80 = vector.broadcast %79 : f32 to vector<4x16xf32>
    %81 = arith.addf %78, %80 : vector<4x16xf32>
    %c0_43 = arith.constant 0 : index
    %c0_44 = arith.constant 0 : index
    %c0_45 = arith.constant 0 : index
    %82 = vector.load %arg11[%c0_43, %c0_44, %c0_45] : memref<4x64x22xf32, #tpu.memory_space<vmem>>, vector<4x64x16xf32>
    %83 = vector.extract_strided_slice %64 {offsets = [0, 0, 0], sizes = [1, 64, 1], strides = [1, 1, 1]} : vector<4x64x7xf32> to vector<1x64x1xf32>
    %84 = vector.shape_cast %83 : vector<1x64x1xf32> to vector<64x1xf32>
    %85 = vector.shape_cast %84 : vector<64x1xf32> to vector<1x64x1xf32>
    %86 = vector.broadcast %85 : vector<1x64x1xf32> to vector<4x64x16xf32>
    %87 = arith.mulf %82, %86 : vector<4x64x16xf32>
    %cst_46 = arith.constant dense<0.000000e+00> : vector<4x16xf32>
    %88 = vector.multi_reduction <add>, %87, %cst_46 [1] : vector<4x64x16xf32> to vector<4x16xf32>
    %89 = arith.addf %69, %88 : vector<4x16xf32>
    %90 = vector.extract_strided_slice %64 {offsets = [1, 0, 0], sizes = [1, 64, 1], strides = [1, 1, 1]} : vector<4x64x7xf32> to vector<1x64x1xf32>
    %91 = vector.shape_cast %90 : vector<1x64x1xf32> to vector<64x1xf32>
    %92 = vector.shape_cast %91 : vector<64x1xf32> to vector<1x64x1xf32>
    %93 = vector.broadcast %92 : vector<1x64x1xf32> to vector<4x64x16xf32>
    %94 = arith.mulf %82, %93 : vector<4x64x16xf32>
    %cst_47 = arith.constant dense<0.000000e+00> : vector<4x16xf32>
    %95 = vector.multi_reduction <add>, %94, %cst_47 [1] : vector<4x64x16xf32> to vector<4x16xf32>
    %96 = arith.addf %73, %95 : vector<4x16xf32>
    %97 = vector.extract_strided_slice %64 {offsets = [2, 0, 0], sizes = [1, 64, 1], strides = [1, 1, 1]} : vector<4x64x7xf32> to vector<1x64x1xf32>
    %98 = vector.shape_cast %97 : vector<1x64x1xf32> to vector<64x1xf32>
    %99 = vector.shape_cast %98 : vector<64x1xf32> to vector<1x64x1xf32>
    %100 = vector.broadcast %99 : vector<1x64x1xf32> to vector<4x64x16xf32>
    %101 = arith.mulf %82, %100 : vector<4x64x16xf32>
    %cst_48 = arith.constant dense<0.000000e+00> : vector<4x16xf32>
    %102 = vector.multi_reduction <add>, %101, %cst_48 [1] : vector<4x64x16xf32> to vector<4x16xf32>
    %103 = arith.addf %77, %102 : vector<4x16xf32>
    %104 = vector.extract_strided_slice %64 {offsets = [3, 0, 0], sizes = [1, 64, 1], strides = [1, 1, 1]} : vector<4x64x7xf32> to vector<1x64x1xf32>
    %105 = vector.shape_cast %104 : vector<1x64x1xf32> to vector<64x1xf32>
    %106 = vector.shape_cast %105 : vector<64x1xf32> to vector<1x64x1xf32>
    %107 = vector.broadcast %106 : vector<1x64x1xf32> to vector<4x64x16xf32>
    %108 = arith.mulf %82, %107 : vector<4x64x16xf32>
    %cst_49 = arith.constant dense<0.000000e+00> : vector<4x16xf32>
    %109 = vector.multi_reduction <add>, %108, %cst_49 [1] : vector<4x64x16xf32> to vector<4x16xf32>
    %110 = arith.addf %81, %109 : vector<4x16xf32>
    %c0_50 = arith.constant 0 : index
    %c0_51 = arith.constant 0 : index
    %c1_52 = arith.constant 1 : index
    %111 = vector.load %arg11[%c0_50, %c0_51, %c1_52] : memref<4x64x22xf32, #tpu.memory_space<vmem>>, vector<4x64x16xf32>
    %112 = vector.extract_strided_slice %64 {offsets = [0, 0, 1], sizes = [1, 64, 1], strides = [1, 1, 1]} : vector<4x64x7xf32> to vector<1x64x1xf32>
    %113 = vector.shape_cast %112 : vector<1x64x1xf32> to vector<64x1xf32>
    %114 = vector.shape_cast %113 : vector<64x1xf32> to vector<1x64x1xf32>
    %115 = vector.broadcast %114 : vector<1x64x1xf32> to vector<4x64x16xf32>
    %116 = arith.mulf %111, %115 : vector<4x64x16xf32>
    %cst_53 = arith.constant dense<0.000000e+00> : vector<4x16xf32>
    %117 = vector.multi_reduction <add>, %116, %cst_53 [1] : vector<4x64x16xf32> to vector<4x16xf32>
    %118 = arith.addf %89, %117 : vector<4x16xf32>
    %119 = vector.extract_strided_slice %64 {offsets = [1, 0, 1], sizes = [1, 64, 1], strides = [1, 1, 1]} : vector<4x64x7xf32> to vector<1x64x1xf32>
    %120 = vector.shape_cast %119 : vector<1x64x1xf32> to vector<64x1xf32>
    %121 = vector.shape_cast %120 : vector<64x1xf32> to vector<1x64x1xf32>
    %122 = vector.broadcast %121 : vector<1x64x1xf32> to vector<4x64x16xf32>
    %123 = arith.mulf %111, %122 : vector<4x64x16xf32>
    %cst_54 = arith.constant dense<0.000000e+00> : vector<4x16xf32>
    %124 = vector.multi_reduction <add>, %123, %cst_54 [1] : vector<4x64x16xf32> to vector<4x16xf32>
    %125 = arith.addf %96, %124 : vector<4x16xf32>
    %126 = vector.extract_strided_slice %64 {offsets = [2, 0, 1], sizes = [1, 64, 1], strides = [1, 1, 1]} : vector<4x64x7xf32> to vector<1x64x1xf32>
    %127 = vector.shape_cast %126 : vector<1x64x1xf32> to vector<64x1xf32>
    %128 = vector.shape_cast %127 : vector<64x1xf32> to vector<1x64x1xf32>
    %129 = vector.broadcast %128 : vector<1x64x1xf32> to vector<4x64x16xf32>
    %130 = arith.mulf %111, %129 : vector<4x64x16xf32>
    %cst_55 = arith.constant dense<0.000000e+00> : vector<4x16xf32>
    %131 = vector.multi_reduction <add>, %130, %cst_55 [1] : vector<4x64x16xf32> to vector<4x16xf32>
    %132 = arith.addf %103, %131 : vector<4x16xf32>
    %133 = vector.extract_strided_slice %64 {offsets = [3, 0, 1], sizes = [1, 64, 1], strides = [1, 1, 1]} : vector<4x64x7xf32> to vector<1x64x1xf32>
    %134 = vector.shape_cast %133 : vector<1x64x1xf32> to vector<64x1xf32>
    %135 = vector.shape_cast %134 : vector<64x1xf32> to vector<1x64x1xf32>
    %136 = vector.broadcast %135 : vector<1x64x1xf32> to vector<4x64x16xf32>
    %137 = arith.mulf %111, %136 : vector<4x64x16xf32>
    %cst_56 = arith.constant dense<0.000000e+00> : vector<4x16xf32>
    %138 = vector.multi_reduction <add>, %137, %cst_56 [1] : vector<4x64x16xf32> to vector<4x16xf32>
    %139 = arith.addf %110, %138 : vector<4x16xf32>
    %c0_57 = arith.constant 0 : index
    %c0_58 = arith.constant 0 : index
    %c2_59 = arith.constant 2 : index
    %140 = vector.load %arg11[%c0_57, %c0_58, %c2_59] : memref<4x64x22xf32, #tpu.memory_space<vmem>>, vector<4x64x16xf32>
    %141 = vector.extract_strided_slice %64 {offsets = [0, 0, 2], sizes = [1, 64, 1], strides = [1, 1, 1]} : vector<4x64x7xf32> to vector<1x64x1xf32>
    %142 = vector.shape_cast %141 : vector<1x64x1xf32> to vector<64x1xf32>
    %143 = vector.shape_cast %142 : vector<64x1xf32> to vector<1x64x1xf32>
    %144 = vector.broadcast %143 : vector<1x64x1xf32> to vector<4x64x16xf32>
    %145 = arith.mulf %140, %144 : vector<4x64x16xf32>
    %cst_60 = arith.constant dense<0.000000e+00> : vector<4x16xf32>
    %146 = vector.multi_reduction <add>, %145, %cst_60 [1] : vector<4x64x16xf32> to vector<4x16xf32>
    %147 = arith.addf %118, %146 : vector<4x16xf32>
    %148 = vector.extract_strided_slice %64 {offsets = [1, 0, 2], sizes = [1, 64, 1], strides = [1, 1, 1]} : vector<4x64x7xf32> to vector<1x64x1xf32>
    %149 = vector.shape_cast %148 : vector<1x64x1xf32> to vector<64x1xf32>
    %150 = vector.shape_cast %149 : vector<64x1xf32> to vector<1x64x1xf32>
    %151 = vector.broadcast %150 : vector<1x64x1xf32> to vector<4x64x16xf32>
    %152 = arith.mulf %140, %151 : vector<4x64x16xf32>
    %cst_61 = arith.constant dense<0.000000e+00> : vector<4x16xf32>
    %153 = vector.multi_reduction <add>, %152, %cst_61 [1] : vector<4x64x16xf32> to vector<4x16xf32>
    %154 = arith.addf %125, %153 : vector<4x16xf32>
    %155 = vector.extract_strided_slice %64 {offsets = [2, 0, 2], sizes = [1, 64, 1], strides = [1, 1, 1]} : vector<4x64x7xf32> to vector<1x64x1xf32>
    %156 = vector.shape_cast %155 : vector<1x64x1xf32> to vector<64x1xf32>
    %157 = vector.shape_cast %156 : vector<64x1xf32> to vector<1x64x1xf32>
    %158 = vector.broadcast %157 : vector<1x64x1xf32> to vector<4x64x16xf32>
    %159 = arith.mulf %140, %158 : vector<4x64x16xf32>
    %cst_62 = arith.constant dense<0.000000e+00> : vector<4x16xf32>
    %160 = vector.multi_reduction <add>, %159, %cst_62 [1] : vector<4x64x16xf32> to vector<4x16xf32>
    %161 = arith.addf %132, %160 : vector<4x16xf32>
    %162 = vector.extract_strided_slice %64 {offsets = [3, 0, 2], sizes = [1, 64, 1], strides = [1, 1, 1]} : vector<4x64x7xf32> to vector<1x64x1xf32>
    %163 = vector.shape_cast %162 : vector<1x64x1xf32> to vector<64x1xf32>
    %164 = vector.shape_cast %163 : vector<64x1xf32> to vector<1x64x1xf32>
    %165 = vector.broadcast %164 : vector<1x64x1xf32> to vector<4x64x16xf32>
    %166 = arith.mulf %140, %165 : vector<4x64x16xf32>
    %cst_63 = arith.constant dense<0.000000e+00> : vector<4x16xf32>
    %167 = vector.multi_reduction <add>, %166, %cst_63 [1] : vector<4x64x16xf32> to vector<4x16xf32>
    %168 = arith.addf %139, %167 : vector<4x16xf32>
    %c0_64 = arith.constant 0 : index
    %c0_65 = arith.constant 0 : index
    %c3_66 = arith.constant 3 : index
    %169 = vector.load %arg11[%c0_64, %c0_65, %c3_66] : memref<4x64x22xf32, #tpu.memory_space<vmem>>, vector<4x64x16xf32>
    %170 = vector.extract_strided_slice %64 {offsets = [0, 0, 3], sizes = [1, 64, 1], strides = [1, 1, 1]} : vector<4x64x7xf32> to vector<1x64x1xf32>
    %171 = vector.shape_cast %170 : vector<1x64x1xf32> to vector<64x1xf32>
    %172 = vector.shape_cast %171 : vector<64x1xf32> to vector<1x64x1xf32>
    %173 = vector.broadcast %172 : vector<1x64x1xf32> to vector<4x64x16xf32>
    %174 = arith.mulf %169, %173 : vector<4x64x16xf32>
    %cst_67 = arith.constant dense<0.000000e+00> : vector<4x16xf32>
    %175 = vector.multi_reduction <add>, %174, %cst_67 [1] : vector<4x64x16xf32> to vector<4x16xf32>
    %176 = arith.addf %147, %175 : vector<4x16xf32>
    %177 = vector.extract_strided_slice %64 {offsets = [1, 0, 3], sizes = [1, 64, 1], strides = [1, 1, 1]} : vector<4x64x7xf32> to vector<1x64x1xf32>
    %178 = vector.shape_cast %177 : vector<1x64x1xf32> to vector<64x1xf32>
    %179 = vector.shape_cast %178 : vector<64x1xf32> to vector<1x64x1xf32>
    %180 = vector.broadcast %179 : vector<1x64x1xf32> to vector<4x64x16xf32>
    %181 = arith.mulf %169, %180 : vector<4x64x16xf32>
    %cst_68 = arith.constant dense<0.000000e+00> : vector<4x16xf32>
    %182 = vector.multi_reduction <add>, %181, %cst_68 [1] : vector<4x64x16xf32> to vector<4x16xf32>
    %183 = arith.addf %154, %182 : vector<4x16xf32>
    %184 = vector.extract_strided_slice %64 {offsets = [2, 0, 3], sizes = [1, 64, 1], strides = [1, 1, 1]} : vector<4x64x7xf32> to vector<1x64x1xf32>
    %185 = vector.shape_cast %184 : vector<1x64x1xf32> to vector<64x1xf32>
    %186 = vector.shape_cast %185 : vector<64x1xf32> to vector<1x64x1xf32>
    %187 = vector.broadcast %186 : vector<1x64x1xf32> to vector<4x64x16xf32>
    %188 = arith.mulf %169, %187 : vector<4x64x16xf32>
    %cst_69 = arith.constant dense<0.000000e+00> : vector<4x16xf32>
    %189 = vector.multi_reduction <add>, %188, %cst_69 [1] : vector<4x64x16xf32> to vector<4x16xf32>
    %190 = arith.addf %161, %189 : vector<4x16xf32>
    %191 = vector.extract_strided_slice %64 {offsets = [3, 0, 3], sizes = [1, 64, 1], strides = [1, 1, 1]} : vector<4x64x7xf32> to vector<1x64x1xf32>
    %192 = vector.shape_cast %191 : vector<1x64x1xf32> to vector<64x1xf32>
    %193 = vector.shape_cast %192 : vector<64x1xf32> to vector<1x64x1xf32>
    %194 = vector.broadcast %193 : vector<1x64x1xf32> to vector<4x64x16xf32>
    %195 = arith.mulf %169, %194 : vector<4x64x16xf32>
    %cst_70 = arith.constant dense<0.000000e+00> : vector<4x16xf32>
    %196 = vector.multi_reduction <add>, %195, %cst_70 [1] : vector<4x64x16xf32> to vector<4x16xf32>
    %197 = arith.addf %168, %196 : vector<4x16xf32>
    %c0_71 = arith.constant 0 : index
    %c0_72 = arith.constant 0 : index
    %c4 = arith.constant 4 : index
    %198 = vector.load %arg11[%c0_71, %c0_72, %c4] : memref<4x64x22xf32, #tpu.memory_space<vmem>>, vector<4x64x16xf32>
    %199 = vector.extract_strided_slice %64 {offsets = [0, 0, 4], sizes = [1, 64, 1], strides = [1, 1, 1]} : vector<4x64x7xf32> to vector<1x64x1xf32>
    %200 = vector.shape_cast %199 : vector<1x64x1xf32> to vector<64x1xf32>
    %201 = vector.shape_cast %200 : vector<64x1xf32> to vector<1x64x1xf32>
    %202 = vector.broadcast %201 : vector<1x64x1xf32> to vector<4x64x16xf32>
    %203 = arith.mulf %198, %202 : vector<4x64x16xf32>
    %cst_73 = arith.constant dense<0.000000e+00> : vector<4x16xf32>
    %204 = vector.multi_reduction <add>, %203, %cst_73 [1] : vector<4x64x16xf32> to vector<4x16xf32>
    %205 = arith.addf %176, %204 : vector<4x16xf32>
    %206 = vector.extract_strided_slice %64 {offsets = [1, 0, 4], sizes = [1, 64, 1], strides = [1, 1, 1]} : vector<4x64x7xf32> to vector<1x64x1xf32>
    %207 = vector.shape_cast %206 : vector<1x64x1xf32> to vector<64x1xf32>
    %208 = vector.shape_cast %207 : vector<64x1xf32> to vector<1x64x1xf32>
    %209 = vector.broadcast %208 : vector<1x64x1xf32> to vector<4x64x16xf32>
    %210 = arith.mulf %198, %209 : vector<4x64x16xf32>
    %cst_74 = arith.constant dense<0.000000e+00> : vector<4x16xf32>
    %211 = vector.multi_reduction <add>, %210, %cst_74 [1] : vector<4x64x16xf32> to vector<4x16xf32>
    %212 = arith.addf %183, %211 : vector<4x16xf32>
    %213 = vector.extract_strided_slice %64 {offsets = [2, 0, 4], sizes = [1, 64, 1], strides = [1, 1, 1]} : vector<4x64x7xf32> to vector<1x64x1xf32>
    %214 = vector.shape_cast %213 : vector<1x64x1xf32> to vector<64x1xf32>
    %215 = vector.shape_cast %214 : vector<64x1xf32> to vector<1x64x1xf32>
    %216 = vector.broadcast %215 : vector<1x64x1xf32> to vector<4x64x16xf32>
    %217 = arith.mulf %198, %216 : vector<4x64x16xf32>
    %cst_75 = arith.constant dense<0.000000e+00> : vector<4x16xf32>
    %218 = vector.multi_reduction <add>, %217, %cst_75 [1] : vector<4x64x16xf32> to vector<4x16xf32>
    %219 = arith.addf %190, %218 : vector<4x16xf32>
    %220 = vector.extract_strided_slice %64 {offsets = [3, 0, 4], sizes = [1, 64, 1], strides = [1, 1, 1]} : vector<4x64x7xf32> to vector<1x64x1xf32>
    %221 = vector.shape_cast %220 : vector<1x64x1xf32> to vector<64x1xf32>
    %222 = vector.shape_cast %221 : vector<64x1xf32> to vector<1x64x1xf32>
    %223 = vector.broadcast %222 : vector<1x64x1xf32> to vector<4x64x16xf32>
    %224 = arith.mulf %198, %223 : vector<4x64x16xf32>
    %cst_76 = arith.constant dense<0.000000e+00> : vector<4x16xf32>
    %225 = vector.multi_reduction <add>, %224, %cst_76 [1] : vector<4x64x16xf32> to vector<4x16xf32>
    %226 = arith.addf %197, %225 : vector<4x16xf32>
    %c0_77 = arith.constant 0 : index
    %c0_78 = arith.constant 0 : index
    %c5 = arith.constant 5 : index
    %227 = vector.load %arg11[%c0_77, %c0_78, %c5] : memref<4x64x22xf32, #tpu.memory_space<vmem>>, vector<4x64x16xf32>
    %228 = vector.extract_strided_slice %64 {offsets = [0, 0, 5], sizes = [1, 64, 1], strides = [1, 1, 1]} : vector<4x64x7xf32> to vector<1x64x1xf32>
    %229 = vector.shape_cast %228 : vector<1x64x1xf32> to vector<64x1xf32>
    %230 = vector.shape_cast %229 : vector<64x1xf32> to vector<1x64x1xf32>
    %231 = vector.broadcast %230 : vector<1x64x1xf32> to vector<4x64x16xf32>
    %232 = arith.mulf %227, %231 : vector<4x64x16xf32>
    %cst_79 = arith.constant dense<0.000000e+00> : vector<4x16xf32>
    %233 = vector.multi_reduction <add>, %232, %cst_79 [1] : vector<4x64x16xf32> to vector<4x16xf32>
    %234 = arith.addf %205, %233 : vector<4x16xf32>
    %235 = vector.extract_strided_slice %64 {offsets = [1, 0, 5], sizes = [1, 64, 1], strides = [1, 1, 1]} : vector<4x64x7xf32> to vector<1x64x1xf32>
    %236 = vector.shape_cast %235 : vector<1x64x1xf32> to vector<64x1xf32>
    %237 = vector.shape_cast %236 : vector<64x1xf32> to vector<1x64x1xf32>
    %238 = vector.broadcast %237 : vector<1x64x1xf32> to vector<4x64x16xf32>
    %239 = arith.mulf %227, %238 : vector<4x64x16xf32>
    %cst_80 = arith.constant dense<0.000000e+00> : vector<4x16xf32>
    %240 = vector.multi_reduction <add>, %239, %cst_80 [1] : vector<4x64x16xf32> to vector<4x16xf32>
    %241 = arith.addf %212, %240 : vector<4x16xf32>
    %242 = vector.extract_strided_slice %64 {offsets = [2, 0, 5], sizes = [1, 64, 1], strides = [1, 1, 1]} : vector<4x64x7xf32> to vector<1x64x1xf32>
    %243 = vector.shape_cast %242 : vector<1x64x1xf32> to vector<64x1xf32>
    %244 = vector.shape_cast %243 : vector<64x1xf32> to vector<1x64x1xf32>
    %245 = vector.broadcast %244 : vector<1x64x1xf32> to vector<4x64x16xf32>
    %246 = arith.mulf %227, %245 : vector<4x64x16xf32>
    %cst_81 = arith.constant dense<0.000000e+00> : vector<4x16xf32>
    %247 = vector.multi_reduction <add>, %246, %cst_81 [1] : vector<4x64x16xf32> to vector<4x16xf32>
    %248 = arith.addf %219, %247 : vector<4x16xf32>
    %249 = vector.extract_strided_slice %64 {offsets = [3, 0, 5], sizes = [1, 64, 1], strides = [1, 1, 1]} : vector<4x64x7xf32> to vector<1x64x1xf32>
    %250 = vector.shape_cast %249 : vector<1x64x1xf32> to vector<64x1xf32>
    %251 = vector.shape_cast %250 : vector<64x1xf32> to vector<1x64x1xf32>
    %252 = vector.broadcast %251 : vector<1x64x1xf32> to vector<4x64x16xf32>
    %253 = arith.mulf %227, %252 : vector<4x64x16xf32>
    %cst_82 = arith.constant dense<0.000000e+00> : vector<4x16xf32>
    %254 = vector.multi_reduction <add>, %253, %cst_82 [1] : vector<4x64x16xf32> to vector<4x16xf32>
    %255 = arith.addf %226, %254 : vector<4x16xf32>
    %c0_83 = arith.constant 0 : index
    %c0_84 = arith.constant 0 : index
    %c6 = arith.constant 6 : index
    %256 = vector.load %arg11[%c0_83, %c0_84, %c6] : memref<4x64x22xf32, #tpu.memory_space<vmem>>, vector<4x64x16xf32>
    %257 = vector.extract_strided_slice %64 {offsets = [0, 0, 6], sizes = [1, 64, 1], strides = [1, 1, 1]} : vector<4x64x7xf32> to vector<1x64x1xf32>
    %258 = vector.shape_cast %257 : vector<1x64x1xf32> to vector<64x1xf32>
    %259 = vector.shape_cast %258 : vector<64x1xf32> to vector<1x64x1xf32>
    %260 = vector.broadcast %259 : vector<1x64x1xf32> to vector<4x64x16xf32>
    %261 = arith.mulf %256, %260 : vector<4x64x16xf32>
    %cst_85 = arith.constant dense<0.000000e+00> : vector<4x16xf32>
    %262 = vector.multi_reduction <add>, %261, %cst_85 [1] : vector<4x64x16xf32> to vector<4x16xf32>
    %263 = arith.addf %234, %262 : vector<4x16xf32>
    %264 = vector.extract_strided_slice %64 {offsets = [1, 0, 6], sizes = [1, 64, 1], strides = [1, 1, 1]} : vector<4x64x7xf32> to vector<1x64x1xf32>
    %265 = vector.shape_cast %264 : vector<1x64x1xf32> to vector<64x1xf32>
    %266 = vector.shape_cast %265 : vector<64x1xf32> to vector<1x64x1xf32>
    %267 = vector.broadcast %266 : vector<1x64x1xf32> to vector<4x64x16xf32>
    %268 = arith.mulf %256, %267 : vector<4x64x16xf32>
    %cst_86 = arith.constant dense<0.000000e+00> : vector<4x16xf32>
    %269 = vector.multi_reduction <add>, %268, %cst_86 [1] : vector<4x64x16xf32> to vector<4x16xf32>
    %270 = arith.addf %241, %269 : vector<4x16xf32>
    %271 = vector.extract_strided_slice %64 {offsets = [2, 0, 6], sizes = [1, 64, 1], strides = [1, 1, 1]} : vector<4x64x7xf32> to vector<1x64x1xf32>
    %272 = vector.shape_cast %271 : vector<1x64x1xf32> to vector<64x1xf32>
    %273 = vector.shape_cast %272 : vector<64x1xf32> to vector<1x64x1xf32>
    %274 = vector.broadcast %273 : vector<1x64x1xf32> to vector<4x64x16xf32>
    %275 = arith.mulf %256, %274 : vector<4x64x16xf32>
    %cst_87 = arith.constant dense<0.000000e+00> : vector<4x16xf32>
    %276 = vector.multi_reduction <add>, %275, %cst_87 [1] : vector<4x64x16xf32> to vector<4x16xf32>
    %277 = arith.addf %248, %276 : vector<4x16xf32>
    %278 = vector.extract_strided_slice %64 {offsets = [3, 0, 6], sizes = [1, 64, 1], strides = [1, 1, 1]} : vector<4x64x7xf32> to vector<1x64x1xf32>
    %279 = vector.shape_cast %278 : vector<1x64x1xf32> to vector<64x1xf32>
    %280 = vector.shape_cast %279 : vector<64x1xf32> to vector<1x64x1xf32>
    %281 = vector.broadcast %280 : vector<1x64x1xf32> to vector<4x64x16xf32>
    %282 = arith.mulf %256, %281 : vector<4x64x16xf32>
    %cst_88 = arith.constant dense<0.000000e+00> : vector<4x16xf32>
    %283 = vector.multi_reduction <add>, %282, %cst_88 [1] : vector<4x64x16xf32> to vector<4x16xf32>
    %284 = arith.addf %255, %283 : vector<4x16xf32>
    %cst_89 = arith.constant 0.000000e+00 : f32
    %285 = vector.broadcast %cst_89 : f32 to vector<4x4x3xf32>
    %c0_90 = arith.constant 0 : index
    %c0_91 = arith.constant 0 : index
    %c0_92 = arith.constant 0 : index
    %286 = vector.load %arg12[%c0_90, %c0_91, %c0_92] : memref<4x4x22xf32, #tpu.memory_space<vmem>>, vector<4x4x3xf32>
    tpu.vector_store %arg12[%c0_90, %c0_91, %c0_92], %285 {strides = array<i32>} : memref<4x4x22xf32, #tpu.memory_space<vmem>>, vector<4x4x3xf32>,
    %c0_93 = arith.constant 0 : index
    %c0_94 = arith.constant 0 : index
    %c19_95 = arith.constant 19 : index
    %287 = vector.load %arg12[%c0_93, %c0_94, %c19_95] : memref<4x4x22xf32, #tpu.memory_space<vmem>>, vector<4x4x3xf32>
    tpu.vector_store %arg12[%c0_93, %c0_94, %c19_95], %285 {strides = array<i32>} : memref<4x4x22xf32, #tpu.memory_space<vmem>>, vector<4x4x3xf32>,
    %cst_96 = arith.constant 0.000000e+00 : f32
    %288 = vector.broadcast %cst_96 : f32 to vector<4x16xf32>
    %289 = arith.select %7, %288, %263 : vector<4x16xi1>, vector<4x16xf32>
    %cst_97 = arith.constant 0.000000e+00 : f32
    %290 = vector.broadcast %cst_97 : f32 to vector<4x16xf32>
    %291 = arith.maximumf %289, %290 : vector<4x16xf32>
    %c0_98 = arith.constant 0 : index
    %c0_99 = arith.constant 0 : index
    %c3_100 = arith.constant 3 : index
    %292 = vector.load %arg12[%c0_98, %c0_99, %c3_100] : memref<4x4x22xf32, #tpu.memory_space<vmem>>, vector<1x4x16xf32>
    %293 = vector.shape_cast %292 : vector<1x4x16xf32> to vector<4x16xf32>
    %294 = vector.shape_cast %291 : vector<4x16xf32> to vector<1x4x16xf32>
    tpu.vector_store %arg12[%c0_98, %c0_99, %c3_100], %294 {strides = array<i32>} : memref<4x4x22xf32, #tpu.memory_space<vmem>>, vector<1x4x16xf32>,
    %cst_101 = arith.constant 0.000000e+00 : f32
    %295 = vector.broadcast %cst_101 : f32 to vector<4x16xf32>
    %296 = arith.select %7, %295, %270 : vector<4x16xi1>, vector<4x16xf32>
    %cst_102 = arith.constant 0.000000e+00 : f32
    %297 = vector.broadcast %cst_102 : f32 to vector<4x16xf32>
    %298 = arith.maximumf %296, %297 : vector<4x16xf32>
    %c1_103 = arith.constant 1 : index
    %c0_104 = arith.constant 0 : index
    %c3_105 = arith.constant 3 : index
    %299 = vector.load %arg12[%c1_103, %c0_104, %c3_105] : memref<4x4x22xf32, #tpu.memory_space<vmem>>, vector<1x4x16xf32>
    %300 = vector.shape_cast %299 : vector<1x4x16xf32> to vector<4x16xf32>
    %301 = vector.shape_cast %298 : vector<4x16xf32> to vector<1x4x16xf32>
    tpu.vector_store %arg12[%c1_103, %c0_104, %c3_105], %301 {strides = array<i32>} : memref<4x4x22xf32, #tpu.memory_space<vmem>>, vector<1x4x16xf32>,
    %cst_106 = arith.constant 0.000000e+00 : f32
    %302 = vector.broadcast %cst_106 : f32 to vector<4x16xf32>
    %303 = arith.select %7, %302, %277 : vector<4x16xi1>, vector<4x16xf32>
    %cst_107 = arith.constant 0.000000e+00 : f32
    %304 = vector.broadcast %cst_107 : f32 to vector<4x16xf32>
    %305 = arith.maximumf %303, %304 : vector<4x16xf32>
    %c2_108 = arith.constant 2 : index
    %c0_109 = arith.constant 0 : index
    %c3_110 = arith.constant 3 : index
    %306 = vector.load %arg12[%c2_108, %c0_109, %c3_110] : memref<4x4x22xf32, #tpu.memory_space<vmem>>, vector<1x4x16xf32>
    %307 = vector.shape_cast %306 : vector<1x4x16xf32> to vector<4x16xf32>
    %308 = vector.shape_cast %305 : vector<4x16xf32> to vector<1x4x16xf32>
    tpu.vector_store %arg12[%c2_108, %c0_109, %c3_110], %308 {strides = array<i32>} : memref<4x4x22xf32, #tpu.memory_space<vmem>>, vector<1x4x16xf32>,
    %cst_111 = arith.constant 0.000000e+00 : f32
    %309 = vector.broadcast %cst_111 : f32 to vector<4x16xf32>
    %310 = arith.select %7, %309, %284 : vector<4x16xi1>, vector<4x16xf32>
    %cst_112 = arith.constant 0.000000e+00 : f32
    %311 = vector.broadcast %cst_112 : f32 to vector<4x16xf32>
    %312 = arith.maximumf %310, %311 : vector<4x16xf32>
    %c3_113 = arith.constant 3 : index
    %c0_114 = arith.constant 0 : index
    %c3_115 = arith.constant 3 : index
    %313 = vector.load %arg12[%c3_113, %c0_114, %c3_115] : memref<4x4x22xf32, #tpu.memory_space<vmem>>, vector<1x4x16xf32>
    %314 = vector.shape_cast %313 : vector<1x4x16xf32> to vector<4x16xf32>
    %315 = vector.shape_cast %312 : vector<4x16xf32> to vector<1x4x16xf32>
    tpu.vector_store %arg12[%c3_113, %c0_114, %c3_115], %315 {strides = array<i32>} : memref<4x4x22xf32, #tpu.memory_space<vmem>>, vector<1x4x16xf32>,
    %cst_116 = arith.constant 0.000000e+00 : f32
    %316 = vector.broadcast %cst_116 : f32 to vector<4x16xf32>
    %c0_117 = arith.constant 0 : index
    %317 = memref.load %arg9[%c0_117] : memref<1xf32, #tpu.memory_space<smem>>
    %318 = vector.broadcast %317 : f32 to vector<4x16xf32>
    %319 = arith.addf %316, %318 : vector<4x16xf32>
    %c0_118 = arith.constant 0 : index
    %c0_119 = arith.constant 0 : index
    %c0_120 = arith.constant 0 : index
    %320 = vector.load %arg12[%c0_118, %c0_119, %c0_120] : memref<4x4x22xf32, #tpu.memory_space<vmem>>, vector<4x4x16xf32>
    %321 = vector.extract_strided_slice %65 {offsets = [0, 0], sizes = [4, 1], strides = [1, 1]} : vector<4x7xf32> to vector<4x1xf32>
    %322 = vector.shape_cast %321 : vector<4x1xf32> to vector<4x1x1xf32>
    %323 = vector.broadcast %322 : vector<4x1x1xf32> to vector<4x4x16xf32>
    %324 = arith.mulf %320, %323 : vector<4x4x16xf32>
    %cst_121 = arith.constant dense<0.000000e+00> : vector<4x16xf32>
    %325 = vector.multi_reduction <add>, %324, %cst_121 [0] : vector<4x4x16xf32> to vector<4x16xf32>
    %326 = arith.addf %319, %325 : vector<4x16xf32>
    %c0_122 = arith.constant 0 : index
    %c0_123 = arith.constant 0 : index
    %c1_124 = arith.constant 1 : index
    %327 = vector.load %arg12[%c0_122, %c0_123, %c1_124] : memref<4x4x22xf32, #tpu.memory_space<vmem>>, vector<4x4x16xf32>
    %328 = vector.extract_strided_slice %65 {offsets = [0, 1], sizes = [4, 1], strides = [1, 1]} : vector<4x7xf32> to vector<4x1xf32>
    %329 = vector.shape_cast %328 : vector<4x1xf32> to vector<4x1x1xf32>
    %330 = vector.broadcast %329 : vector<4x1x1xf32> to vector<4x4x16xf32>
    %331 = arith.mulf %327, %330 : vector<4x4x16xf32>
    %cst_125 = arith.constant dense<0.000000e+00> : vector<4x16xf32>
    %332 = vector.multi_reduction <add>, %331, %cst_125 [0] : vector<4x4x16xf32> to vector<4x16xf32>
    %333 = arith.addf %326, %332 : vector<4x16xf32>
    %c0_126 = arith.constant 0 : index
    %c0_127 = arith.constant 0 : index
    %c2_128 = arith.constant 2 : index
    %334 = vector.load %arg12[%c0_126, %c0_127, %c2_128] : memref<4x4x22xf32, #tpu.memory_space<vmem>>, vector<4x4x16xf32>
    %335 = vector.extract_strided_slice %65 {offsets = [0, 2], sizes = [4, 1], strides = [1, 1]} : vector<4x7xf32> to vector<4x1xf32>
    %336 = vector.shape_cast %335 : vector<4x1xf32> to vector<4x1x1xf32>
    %337 = vector.broadcast %336 : vector<4x1x1xf32> to vector<4x4x16xf32>
    %338 = arith.mulf %334, %337 : vector<4x4x16xf32>
    %cst_129 = arith.constant dense<0.000000e+00> : vector<4x16xf32>
    %339 = vector.multi_reduction <add>, %338, %cst_129 [0] : vector<4x4x16xf32> to vector<4x16xf32>
    %340 = arith.addf %333, %339 : vector<4x16xf32>
    %c0_130 = arith.constant 0 : index
    %c0_131 = arith.constant 0 : index
    %c3_132 = arith.constant 3 : index
    %341 = vector.load %arg12[%c0_130, %c0_131, %c3_132] : memref<4x4x22xf32, #tpu.memory_space<vmem>>, vector<4x4x16xf32>
    %342 = vector.extract_strided_slice %65 {offsets = [0, 3], sizes = [4, 1], strides = [1, 1]} : vector<4x7xf32> to vector<4x1xf32>
    %343 = vector.shape_cast %342 : vector<4x1xf32> to vector<4x1x1xf32>
    %344 = vector.broadcast %343 : vector<4x1x1xf32> to vector<4x4x16xf32>
    %345 = arith.mulf %341, %344 : vector<4x4x16xf32>
    %cst_133 = arith.constant dense<0.000000e+00> : vector<4x16xf32>
    %346 = vector.multi_reduction <add>, %345, %cst_133 [0] : vector<4x4x16xf32> to vector<4x16xf32>
    %347 = arith.addf %340, %346 : vector<4x16xf32>
    %c0_134 = arith.constant 0 : index
    %c0_135 = arith.constant 0 : index
    %c4_136 = arith.constant 4 : index
    %348 = vector.load %arg12[%c0_134, %c0_135, %c4_136] : memref<4x4x22xf32, #tpu.memory_space<vmem>>, vector<4x4x16xf32>
    %349 = vector.extract_strided_slice %65 {offsets = [0, 4], sizes = [4, 1], strides = [1, 1]} : vector<4x7xf32> to vector<4x1xf32>
    %350 = vector.shape_cast %349 : vector<4x1xf32> to vector<4x1x1xf32>
    %351 = vector.broadcast %350 : vector<4x1x1xf32> to vector<4x4x16xf32>
    %352 = arith.mulf %348, %351 : vector<4x4x16xf32>
    %cst_137 = arith.constant dense<0.000000e+00> : vector<4x16xf32>
    %353 = vector.multi_reduction <add>, %352, %cst_137 [0] : vector<4x4x16xf32> to vector<4x16xf32>
    %354 = arith.addf %347, %353 : vector<4x16xf32>
    %c0_138 = arith.constant 0 : index
    %c0_139 = arith.constant 0 : index
    %c5_140 = arith.constant 5 : index
    %355 = vector.load %arg12[%c0_138, %c0_139, %c5_140] : memref<4x4x22xf32, #tpu.memory_space<vmem>>, vector<4x4x16xf32>
    %356 = vector.extract_strided_slice %65 {offsets = [0, 5], sizes = [4, 1], strides = [1, 1]} : vector<4x7xf32> to vector<4x1xf32>
    %357 = vector.shape_cast %356 : vector<4x1xf32> to vector<4x1x1xf32>
    %358 = vector.broadcast %357 : vector<4x1x1xf32> to vector<4x4x16xf32>
    %359 = arith.mulf %355, %358 : vector<4x4x16xf32>
    %cst_141 = arith.constant dense<0.000000e+00> : vector<4x16xf32>
    %360 = vector.multi_reduction <add>, %359, %cst_141 [0] : vector<4x4x16xf32> to vector<4x16xf32>
    %361 = arith.addf %354, %360 : vector<4x16xf32>
    %c0_142 = arith.constant 0 : index
    %c0_143 = arith.constant 0 : index
    %c6_144 = arith.constant 6 : index
    %362 = vector.load %arg12[%c0_142, %c0_143, %c6_144] : memref<4x4x22xf32, #tpu.memory_space<vmem>>, vector<4x4x16xf32>
    %363 = vector.extract_strided_slice %65 {offsets = [0, 6], sizes = [4, 1], strides = [1, 1]} : vector<4x7xf32> to vector<4x1xf32>
    %364 = vector.shape_cast %363 : vector<4x1xf32> to vector<4x1x1xf32>
    %365 = vector.broadcast %364 : vector<4x1x1xf32> to vector<4x4x16xf32>
    %366 = arith.mulf %362, %365 : vector<4x4x16xf32>
    %cst_145 = arith.constant dense<0.000000e+00> : vector<4x16xf32>
    %367 = vector.multi_reduction <add>, %366, %cst_145 [0] : vector<4x4x16xf32> to vector<4x16xf32>
    %368 = arith.addf %361, %367 : vector<4x16xf32>
    %cst_146 = arith.constant -1.000000e+01 : f32
    %369 = vector.broadcast %cst_146 : f32 to vector<4x16xf32>
    %370 = arith.select %7, %369, %368 : vector<4x16xi1>, vector<4x16xf32>
    %cst_147 = arith.constant 0.000000e+00 : f32
    %371 = vector.broadcast %cst_147 : f32 to vector<4x16xf32>
    %372 = arith.subf %371, %370 : vector<4x16xf32>
    %373 = math.exp %372 : vector<4x16xf32>
    %cst_148 = arith.constant 1.000000e+00 : f32
    %374 = vector.broadcast %cst_148 : f32 to vector<4x16xf32>
    %375 = arith.addf %374, %373 : vector<4x16xf32>
    %cst_149 = arith.constant 1.000000e+00 : f32
    %376 = vector.broadcast %cst_149 : f32 to vector<4x16xf32>
    %377 = arith.divf %376, %375 : vector<4x16xf32>
    %c0_150 = arith.constant 0 : index
    %c0_151 = arith.constant 0 : index
    %c3_152 = arith.constant 3 : index
    %378 = vector.load %arg11[%c0_150, %c0_151, %c3_152] : memref<4x64x22xf32, #tpu.memory_space<vmem>>, vector<4x64x16xf32>
    %379 = vector.shape_cast %377 : vector<4x16xf32> to vector<4x1x16xf32>
    %380 = vector.broadcast %379 : vector<4x1x16xf32> to vector<4x64x16xf32>
    %381 = arith.mulf %378, %380 : vector<4x64x16xf32>
    %c0_153 = arith.constant 0 : index
    %c0_154 = arith.constant 0 : index
    %c0_155 = arith.constant 0 : index
    %382 = vector.load %arg10[%c0_153, %c0_154, %c0_155] : memref<4x64x16xf32, #tpu.memory_space<vmem>>, vector<4x64x16xf32>
    tpu.vector_store %arg10[%c0_153, %c0_154, %c0_155], %381 {strides = array<i32>} : memref<4x64x16xf32, #tpu.memory_space<vmem>>, vector<4x64x16xf32>,
    return
  }
  func.func @transform_0(%arg0: i32) -> (i32, i32, i32) {
    %c0_i32 = arith.constant 0 : i32
    %c0_i32_0 = arith.constant 0 : i32
    %c0_i32_1 = arith.constant 0 : i32
    return %arg0, %c0_i32, %c0_i32_0 : i32, i32, i32
  }
  func.func @transform_1(%arg0: i32) -> (i32, i32, i32) {
    %c0_i32 = arith.constant 0 : i32
    %c0_i32_0 = arith.constant 0 : i32
    %c0_i32_1 = arith.constant 0 : i32
    return %arg0, %c0_i32, %c0_i32_0 : i32, i32, i32
  }
  func.func @transform_2(%arg0: i32) -> (i32, i32) {
    %c0_i32 = arith.constant 0 : i32
    %c0_i32_0 = arith.constant 0 : i32
    %c0_i32_1 = arith.constant 0 : i32
    return %c0_i32, %c0_i32_0 : i32, i32
  }
  func.func @transform_3(%arg0: i32) -> (i32, i32) {
    %c0_i32 = arith.constant 0 : i32
    %c0_i32_0 = arith.constant 0 : i32
    %c0_i32_1 = arith.constant 0 : i32
    return %c0_i32, %c0_i32_0 : i32, i32
  }
  func.func @transform_4(%arg0: i32) -> (i32, i32) {
    %c0_i32 = arith.constant 0 : i32
    %c0_i32_0 = arith.constant 0 : i32
    %c0_i32_1 = arith.constant 0 : i32
    return %c0_i32, %c0_i32_0 : i32, i32
  }
  func.func @transform_5(%arg0: i32) -> (i32, i32, i32) {
    %c0_i32 = arith.constant 0 : i32
    %c0_i32_0 = arith.constant 0 : i32
    %c0_i32_1 = arith.constant 0 : i32
    %c0_i32_2 = arith.constant 0 : i32
    return %c0_i32, %c0_i32_0, %c0_i32_1 : i32, i32, i32
  }
  func.func @transform_6(%arg0: i32) -> (i32, i32) {
    %c0_i32 = arith.constant 0 : i32
    %c0_i32_0 = arith.constant 0 : i32
    %c0_i32_1 = arith.constant 0 : i32
    return %c0_i32, %c0_i32_0 : i32, i32
  }
  func.func @transform_7(%arg0: i32) -> i32 {
    %c0_i32 = arith.constant 0 : i32
    %c0_i32_0 = arith.constant 0 : i32
    return %c0_i32 : i32
  }
  func.func @transform_8(%arg0: i32) -> i32 {
    %c0_i32 = arith.constant 0 : i32
    %c0_i32_0 = arith.constant 0 : i32
    return %c0_i32 : i32
  }
  func.func @transform_9(%arg0: i32) -> (i32, i32, i32) {
    %c0_i32 = arith.constant 0 : i32
    %c0_i32_0 = arith.constant 0 : i32
    %c0_i32_1 = arith.constant 0 : i32
    return %arg0, %c0_i32, %c0_i32_0 : i32, i32, i32
  }
}

</mosaic_0001>

<llo_original>
// kernel: tpu_custom_call.1
$region0: #{tpu_custom_call.1}
  #allocation0 [shape = 'u32[]', space=smem, size = 0x4, offset = 0x4, fixed_abs, tag = 'smem constant byte address 0x4 - core index']
  #allocation1 [shape = 'u32[144,128]{1,0:T(1,128)}', space=vmem, size = 0x12000, scoped, tag = 'internal scratch']
  #allocation2 [shape = 'f32[4,64,22]{2,1,0:T(8,128)}', space=vmem, size = 0x20000, scoped, tag = 'scratch operand']
  #allocation3 [shape = 'f32[4,4,22]{2,1,0:T(4,128)}', space=vmem, size = 0x2000, scoped, tag = 'scratch operand']
  #allocation4 [shape = 'f32[1]{0:T(128)S(6)}', space=smem, size = 0x200, scoped, tag = 'scoped memory for tpu_custom_call.1']
  %s0 = inlined_call_operand.vmem [shape: f32[16,64,16], index: 0, kind: input, shape index: {}]
  %s1 = inlined_call_operand.vmem [shape: s8[16,1,16], index: 1, kind: input, shape index: {}]
  %s2 = inlined_call_operand.vmem [shape: f32[64,1], index: 2, kind: input, shape index: {}]
  %s3 = inlined_call_operand.vmem [shape: f32[4,64], index: 3, kind: input, shape index: {}]
  %s4 = inlined_call_operand.vmem [shape: f32[64,4], index: 4, kind: input, shape index: {}]
  %s5 = inlined_call_operand.vmem [shape: f32[4,64,7], index: 5, kind: input, shape index: {}]
  %s6 = inlined_call_operand.vmem [shape: f32[4,7], index: 6, kind: input, shape index: {}]
  %s7 = inlined_call_operand.vmem [shape: f32[4], index: 7, kind: input, shape index: {}]
  %s8 = inlined_call_operand.<no memory space> [shape: f32[1], index: 8, kind: input, shape index: {}]
  %s9 = inlined_call_operand.vmem [shape: f32[16,64,16], index: 9, kind: output, shape index: {}]
  %s10 = sld [smem:[#allocation0]]
  $region73: #{tpu_custom_call.1} parent=0
    _
  %s12 = ssub.s32 1, %s10
  %s13 = scalar_select 0, %s12, %s10
  %14 = sst [smem:[#allocation4]] %s8
  $region1: #{tpu_custom_call.1} parent=0
    #allocation5 [shape = 'u8[512]{0}', space=smem, size = 0x200, scoped, tag = 'input window, operand 7, single buffered']
    #allocation6 [shape = 's32[2]{0}', space=sflag, size = 0x8, scoped, tag = 'scoped memory for tpu_custom_call.1']
    %15 = vsyncpa [#allocation6], 0
    loop: start=0, step=1, limit=6
    $region2: #{tpu_custom_call.1} parent=1 // loop_pre_header
      _
    $region3: #{tpu_custom_call.1} parent=1 // loop_header
      %s17 = sphi 0, %s21
      %p18 = scmp.ge.s32.totalorder %s17, 6
      %s27 = sphi 0, %s29
      %s30 = sphi 0, %s27
      %s31 = sphi 0, %s30
      %s47 = sphi 0, %s31
      %s53 = sphi 0, %s55
      %s56 = sphi 0, %s53
      %s57 = sphi 0, %s56
      %s73 = sphi 0, %s57
      %s77 = sphi 0, %s77
      %s79 = sphi 0, %s77
      %s80 = sphi 0, %s79
      %s94 = sphi 0, %s80
      %s98 = sphi 0, %s98
      %s100 = sphi 0, %s98
      %s101 = sphi 0, %s100
      %s115 = sphi 0, %s101
      %s119 = sphi 0, %s119
      %s121 = sphi 0, %s119
      %s122 = sphi 0, %s121
      %s136 = sphi 0, %s122
      %s140 = sphi 0, %s140
      %s142 = sphi 0, %s140
      %s143 = sphi 0, %s142
      %s157 = sphi 0, %s143
      %s161 = sphi 0, %s161
      %s163 = sphi 0, %s161
      %s164 = sphi 0, %s163
      %s178 = sphi 0, %s164
      %s182 = sphi 0, %s182
      %s184 = sphi 0, %s182
      %s185 = sphi 0, %s184
      %s199 = sphi 0, %s185
      %s203 = sphi 0, %s203
      %s205 = sphi 0, %s203
      %s206 = sphi 0, %s205
      %s220 = sphi 0, %s206
      %s226 = sphi 0, %s228
      %s229 = sphi 0, %s226
      %s230 = sphi 0, %s229
      %s246 = sphi 0, %s230
    $region4: #{tpu_custom_call.1} parent=1 // loop_header_branch
      %20 = sbr.rel (%p18) target = $region8
    $region5: #{tpu_custom_call.1} parent=1 // loop_body
      %s22 = ssub.s32 %s17, 1
      %s23 = ssub.s32 %s17, 2
      %s24 = sadd.s32 %s17, 1
      %s25 = ssub.s32 %s17, %s24
      %p26 = scmp.eq.s32.totalorder %s25, 0
      %s28 = sadd.s32 %s27, 1
      %s29 = scalar_select %p26, %s27, %s28
      %p32 = pneg %p26
      %p33 = scmp.eq.s32.totalorder %s17, 3
      %p34 = por %p32, %p33
      %p35 = scmp.ne.s32.totalorder %s27, %s30
      %p36 = scmp.eq.s32.totalorder %s17, 0
      %p37 = por %p35, %p36
      %p38 = scmp.ne.s32.totalorder %s27, %s30
      %p39 = scmp.eq.s32.totalorder %s22, 3
      %p40 = por %p38, %p39
      %p41 = scmp.ne.s32.totalorder %s30, %s31
      %p42 = scmp.eq.s32.totalorder %s22, 0
      %p43 = por %p41, %p42
      %p44 = scmp.ne.s32.totalorder %s30, %s31
      %p45 = scmp.eq.s32.totalorder %s23, 3
      %p46 = por %p44, %p45
      %p48 = scmp.ne.s32.totalorder %s31, %s47
      %p49 = scmp.eq.s32.totalorder %s23, 0
      %p50 = por %p48, %p49
      %s51 = ssub.s32 %s17, %s24
      %p52 = scmp.eq.s32.totalorder %s51, 0
      %s54 = sadd.s32 %s53, 1
      %s55 = scalar_select %p52, %s53, %s54
      %p58 = pneg %p52
      %p59 = scmp.eq.s32.totalorder %s17, 3
      %p60 = por %p58, %p59
      %p61 = scmp.ne.s32.totalorder %s53, %s56
      %p62 = scmp.eq.s32.totalorder %s17, 0
      %p63 = por %p61, %p62
      %p64 = scmp.ne.s32.totalorder %s53, %s56
      %p65 = scmp.eq.s32.totalorder %s22, 3
      %p66 = por %p64, %p65
      %p67 = scmp.ne.s32.totalorder %s56, %s57
      %p68 = scmp.eq.s32.totalorder %s22, 0
      %p69 = por %p67, %p68
      %p70 = scmp.ne.s32.totalorder %s56, %s57
      %p71 = scmp.eq.s32.totalorder %s23, 3
      %p72 = por %p70, %p71
      %p74 = scmp.ne.s32.totalorder %s57, %s73
      %p75 = scmp.eq.s32.totalorder %s23, 0
      %p76 = por %p74, %p75
      %s78 = sadd.s32 %s77, 1
      %p81 = scmp.eq.s32.totalorder %s17, 3
      %p82 = scmp.ne.s32.totalorder %s77, %s79
      %p83 = scmp.eq.s32.totalorder %s17, 0
      %p84 = por %p82, %p83
      %p85 = scmp.ne.s32.totalorder %s77, %s79
      %p86 = scmp.eq.s32.totalorder %s22, 3
      %p87 = por %p85, %p86
      %p88 = scmp.ne.s32.totalorder %s79, %s80
      %p89 = scmp.eq.s32.totalorder %s22, 0
      %p90 = por %p88, %p89
      %p91 = scmp.ne.s32.totalorder %s79, %s80
      %p92 = scmp.eq.s32.totalorder %s23, 3
      %p93 = por %p91, %p92
      %p95 = scmp.ne.s32.totalorder %s80, %s94
      %p96 = scmp.eq.s32.totalorder %s23, 0
      %p97 = por %p95, %p96
      %s99 = sadd.s32 %s98, 1
      %p102 = scmp.eq.s32.totalorder %s17, 3
      %p103 = scmp.ne.s32.totalorder %s98, %s100
      %p104 = scmp.eq.s32.totalorder %s17, 0
      %p105 = por %p103, %p104
      %p106 = scmp.ne.s32.totalorder %s98, %s100
      %p107 = scmp.eq.s32.totalorder %s22, 3
      %p108 = por %p106, %p107
      %p109 = scmp.ne.s32.totalorder %s100, %s101
      %p110 = scmp.eq.s32.totalorder %s22, 0
      %p111 = por %p109, %p110
      %p112 = scmp.ne.s32.totalorder %s100, %s101
      %p113 = scmp.eq.s32.totalorder %s23, 3
      %p114 = por %p112, %p113
      %p116 = scmp.ne.s32.totalorder %s101, %s115
      %p117 = scmp.eq.s32.totalorder %s23, 0
      %p118 = por %p116, %p117
      %s120 = sadd.s32 %s119, 1
      %p123 = scmp.eq.s32.totalorder %s17, 3
      %p124 = scmp.ne.s32.totalorder %s119, %s121
      %p125 = scmp.eq.s32.totalorder %s17, 0
      %p126 = por %p124, %p125
      %p127 = scmp.ne.s32.totalorder %s119, %s121
      %p128 = scmp.eq.s32.totalorder %s22, 3
      %p129 = por %p127, %p128
      %p130 = scmp.ne.s32.totalorder %s121, %s122
      %p131 = scmp.eq.s32.totalorder %s22, 0
      %p132 = por %p130, %p131
      %p133 = scmp.ne.s32.totalorder %s121, %s122
      %p134 = scmp.eq.s32.totalorder %s23, 3
      %p135 = por %p133, %p134
      %p137 = scmp.ne.s32.totalorder %s122, %s136
      %p138 = scmp.eq.s32.totalorder %s23, 0
      %p139 = por %p137, %p138
      %s141 = sadd.s32 %s140, 1
      %p144 = scmp.eq.s32.totalorder %s17, 3
      %p145 = scmp.ne.s32.totalorder %s140, %s142
      %p146 = scmp.eq.s32.totalorder %s17, 0
      %p147 = por %p145, %p146
      %p148 = scmp.ne.s32.totalorder %s140, %s142
      %p149 = scmp.eq.s32.totalorder %s22, 3
      %p150 = por %p148, %p149
      %p151 = scmp.ne.s32.totalorder %s142, %s143
      %p152 = scmp.eq.s32.totalorder %s22, 0
      %p153 = por %p151, %p152
      %p154 = scmp.ne.s32.totalorder %s142, %s143
      %p155 = scmp.eq.s32.totalorder %s23, 3
      %p156 = por %p154, %p155
      %p158 = scmp.ne.s32.totalorder %s143, %s157
      %p159 = scmp.eq.s32.totalorder %s23, 0
      %p160 = por %p158, %p159
      %s162 = sadd.s32 %s161, 1
      %p165 = scmp.eq.s32.totalorder %s17, 3
      %p166 = scmp.ne.s32.totalorder %s161, %s163
      %p167 = scmp.eq.s32.totalorder %s17, 0
      %p168 = por %p166, %p167
      %p169 = scmp.ne.s32.totalorder %s161, %s163
      %p170 = scmp.eq.s32.totalorder %s22, 3
      %p171 = por %p169, %p170
      %p172 = scmp.ne.s32.totalorder %s163, %s164
      %p173 = scmp.eq.s32.totalorder %s22, 0
      %p174 = por %p172, %p173
      %p175 = scmp.ne.s32.totalorder %s163, %s164
      %p176 = scmp.eq.s32.totalorder %s23, 3
      %p177 = por %p175, %p176
      %p179 = scmp.ne.s32.totalorder %s164, %s178
      %p180 = scmp.eq.s32.totalorder %s23, 0
      %p181 = por %p179, %p180
      %s183 = sadd.s32 %s182, 1
      %p186 = scmp.eq.s32.totalorder %s17, 3
      %p187 = scmp.ne.s32.totalorder %s182, %s184
      %p188 = scmp.eq.s32.totalorder %s17, 0
      %p189 = por %p187, %p188
      %p190 = scmp.ne.s32.totalorder %s182, %s184
      %p191 = scmp.eq.s32.totalorder %s22, 3
      %p192 = por %p190, %p191
      %p193 = scmp.ne.s32.totalorder %s184, %s185
      %p194 = scmp.eq.s32.totalorder %s22, 0
      %p195 = por %p193, %p194
      %p196 = scmp.ne.s32.totalorder %s184, %s185
      %p197 = scmp.eq.s32.totalorder %s23, 3
      %p198 = por %p196, %p197
      %p200 = scmp.ne.s32.totalorder %s185, %s199
      %p201 = scmp.eq.s32.totalorder %s23, 0
      %p202 = por %p200, %p201
      %s204 = sadd.s32 %s203, 1
      %p207 = scmp.eq.s32.totalorder %s17, 3
      %p208 = scmp.ne.s32.totalorder %s203, %s205
      %p209 = scmp.eq.s32.totalorder %s17, 0
      %p210 = por %p208, %p209
      %p211 = scmp.ne.s32.totalorder %s203, %s205
      %p212 = scmp.eq.s32.totalorder %s22, 3
      %p213 = por %p211, %p212
      %p214 = scmp.ne.s32.totalorder %s205, %s206
      %p215 = scmp.eq.s32.totalorder %s22, 0
      %p216 = por %p214, %p215
      %p217 = scmp.ne.s32.totalorder %s205, %s206
      %p218 = scmp.eq.s32.totalorder %s23, 3
      %p219 = por %p217, %p218
      %p221 = scmp.ne.s32.totalorder %s206, %s220
      %p222 = scmp.eq.s32.totalorder %s23, 0
      %p223 = por %p221, %p222
      %s224 = ssub.s32 %s17, %s24
      %p225 = scmp.eq.s32.totalorder %s224, 0
      %s227 = sadd.s32 %s226, 1
      %s228 = scalar_select %p225, %s226, %s227
      %p231 = pneg %p225
      %p232 = scmp.eq.s32.totalorder %s17, 3
      %p233 = por %p231, %p232
      %p234 = scmp.ne.s32.totalorder %s226, %s229
      %p235 = scmp.eq.s32.totalorder %s17, 0
      %p236 = por %p234, %p235
      %p237 = scmp.ne.s32.totalorder %s226, %s229
      %p238 = scmp.eq.s32.totalorder %s22, 3
      %p239 = por %p237, %p238
      %p240 = scmp.ne.s32.totalorder %s229, %s230
      %p241 = scmp.eq.s32.totalorder %s22, 0
      %p242 = por %p240, %p241
      %p243 = scmp.ne.s32.totalorder %s229, %s230
      %p244 = scmp.eq.s32.totalorder %s23, 3
      %p245 = por %p243, %p244
      %p247 = scmp.ne.s32.totalorder %s230, %s246
      %p248 = scmp.eq.s32.totalorder %s23, 0
      %p249 = por %p247, %p248
      %p250 = scmp.le.s32.totalorder 1, %s17
      %p251 = scmp.lt.s32.totalorder %s17, 5
      %p252 = pnand %p250, %p251
      %p253 = pneg %p252
      // Predicated region
      $region9: #{tpu_custom_call.1} parent=5 // pred_check
        _
      $region10: #{tpu_custom_call.1} parent=5 // pred_check_branch
        %255 = sbr.rel (%p252) target = $region12
      $region11: #{tpu_custom_call.1} parent=5 // pred_region
        %s256 = ssub.s32 %s17, 1
        // Predicated region
        $region13: #{tpu_custom_call.1} parent=11 // pred_check
          %p257 = pneg %p90
        $region14: #{tpu_custom_call.1} parent=11 // pred_check_branch
          %259 = sbr.rel (%p257) target = $region16
        $region15: #{tpu_custom_call.1} parent=11 // pred_region
          _
        $region16: #{tpu_custom_call.1} parent=11 // pred_fallthru
          _
        // Predicated region
        $region17: #{tpu_custom_call.1} parent=11 // pred_check
          %p260 = pneg %p111
        $region18: #{tpu_custom_call.1} parent=11 // pred_check_branch
          %262 = sbr.rel (%p260) target = $region20
        $region19: #{tpu_custom_call.1} parent=11 // pred_region
          _
        $region20: #{tpu_custom_call.1} parent=11 // pred_fallthru
          _
        // Predicated region
        $region21: #{tpu_custom_call.1} parent=11 // pred_check
          %p263 = pneg %p132
        $region22: #{tpu_custom_call.1} parent=11 // pred_check_branch
          %265 = sbr.rel (%p263) target = $region24
        $region23: #{tpu_custom_call.1} parent=11 // pred_region
          _
        $region24: #{tpu_custom_call.1} parent=11 // pred_fallthru
          _
        // Predicated region
        $region25: #{tpu_custom_call.1} parent=11 // pred_check
          %p266 = pneg %p153
        $region26: #{tpu_custom_call.1} parent=11 // pred_check_branch
          %268 = sbr.rel (%p266) target = $region28
        $region27: #{tpu_custom_call.1} parent=11 // pred_region
          _
        $region28: #{tpu_custom_call.1} parent=11 // pred_fallthru
          _
        // Predicated region
        $region29: #{tpu_custom_call.1} parent=11 // pred_check
          %p269 = pneg %p174
        $region30: #{tpu_custom_call.1} parent=11 // pred_check_branch
          %271 = sbr.rel (%p269) target = $region32
        $region31: #{tpu_custom_call.1} parent=11 // pred_region
          _
        $region32: #{tpu_custom_call.1} parent=11 // pred_fallthru
          _
        // Predicated region
        $region33: #{tpu_custom_call.1} parent=11 // pred_check
          %p272 = pneg %p195
        $region34: #{tpu_custom_call.1} parent=11 // pred_check_branch
          %274 = sbr.rel (%p272) target = $region36
        $region35: #{tpu_custom_call.1} parent=11 // pred_region
          %s276 = ssub.s32 16, 16
          %277 = vsyncadd [#allocation6], %s276
          %s279 = sshll.u32 %s7, 4
          %s280 = int_to_ptr.vmem [resolvable:$true] %s279
          %282 = dma.vmem_to_smem %s280, 16, [#allocation5], [#allocation6]
        $region36: #{tpu_custom_call.1} parent=11 // pred_fallthru
          _
        // Predicated region
        $region37: #{tpu_custom_call.1} parent=11 // pred_check
          %p283 = pneg %p216
        $region38: #{tpu_custom_call.1} parent=11 // pred_check_branch
          %285 = sbr.rel (%p283) target = $region40
        $region39: #{tpu_custom_call.1} parent=11 // pred_region
          _
        $region40: #{tpu_custom_call.1} parent=11 // pred_fallthru
          _
      $region12: #{tpu_custom_call.1} parent=5 // pred_fallthru
        _
      %p286 = scmp.lt.s32.totalorder %s17, 4
      // Predicated region
      $region41: #{tpu_custom_call.1} parent=5 // pred_check
        %p287 = pneg %p286
      $region42: #{tpu_custom_call.1} parent=5 // pred_check_branch
        %289 = sbr.rel (%p287) target = $region44
      $region43: #{tpu_custom_call.1} parent=5 // pred_region
        // Predicated region
        $region45: #{tpu_custom_call.1} parent=43 // pred_check
          %p290 = pneg %p37
        $region46: #{tpu_custom_call.1} parent=43 // pred_check_branch
          %292 = sbr.rel (%p290) target = $region48
        $region47: #{tpu_custom_call.1} parent=43 // pred_region
          %s293 = smul.u32 4, %s17
          %p294 = scmp.lt.s32.totalorder %s293, 15
          %s295 = scalar_select %p294, %s293, 15
          %s296 = smul.addr %s295, 8
          %s297 = smul.addr %s296, 8
          %s298 = scalar_lea.vmem %s0, %s297
          %s299 = smul.u32 4, %s17
        $region48: #{tpu_custom_call.1} parent=43 // pred_fallthru
          _
        // Predicated region
        $region49: #{tpu_custom_call.1} parent=43 // pred_check
          %p300 = pneg %p63
        $region50: #{tpu_custom_call.1} parent=43 // pred_check_branch
          %302 = sbr.rel (%p300) target = $region52
        $region51: #{tpu_custom_call.1} parent=43 // pred_region
          %s303 = smul.u32 4, %s17
          %p304 = scmp.lt.s32.totalorder %s303, 15
          %s305 = scalar_select %p304, %s303, 15
          %s306 = scalar_lea.vmem %s1, %s305
          %s307 = smul.u32 4, %s17
        $region52: #{tpu_custom_call.1} parent=43 // pred_fallthru
          _
      $region44: #{tpu_custom_call.1} parent=5 // pred_fallthru
        _
      %p308 = scmp.le.s32.totalorder 1, %s17
      %p309 = scmp.lt.s32.totalorder %s17, 5
      %p310 = pnand %p308, %p309
      %p311 = pneg %p310
      // Predicated region
      $region53: #{tpu_custom_call.1} parent=5 // pred_check
        _
      $region54: #{tpu_custom_call.1} parent=5 // pred_check_branch
        %313 = sbr.rel (%p310) target = $region56
      $region55: #{tpu_custom_call.1} parent=5 // pred_region
        %s314 = ssub.s32 %s17, 1
        // Predicated region
        $region57: #{tpu_custom_call.1} parent=55 // pred_check
          %p315 = pneg %p195
        $region58: #{tpu_custom_call.1} parent=55 // pred_check_branch
          %317 = sbr.rel (%p315) target = $region60
        $region59: #{tpu_custom_call.1} parent=55 // pred_region
          %318 = dma.done [#allocation6], 16
        $region60: #{tpu_custom_call.1} parent=55 // pred_fallthru
          _
        %319 = sfence
        %s320 = smul.u32 4, %s22
        %p321 = scmp.lt.s32.totalorder %s320, 15
        %s322 = scalar_select %p321, %s320, 15
        %s323 = smul.addr %s322, 8
        %s324 = smul.addr %s323, 8
        %s325 = scalar_lea.vmem %s0, %s324
        %p326 = pneg %p43
        %p327 = pneg %p40
        %s328 = smul.u32 4, %s22
        %p329 = scmp.lt.s32.totalorder %s328, 15
        %s330 = scalar_select %p329, %s328, 15
        %s331 = scalar_lea.vmem %s1, %s330
        %p332 = pneg %p69
        %p333 = pneg %p66
        %p334 = pneg %p90
        %p335 = pneg %p87
        %p336 = pneg %p111
        %p337 = pneg %p108
        %p338 = pneg %p132
        %p339 = pneg %p129
        %p340 = pneg %p153
        %p341 = pneg %p150
        %p342 = pneg %p174
        %p343 = pneg %p171
        %p344 = pneg %p195
        %p345 = pneg %p192
        %p346 = pneg %p216
        %p347 = pneg %p213
        %p348 = pneg %p242
        %p349 = pneg %p239
        %s350 = smul.u32 4, %s22
        %p351 = scmp.lt.s32.totalorder %s350, 15
        %s352 = scalar_select %p351, %s350, 15
        %s353 = smul.addr %s352, 8
        %s354 = smul.addr %s353, 8
        %s355 = scalar_lea.vmem %s9, %s354
        %s356 = smul.u32 4, %s22
        %p357 = scmp.lt.s32.totalorder %s356, 15
        %s358 = scalar_select %p357, %s356, 15
        %s359 = smul.addr %s358, 8
        %s360 = smul.addr %s359, 8
        %s361 = scalar_lea.vmem %s0, %s360
        %s362 = smul.u32 4, %s22
        %s363 = smul.u32 4, %s22
        %p364 = scmp.lt.s32.totalorder %s363, 15
        %s365 = scalar_select %p364, %s363, 15
        %s366 = scalar_lea.vmem %s1, %s365
        %s367 = smul.u32 4, %s22
        %s368 = smul.u32 4, %s22
        %p369 = scmp.lt.s32.totalorder %s368, 15
        %s370 = scalar_select %p369, %s368, 15
        %s371 = smul.addr %s370, 8
        %s372 = smul.addr %s371, 8
        %s373 = scalar_lea.vmem %s9, %s372
        %s374 = smul.u32 4, %s22
        %v375 = vld [vmem:[%s361] sm:$0xff]
        %v376 = vld [vmem:[%s361 + $0x8] sm:$0xff]
        %v377 = vld [vmem:[%s361 + $0x10] sm:$0xff]
        %v378 = vld [vmem:[%s361 + $0x18] sm:$0xff]
        %v379 = vld [vmem:[%s361 + $0x20] sm:$0xff]
        %v380 = vld [vmem:[%s361 + $0x28] sm:$0xff]
        %v381 = vld [vmem:[%s361 + $0x30] sm:$0xff]
        %v382 = vld [vmem:[%s361 + $0x38] sm:$0xff]
        %v383 = vld [vmem:[%s361 + $0x40] sm:$0xff]
        %v384 = vld [vmem:[%s361 + $0x48] sm:$0xff]
        %v385 = vld [vmem:[%s361 + $0x50] sm:$0xff]
        %v386 = vld [vmem:[%s361 + $0x58] sm:$0xff]
        %v387 = vld [vmem:[%s361 + $0x60] sm:$0xff]
        %v388 = vld [vmem:[%s361 + $0x68] sm:$0xff]
        %v389 = vld [vmem:[%s361 + $0x70] sm:$0xff]
        %v390 = vld [vmem:[%s361 + $0x78] sm:$0xff]
        %v391 = vld [vmem:[%s361 + $0x80] sm:$0xff]
        %v392 = vld [vmem:[%s361 + $0x88] sm:$0xff]
        %v393 = vld [vmem:[%s361 + $0x90] sm:$0xff]
        %v394 = vld [vmem:[%s361 + $0x98] sm:$0xff]
        %v395 = vld [vmem:[%s361 + $0xa0] sm:$0xff]
        %v396 = vld [vmem:[%s361 + $0xa8] sm:$0xff]
        %v397 = vld [vmem:[%s361 + $0xb0] sm:$0xff]
        %v398 = vld [vmem:[%s361 + $0xb8] sm:$0xff]
        %v399 = vld [vmem:[%s361 + $0xc0] sm:$0xff]
        %v400 = vld [vmem:[%s361 + $0xc8] sm:$0xff]
        %v401 = vld [vmem:[%s361 + $0xd0] sm:$0xff]
        %v402 = vld [vmem:[%s361 + $0xd8] sm:$0xff]
        %v403 = vld [vmem:[%s361 + $0xe0] sm:$0xff]
        %v404 = vld [vmem:[%s361 + $0xe8] sm:$0xff]
        %v405 = vld [vmem:[%s361 + $0xf0] sm:$0xff]
        %v406 = vld [vmem:[%s361 + $0xf8] sm:$0xff]
        %v407 = vld [vmem:[%s366] sm:$0x1]
        %v408 = vld [vmem:[%s366 + $0x1] sm:$0x1]
        %v409 = vld [vmem:[%s366 + $0x2] sm:$0x1]
        %v410 = vld [vmem:[%s366 + $0x3] sm:$0x1]
        %v411 = vunpack.c.0.s8 %v407
        %v412 = vunpack.c.0.s8 %v408
        %v413 = vunpack.c.0.s8 %v409
        %v414 = vunpack.c.0.s8 %v410
        %v415 = vcvt.s32.f32 %v411
        %v416 = vcvt.s32.f32 %v412
        %v417 = vcvt.s32.f32 %v413
        %v418 = vcvt.s32.f32 %v414
        %vm419 = vcmp.gt.f32.partialorder %v415, 0.5
        %vm420 = vcmp.gt.f32.partialorder %v416, 0.5
        %vm421 = vcmp.gt.f32.partialorder %v417, 0.5
        %vm422 = vcmp.gt.f32.partialorder %v418, 0.5
        %v423 = vld [vmem:[%s2] sm:$0xff]
        %v424 = vld [vmem:[%s2 + $0x8] sm:$0xff]
        %v425 = vld [vmem:[%s2 + $0x10] sm:$0xff]
        %v426 = vld [vmem:[%s2 + $0x18] sm:$0xff]
        %v427 = vld [vmem:[%s2 + $0x20] sm:$0xff]
        %v428 = vld [vmem:[%s2 + $0x28] sm:$0xff]
        %v429 = vld [vmem:[%s2 + $0x30] sm:$0xff]
        %v430 = vld [vmem:[%s2 + $0x38] sm:$0xff]
        %432 = vset.pattern.permute.xlu0 0
        %433 = vperm.xlu0 %432, %v423
        %v434 = vpop.permute.xlu0 %433
        %437 = vset.pattern.permute.xlu0 0
        %438 = vperm.xlu0 %437, %v424
        %v439 = vpop.permute.xlu0 %438
        %442 = vset.pattern.permute.xlu0 0
        %443 = vperm.xlu0 %442, %v425
        %v444 = vpop.permute.xlu0 %443
        %447 = vset.pattern.permute.xlu0 0
        %448 = vperm.xlu0 %447, %v426
        %v449 = vpop.permute.xlu0 %448
        %452 = vset.pattern.permute.xlu0 0
        %453 = vperm.xlu0 %452, %v427
        %v454 = vpop.permute.xlu0 %453
        %457 = vset.pattern.permute.xlu0 0
        %458 = vperm.xlu0 %457, %v428
        %v459 = vpop.permute.xlu0 %458
        %462 = vset.pattern.permute.xlu0 0
        %463 = vperm.xlu0 %462, %v429
        %v464 = vpop.permute.xlu0 %463
        %467 = vset.pattern.permute.xlu0 0
        %468 = vperm.xlu0 %467, %v430
        %v469 = vpop.permute.xlu0 %468
        %v471 = vmul.f32 %v375, %v434
        %v472 = vmul.f32 %v376, %v439
        %v473 = vmul.f32 %v377, %v444
        %v474 = vmul.f32 %v378, %v449
        %v475 = vmul.f32 %v379, %v454
        %v476 = vmul.f32 %v380, %v459
        %v477 = vmul.f32 %v381, %v464
        %v478 = vmul.f32 %v382, %v469
        %v479 = vmul.f32 %v383, %v434
        %v480 = vmul.f32 %v384, %v439
        %v481 = vmul.f32 %v385, %v444
        %v482 = vmul.f32 %v386, %v449
        %v483 = vmul.f32 %v387, %v454
        %v484 = vmul.f32 %v388, %v459
        %v485 = vmul.f32 %v389, %v464
        %v486 = vmul.f32 %v390, %v469
        %v487 = vmul.f32 %v391, %v434
        %v488 = vmul.f32 %v392, %v439
        %v489 = vmul.f32 %v393, %v444
        %v490 = vmul.f32 %v394, %v449
        %v491 = vmul.f32 %v395, %v454
        %v492 = vmul.f32 %v396, %v459
        %v493 = vmul.f32 %v397, %v464
        %v494 = vmul.f32 %v398, %v469
        %v495 = vmul.f32 %v399, %v434
        %v496 = vmul.f32 %v400, %v439
        %v497 = vmul.f32 %v401, %v444
        %v498 = vmul.f32 %v402, %v449
        %v499 = vmul.f32 %v403, %v454
        %v500 = vmul.f32 %v404, %v459
        %v501 = vmul.f32 %v405, %v464
        %v502 = vmul.f32 %v406, %v469
        %vm503 = vcmask 130048
        %v504 = vsel %vm503, %v471, 0.0
        %v505 = vsel %vm503, %v472, 0.0
        %v506 = vadd.f32 %v504, %v505
        %v507 = vsel %vm503, %v473, 0.0
        %v508 = vadd.f32 %v506, %v507
        %v509 = vsel %vm503, %v474, 0.0
        %v510 = vadd.f32 %v508, %v509
        %v511 = vsel %vm503, %v475, 0.0
        %v512 = vadd.f32 %v510, %v511
        %v513 = vsel %vm503, %v476, 0.0
        %v514 = vadd.f32 %v512, %v513
        %v515 = vsel %vm503, %v477, 0.0
        %v516 = vadd.f32 %v514, %v515
        %v517 = vsel %vm503, %v478, 0.0
        %v518 = vadd.f32 %v516, %v517
        %v519 = vrot.slane %v518, 4
        %v520 = vadd.f32 %v518, %v519
        %v521 = vrot.slane %v520, 2
        %v522 = vadd.f32 %v520, %v521
        %v523 = vrot.slane %v522, 1
        %v524 = vadd.f32 %v522, %v523
        %v525 = vsel %vm503, %v479, 0.0
        %v526 = vsel %vm503, %v480, 0.0
        %v527 = vadd.f32 %v525, %v526
        %v528 = vsel %vm503, %v481, 0.0
        %v529 = vadd.f32 %v527, %v528
        %v530 = vsel %vm503, %v482, 0.0
        %v531 = vadd.f32 %v529, %v530
        %v532 = vsel %vm503, %v483, 0.0
        %v533 = vadd.f32 %v531, %v532
        %v534 = vsel %vm503, %v484, 0.0
        %v535 = vadd.f32 %v533, %v534
        %v536 = vsel %vm503, %v485, 0.0
        %v537 = vadd.f32 %v535, %v536
        %v538 = vsel %vm503, %v486, 0.0
        %v539 = vadd.f32 %v537, %v538
        %v540 = vrot.slane %v539, 4
        %v541 = vadd.f32 %v539, %v540
        %v542 = vrot.slane %v541, 2
        %v543 = vadd.f32 %v541, %v542
        %v544 = vrot.slane %v543, 1
        %v545 = vadd.f32 %v543, %v544
        %v546 = vsel %vm503, %v487, 0.0
        %v547 = vsel %vm503, %v488, 0.0
        %v548 = vadd.f32 %v546, %v547
        %v549 = vsel %vm503, %v489, 0.0
        %v550 = vadd.f32 %v548, %v549
        %v551 = vsel %vm503, %v490, 0.0
        %v552 = vadd.f32 %v550, %v551
        %v553 = vsel %vm503, %v491, 0.0
        %v554 = vadd.f32 %v552, %v553
        %v555 = vsel %vm503, %v492, 0.0
        %v556 = vadd.f32 %v554, %v555
        %v557 = vsel %vm503, %v493, 0.0
        %v558 = vadd.f32 %v556, %v557
        %v559 = vsel %vm503, %v494, 0.0
        %v560 = vadd.f32 %v558, %v559
        %v561 = vrot.slane %v560, 4
        %v562 = vadd.f32 %v560, %v561
        %v563 = vrot.slane %v562, 2
        %v564 = vadd.f32 %v562, %v563
        %v565 = vrot.slane %v564, 1
        %v566 = vadd.f32 %v564, %v565
        %v567 = vsel %vm503, %v495, 0.0
        %v568 = vsel %vm503, %v496, 0.0
        %v569 = vadd.f32 %v567, %v568
        %v570 = vsel %vm503, %v497, 0.0
        %v571 = vadd.f32 %v569, %v570
        %v572 = vsel %vm503, %v498, 0.0
        %v573 = vadd.f32 %v571, %v572
        %v574 = vsel %vm503, %v499, 0.0
        %v575 = vadd.f32 %v573, %v574
        %v576 = vsel %vm503, %v500, 0.0
        %v577 = vadd.f32 %v575, %v576
        %v578 = vsel %vm503, %v501, 0.0
        %v579 = vadd.f32 %v577, %v578
        %v580 = vsel %vm503, %v502, 0.0
        %v581 = vadd.f32 %v579, %v580
        %v582 = vrot.slane %v581, 4
        %v583 = vadd.f32 %v581, %v582
        %v584 = vrot.slane %v583, 2
        %v585 = vadd.f32 %v583, %v584
        %v586 = vrot.slane %v585, 1
        %v587 = vadd.f32 %v585, %v586
        %v588 = vsel %vm419, -1e+30, %v524
        %v589 = vsel %vm420, -1e+30, %v545
        %v590 = vsel %vm421, -1e+30, %v566
        %v591 = vsel %vm422, -1e+30, %v587
        %v596 = vlaneseq
        %v597 = vshrl.u32 %v596, 7
        %v598 = vsub.s32 0, %v597
        %v599 = vrot.slane %v588, %v598
        %v600 = vlaneseq
        %v601 = vshrl.u32 %v600, 7
        %v602 = vsub.s32 0, %v601
        %v603 = vrot.slane %v589, %v602
        %v604 = vlaneseq
        %v605 = vshrl.u32 %v604, 7
        %v606 = vsub.s32 0, %v605
        %v607 = vrot.slane %v590, %v606
        %v608 = vlaneseq
        %v609 = vshrl.u32 %v608, 7
        %v610 = vsub.s32 0, %v609
        %v611 = vrot.slane %v591, %v610
        %vm612 = vcmask 1041409
        %v613 = vsel %vm612, %v603, %v599
        %vm614 = vcmask 1042434
        %v615 = vsel %vm614, %v607, %v613
        %vm616 = vcmask 1043459
        %v617 = vsel %vm616, %v611, %v615
        %vm619 = vcmask 125952
        %v620 = vsel %vm619, %v617, -inf
        %621 = vmax.xlane.f32.xlu0 %v620
        %v622 = vpop.xlane.xlu0 %621
        %v625 = vunpack.c.l.s4 839922192
        %v626 = vunpack.c.0.s8 %v625
        %v627 = vlaneseq
        %v628 = vshrl.u32 %v627, 7
        %v629 = vsub.s32 %v626, %v628
        %v630 = vrot.slane %v622, %v629
        %v631 = vrot.slane %v630, 1
        %v632 = vrot.slane %v630, 2
        %v633 = vrot.slane %v630, 3
        %v638 = vsub.f32 %v588, %v630
        %v639 = vsub.f32 %v589, %v631
        %v640 = vsub.f32 %v590, %v632
        %v641 = vsub.f32 %v591, %v633
        %v642 = vmul.f32 %v638, 1.442695
        %v643 = vpow.pop %v642
        %v644 = vmul.f32 %v639, 1.442695
        %v645 = vpow.pop %v644
        %v646 = vmul.f32 %v640, 1.442695
        %v647 = vpow.pop %v646
        %v648 = vmul.f32 %v641, 1.442695
        %v649 = vpow.pop %v648
        %v654 = vlaneseq
        %v655 = vshrl.u32 %v654, 7
        %v656 = vsub.s32 0, %v655
        %v657 = vrot.slane %v643, %v656
        %v658 = vlaneseq
        %v659 = vshrl.u32 %v658, 7
        %v660 = vsub.s32 0, %v659
        %v661 = vrot.slane %v645, %v660
        %v662 = vlaneseq
        %v663 = vshrl.u32 %v662, 7
        %v664 = vsub.s32 0, %v663
        %v665 = vrot.slane %v647, %v664
        %v666 = vlaneseq
        %v667 = vshrl.u32 %v666, 7
        %v668 = vsub.s32 0, %v667
        %v669 = vrot.slane %v649, %v668
        %v670 = vsel %vm612, %v661, %v657
        %v671 = vsel %vm614, %v665, %v670
        %v672 = vsel %vm616, %v669, %v671
        %v674 = vsel %vm619, %v672, 0.0
        %675 = vadd.xlane.f32.xlu0 %v674
        %v676 = vpop.xlane.xlu0 %675
        %v677 = vrcp.pop %v676
        %v680 = vunpack.c.l.s4 839922192
        %v681 = vunpack.c.0.s8 %v680
        %v682 = vlaneseq
        %v683 = vshrl.u32 %v682, 7
        %v684 = vsub.s32 %v681, %v683
        %v685 = vrot.slane %v677, %v684
        %v686 = vrot.slane %v685, 1
        %v687 = vrot.slane %v685, 2
        %v688 = vrot.slane %v685, 3
        %v693 = vmul.f32 %v643, %v685
        %v694 = vmul.f32 %v645, %v686
        %v695 = vmul.f32 %v647, %v687
        %v696 = vmul.f32 %v649, %v688
        %v697 = vlaneseq
        %v698 = vshrl.u32 %v697, 7
        %v699 = vsub.s32 0, %v698
        %v700 = vrot.slane %v693, %v699
        %v701 = vlaneseq
        %v702 = vshrl.u32 %v701, 7
        %v703 = vsub.s32 0, %v702
        %v704 = vrot.slane %v694, %v703
        %v705 = vlaneseq
        %v706 = vshrl.u32 %v705, 7
        %v707 = vsub.s32 0, %v706
        %v708 = vrot.slane %v695, %v707
        %v709 = vlaneseq
        %v710 = vshrl.u32 %v709, 7
        %v711 = vsub.s32 0, %v710
        %v712 = vrot.slane %v696, %v711
        %v713 = vmul.f32 %v700, %v375
        %v714 = vmul.f32 %v700, %v376
        %v715 = vmul.f32 %v700, %v377
        %v716 = vmul.f32 %v700, %v378
        %v717 = vmul.f32 %v700, %v379
        %v718 = vmul.f32 %v700, %v380
        %v719 = vmul.f32 %v700, %v381
        %v720 = vmul.f32 %v700, %v382
        %v721 = vmul.f32 %v704, %v383
        %v722 = vmul.f32 %v704, %v384
        %v723 = vmul.f32 %v704, %v385
        %v724 = vmul.f32 %v704, %v386
        %v725 = vmul.f32 %v704, %v387
        %v726 = vmul.f32 %v704, %v388
        %v727 = vmul.f32 %v704, %v389
        %v728 = vmul.f32 %v704, %v390
        %v729 = vmul.f32 %v708, %v391
        %v730 = vmul.f32 %v708, %v392
        %v731 = vmul.f32 %v708, %v393
        %v732 = vmul.f32 %v708, %v394
        %v733 = vmul.f32 %v708, %v395
        %v734 = vmul.f32 %v708, %v396
        %v735 = vmul.f32 %v708, %v397
        %v736 = vmul.f32 %v708, %v398
        %v737 = vmul.f32 %v712, %v399
        %v738 = vmul.f32 %v712, %v400
        %v739 = vmul.f32 %v712, %v401
        %v740 = vmul.f32 %v712, %v402
        %v741 = vmul.f32 %v712, %v403
        %v742 = vmul.f32 %v712, %v404
        %v743 = vmul.f32 %v712, %v405
        %v744 = vmul.f32 %v712, %v406
        %v745 = vsel %vm503, %v713, 0.0
        %746 = vadd.xlane.f32.xlu0 %v745
        %v747 = vpop.xlane.xlu0 %746
        %v748 = vsel %vm503, %v714, 0.0
        %749 = vadd.xlane.f32.xlu0 %v748
        %v750 = vpop.xlane.xlu0 %749
        %v751 = vsel %vm503, %v715, 0.0
        %752 = vadd.xlane.f32.xlu0 %v751
        %v753 = vpop.xlane.xlu0 %752
        %v754 = vsel %vm503, %v716, 0.0
        %755 = vadd.xlane.f32.xlu0 %v754
        %v756 = vpop.xlane.xlu0 %755
        %v757 = vsel %vm503, %v717, 0.0
        %758 = vadd.xlane.f32.xlu0 %v757
        %v759 = vpop.xlane.xlu0 %758
        %v760 = vsel %vm503, %v718, 0.0
        %761 = vadd.xlane.f32.xlu0 %v760
        %v762 = vpop.xlane.xlu0 %761
        %v763 = vsel %vm503, %v719, 0.0
        %764 = vadd.xlane.f32.xlu0 %v763
        %v765 = vpop.xlane.xlu0 %764
        %v766 = vsel %vm503, %v720, 0.0
        %767 = vadd.xlane.f32.xlu0 %v766
        %v768 = vpop.xlane.xlu0 %767
        %v769 = vsel %vm503, %v721, 0.0
        %770 = vadd.xlane.f32.xlu0 %v769
        %v771 = vpop.xlane.xlu0 %770
        %v772 = vsel %vm503, %v722, 0.0
        %773 = vadd.xlane.f32.xlu0 %v772
        %v774 = vpop.xlane.xlu0 %773
        %v775 = vsel %vm503, %v723, 0.0
        %776 = vadd.xlane.f32.xlu0 %v775
        %v777 = vpop.xlane.xlu0 %776
        %v778 = vsel %vm503, %v724, 0.0
        %779 = vadd.xlane.f32.xlu0 %v778
        %v780 = vpop.xlane.xlu0 %779
        %v781 = vsel %vm503, %v725, 0.0
        %782 = vadd.xlane.f32.xlu0 %v781
        %v783 = vpop.xlane.xlu0 %782
        %v784 = vsel %vm503, %v726, 0.0
        %785 = vadd.xlane.f32.xlu0 %v784
        %v786 = vpop.xlane.xlu0 %785
        %v787 = vsel %vm503, %v727, 0.0
        %788 = vadd.xlane.f32.xlu0 %v787
        %v789 = vpop.xlane.xlu0 %788
        %v790 = vsel %vm503, %v728, 0.0
        %791 = vadd.xlane.f32.xlu0 %v790
        %v792 = vpop.xlane.xlu0 %791
        %v793 = vsel %vm503, %v729, 0.0
        %794 = vadd.xlane.f32.xlu0 %v793
        %v795 = vpop.xlane.xlu0 %794
        %v796 = vsel %vm503, %v730, 0.0
        %797 = vadd.xlane.f32.xlu0 %v796
        %v798 = vpop.xlane.xlu0 %797
        %v799 = vsel %vm503, %v731, 0.0
        %800 = vadd.xlane.f32.xlu0 %v799
        %v801 = vpop.xlane.xlu0 %800
        %v802 = vsel %vm503, %v732, 0.0
        %803 = vadd.xlane.f32.xlu0 %v802
        %v804 = vpop.xlane.xlu0 %803
        %v805 = vsel %vm503, %v733, 0.0
        %806 = vadd.xlane.f32.xlu0 %v805
        %v807 = vpop.xlane.xlu0 %806
        %v808 = vsel %vm503, %v734, 0.0
        %809 = vadd.xlane.f32.xlu0 %v808
        %v810 = vpop.xlane.xlu0 %809
        %v811 = vsel %vm503, %v735, 0.0
        %812 = vadd.xlane.f32.xlu0 %v811
        %v813 = vpop.xlane.xlu0 %812
        %v814 = vsel %vm503, %v736, 0.0
        %815 = vadd.xlane.f32.xlu0 %v814
        %v816 = vpop.xlane.xlu0 %815
        %v817 = vsel %vm503, %v737, 0.0
        %818 = vadd.xlane.f32.xlu0 %v817
        %v819 = vpop.xlane.xlu0 %818
        %v820 = vsel %vm503, %v738, 0.0
        %821 = vadd.xlane.f32.xlu0 %v820
        %v822 = vpop.xlane.xlu0 %821
        %v823 = vsel %vm503, %v739, 0.0
        %824 = vadd.xlane.f32.xlu0 %v823
        %v825 = vpop.xlane.xlu0 %824
        %v826 = vsel %vm503, %v740, 0.0
        %827 = vadd.xlane.f32.xlu0 %v826
        %v828 = vpop.xlane.xlu0 %827
        %v829 = vsel %vm503, %v741, 0.0
        %830 = vadd.xlane.f32.xlu0 %v829
        %v831 = vpop.xlane.xlu0 %830
        %v832 = vsel %vm503, %v742, 0.0
        %833 = vadd.xlane.f32.xlu0 %v832
        %v834 = vpop.xlane.xlu0 %833
        %v835 = vsel %vm503, %v743, 0.0
        %836 = vadd.xlane.f32.xlu0 %v835
        %v837 = vpop.xlane.xlu0 %836
        %v838 = vsel %vm503, %v744, 0.0
        %839 = vadd.xlane.f32.xlu0 %v838
        %v840 = vpop.xlane.xlu0 %839
        %v841 = vld [vmem:[%s3] sm:$0xf]
        %v842 = vld [vmem:[%s4] sm:$0xff]
        %v843 = vld [vmem:[%s4 + $0x8] sm:$0xff]
        %v844 = vld [vmem:[%s4 + $0x10] sm:$0xff]
        %v845 = vld [vmem:[%s4 + $0x18] sm:$0xff]
        %v846 = vld [vmem:[%s4 + $0x20] sm:$0xff]
        %v847 = vld [vmem:[%s4 + $0x28] sm:$0xff]
        %v848 = vld [vmem:[%s4 + $0x30] sm:$0xff]
        %v849 = vld [vmem:[%s4 + $0x38] sm:$0xff]
        %v851 = vlaneseq
        %v852 = vshrl.u32 %v851, 7
        %v853 = vsub.s32 0, %v852
        %v854 = vrot.slane %v841, %v853
        %856 = vbcast.lane.b32.xlu0 %v854, 256
        %v857 = vpop.permute.xlu0 %856
        %s859 = sor.u32 256, 8
        %860 = vbcast.lane.b32.xlu0 %v854, %s859
        %v861 = vpop.permute.xlu0 %860
        %s863 = sor.u32 256, 16
        %864 = vbcast.lane.b32.xlu0 %v854, %s863
        %v865 = vpop.permute.xlu0 %864
        %s867 = sor.u32 256, 24
        %868 = vbcast.lane.b32.xlu0 %v854, %s867
        %v869 = vpop.permute.xlu0 %868
        %s871 = sor.u32 256, 32
        %872 = vbcast.lane.b32.xlu0 %v854, %s871
        %v873 = vpop.permute.xlu0 %872
        %s875 = sor.u32 256, 40
        %876 = vbcast.lane.b32.xlu0 %v854, %s875
        %v877 = vpop.permute.xlu0 %876
        %s879 = sor.u32 256, 48
        %880 = vbcast.lane.b32.xlu0 %v854, %s879
        %v881 = vpop.permute.xlu0 %880
        %s883 = sor.u32 256, 56
        %884 = vbcast.lane.b32.xlu0 %v854, %s883
        %v885 = vpop.permute.xlu0 %884
        %v886 = vlaneseq
        %v887 = vshrl.u32 %v886, 7
        %v888 = vsub.s32 1, %v887
        %v889 = vrot.slane %v841, %v888
        %891 = vbcast.lane.b32.xlu0 %v889, 256
        %v892 = vpop.permute.xlu0 %891
        %s894 = sor.u32 256, 8
        %895 = vbcast.lane.b32.xlu0 %v889, %s894
        %v896 = vpop.permute.xlu0 %895
        %s898 = sor.u32 256, 16
        %899 = vbcast.lane.b32.xlu0 %v889, %s898
        %v900 = vpop.permute.xlu0 %899
        %s902 = sor.u32 256, 24
        %903 = vbcast.lane.b32.xlu0 %v889, %s902
        %v904 = vpop.permute.xlu0 %903
        %s906 = sor.u32 256, 32
        %907 = vbcast.lane.b32.xlu0 %v889, %s906
        %v908 = vpop.permute.xlu0 %907
        %s910 = sor.u32 256, 40
        %911 = vbcast.lane.b32.xlu0 %v889, %s910
        %v912 = vpop.permute.xlu0 %911
        %s914 = sor.u32 256, 48
        %915 = vbcast.lane.b32.xlu0 %v889, %s914
        %v916 = vpop.permute.xlu0 %915
        %s918 = sor.u32 256, 56
        %919 = vbcast.lane.b32.xlu0 %v889, %s918
        %v920 = vpop.permute.xlu0 %919
        %v921 = vlaneseq
        %v922 = vshrl.u32 %v921, 7
        %v923 = vsub.s32 2, %v922
        %v924 = vrot.slane %v841, %v923
        %926 = vbcast.lane.b32.xlu0 %v924, 256
        %v927 = vpop.permute.xlu0 %926
        %s929 = sor.u32 256, 8
        %930 = vbcast.lane.b32.xlu0 %v924, %s929
        %v931 = vpop.permute.xlu0 %930
        %s933 = sor.u32 256, 16
        %934 = vbcast.lane.b32.xlu0 %v924, %s933
        %v935 = vpop.permute.xlu0 %934
        %s937 = sor.u32 256, 24
        %938 = vbcast.lane.b32.xlu0 %v924, %s937
        %v939 = vpop.permute.xlu0 %938
        %s941 = sor.u32 256, 32
        %942 = vbcast.lane.b32.xlu0 %v924, %s941
        %v943 = vpop.permute.xlu0 %942
        %s945 = sor.u32 256, 40
        %946 = vbcast.lane.b32.xlu0 %v924, %s945
        %v947 = vpop.permute.xlu0 %946
        %s949 = sor.u32 256, 48
        %950 = vbcast.lane.b32.xlu0 %v924, %s949
        %v951 = vpop.permute.xlu0 %950
        %s953 = sor.u32 256, 56
        %954 = vbcast.lane.b32.xlu0 %v924, %s953
        %v955 = vpop.permute.xlu0 %954
        %v956 = vlaneseq
        %v957 = vshrl.u32 %v956, 7
        %v958 = vsub.s32 3, %v957
        %v959 = vrot.slane %v841, %v958
        %961 = vbcast.lane.b32.xlu0 %v959, 256
        %v962 = vpop.permute.xlu0 %961
        %s964 = sor.u32 256, 8
        %965 = vbcast.lane.b32.xlu0 %v959, %s964
        %v966 = vpop.permute.xlu0 %965
        %s968 = sor.u32 256, 16
        %969 = vbcast.lane.b32.xlu0 %v959, %s968
        %v970 = vpop.permute.xlu0 %969
        %s972 = sor.u32 256, 24
        %973 = vbcast.lane.b32.xlu0 %v959, %s972
        %v974 = vpop.permute.xlu0 %973
        %s976 = sor.u32 256, 32
        %977 = vbcast.lane.b32.xlu0 %v959, %s976
        %v978 = vpop.permute.xlu0 %977
        %s980 = sor.u32 256, 40
        %981 = vbcast.lane.b32.xlu0 %v959, %s980
        %v982 = vpop.permute.xlu0 %981
        %s984 = sor.u32 256, 48
        %985 = vbcast.lane.b32.xlu0 %v959, %s984
        %v986 = vpop.permute.xlu0 %985
        %s988 = sor.u32 256, 56
        %989 = vbcast.lane.b32.xlu0 %v959, %s988
        %v990 = vpop.permute.xlu0 %989
        %v1023 = vmul.f32 %v747, %v857
        %v1024 = vmul.f32 %v750, %v861
        %v1025 = vmul.f32 %v753, %v865
        %v1026 = vmul.f32 %v756, %v869
        %v1027 = vmul.f32 %v759, %v873
        %v1028 = vmul.f32 %v762, %v877
        %v1029 = vmul.f32 %v765, %v881
        %v1030 = vmul.f32 %v768, %v885
        %v1031 = vmul.f32 %v747, %v892
        %v1032 = vmul.f32 %v750, %v896
        %v1033 = vmul.f32 %v753, %v900
        %v1034 = vmul.f32 %v756, %v904
        %v1035 = vmul.f32 %v759, %v908
        %v1036 = vmul.f32 %v762, %v912
        %v1037 = vmul.f32 %v765, %v916
        %v1038 = vmul.f32 %v768, %v920
        %v1039 = vmul.f32 %v747, %v927
        %v1040 = vmul.f32 %v750, %v931
        %v1041 = vmul.f32 %v753, %v935
        %v1042 = vmul.f32 %v756, %v939
        %v1043 = vmul.f32 %v759, %v943
        %v1044 = vmul.f32 %v762, %v947
        %v1045 = vmul.f32 %v765, %v951
        %v1046 = vmul.f32 %v768, %v955
        %v1047 = vmul.f32 %v747, %v962
        %v1048 = vmul.f32 %v750, %v966
        %v1049 = vmul.f32 %v753, %v970
        %v1050 = vmul.f32 %v756, %v974
        %v1051 = vmul.f32 %v759, %v978
        %v1052 = vmul.f32 %v762, %v982
        %v1053 = vmul.f32 %v765, %v986
        %v1054 = vmul.f32 %v768, %v990
        %v1055 = vmul.f32 %v771, %v857
        %v1056 = vmul.f32 %v774, %v861
        %v1057 = vmul.f32 %v777, %v865
        %v1058 = vmul.f32 %v780, %v869
        %v1059 = vmul.f32 %v783, %v873
        %v1060 = vmul.f32 %v786, %v877
        %v1061 = vmul.f32 %v789, %v881
        %v1062 = vmul.f32 %v792, %v885
        %v1063 = vmul.f32 %v771, %v892
        %v1064 = vmul.f32 %v774, %v896
        %v1065 = vmul.f32 %v777, %v900
        %v1066 = vmul.f32 %v780, %v904
        %v1067 = vmul.f32 %v783, %v908
        %v1068 = vmul.f32 %v786, %v912
        %v1069 = vmul.f32 %v789, %v916
        %v1070 = vmul.f32 %v792, %v920
        %v1071 = vmul.f32 %v771, %v927
        %v1072 = vmul.f32 %v774, %v931
        %v1073 = vmul.f32 %v777, %v935
        %v1074 = vmul.f32 %v780, %v939
        %v1075 = vmul.f32 %v783, %v943
        %v1076 = vmul.f32 %v786, %v947
        %v1077 = vmul.f32 %v789, %v951
        %v1078 = vmul.f32 %v792, %v955
        %v1079 = vmul.f32 %v771, %v962
        %v1080 = vmul.f32 %v774, %v966
        %v1081 = vmul.f32 %v777, %v970
        %v1082 = vmul.f32 %v780, %v974
        %v1083 = vmul.f32 %v783, %v978
        %v1084 = vmul.f32 %v786, %v982
        %v1085 = vmul.f32 %v789, %v986
        %v1086 = vmul.f32 %v792, %v990
        %v1087 = vmul.f32 %v795, %v857
        %v1088 = vmul.f32 %v798, %v861
        %v1089 = vmul.f32 %v801, %v865
        %v1090 = vmul.f32 %v804, %v869
        %v1091 = vmul.f32 %v807, %v873
        %v1092 = vmul.f32 %v810, %v877
        %v1093 = vmul.f32 %v813, %v881
        %v1094 = vmul.f32 %v816, %v885
        %v1095 = vmul.f32 %v795, %v892
        %v1096 = vmul.f32 %v798, %v896
        %v1097 = vmul.f32 %v801, %v900
        %v1098 = vmul.f32 %v804, %v904
        %v1099 = vmul.f32 %v807, %v908
        %v1100 = vmul.f32 %v810, %v912
        %v1101 = vmul.f32 %v813, %v916
        %v1102 = vmul.f32 %v816, %v920
        %v1103 = vmul.f32 %v795, %v927
        %v1104 = vmul.f32 %v798, %v931
        %v1105 = vmul.f32 %v801, %v935
        %v1106 = vmul.f32 %v804, %v939
        %v1107 = vmul.f32 %v807, %v943
        %v1108 = vmul.f32 %v810, %v947
        %v1109 = vmul.f32 %v813, %v951
        %v1110 = vmul.f32 %v816, %v955
        %v1111 = vmul.f32 %v795, %v962
        %v1112 = vmul.f32 %v798, %v966
        %v1113 = vmul.f32 %v801, %v970
        %v1114 = vmul.f32 %v804, %v974
        %v1115 = vmul.f32 %v807, %v978
        %v1116 = vmul.f32 %v810, %v982
        %v1117 = vmul.f32 %v813, %v986
        %v1118 = vmul.f32 %v816, %v990
        %v1119 = vmul.f32 %v819, %v857
        %v1120 = vmul.f32 %v822, %v861
        %v1121 = vmul.f32 %v825, %v865
        %v1122 = vmul.f32 %v828, %v869
        %v1123 = vmul.f32 %v831, %v873
        %v1124 = vmul.f32 %v834, %v877
        %v1125 = vmul.f32 %v837, %v881
        %v1126 = vmul.f32 %v840, %v885
        %v1127 = vmul.f32 %v819, %v892
        %v1128 = vmul.f32 %v822, %v896
        %v1129 = vmul.f32 %v825, %v900
        %v1130 = vmul.f32 %v828, %v904
        %v1131 = vmul.f32 %v831, %v908
        %v1132 = vmul.f32 %v834, %v912
        %v1133 = vmul.f32 %v837, %v916
        %v1134 = vmul.f32 %v840, %v920
        %v1135 = vmul.f32 %v819, %v927
        %v1136 = vmul.f32 %v822, %v931
        %v1137 = vmul.f32 %v825, %v935
        %v1138 = vmul.f32 %v828, %v939
        %v1139 = vmul.f32 %v831, %v943
        %v1140 = vmul.f32 %v834, %v947
        %v1141 = vmul.f32 %v837, %v951
        %v1142 = vmul.f32 %v840, %v955
        %v1143 = vmul.f32 %v819, %v962
        %v1144 = vmul.f32 %v822, %v966
        %v1145 = vmul.f32 %v825, %v970
        %v1146 = vmul.f32 %v828, %v974
        %v1147 = vmul.f32 %v831, %v978
        %v1148 = vmul.f32 %v834, %v982
        %v1149 = vmul.f32 %v837, %v986
        %v1150 = vmul.f32 %v840, %v990
        %1279 = vset.pattern.permute.xlu0 0
        %1280 = vperm.xlu0 %1279, %v1023
        %v1281 = vpop.permute.xlu0 %1280
        %1282 = vset.pattern.permute.xlu0 0
        %1283 = vperm.xlu0 %1282, %v1024
        %v1284 = vpop.permute.xlu0 %1283
        %1285 = vset.pattern.permute.xlu0 0
        %1286 = vperm.xlu0 %1285, %v1025
        %v1287 = vpop.permute.xlu0 %1286
        %1288 = vset.pattern.permute.xlu0 0
        %1289 = vperm.xlu0 %1288, %v1026
        %v1290 = vpop.permute.xlu0 %1289
        %1291 = vset.pattern.permute.xlu0 0
        %1292 = vperm.xlu0 %1291, %v1027
        %v1293 = vpop.permute.xlu0 %1292
        %1294 = vset.pattern.permute.xlu0 0
        %1295 = vperm.xlu0 %1294, %v1028
        %v1296 = vpop.permute.xlu0 %1295
        %1297 = vset.pattern.permute.xlu0 0
        %1298 = vperm.xlu0 %1297, %v1029
        %v1299 = vpop.permute.xlu0 %1298
        %1300 = vset.pattern.permute.xlu0 0
        %1301 = vperm.xlu0 %1300, %v1030
        %v1302 = vpop.permute.xlu0 %1301
        %1303 = vset.pattern.permute.xlu0 0
        %1304 = vperm.xlu0 %1303, %v1031
        %v1305 = vpop.permute.xlu0 %1304
        %1306 = vset.pattern.permute.xlu0 0
        %1307 = vperm.xlu0 %1306, %v1032
        %v1308 = vpop.permute.xlu0 %1307
        %1309 = vset.pattern.permute.xlu0 0
        %1310 = vperm.xlu0 %1309, %v1033
        %v1311 = vpop.permute.xlu0 %1310
        %1312 = vset.pattern.permute.xlu0 0
        %1313 = vperm.xlu0 %1312, %v1034
        %v1314 = vpop.permute.xlu0 %1313
        %1315 = vset.pattern.permute.xlu0 0
        %1316 = vperm.xlu0 %1315, %v1035
        %v1317 = vpop.permute.xlu0 %1316
        %1318 = vset.pattern.permute.xlu0 0
        %1319 = vperm.xlu0 %1318, %v1036
        %v1320 = vpop.permute.xlu0 %1319
        %1321 = vset.pattern.permute.xlu0 0
        %1322 = vperm.xlu0 %1321, %v1037
        %v1323 = vpop.permute.xlu0 %1322
        %1324 = vset.pattern.permute.xlu0 0
        %1325 = vperm.xlu0 %1324, %v1038
        %v1326 = vpop.permute.xlu0 %1325
        %1327 = vset.pattern.permute.xlu0 0
        %1328 = vperm.xlu0 %1327, %v1039
        %v1329 = vpop.permute.xlu0 %1328
        %1330 = vset.pattern.permute.xlu0 0
        %1331 = vperm.xlu0 %1330, %v1040
        %v1332 = vpop.permute.xlu0 %1331
        %1333 = vset.pattern.permute.xlu0 0
        %1334 = vperm.xlu0 %1333, %v1041
        %v1335 = vpop.permute.xlu0 %1334
        %1336 = vset.pattern.permute.xlu0 0
        %1337 = vperm.xlu0 %1336, %v1042
        %v1338 = vpop.permute.xlu0 %1337
        %1339 = vset.pattern.permute.xlu0 0
        %1340 = vperm.xlu0 %1339, %v1043
        %v1341 = vpop.permute.xlu0 %1340
        %1342 = vset.pattern.permute.xlu0 0
        %1343 = vperm.xlu0 %1342, %v1044
        %v1344 = vpop.permute.xlu0 %1343
        %1345 = vset.pattern.permute.xlu0 0
        %1346 = vperm.xlu0 %1345, %v1045
        %v1347 = vpop.permute.xlu0 %1346
        %1348 = vset.pattern.permute.xlu0 0
        %1349 = vperm.xlu0 %1348, %v1046
        %v1350 = vpop.permute.xlu0 %1349
        %1351 = vset.pattern.permute.xlu0 0
        %1352 = vperm.xlu0 %1351, %v1047
        %v1353 = vpop.permute.xlu0 %1352
        %1354 = vset.pattern.permute.xlu0 0
        %1355 = vperm.xlu0 %1354, %v1048
        %v1356 = vpop.permute.xlu0 %1355
        %1357 = vset.pattern.permute.xlu0 0
        %1358 = vperm.xlu0 %1357, %v1049
        %v1359 = vpop.permute.xlu0 %1358
        %1360 = vset.pattern.permute.xlu0 0
        %1361 = vperm.xlu0 %1360, %v1050
        %v1362 = vpop.permute.xlu0 %1361
        %1363 = vset.pattern.permute.xlu0 0
        %1364 = vperm.xlu0 %1363, %v1051
        %v1365 = vpop.permute.xlu0 %1364
        %1366 = vset.pattern.permute.xlu0 0
        %1367 = vperm.xlu0 %1366, %v1052
        %v1368 = vpop.permute.xlu0 %1367
        %1369 = vset.pattern.permute.xlu0 0
        %1370 = vperm.xlu0 %1369, %v1053
        %v1371 = vpop.permute.xlu0 %1370
        %1372 = vset.pattern.permute.xlu0 0
        %1373 = vperm.xlu0 %1372, %v1054
        %v1374 = vpop.permute.xlu0 %1373
        %1375 = vset.pattern.permute.xlu0 0
        %1376 = vperm.xlu0 %1375, %v1055
        %v1377 = vpop.permute.xlu0 %1376
        %1378 = vset.pattern.permute.xlu0 0
        %1379 = vperm.xlu0 %1378, %v1056
        %v1380 = vpop.permute.xlu0 %1379
        %1381 = vset.pattern.permute.xlu0 0
        %1382 = vperm.xlu0 %1381, %v1057
        %v1383 = vpop.permute.xlu0 %1382
        %1384 = vset.pattern.permute.xlu0 0
        %1385 = vperm.xlu0 %1384, %v1058
        %v1386 = vpop.permute.xlu0 %1385
        %1387 = vset.pattern.permute.xlu0 0
        %1388 = vperm.xlu0 %1387, %v1059
        %v1389 = vpop.permute.xlu0 %1388
        %1390 = vset.pattern.permute.xlu0 0
        %1391 = vperm.xlu0 %1390, %v1060
        %v1392 = vpop.permute.xlu0 %1391
        %1393 = vset.pattern.permute.xlu0 0
        %1394 = vperm.xlu0 %1393, %v1061
        %v1395 = vpop.permute.xlu0 %1394
        %1396 = vset.pattern.permute.xlu0 0
        %1397 = vperm.xlu0 %1396, %v1062
        %v1398 = vpop.permute.xlu0 %1397
        %1399 = vset.pattern.permute.xlu0 0
        %1400 = vperm.xlu0 %1399, %v1063
        %v1401 = vpop.permute.xlu0 %1400
        %1402 = vset.pattern.permute.xlu0 0
        %1403 = vperm.xlu0 %1402, %v1064
        %v1404 = vpop.permute.xlu0 %1403
        %1405 = vset.pattern.permute.xlu0 0
        %1406 = vperm.xlu0 %1405, %v1065
        %v1407 = vpop.permute.xlu0 %1406
        %1408 = vset.pattern.permute.xlu0 0
        %1409 = vperm.xlu0 %1408, %v1066
        %v1410 = vpop.permute.xlu0 %1409
        %1411 = vset.pattern.permute.xlu0 0
        %1412 = vperm.xlu0 %1411, %v1067
        %v1413 = vpop.permute.xlu0 %1412
        %1414 = vset.pattern.permute.xlu0 0
        %1415 = vperm.xlu0 %1414, %v1068
        %v1416 = vpop.permute.xlu0 %1415
        %1417 = vset.pattern.permute.xlu0 0
        %1418 = vperm.xlu0 %1417, %v1069
        %v1419 = vpop.permute.xlu0 %1418
        %1420 = vset.pattern.permute.xlu0 0
        %1421 = vperm.xlu0 %1420, %v1070
        %v1422 = vpop.permute.xlu0 %1421
        %1423 = vset.pattern.permute.xlu0 0
        %1424 = vperm.xlu0 %1423, %v1071
        %v1425 = vpop.permute.xlu0 %1424
        %1426 = vset.pattern.permute.xlu0 0
        %1427 = vperm.xlu0 %1426, %v1072
        %v1428 = vpop.permute.xlu0 %1427
        %1429 = vset.pattern.permute.xlu0 0
        %1430 = vperm.xlu0 %1429, %v1073
        %v1431 = vpop.permute.xlu0 %1430
        %1432 = vset.pattern.permute.xlu0 0
        %1433 = vperm.xlu0 %1432, %v1074
        %v1434 = vpop.permute.xlu0 %1433
        %1435 = vset.pattern.permute.xlu0 0
        %1436 = vperm.xlu0 %1435, %v1075
        %v1437 = vpop.permute.xlu0 %1436
        %1438 = vset.pattern.permute.xlu0 0
        %1439 = vperm.xlu0 %1438, %v1076
        %v1440 = vpop.permute.xlu0 %1439
        %1441 = vset.pattern.permute.xlu0 0
        %1442 = vperm.xlu0 %1441, %v1077
        %v1443 = vpop.permute.xlu0 %1442
        %1444 = vset.pattern.permute.xlu0 0
        %1445 = vperm.xlu0 %1444, %v1078
        %v1446 = vpop.permute.xlu0 %1445
        %1447 = vset.pattern.permute.xlu0 0
        %1448 = vperm.xlu0 %1447, %v1079
        %v1449 = vpop.permute.xlu0 %1448
        %1450 = vset.pattern.permute.xlu0 0
        %1451 = vperm.xlu0 %1450, %v1080
        %v1452 = vpop.permute.xlu0 %1451
        %1453 = vset.pattern.permute.xlu0 0
        %1454 = vperm.xlu0 %1453, %v1081
        %v1455 = vpop.permute.xlu0 %1454
        %1456 = vset.pattern.permute.xlu0 0
        %1457 = vperm.xlu0 %1456, %v1082
        %v1458 = vpop.permute.xlu0 %1457
        %1459 = vset.pattern.permute.xlu0 0
        %1460 = vperm.xlu0 %1459, %v1083
        %v1461 = vpop.permute.xlu0 %1460
        %1462 = vset.pattern.permute.xlu0 0
        %1463 = vperm.xlu0 %1462, %v1084
        %v1464 = vpop.permute.xlu0 %1463
        %1465 = vset.pattern.permute.xlu0 0
        %1466 = vperm.xlu0 %1465, %v1085
        %v1467 = vpop.permute.xlu0 %1466
        %1468 = vset.pattern.permute.xlu0 0
        %1469 = vperm.xlu0 %1468, %v1086
        %v1470 = vpop.permute.xlu0 %1469
        %1471 = vset.pattern.permute.xlu0 0
        %1472 = vperm.xlu0 %1471, %v1087
        %v1473 = vpop.permute.xlu0 %1472
        %1474 = vset.pattern.permute.xlu0 0
        %1475 = vperm.xlu0 %1474, %v1088
        %v1476 = vpop.permute.xlu0 %1475
        %1477 = vset.pattern.permute.xlu0 0
        %1478 = vperm.xlu0 %1477, %v1089
        %v1479 = vpop.permute.xlu0 %1478
        %1480 = vset.pattern.permute.xlu0 0
        %1481 = vperm.xlu0 %1480, %v1090
        %v1482 = vpop.permute.xlu0 %1481
        %1483 = vset.pattern.permute.xlu0 0
        %1484 = vperm.xlu0 %1483, %v1091
        %v1485 = vpop.permute.xlu0 %1484
        %1486 = vset.pattern.permute.xlu0 0
        %1487 = vperm.xlu0 %1486, %v1092
        %v1488 = vpop.permute.xlu0 %1487
        %1489 = vset.pattern.permute.xlu0 0
        %1490 = vperm.xlu0 %1489, %v1093
        %v1491 = vpop.permute.xlu0 %1490
        %1492 = vset.pattern.permute.xlu0 0
        %1493 = vperm.xlu0 %1492, %v1094
        %v1494 = vpop.permute.xlu0 %1493
        %1495 = vset.pattern.permute.xlu0 0
        %1496 = vperm.xlu0 %1495, %v1095
        %v1497 = vpop.permute.xlu0 %1496
        %1498 = vset.pattern.permute.xlu0 0
        %1499 = vperm.xlu0 %1498, %v1096
        %v1500 = vpop.permute.xlu0 %1499
        %1501 = vset.pattern.permute.xlu0 0
        %1502 = vperm.xlu0 %1501, %v1097
        %v1503 = vpop.permute.xlu0 %1502
        %1504 = vset.pattern.permute.xlu0 0
        %1505 = vperm.xlu0 %1504, %v1098
        %v1506 = vpop.permute.xlu0 %1505
        %1507 = vset.pattern.permute.xlu0 0
        %1508 = vperm.xlu0 %1507, %v1099
        %v1509 = vpop.permute.xlu0 %1508
        %1510 = vset.pattern.permute.xlu0 0
        %1511 = vperm.xlu0 %1510, %v1100
        %v1512 = vpop.permute.xlu0 %1511
        %1513 = vset.pattern.permute.xlu0 0
        %1514 = vperm.xlu0 %1513, %v1101
        %v1515 = vpop.permute.xlu0 %1514
        %1516 = vset.pattern.permute.xlu0 0
        %1517 = vperm.xlu0 %1516, %v1102
        %v1518 = vpop.permute.xlu0 %1517
        %1519 = vset.pattern.permute.xlu0 0
        %1520 = vperm.xlu0 %1519, %v1103
        %v1521 = vpop.permute.xlu0 %1520
        %1522 = vset.pattern.permute.xlu0 0
        %1523 = vperm.xlu0 %1522, %v1104
        %v1524 = vpop.permute.xlu0 %1523
        %1525 = vset.pattern.permute.xlu0 0
        %1526 = vperm.xlu0 %1525, %v1105
        %v1527 = vpop.permute.xlu0 %1526
        %1528 = vset.pattern.permute.xlu0 0
        %1529 = vperm.xlu0 %1528, %v1106
        %v1530 = vpop.permute.xlu0 %1529
        %1531 = vset.pattern.permute.xlu0 0
        %1532 = vperm.xlu0 %1531, %v1107
        %v1533 = vpop.permute.xlu0 %1532
        %1534 = vset.pattern.permute.xlu0 0
        %1535 = vperm.xlu0 %1534, %v1108
        %v1536 = vpop.permute.xlu0 %1535
        %1537 = vset.pattern.permute.xlu0 0
        %1538 = vperm.xlu0 %1537, %v1109
        %v1539 = vpop.permute.xlu0 %1538
        %1540 = vset.pattern.permute.xlu0 0
        %1541 = vperm.xlu0 %1540, %v1110
        %v1542 = vpop.permute.xlu0 %1541
        %1543 = vset.pattern.permute.xlu0 0
        %1544 = vperm.xlu0 %1543, %v1111
        %v1545 = vpop.permute.xlu0 %1544
        %1546 = vset.pattern.permute.xlu0 0
        %1547 = vperm.xlu0 %1546, %v1112
        %v1548 = vpop.permute.xlu0 %1547
        %1549 = vset.pattern.permute.xlu0 0
        %1550 = vperm.xlu0 %1549, %v1113
        %v1551 = vpop.permute.xlu0 %1550
        %1552 = vset.pattern.permute.xlu0 0
        %1553 = vperm.xlu0 %1552, %v1114
        %v1554 = vpop.permute.xlu0 %1553
        %1555 = vset.pattern.permute.xlu0 0
        %1556 = vperm.xlu0 %1555, %v1115
        %v1557 = vpop.permute.xlu0 %1556
        %1558 = vset.pattern.permute.xlu0 0
        %1559 = vperm.xlu0 %1558, %v1116
        %v1560 = vpop.permute.xlu0 %1559
        %1561 = vset.pattern.permute.xlu0 0
        %1562 = vperm.xlu0 %1561, %v1117
        %v1563 = vpop.permute.xlu0 %1562
        %1564 = vset.pattern.permute.xlu0 0
        %1565 = vperm.xlu0 %1564, %v1118
        %v1566 = vpop.permute.xlu0 %1565
        %1567 = vset.pattern.permute.xlu0 0
        %1568 = vperm.xlu0 %1567, %v1119
        %v1569 = vpop.permute.xlu0 %1568
        %1570 = vset.pattern.permute.xlu0 0
        %1571 = vperm.xlu0 %1570, %v1120
        %v1572 = vpop.permute.xlu0 %1571
        %1573 = vset.pattern.permute.xlu0 0
        %1574 = vperm.xlu0 %1573, %v1121
        %v1575 = vpop.permute.xlu0 %1574
        %1576 = vset.pattern.permute.xlu0 0
        %1577 = vperm.xlu0 %1576, %v1122
        %v1578 = vpop.permute.xlu0 %1577
        %1579 = vset.pattern.permute.xlu0 0
        %1580 = vperm.xlu0 %1579, %v1123
        %v1581 = vpop.permute.xlu0 %1580
        %1582 = vset.pattern.permute.xlu0 0
        %1583 = vperm.xlu0 %1582, %v1124
        %v1584 = vpop.permute.xlu0 %1583
        %1585 = vset.pattern.permute.xlu0 0
        %1586 = vperm.xlu0 %1585, %v1125
        %v1587 = vpop.permute.xlu0 %1586
        %1588 = vset.pattern.permute.xlu0 0
        %1589 = vperm.xlu0 %1588, %v1126
        %v1590 = vpop.permute.xlu0 %1589
        %1591 = vset.pattern.permute.xlu0 0
        %1592 = vperm.xlu0 %1591, %v1127
        %v1593 = vpop.permute.xlu0 %1592
        %1594 = vset.pattern.permute.xlu0 0
        %1595 = vperm.xlu0 %1594, %v1128
        %v1596 = vpop.permute.xlu0 %1595
        %1597 = vset.pattern.permute.xlu0 0
        %1598 = vperm.xlu0 %1597, %v1129
        %v1599 = vpop.permute.xlu0 %1598
        %1600 = vset.pattern.permute.xlu0 0
        %1601 = vperm.xlu0 %1600, %v1130
        %v1602 = vpop.permute.xlu0 %1601
        %1603 = vset.pattern.permute.xlu0 0
        %1604 = vperm.xlu0 %1603, %v1131
        %v1605 = vpop.permute.xlu0 %1604
        %1606 = vset.pattern.permute.xlu0 0
        %1607 = vperm.xlu0 %1606, %v1132
        %v1608 = vpop.permute.xlu0 %1607
        %1609 = vset.pattern.permute.xlu0 0
        %1610 = vperm.xlu0 %1609, %v1133
        %v1611 = vpop.permute.xlu0 %1610
        %1612 = vset.pattern.permute.xlu0 0
        %1613 = vperm.xlu0 %1612, %v1134
        %v1614 = vpop.permute.xlu0 %1613
        %1615 = vset.pattern.permute.xlu0 0
        %1616 = vperm.xlu0 %1615, %v1135
        %v1617 = vpop.permute.xlu0 %1616
        %1618 = vset.pattern.permute.xlu0 0
        %1619 = vperm.xlu0 %1618, %v1136
        %v1620 = vpop.permute.xlu0 %1619
        %1621 = vset.pattern.permute.xlu0 0
        %1622 = vperm.xlu0 %1621, %v1137
        %v1623 = vpop.permute.xlu0 %1622
        %1624 = vset.pattern.permute.xlu0 0
        %1625 = vperm.xlu0 %1624, %v1138
        %v1626 = vpop.permute.xlu0 %1625
        %1627 = vset.pattern.permute.xlu0 0
        %1628 = vperm.xlu0 %1627, %v1139
        %v1629 = vpop.permute.xlu0 %1628
        %1630 = vset.pattern.permute.xlu0 0
        %1631 = vperm.xlu0 %1630, %v1140
        %v1632 = vpop.permute.xlu0 %1631
        %1633 = vset.pattern.permute.xlu0 0
        %1634 = vperm.xlu0 %1633, %v1141
        %v1635 = vpop.permute.xlu0 %1634
        %1636 = vset.pattern.permute.xlu0 0
        %1637 = vperm.xlu0 %1636, %v1142
        %v1638 = vpop.permute.xlu0 %1637
        %1639 = vset.pattern.permute.xlu0 0
        %1640 = vperm.xlu0 %1639, %v1143
        %v1641 = vpop.permute.xlu0 %1640
        %1642 = vset.pattern.permute.xlu0 0
        %1643 = vperm.xlu0 %1642, %v1144
        %v1644 = vpop.permute.xlu0 %1643
        %1645 = vset.pattern.permute.xlu0 0
        %1646 = vperm.xlu0 %1645, %v1145
        %v1647 = vpop.permute.xlu0 %1646
        %1648 = vset.pattern.permute.xlu0 0
        %1649 = vperm.xlu0 %1648, %v1146
        %v1650 = vpop.permute.xlu0 %1649
        %1651 = vset.pattern.permute.xlu0 0
        %1652 = vperm.xlu0 %1651, %v1147
        %v1653 = vpop.permute.xlu0 %1652
        %1654 = vset.pattern.permute.xlu0 0
        %1655 = vperm.xlu0 %1654, %v1148
        %v1656 = vpop.permute.xlu0 %1655
        %1657 = vset.pattern.permute.xlu0 0
        %1658 = vperm.xlu0 %1657, %v1149
        %v1659 = vpop.permute.xlu0 %1658
        %1660 = vset.pattern.permute.xlu0 0
        %1661 = vperm.xlu0 %1660, %v1150
        %v1662 = vpop.permute.xlu0 %1661
        %v1663 = vlaneseq
        %v1664 = vand.u32 %v1663, 127
        %v1665 = vlaneseq
        %v1666 = vshrl.u32 %v1665, 7
        %v1667 = vsub.s32 %v1664, %v1666
        %v1668 = vrot.slane %v1281, %v1667
        %v1669 = vadd.s32 %v1664, 4294967288
        %v1670 = vlaneseq
        %v1671 = vshrl.u32 %v1670, 7
        %v1672 = vsub.s32 %v1669, %v1671
        %v1673 = vrot.slane %v1284, %v1672
        %vm1674 = vcmask 130112
        %v1675 = vsel %vm1674, %v1673, %v1668
        %v1676 = vadd.s32 %v1664, 4294967280
        %v1677 = vlaneseq
        %v1678 = vshrl.u32 %v1677, 7
        %v1679 = vsub.s32 %v1676, %v1678
        %v1680 = vrot.slane %v1287, %v1679
        %vm1681 = vcmask 195712
        %v1682 = vsel %vm1681, %v1680, %v1675
        %v1683 = vadd.s32 %v1664, 4294967272
        %v1684 = vlaneseq
        %v1685 = vshrl.u32 %v1684, 7
        %v1686 = vsub.s32 %v1683, %v1685
        %v1687 = vrot.slane %v1290, %v1686
        %vm1688 = vcmask 261312
        %v1689 = vsel %vm1688, %v1687, %v1682
        %v1690 = vadd.s32 %v1664, 4294967264
        %v1691 = vlaneseq
        %v1692 = vshrl.u32 %v1691, 7
        %v1693 = vsub.s32 %v1690, %v1692
        %v1694 = vrot.slane %v1293, %v1693
        %vm1695 = vcmask 326912
        %v1696 = vsel %vm1695, %v1694, %v1689
        %v1697 = vadd.s32 %v1664, 4294967256
        %v1698 = vlaneseq
        %v1699 = vshrl.u32 %v1698, 7
        %v1700 = vsub.s32 %v1697, %v1699
        %v1701 = vrot.slane %v1296, %v1700
        %vm1702 = vcmask 392512
        %v1703 = vsel %vm1702, %v1701, %v1696
        %v1704 = vadd.s32 %v1664, 4294967248
        %v1705 = vlaneseq
        %v1706 = vshrl.u32 %v1705, 7
        %v1707 = vsub.s32 %v1704, %v1706
        %v1708 = vrot.slane %v1299, %v1707
        %vm1709 = vcmask 458112
        %v1710 = vsel %vm1709, %v1708, %v1703
        %v1711 = vadd.s32 %v1664, 4294967240
        %v1712 = vlaneseq
        %v1713 = vshrl.u32 %v1712, 7
        %v1714 = vsub.s32 %v1711, %v1713
        %v1715 = vrot.slane %v1302, %v1714
        %vm1716 = vcmask 523712
        %v1717 = vsel %vm1716, %v1715, %v1710
        %v1718 = vlaneseq
        %v1719 = vshrl.u32 %v1718, 7
        %v1720 = vsub.s32 %v1664, %v1719
        %v1721 = vrot.slane %v1305, %v1720
        %v1722 = vlaneseq
        %v1723 = vshrl.u32 %v1722, 7
        %v1724 = vsub.s32 %v1669, %v1723
        %v1725 = vrot.slane %v1308, %v1724
        %v1726 = vsel %vm1674, %v1725, %v1721
        %v1727 = vlaneseq
        %v1728 = vshrl.u32 %v1727, 7
        %v1729 = vsub.s32 %v1676, %v1728
        %v1730 = vrot.slane %v1311, %v1729
        %v1731 = vsel %vm1681, %v1730, %v1726
        %v1732 = vlaneseq
        %v1733 = vshrl.u32 %v1732, 7
        %v1734 = vsub.s32 %v1683, %v1733
        %v1735 = vrot.slane %v1314, %v1734
        %v1736 = vsel %vm1688, %v1735, %v1731
        %v1737 = vlaneseq
        %v1738 = vshrl.u32 %v1737, 7
        %v1739 = vsub.s32 %v1690, %v1738
        %v1740 = vrot.slane %v1317, %v1739
        %v1741 = vsel %vm1695, %v1740, %v1736
        %v1742 = vlaneseq
        %v1743 = vshrl.u32 %v1742, 7
        %v1744 = vsub.s32 %v1697, %v1743
        %v1745 = vrot.slane %v1320, %v1744
        %v1746 = vsel %vm1702, %v1745, %v1741
        %v1747 = vlaneseq
        %v1748 = vshrl.u32 %v1747, 7
        %v1749 = vsub.s32 %v1704, %v1748
        %v1750 = vrot.slane %v1323, %v1749
        %v1751 = vsel %vm1709, %v1750, %v1746
        %v1752 = vlaneseq
        %v1753 = vshrl.u32 %v1752, 7
        %v1754 = vsub.s32 %v1711, %v1753
        %v1755 = vrot.slane %v1326, %v1754
        %v1756 = vsel %vm1716, %v1755, %v1751
        %v1757 = vlaneseq
        %v1758 = vshrl.u32 %v1757, 7
        %v1759 = vsub.s32 %v1664, %v1758
        %v1760 = vrot.slane %v1329, %v1759
        %v1761 = vlaneseq
        %v1762 = vshrl.u32 %v1761, 7
        %v1763 = vsub.s32 %v1669, %v1762
        %v1764 = vrot.slane %v1332, %v1763
        %v1765 = vsel %vm1674, %v1764, %v1760
        %v1766 = vlaneseq
        %v1767 = vshrl.u32 %v1766, 7
        %v1768 = vsub.s32 %v1676, %v1767
        %v1769 = vrot.slane %v1335, %v1768
        %v1770 = vsel %vm1681, %v1769, %v1765
        %v1771 = vlaneseq
        %v1772 = vshrl.u32 %v1771, 7
        %v1773 = vsub.s32 %v1683, %v1772
        %v1774 = vrot.slane %v1338, %v1773
        %v1775 = vsel %vm1688, %v1774, %v1770
        %v1776 = vlaneseq
        %v1777 = vshrl.u32 %v1776, 7
        %v1778 = vsub.s32 %v1690, %v1777
        %v1779 = vrot.slane %v1341, %v1778
        %v1780 = vsel %vm1695, %v1779, %v1775
        %v1781 = vlaneseq
        %v1782 = vshrl.u32 %v1781, 7
        %v1783 = vsub.s32 %v1697, %v1782
        %v1784 = vrot.slane %v1344, %v1783
        %v1785 = vsel %vm1702, %v1784, %v1780
        %v1786 = vlaneseq
        %v1787 = vshrl.u32 %v1786, 7
        %v1788 = vsub.s32 %v1704, %v1787
        %v1789 = vrot.slane %v1347, %v1788
        %v1790 = vsel %vm1709, %v1789, %v1785
        %v1791 = vlaneseq
        %v1792 = vshrl.u32 %v1791, 7
        %v1793 = vsub.s32 %v1711, %v1792
        %v1794 = vrot.slane %v1350, %v1793
        %v1795 = vsel %vm1716, %v1794, %v1790
        %v1796 = vlaneseq
        %v1797 = vshrl.u32 %v1796, 7
        %v1798 = vsub.s32 %v1664, %v1797
        %v1799 = vrot.slane %v1353, %v1798
        %v1800 = vlaneseq
        %v1801 = vshrl.u32 %v1800, 7
        %v1802 = vsub.s32 %v1669, %v1801
        %v1803 = vrot.slane %v1356, %v1802
        %v1804 = vsel %vm1674, %v1803, %v1799
        %v1805 = vlaneseq
        %v1806 = vshrl.u32 %v1805, 7
        %v1807 = vsub.s32 %v1676, %v1806
        %v1808 = vrot.slane %v1359, %v1807
        %v1809 = vsel %vm1681, %v1808, %v1804
        %v1810 = vlaneseq
        %v1811 = vshrl.u32 %v1810, 7
        %v1812 = vsub.s32 %v1683, %v1811
        %v1813 = vrot.slane %v1362, %v1812
        %v1814 = vsel %vm1688, %v1813, %v1809
        %v1815 = vlaneseq
        %v1816 = vshrl.u32 %v1815, 7
        %v1817 = vsub.s32 %v1690, %v1816
        %v1818 = vrot.slane %v1365, %v1817
        %v1819 = vsel %vm1695, %v1818, %v1814
        %v1820 = vlaneseq
        %v1821 = vshrl.u32 %v1820, 7
        %v1822 = vsub.s32 %v1697, %v1821
        %v1823 = vrot.slane %v1368, %v1822
        %v1824 = vsel %vm1702, %v1823, %v1819
        %v1825 = vlaneseq
        %v1826 = vshrl.u32 %v1825, 7
        %v1827 = vsub.s32 %v1704, %v1826
        %v1828 = vrot.slane %v1371, %v1827
        %v1829 = vsel %vm1709, %v1828, %v1824
        %v1830 = vlaneseq
        %v1831 = vshrl.u32 %v1830, 7
        %v1832 = vsub.s32 %v1711, %v1831
        %v1833 = vrot.slane %v1374, %v1832
        %v1834 = vsel %vm1716, %v1833, %v1829
        %v1835 = vlaneseq
        %v1836 = vshrl.u32 %v1835, 7
        %v1837 = vsub.s32 %v1664, %v1836
        %v1838 = vrot.slane %v1377, %v1837
        %v1839 = vlaneseq
        %v1840 = vshrl.u32 %v1839, 7
        %v1841 = vsub.s32 %v1669, %v1840
        %v1842 = vrot.slane %v1380, %v1841
        %v1843 = vsel %vm1674, %v1842, %v1838
        %v1844 = vlaneseq
        %v1845 = vshrl.u32 %v1844, 7
        %v1846 = vsub.s32 %v1676, %v1845
        %v1847 = vrot.slane %v1383, %v1846
        %v1848 = vsel %vm1681, %v1847, %v1843
        %v1849 = vlaneseq
        %v1850 = vshrl.u32 %v1849, 7
        %v1851 = vsub.s32 %v1683, %v1850
        %v1852 = vrot.slane %v1386, %v1851
        %v1853 = vsel %vm1688, %v1852, %v1848
        %v1854 = vlaneseq
        %v1855 = vshrl.u32 %v1854, 7
        %v1856 = vsub.s32 %v1690, %v1855
        %v1857 = vrot.slane %v1389, %v1856
        %v1858 = vsel %vm1695, %v1857, %v1853
        %v1859 = vlaneseq
        %v1860 = vshrl.u32 %v1859, 7
        %v1861 = vsub.s32 %v1697, %v1860
        %v1862 = vrot.slane %v1392, %v1861
        %v1863 = vsel %vm1702, %v1862, %v1858
        %v1864 = vlaneseq
        %v1865 = vshrl.u32 %v1864, 7
        %v1866 = vsub.s32 %v1704, %v1865
        %v1867 = vrot.slane %v1395, %v1866
        %v1868 = vsel %vm1709, %v1867, %v1863
        %v1869 = vlaneseq
        %v1870 = vshrl.u32 %v1869, 7
        %v1871 = vsub.s32 %v1711, %v1870
        %v1872 = vrot.slane %v1398, %v1871
        %v1873 = vsel %vm1716, %v1872, %v1868
        %v1874 = vlaneseq
        %v1875 = vshrl.u32 %v1874, 7
        %v1876 = vsub.s32 %v1664, %v1875
        %v1877 = vrot.slane %v1401, %v1876
        %v1878 = vlaneseq
        %v1879 = vshrl.u32 %v1878, 7
        %v1880 = vsub.s32 %v1669, %v1879
        %v1881 = vrot.slane %v1404, %v1880
        %v1882 = vsel %vm1674, %v1881, %v1877
        %v1883 = vlaneseq
        %v1884 = vshrl.u32 %v1883, 7
        %v1885 = vsub.s32 %v1676, %v1884
        %v1886 = vrot.slane %v1407, %v1885
        %v1887 = vsel %vm1681, %v1886, %v1882
        %v1888 = vlaneseq
        %v1889 = vshrl.u32 %v1888, 7
        %v1890 = vsub.s32 %v1683, %v1889
        %v1891 = vrot.slane %v1410, %v1890
        %v1892 = vsel %vm1688, %v1891, %v1887
        %v1893 = vlaneseq
        %v1894 = vshrl.u32 %v1893, 7
        %v1895 = vsub.s32 %v1690, %v1894
        %v1896 = vrot.slane %v1413, %v1895
        %v1897 = vsel %vm1695, %v1896, %v1892
        %v1898 = vlaneseq
        %v1899 = vshrl.u32 %v1898, 7
        %v1900 = vsub.s32 %v1697, %v1899
        %v1901 = vrot.slane %v1416, %v1900
        %v1902 = vsel %vm1702, %v1901, %v1897
        %v1903 = vlaneseq
        %v1904 = vshrl.u32 %v1903, 7
        %v1905 = vsub.s32 %v1704, %v1904
        %v1906 = vrot.slane %v1419, %v1905
        %v1907 = vsel %vm1709, %v1906, %v1902
        %v1908 = vlaneseq
        %v1909 = vshrl.u32 %v1908, 7
        %v1910 = vsub.s32 %v1711, %v1909
        %v1911 = vrot.slane %v1422, %v1910
        %v1912 = vsel %vm1716, %v1911, %v1907
        %v1913 = vlaneseq
        %v1914 = vshrl.u32 %v1913, 7
        %v1915 = vsub.s32 %v1664, %v1914
        %v1916 = vrot.slane %v1425, %v1915
        %v1917 = vlaneseq
        %v1918 = vshrl.u32 %v1917, 7
        %v1919 = vsub.s32 %v1669, %v1918
        %v1920 = vrot.slane %v1428, %v1919
        %v1921 = vsel %vm1674, %v1920, %v1916
        %v1922 = vlaneseq
        %v1923 = vshrl.u32 %v1922, 7
        %v1924 = vsub.s32 %v1676, %v1923
        %v1925 = vrot.slane %v1431, %v1924
        %v1926 = vsel %vm1681, %v1925, %v1921
        %v1927 = vlaneseq
        %v1928 = vshrl.u32 %v1927, 7
        %v1929 = vsub.s32 %v1683, %v1928
        %v1930 = vrot.slane %v1434, %v1929
        %v1931 = vsel %vm1688, %v1930, %v1926
        %v1932 = vlaneseq
        %v1933 = vshrl.u32 %v1932, 7
        %v1934 = vsub.s32 %v1690, %v1933
        %v1935 = vrot.slane %v1437, %v1934
        %v1936 = vsel %vm1695, %v1935, %v1931
        %v1937 = vlaneseq
        %v1938 = vshrl.u32 %v1937, 7
        %v1939 = vsub.s32 %v1697, %v1938
        %v1940 = vrot.slane %v1440, %v1939
        %v1941 = vsel %vm1702, %v1940, %v1936
        %v1942 = vlaneseq
        %v1943 = vshrl.u32 %v1942, 7
        %v1944 = vsub.s32 %v1704, %v1943
        %v1945 = vrot.slane %v1443, %v1944
        %v1946 = vsel %vm1709, %v1945, %v1941
        %v1947 = vlaneseq
        %v1948 = vshrl.u32 %v1947, 7
        %v1949 = vsub.s32 %v1711, %v1948
        %v1950 = vrot.slane %v1446, %v1949
        %v1951 = vsel %vm1716, %v1950, %v1946
        %v1952 = vlaneseq
        %v1953 = vshrl.u32 %v1952, 7
        %v1954 = vsub.s32 %v1664, %v1953
        %v1955 = vrot.slane %v1449, %v1954
        %v1956 = vlaneseq
        %v1957 = vshrl.u32 %v1956, 7
        %v1958 = vsub.s32 %v1669, %v1957
        %v1959 = vrot.slane %v1452, %v1958
        %v1960 = vsel %vm1674, %v1959, %v1955
        %v1961 = vlaneseq
        %v1962 = vshrl.u32 %v1961, 7
        %v1963 = vsub.s32 %v1676, %v1962
        %v1964 = vrot.slane %v1455, %v1963
        %v1965 = vsel %vm1681, %v1964, %v1960
        %v1966 = vlaneseq
        %v1967 = vshrl.u32 %v1966, 7
        %v1968 = vsub.s32 %v1683, %v1967
        %v1969 = vrot.slane %v1458, %v1968
        %v1970 = vsel %vm1688, %v1969, %v1965
        %v1971 = vlaneseq
        %v1972 = vshrl.u32 %v1971, 7
        %v1973 = vsub.s32 %v1690, %v1972
        %v1974 = vrot.slane %v1461, %v1973
        %v1975 = vsel %vm1695, %v1974, %v1970
        %v1976 = vlaneseq
        %v1977 = vshrl.u32 %v1976, 7
        %v1978 = vsub.s32 %v1697, %v1977
        %v1979 = vrot.slane %v1464, %v1978
        %v1980 = vsel %vm1702, %v1979, %v1975
        %v1981 = vlaneseq
        %v1982 = vshrl.u32 %v1981, 7
        %v1983 = vsub.s32 %v1704, %v1982
        %v1984 = vrot.slane %v1467, %v1983
        %v1985 = vsel %vm1709, %v1984, %v1980
        %v1986 = vlaneseq
        %v1987 = vshrl.u32 %v1986, 7
        %v1988 = vsub.s32 %v1711, %v1987
        %v1989 = vrot.slane %v1470, %v1988
        %v1990 = vsel %vm1716, %v1989, %v1985
        %v1991 = vlaneseq
        %v1992 = vshrl.u32 %v1991, 7
        %v1993 = vsub.s32 %v1664, %v1992
        %v1994 = vrot.slane %v1473, %v1993
        %v1995 = vlaneseq
        %v1996 = vshrl.u32 %v1995, 7
        %v1997 = vsub.s32 %v1669, %v1996
        %v1998 = vrot.slane %v1476, %v1997
        %v1999 = vsel %vm1674, %v1998, %v1994
        %v2000 = vlaneseq
        %v2001 = vshrl.u32 %v2000, 7
        %v2002 = vsub.s32 %v1676, %v2001
        %v2003 = vrot.slane %v1479, %v2002
        %v2004 = vsel %vm1681, %v2003, %v1999
        %v2005 = vlaneseq
        %v2006 = vshrl.u32 %v2005, 7
        %v2007 = vsub.s32 %v1683, %v2006
        %v2008 = vrot.slane %v1482, %v2007
        %v2009 = vsel %vm1688, %v2008, %v2004
        %v2010 = vlaneseq
        %v2011 = vshrl.u32 %v2010, 7
        %v2012 = vsub.s32 %v1690, %v2011
        %v2013 = vrot.slane %v1485, %v2012
        %v2014 = vsel %vm1695, %v2013, %v2009
        %v2015 = vlaneseq
        %v2016 = vshrl.u32 %v2015, 7
        %v2017 = vsub.s32 %v1697, %v2016
        %v2018 = vrot.slane %v1488, %v2017
        %v2019 = vsel %vm1702, %v2018, %v2014
        %v2020 = vlaneseq
        %v2021 = vshrl.u32 %v2020, 7
        %v2022 = vsub.s32 %v1704, %v2021
        %v2023 = vrot.slane %v1491, %v2022
        %v2024 = vsel %vm1709, %v2023, %v2019
        %v2025 = vlaneseq
        %v2026 = vshrl.u32 %v2025, 7
        %v2027 = vsub.s32 %v1711, %v2026
        %v2028 = vrot.slane %v1494, %v2027
        %v2029 = vsel %vm1716, %v2028, %v2024
        %v2030 = vlaneseq
        %v2031 = vshrl.u32 %v2030, 7
        %v2032 = vsub.s32 %v1664, %v2031
        %v2033 = vrot.slane %v1497, %v2032
        %v2034 = vlaneseq
        %v2035 = vshrl.u32 %v2034, 7
        %v2036 = vsub.s32 %v1669, %v2035
        %v2037 = vrot.slane %v1500, %v2036
        %v2038 = vsel %vm1674, %v2037, %v2033
        %v2039 = vlaneseq
        %v2040 = vshrl.u32 %v2039, 7
        %v2041 = vsub.s32 %v1676, %v2040
        %v2042 = vrot.slane %v1503, %v2041
        %v2043 = vsel %vm1681, %v2042, %v2038
        %v2044 = vlaneseq
        %v2045 = vshrl.u32 %v2044, 7
        %v2046 = vsub.s32 %v1683, %v2045
        %v2047 = vrot.slane %v1506, %v2046
        %v2048 = vsel %vm1688, %v2047, %v2043
        %v2049 = vlaneseq
        %v2050 = vshrl.u32 %v2049, 7
        %v2051 = vsub.s32 %v1690, %v2050
        %v2052 = vrot.slane %v1509, %v2051
        %v2053 = vsel %vm1695, %v2052, %v2048
        %v2054 = vlaneseq
        %v2055 = vshrl.u32 %v2054, 7
        %v2056 = vsub.s32 %v1697, %v2055
        %v2057 = vrot.slane %v1512, %v2056
        %v2058 = vsel %vm1702, %v2057, %v2053
        %v2059 = vlaneseq
        %v2060 = vshrl.u32 %v2059, 7
        %v2061 = vsub.s32 %v1704, %v2060
        %v2062 = vrot.slane %v1515, %v2061
        %v2063 = vsel %vm1709, %v2062, %v2058
        %v2064 = vlaneseq
        %v2065 = vshrl.u32 %v2064, 7
        %v2066 = vsub.s32 %v1711, %v2065
        %v2067 = vrot.slane %v1518, %v2066
        %v2068 = vsel %vm1716, %v2067, %v2063
        %v2069 = vlaneseq
        %v2070 = vshrl.u32 %v2069, 7
        %v2071 = vsub.s32 %v1664, %v2070
        %v2072 = vrot.slane %v1521, %v2071
        %v2073 = vlaneseq
        %v2074 = vshrl.u32 %v2073, 7
        %v2075 = vsub.s32 %v1669, %v2074
        %v2076 = vrot.slane %v1524, %v2075
        %v2077 = vsel %vm1674, %v2076, %v2072
        %v2078 = vlaneseq
        %v2079 = vshrl.u32 %v2078, 7
        %v2080 = vsub.s32 %v1676, %v2079
        %v2081 = vrot.slane %v1527, %v2080
        %v2082 = vsel %vm1681, %v2081, %v2077
        %v2083 = vlaneseq
        %v2084 = vshrl.u32 %v2083, 7
        %v2085 = vsub.s32 %v1683, %v2084
        %v2086 = vrot.slane %v1530, %v2085
        %v2087 = vsel %vm1688, %v2086, %v2082
        %v2088 = vlaneseq
        %v2089 = vshrl.u32 %v2088, 7
        %v2090 = vsub.s32 %v1690, %v2089
        %v2091 = vrot.slane %v1533, %v2090
        %v2092 = vsel %vm1695, %v2091, %v2087
        %v2093 = vlaneseq
        %v2094 = vshrl.u32 %v2093, 7
        %v2095 = vsub.s32 %v1697, %v2094
        %v2096 = vrot.slane %v1536, %v2095
        %v2097 = vsel %vm1702, %v2096, %v2092
        %v2098 = vlaneseq
        %v2099 = vshrl.u32 %v2098, 7
        %v2100 = vsub.s32 %v1704, %v2099
        %v2101 = vrot.slane %v1539, %v2100
        %v2102 = vsel %vm1709, %v2101, %v2097
        %v2103 = vlaneseq
        %v2104 = vshrl.u32 %v2103, 7
        %v2105 = vsub.s32 %v1711, %v2104
        %v2106 = vrot.slane %v1542, %v2105
        %v2107 = vsel %vm1716, %v2106, %v2102
        %v2108 = vlaneseq
        %v2109 = vshrl.u32 %v2108, 7
        %v2110 = vsub.s32 %v1664, %v2109
        %v2111 = vrot.slane %v1545, %v2110
        %v2112 = vlaneseq
        %v2113 = vshrl.u32 %v2112, 7
        %v2114 = vsub.s32 %v1669, %v2113
        %v2115 = vrot.slane %v1548, %v2114
        %v2116 = vsel %vm1674, %v2115, %v2111
        %v2117 = vlaneseq
        %v2118 = vshrl.u32 %v2117, 7
        %v2119 = vsub.s32 %v1676, %v2118
        %v2120 = vrot.slane %v1551, %v2119
        %v2121 = vsel %vm1681, %v2120, %v2116
        %v2122 = vlaneseq
        %v2123 = vshrl.u32 %v2122, 7
        %v2124 = vsub.s32 %v1683, %v2123
        %v2125 = vrot.slane %v1554, %v2124
        %v2126 = vsel %vm1688, %v2125, %v2121
        %v2127 = vlaneseq
        %v2128 = vshrl.u32 %v2127, 7
        %v2129 = vsub.s32 %v1690, %v2128
        %v2130 = vrot.slane %v1557, %v2129
        %v2131 = vsel %vm1695, %v2130, %v2126
        %v2132 = vlaneseq
        %v2133 = vshrl.u32 %v2132, 7
        %v2134 = vsub.s32 %v1697, %v2133
        %v2135 = vrot.slane %v1560, %v2134
        %v2136 = vsel %vm1702, %v2135, %v2131
        %v2137 = vlaneseq
        %v2138 = vshrl.u32 %v2137, 7
        %v2139 = vsub.s32 %v1704, %v2138
        %v2140 = vrot.slane %v1563, %v2139
        %v2141 = vsel %vm1709, %v2140, %v2136
        %v2142 = vlaneseq
        %v2143 = vshrl.u32 %v2142, 7
        %v2144 = vsub.s32 %v1711, %v2143
        %v2145 = vrot.slane %v1566, %v2144
        %v2146 = vsel %vm1716, %v2145, %v2141
        %v2147 = vlaneseq
        %v2148 = vshrl.u32 %v2147, 7
        %v2149 = vsub.s32 %v1664, %v2148
        %v2150 = vrot.slane %v1569, %v2149
        %v2151 = vlaneseq
        %v2152 = vshrl.u32 %v2151, 7
        %v2153 = vsub.s32 %v1669, %v2152
        %v2154 = vrot.slane %v1572, %v2153
        %v2155 = vsel %vm1674, %v2154, %v2150
        %v2156 = vlaneseq
        %v2157 = vshrl.u32 %v2156, 7
        %v2158 = vsub.s32 %v1676, %v2157
        %v2159 = vrot.slane %v1575, %v2158
        %v2160 = vsel %vm1681, %v2159, %v2155
        %v2161 = vlaneseq
        %v2162 = vshrl.u32 %v2161, 7
        %v2163 = vsub.s32 %v1683, %v2162
        %v2164 = vrot.slane %v1578, %v2163
        %v2165 = vsel %vm1688, %v2164, %v2160
        %v2166 = vlaneseq
        %v2167 = vshrl.u32 %v2166, 7
        %v2168 = vsub.s32 %v1690, %v2167
        %v2169 = vrot.slane %v1581, %v2168
        %v2170 = vsel %vm1695, %v2169, %v2165
        %v2171 = vlaneseq
        %v2172 = vshrl.u32 %v2171, 7
        %v2173 = vsub.s32 %v1697, %v2172
        %v2174 = vrot.slane %v1584, %v2173
        %v2175 = vsel %vm1702, %v2174, %v2170
        %v2176 = vlaneseq
        %v2177 = vshrl.u32 %v2176, 7
        %v2178 = vsub.s32 %v1704, %v2177
        %v2179 = vrot.slane %v1587, %v2178
        %v2180 = vsel %vm1709, %v2179, %v2175
        %v2181 = vlaneseq
        %v2182 = vshrl.u32 %v2181, 7
        %v2183 = vsub.s32 %v1711, %v2182
        %v2184 = vrot.slane %v1590, %v2183
        %v2185 = vsel %vm1716, %v2184, %v2180
        %v2186 = vlaneseq
        %v2187 = vshrl.u32 %v2186, 7
        %v2188 = vsub.s32 %v1664, %v2187
        %v2189 = vrot.slane %v1593, %v2188
        %v2190 = vlaneseq
        %v2191 = vshrl.u32 %v2190, 7
        %v2192 = vsub.s32 %v1669, %v2191
        %v2193 = vrot.slane %v1596, %v2192
        %v2194 = vsel %vm1674, %v2193, %v2189
        %v2195 = vlaneseq
        %v2196 = vshrl.u32 %v2195, 7
        %v2197 = vsub.s32 %v1676, %v2196
        %v2198 = vrot.slane %v1599, %v2197
        %v2199 = vsel %vm1681, %v2198, %v2194
        %v2200 = vlaneseq
        %v2201 = vshrl.u32 %v2200, 7
        %v2202 = vsub.s32 %v1683, %v2201
        %v2203 = vrot.slane %v1602, %v2202
        %v2204 = vsel %vm1688, %v2203, %v2199
        %v2205 = vlaneseq
        %v2206 = vshrl.u32 %v2205, 7
        %v2207 = vsub.s32 %v1690, %v2206
        %v2208 = vrot.slane %v1605, %v2207
        %v2209 = vsel %vm1695, %v2208, %v2204
        %v2210 = vlaneseq
        %v2211 = vshrl.u32 %v2210, 7
        %v2212 = vsub.s32 %v1697, %v2211
        %v2213 = vrot.slane %v1608, %v2212
        %v2214 = vsel %vm1702, %v2213, %v2209
        %v2215 = vlaneseq
        %v2216 = vshrl.u32 %v2215, 7
        %v2217 = vsub.s32 %v1704, %v2216
        %v2218 = vrot.slane %v1611, %v2217
        %v2219 = vsel %vm1709, %v2218, %v2214
        %v2220 = vlaneseq
        %v2221 = vshrl.u32 %v2220, 7
        %v2222 = vsub.s32 %v1711, %v2221
        %v2223 = vrot.slane %v1614, %v2222
        %v2224 = vsel %vm1716, %v2223, %v2219
        %v2225 = vlaneseq
        %v2226 = vshrl.u32 %v2225, 7
        %v2227 = vsub.s32 %v1664, %v2226
        %v2228 = vrot.slane %v1617, %v2227
        %v2229 = vlaneseq
        %v2230 = vshrl.u32 %v2229, 7
        %v2231 = vsub.s32 %v1669, %v2230
        %v2232 = vrot.slane %v1620, %v2231
        %v2233 = vsel %vm1674, %v2232, %v2228
        %v2234 = vlaneseq
        %v2235 = vshrl.u32 %v2234, 7
        %v2236 = vsub.s32 %v1676, %v2235
        %v2237 = vrot.slane %v1623, %v2236
        %v2238 = vsel %vm1681, %v2237, %v2233
        %v2239 = vlaneseq
        %v2240 = vshrl.u32 %v2239, 7
        %v2241 = vsub.s32 %v1683, %v2240
        %v2242 = vrot.slane %v1626, %v2241
        %v2243 = vsel %vm1688, %v2242, %v2238
        %v2244 = vlaneseq
        %v2245 = vshrl.u32 %v2244, 7
        %v2246 = vsub.s32 %v1690, %v2245
        %v2247 = vrot.slane %v1629, %v2246
        %v2248 = vsel %vm1695, %v2247, %v2243
        %v2249 = vlaneseq
        %v2250 = vshrl.u32 %v2249, 7
        %v2251 = vsub.s32 %v1697, %v2250
        %v2252 = vrot.slane %v1632, %v2251
        %v2253 = vsel %vm1702, %v2252, %v2248
        %v2254 = vlaneseq
        %v2255 = vshrl.u32 %v2254, 7
        %v2256 = vsub.s32 %v1704, %v2255
        %v2257 = vrot.slane %v1635, %v2256
        %v2258 = vsel %vm1709, %v2257, %v2253
        %v2259 = vlaneseq
        %v2260 = vshrl.u32 %v2259, 7
        %v2261 = vsub.s32 %v1711, %v2260
        %v2262 = vrot.slane %v1638, %v2261
        %v2263 = vsel %vm1716, %v2262, %v2258
        %v2264 = vlaneseq
        %v2265 = vshrl.u32 %v2264, 7
        %v2266 = vsub.s32 %v1664, %v2265
        %v2267 = vrot.slane %v1641, %v2266
        %v2268 = vlaneseq
        %v2269 = vshrl.u32 %v2268, 7
        %v2270 = vsub.s32 %v1669, %v2269
        %v2271 = vrot.slane %v1644, %v2270
        %v2272 = vsel %vm1674, %v2271, %v2267
        %v2273 = vlaneseq
        %v2274 = vshrl.u32 %v2273, 7
        %v2275 = vsub.s32 %v1676, %v2274
        %v2276 = vrot.slane %v1647, %v2275
        %v2277 = vsel %vm1681, %v2276, %v2272
        %v2278 = vlaneseq
        %v2279 = vshrl.u32 %v2278, 7
        %v2280 = vsub.s32 %v1683, %v2279
        %v2281 = vrot.slane %v1650, %v2280
        %v2282 = vsel %vm1688, %v2281, %v2277
        %v2283 = vlaneseq
        %v2284 = vshrl.u32 %v2283, 7
        %v2285 = vsub.s32 %v1690, %v2284
        %v2286 = vrot.slane %v1653, %v2285
        %v2287 = vsel %vm1695, %v2286, %v2282
        %v2288 = vlaneseq
        %v2289 = vshrl.u32 %v2288, 7
        %v2290 = vsub.s32 %v1697, %v2289
        %v2291 = vrot.slane %v1656, %v2290
        %v2292 = vsel %vm1702, %v2291, %v2287
        %v2293 = vlaneseq
        %v2294 = vshrl.u32 %v2293, 7
        %v2295 = vsub.s32 %v1704, %v2294
        %v2296 = vrot.slane %v1659, %v2295
        %v2297 = vsel %vm1709, %v2296, %v2292
        %v2298 = vlaneseq
        %v2299 = vshrl.u32 %v2298, 7
        %v2300 = vsub.s32 %v1711, %v2299
        %v2301 = vrot.slane %v1662, %v2300
        %v2302 = vsel %vm1716, %v2301, %v2297
        %v2303 = vsel %vm612, %v1756, %v1717
        %v2304 = vsel %vm614, %v1795, %v2303
        %v2305 = vsel %vm616, %v1834, %v2304
        %v2306 = vsel %vm612, %v1912, %v1873
        %v2307 = vsel %vm614, %v1951, %v2306
        %v2308 = vsel %vm616, %v1990, %v2307
        %v2309 = vsel %vm612, %v2068, %v2029
        %v2310 = vsel %vm614, %v2107, %v2309
        %v2311 = vsel %vm616, %v2146, %v2310
        %v2312 = vsel %vm612, %v2224, %v2185
        %v2313 = vsel %vm614, %v2263, %v2312
        %v2314 = vsel %vm616, %v2302, %v2313
        %vm2319 = vcmask 519168
        %v2320 = vsel %vm2319, %v2305, 0.0
        %2321 = vadd.xlane.f32.xlu0 %v2320
        %v2322 = vpop.xlane.xlu0 %2321
        %v2323 = vsel %vm2319, %v2308, 0.0
        %2324 = vadd.xlane.f32.xlu0 %v2323
        %v2325 = vpop.xlane.xlu0 %2324
        %v2326 = vsel %vm2319, %v2311, 0.0
        %2327 = vadd.xlane.f32.xlu0 %v2326
        %v2328 = vpop.xlane.xlu0 %2327
        %v2329 = vsel %vm2319, %v2314, 0.0
        %2330 = vadd.xlane.f32.xlu0 %v2329
        %v2331 = vpop.xlane.xlu0 %2330
        %v2332 = vmax.f32 %v2322, 0.0
        %v2333 = vmax.f32 %v2325, 0.0
        %v2334 = vmax.f32 %v2328, 0.0
        %v2335 = vmax.f32 %v2331, 0.0
        %v2344 = vlaneseq
        %v2345 = vshrl.u32 %v2344, 7
        %v2346 = vsub.s32 0, %v2345
        %v2347 = vrot.slane %v842, %v2346
        %2349 = vbcast.lane.b32.xlu0 %v2347, 256
        %v2350 = vpop.permute.xlu0 %2349
        %v2351 = vlaneseq
        %v2352 = vshrl.u32 %v2351, 7
        %v2353 = vsub.s32 1, %v2352
        %v2354 = vrot.slane %v842, %v2353
        %2356 = vbcast.lane.b32.xlu0 %v2354, 256
        %v2357 = vpop.permute.xlu0 %2356
        %v2358 = vlaneseq
        %v2359 = vshrl.u32 %v2358, 7
        %v2360 = vsub.s32 2, %v2359
        %v2361 = vrot.slane %v842, %v2360
        %2363 = vbcast.lane.b32.xlu0 %v2361, 256
        %v2364 = vpop.permute.xlu0 %2363
        %v2365 = vlaneseq
        %v2366 = vshrl.u32 %v2365, 7
        %v2367 = vsub.s32 3, %v2366
        %v2368 = vrot.slane %v842, %v2367
        %2370 = vbcast.lane.b32.xlu0 %v2368, 256
        %v2371 = vpop.permute.xlu0 %2370
        %v2372 = vlaneseq
        %v2373 = vshrl.u32 %v2372, 7
        %v2374 = vsub.s32 4, %v2373
        %v2375 = vrot.slane %v842, %v2374
        %2377 = vbcast.lane.b32.xlu0 %v2375, 256
        %v2378 = vpop.permute.xlu0 %2377
        %v2379 = vlaneseq
        %v2380 = vshrl.u32 %v2379, 7
        %v2381 = vsub.s32 5, %v2380
        %v2382 = vrot.slane %v842, %v2381
        %2384 = vbcast.lane.b32.xlu0 %v2382, 256
        %v2385 = vpop.permute.xlu0 %2384
        %v2386 = vlaneseq
        %v2387 = vshrl.u32 %v2386, 7
        %v2388 = vsub.s32 6, %v2387
        %v2389 = vrot.slane %v842, %v2388
        %2391 = vbcast.lane.b32.xlu0 %v2389, 256
        %v2392 = vpop.permute.xlu0 %2391
        %v2393 = vlaneseq
        %v2394 = vshrl.u32 %v2393, 7
        %v2395 = vsub.s32 7, %v2394
        %v2396 = vrot.slane %v842, %v2395
        %2398 = vbcast.lane.b32.xlu0 %v2396, 256
        %v2399 = vpop.permute.xlu0 %2398
        %v2400 = vlaneseq
        %v2401 = vshrl.u32 %v2400, 7
        %v2402 = vsub.s32 0, %v2401
        %v2403 = vrot.slane %v843, %v2402
        %2405 = vbcast.lane.b32.xlu0 %v2403, 256
        %v2406 = vpop.permute.xlu0 %2405
        %v2407 = vlaneseq
        %v2408 = vshrl.u32 %v2407, 7
        %v2409 = vsub.s32 1, %v2408
        %v2410 = vrot.slane %v843, %v2409
        %2412 = vbcast.lane.b32.xlu0 %v2410, 256
        %v2413 = vpop.permute.xlu0 %2412
        %v2414 = vlaneseq
        %v2415 = vshrl.u32 %v2414, 7
        %v2416 = vsub.s32 2, %v2415
        %v2417 = vrot.slane %v843, %v2416
        %2419 = vbcast.lane.b32.xlu0 %v2417, 256
        %v2420 = vpop.permute.xlu0 %2419
        %v2421 = vlaneseq
        %v2422 = vshrl.u32 %v2421, 7
        %v2423 = vsub.s32 3, %v2422
        %v2424 = vrot.slane %v843, %v2423
        %2426 = vbcast.lane.b32.xlu0 %v2424, 256
        %v2427 = vpop.permute.xlu0 %2426
        %v2428 = vlaneseq
        %v2429 = vshrl.u32 %v2428, 7
        %v2430 = vsub.s32 4, %v2429
        %v2431 = vrot.slane %v843, %v2430
        %2433 = vbcast.lane.b32.xlu0 %v2431, 256
        %v2434 = vpop.permute.xlu0 %2433
        %v2435 = vlaneseq
        %v2436 = vshrl.u32 %v2435, 7
        %v2437 = vsub.s32 5, %v2436
        %v2438 = vrot.slane %v843, %v2437
        %2440 = vbcast.lane.b32.xlu0 %v2438, 256
        %v2441 = vpop.permute.xlu0 %2440
        %v2442 = vlaneseq
        %v2443 = vshrl.u32 %v2442, 7
        %v2444 = vsub.s32 6, %v2443
        %v2445 = vrot.slane %v843, %v2444
        %2447 = vbcast.lane.b32.xlu0 %v2445, 256
        %v2448 = vpop.permute.xlu0 %2447
        %v2449 = vlaneseq
        %v2450 = vshrl.u32 %v2449, 7
        %v2451 = vsub.s32 7, %v2450
        %v2452 = vrot.slane %v843, %v2451
        %2454 = vbcast.lane.b32.xlu0 %v2452, 256
        %v2455 = vpop.permute.xlu0 %2454
        %v2456 = vlaneseq
        %v2457 = vshrl.u32 %v2456, 7
        %v2458 = vsub.s32 0, %v2457
        %v2459 = vrot.slane %v844, %v2458
        %2461 = vbcast.lane.b32.xlu0 %v2459, 256
        %v2462 = vpop.permute.xlu0 %2461
        %v2463 = vlaneseq
        %v2464 = vshrl.u32 %v2463, 7
        %v2465 = vsub.s32 1, %v2464
        %v2466 = vrot.slane %v844, %v2465
        %2468 = vbcast.lane.b32.xlu0 %v2466, 256
        %v2469 = vpop.permute.xlu0 %2468
        %v2470 = vlaneseq
        %v2471 = vshrl.u32 %v2470, 7
        %v2472 = vsub.s32 2, %v2471
        %v2473 = vrot.slane %v844, %v2472
        %2475 = vbcast.lane.b32.xlu0 %v2473, 256
        %v2476 = vpop.permute.xlu0 %2475
        %v2477 = vlaneseq
        %v2478 = vshrl.u32 %v2477, 7
        %v2479 = vsub.s32 3, %v2478
        %v2480 = vrot.slane %v844, %v2479
        %2482 = vbcast.lane.b32.xlu0 %v2480, 256
        %v2483 = vpop.permute.xlu0 %2482
        %v2484 = vlaneseq
        %v2485 = vshrl.u32 %v2484, 7
        %v2486 = vsub.s32 4, %v2485
        %v2487 = vrot.slane %v844, %v2486
        %2489 = vbcast.lane.b32.xlu0 %v2487, 256
        %v2490 = vpop.permute.xlu0 %2489
        %v2491 = vlaneseq
        %v2492 = vshrl.u32 %v2491, 7
        %v2493 = vsub.s32 5, %v2492
        %v2494 = vrot.slane %v844, %v2493
        %2496 = vbcast.lane.b32.xlu0 %v2494, 256
        %v2497 = vpop.permute.xlu0 %2496
        %v2498 = vlaneseq
        %v2499 = vshrl.u32 %v2498, 7
        %v2500 = vsub.s32 6, %v2499
        %v2501 = vrot.slane %v844, %v2500
        %2503 = vbcast.lane.b32.xlu0 %v2501, 256
        %v2504 = vpop.permute.xlu0 %2503
        %v2505 = vlaneseq
        %v2506 = vshrl.u32 %v2505, 7
        %v2507 = vsub.s32 7, %v2506
        %v2508 = vrot.slane %v844, %v2507
        %2510 = vbcast.lane.b32.xlu0 %v2508, 256
        %v2511 = vpop.permute.xlu0 %2510
        %v2512 = vlaneseq
        %v2513 = vshrl.u32 %v2512, 7
        %v2514 = vsub.s32 0, %v2513
        %v2515 = vrot.slane %v845, %v2514
        %2517 = vbcast.lane.b32.xlu0 %v2515, 256
        %v2518 = vpop.permute.xlu0 %2517
        %v2519 = vlaneseq
        %v2520 = vshrl.u32 %v2519, 7
        %v2521 = vsub.s32 1, %v2520
        %v2522 = vrot.slane %v845, %v2521
        %2524 = vbcast.lane.b32.xlu0 %v2522, 256
        %v2525 = vpop.permute.xlu0 %2524
        %v2526 = vlaneseq
        %v2527 = vshrl.u32 %v2526, 7
        %v2528 = vsub.s32 2, %v2527
        %v2529 = vrot.slane %v845, %v2528
        %2531 = vbcast.lane.b32.xlu0 %v2529, 256
        %v2532 = vpop.permute.xlu0 %2531
        %v2533 = vlaneseq
        %v2534 = vshrl.u32 %v2533, 7
        %v2535 = vsub.s32 3, %v2534
        %v2536 = vrot.slane %v845, %v2535
        %2538 = vbcast.lane.b32.xlu0 %v2536, 256
        %v2539 = vpop.permute.xlu0 %2538
        %v2540 = vlaneseq
        %v2541 = vshrl.u32 %v2540, 7
        %v2542 = vsub.s32 4, %v2541
        %v2543 = vrot.slane %v845, %v2542
        %2545 = vbcast.lane.b32.xlu0 %v2543, 256
        %v2546 = vpop.permute.xlu0 %2545
        %v2547 = vlaneseq
        %v2548 = vshrl.u32 %v2547, 7
        %v2549 = vsub.s32 5, %v2548
        %v2550 = vrot.slane %v845, %v2549
        %2552 = vbcast.lane.b32.xlu0 %v2550, 256
        %v2553 = vpop.permute.xlu0 %2552
        %v2554 = vlaneseq
        %v2555 = vshrl.u32 %v2554, 7
        %v2556 = vsub.s32 6, %v2555
        %v2557 = vrot.slane %v845, %v2556
        %2559 = vbcast.lane.b32.xlu0 %v2557, 256
        %v2560 = vpop.permute.xlu0 %2559
        %v2561 = vlaneseq
        %v2562 = vshrl.u32 %v2561, 7
        %v2563 = vsub.s32 7, %v2562
        %v2564 = vrot.slane %v845, %v2563
        %2566 = vbcast.lane.b32.xlu0 %v2564, 256
        %v2567 = vpop.permute.xlu0 %2566
        %v2568 = vlaneseq
        %v2569 = vshrl.u32 %v2568, 7
        %v2570 = vsub.s32 0, %v2569
        %v2571 = vrot.slane %v846, %v2570
        %2573 = vbcast.lane.b32.xlu0 %v2571, 256
        %v2574 = vpop.permute.xlu0 %2573
        %v2575 = vlaneseq
        %v2576 = vshrl.u32 %v2575, 7
        %v2577 = vsub.s32 1, %v2576
        %v2578 = vrot.slane %v846, %v2577
        %2580 = vbcast.lane.b32.xlu0 %v2578, 256
        %v2581 = vpop.permute.xlu0 %2580
        %v2582 = vlaneseq
        %v2583 = vshrl.u32 %v2582, 7
        %v2584 = vsub.s32 2, %v2583
        %v2585 = vrot.slane %v846, %v2584
        %2587 = vbcast.lane.b32.xlu0 %v2585, 256
        %v2588 = vpop.permute.xlu0 %2587
        %v2589 = vlaneseq
        %v2590 = vshrl.u32 %v2589, 7
        %v2591 = vsub.s32 3, %v2590
        %v2592 = vrot.slane %v846, %v2591
        %2594 = vbcast.lane.b32.xlu0 %v2592, 256
        %v2595 = vpop.permute.xlu0 %2594
        %v2596 = vlaneseq
        %v2597 = vshrl.u32 %v2596, 7
        %v2598 = vsub.s32 4, %v2597
        %v2599 = vrot.slane %v846, %v2598
        %2601 = vbcast.lane.b32.xlu0 %v2599, 256
        %v2602 = vpop.permute.xlu0 %2601
        %v2603 = vlaneseq
        %v2604 = vshrl.u32 %v2603, 7
        %v2605 = vsub.s32 5, %v2604
        %v2606 = vrot.slane %v846, %v2605
        %2608 = vbcast.lane.b32.xlu0 %v2606, 256
        %v2609 = vpop.permute.xlu0 %2608
        %v2610 = vlaneseq
        %v2611 = vshrl.u32 %v2610, 7
        %v2612 = vsub.s32 6, %v2611
        %v2613 = vrot.slane %v846, %v2612
        %2615 = vbcast.lane.b32.xlu0 %v2613, 256
        %v2616 = vpop.permute.xlu0 %2615
        %v2617 = vlaneseq
        %v2618 = vshrl.u32 %v2617, 7
        %v2619 = vsub.s32 7, %v2618
        %v2620 = vrot.slane %v846, %v2619
        %2622 = vbcast.lane.b32.xlu0 %v2620, 256
        %v2623 = vpop.permute.xlu0 %2622
        %v2624 = vlaneseq
        %v2625 = vshrl.u32 %v2624, 7
        %v2626 = vsub.s32 0, %v2625
        %v2627 = vrot.slane %v847, %v2626
        %2629 = vbcast.lane.b32.xlu0 %v2627, 256
        %v2630 = vpop.permute.xlu0 %2629
        %v2631 = vlaneseq
        %v2632 = vshrl.u32 %v2631, 7
        %v2633 = vsub.s32 1, %v2632
        %v2634 = vrot.slane %v847, %v2633
        %2636 = vbcast.lane.b32.xlu0 %v2634, 256
        %v2637 = vpop.permute.xlu0 %2636
        %v2638 = vlaneseq
        %v2639 = vshrl.u32 %v2638, 7
        %v2640 = vsub.s32 2, %v2639
        %v2641 = vrot.slane %v847, %v2640
        %2643 = vbcast.lane.b32.xlu0 %v2641, 256
        %v2644 = vpop.permute.xlu0 %2643
        %v2645 = vlaneseq
        %v2646 = vshrl.u32 %v2645, 7
        %v2647 = vsub.s32 3, %v2646
        %v2648 = vrot.slane %v847, %v2647
        %2650 = vbcast.lane.b32.xlu0 %v2648, 256
        %v2651 = vpop.permute.xlu0 %2650
        %v2652 = vlaneseq
        %v2653 = vshrl.u32 %v2652, 7
        %v2654 = vsub.s32 4, %v2653
        %v2655 = vrot.slane %v847, %v2654
        %2657 = vbcast.lane.b32.xlu0 %v2655, 256
        %v2658 = vpop.permute.xlu0 %2657
        %v2659 = vlaneseq
        %v2660 = vshrl.u32 %v2659, 7
        %v2661 = vsub.s32 5, %v2660
        %v2662 = vrot.slane %v847, %v2661
        %2664 = vbcast.lane.b32.xlu0 %v2662, 256
        %v2665 = vpop.permute.xlu0 %2664
        %v2666 = vlaneseq
        %v2667 = vshrl.u32 %v2666, 7
        %v2668 = vsub.s32 6, %v2667
        %v2669 = vrot.slane %v847, %v2668
        %2671 = vbcast.lane.b32.xlu0 %v2669, 256
        %v2672 = vpop.permute.xlu0 %2671
        %v2673 = vlaneseq
        %v2674 = vshrl.u32 %v2673, 7
        %v2675 = vsub.s32 7, %v2674
        %v2676 = vrot.slane %v847, %v2675
        %2678 = vbcast.lane.b32.xlu0 %v2676, 256
        %v2679 = vpop.permute.xlu0 %2678
        %v2680 = vlaneseq
        %v2681 = vshrl.u32 %v2680, 7
        %v2682 = vsub.s32 0, %v2681
        %v2683 = vrot.slane %v848, %v2682
        %2685 = vbcast.lane.b32.xlu0 %v2683, 256
        %v2686 = vpop.permute.xlu0 %2685
        %v2687 = vlaneseq
        %v2688 = vshrl.u32 %v2687, 7
        %v2689 = vsub.s32 1, %v2688
        %v2690 = vrot.slane %v848, %v2689
        %2692 = vbcast.lane.b32.xlu0 %v2690, 256
        %v2693 = vpop.permute.xlu0 %2692
        %v2694 = vlaneseq
        %v2695 = vshrl.u32 %v2694, 7
        %v2696 = vsub.s32 2, %v2695
        %v2697 = vrot.slane %v848, %v2696
        %2699 = vbcast.lane.b32.xlu0 %v2697, 256
        %v2700 = vpop.permute.xlu0 %2699
        %v2701 = vlaneseq
        %v2702 = vshrl.u32 %v2701, 7
        %v2703 = vsub.s32 3, %v2702
        %v2704 = vrot.slane %v848, %v2703
        %2706 = vbcast.lane.b32.xlu0 %v2704, 256
        %v2707 = vpop.permute.xlu0 %2706
        %v2708 = vlaneseq
        %v2709 = vshrl.u32 %v2708, 7
        %v2710 = vsub.s32 4, %v2709
        %v2711 = vrot.slane %v848, %v2710
        %2713 = vbcast.lane.b32.xlu0 %v2711, 256
        %v2714 = vpop.permute.xlu0 %2713
        %v2715 = vlaneseq
        %v2716 = vshrl.u32 %v2715, 7
        %v2717 = vsub.s32 5, %v2716
        %v2718 = vrot.slane %v848, %v2717
        %2720 = vbcast.lane.b32.xlu0 %v2718, 256
        %v2721 = vpop.permute.xlu0 %2720
        %v2722 = vlaneseq
        %v2723 = vshrl.u32 %v2722, 7
        %v2724 = vsub.s32 6, %v2723
        %v2725 = vrot.slane %v848, %v2724
        %2727 = vbcast.lane.b32.xlu0 %v2725, 256
        %v2728 = vpop.permute.xlu0 %2727
        %v2729 = vlaneseq
        %v2730 = vshrl.u32 %v2729, 7
        %v2731 = vsub.s32 7, %v2730
        %v2732 = vrot.slane %v848, %v2731
        %2734 = vbcast.lane.b32.xlu0 %v2732, 256
        %v2735 = vpop.permute.xlu0 %2734
        %v2736 = vlaneseq
        %v2737 = vshrl.u32 %v2736, 7
        %v2738 = vsub.s32 0, %v2737
        %v2739 = vrot.slane %v849, %v2738
        %2741 = vbcast.lane.b32.xlu0 %v2739, 256
        %v2742 = vpop.permute.xlu0 %2741
        %v2743 = vlaneseq
        %v2744 = vshrl.u32 %v2743, 7
        %v2745 = vsub.s32 1, %v2744
        %v2746 = vrot.slane %v849, %v2745
        %2748 = vbcast.lane.b32.xlu0 %v2746, 256
        %v2749 = vpop.permute.xlu0 %2748
        %v2750 = vlaneseq
        %v2751 = vshrl.u32 %v2750, 7
        %v2752 = vsub.s32 2, %v2751
        %v2753 = vrot.slane %v849, %v2752
        %2755 = vbcast.lane.b32.xlu0 %v2753, 256
        %v2756 = vpop.permute.xlu0 %2755
        %v2757 = vlaneseq
        %v2758 = vshrl.u32 %v2757, 7
        %v2759 = vsub.s32 3, %v2758
        %v2760 = vrot.slane %v849, %v2759
        %2762 = vbcast.lane.b32.xlu0 %v2760, 256
        %v2763 = vpop.permute.xlu0 %2762
        %v2764 = vlaneseq
        %v2765 = vshrl.u32 %v2764, 7
        %v2766 = vsub.s32 4, %v2765
        %v2767 = vrot.slane %v849, %v2766
        %2769 = vbcast.lane.b32.xlu0 %v2767, 256
        %v2770 = vpop.permute.xlu0 %2769
        %v2771 = vlaneseq
        %v2772 = vshrl.u32 %v2771, 7
        %v2773 = vsub.s32 5, %v2772
        %v2774 = vrot.slane %v849, %v2773
        %2776 = vbcast.lane.b32.xlu0 %v2774, 256
        %v2777 = vpop.permute.xlu0 %2776
        %v2778 = vlaneseq
        %v2779 = vshrl.u32 %v2778, 7
        %v2780 = vsub.s32 6, %v2779
        %v2781 = vrot.slane %v849, %v2780
        %2783 = vbcast.lane.b32.xlu0 %v2781, 256
        %v2784 = vpop.permute.xlu0 %2783
        %v2785 = vlaneseq
        %v2786 = vshrl.u32 %v2785, 7
        %v2787 = vsub.s32 7, %v2786
        %v2788 = vrot.slane %v849, %v2787
        %2790 = vbcast.lane.b32.xlu0 %v2788, 256
        %v2791 = vpop.permute.xlu0 %2790
        %v2856 = vmul.f32 %v2332, %v2350
        %v2857 = vmul.f32 %v2332, %v2357
        %v2858 = vmul.f32 %v2332, %v2364
        %v2859 = vmul.f32 %v2332, %v2371
        %v2860 = vmul.f32 %v2332, %v2378
        %v2861 = vmul.f32 %v2332, %v2385
        %v2862 = vmul.f32 %v2332, %v2392
        %v2863 = vmul.f32 %v2332, %v2399
        %v2864 = vmul.f32 %v2332, %v2406
        %v2865 = vmul.f32 %v2332, %v2413
        %v2866 = vmul.f32 %v2332, %v2420
        %v2867 = vmul.f32 %v2332, %v2427
        %v2868 = vmul.f32 %v2332, %v2434
        %v2869 = vmul.f32 %v2332, %v2441
        %v2870 = vmul.f32 %v2332, %v2448
        %v2871 = vmul.f32 %v2332, %v2455
        %v2872 = vmul.f32 %v2332, %v2462
        %v2873 = vmul.f32 %v2332, %v2469
        %v2874 = vmul.f32 %v2332, %v2476
        %v2875 = vmul.f32 %v2332, %v2483
        %v2876 = vmul.f32 %v2332, %v2490
        %v2877 = vmul.f32 %v2332, %v2497
        %v2878 = vmul.f32 %v2332, %v2504
        %v2879 = vmul.f32 %v2332, %v2511
        %v2880 = vmul.f32 %v2332, %v2518
        %v2881 = vmul.f32 %v2332, %v2525
        %v2882 = vmul.f32 %v2332, %v2532
        %v2883 = vmul.f32 %v2332, %v2539
        %v2884 = vmul.f32 %v2332, %v2546
        %v2885 = vmul.f32 %v2332, %v2553
        %v2886 = vmul.f32 %v2332, %v2560
        %v2887 = vmul.f32 %v2332, %v2567
        %v2888 = vmul.f32 %v2332, %v2574
        %v2889 = vmul.f32 %v2332, %v2581
        %v2890 = vmul.f32 %v2332, %v2588
        %v2891 = vmul.f32 %v2332, %v2595
        %v2892 = vmul.f32 %v2332, %v2602
        %v2893 = vmul.f32 %v2332, %v2609
        %v2894 = vmul.f32 %v2332, %v2616
        %v2895 = vmul.f32 %v2332, %v2623
        %v2896 = vmul.f32 %v2332, %v2630
        %v2897 = vmul.f32 %v2332, %v2637
        %v2898 = vmul.f32 %v2332, %v2644
        %v2899 = vmul.f32 %v2332, %v2651
        %v2900 = vmul.f32 %v2332, %v2658
        %v2901 = vmul.f32 %v2332, %v2665
        %v2902 = vmul.f32 %v2332, %v2672
        %v2903 = vmul.f32 %v2332, %v2679
        %v2904 = vmul.f32 %v2332, %v2686
        %v2905 = vmul.f32 %v2332, %v2693
        %v2906 = vmul.f32 %v2332, %v2700
        %v2907 = vmul.f32 %v2332, %v2707
        %v2908 = vmul.f32 %v2332, %v2714
        %v2909 = vmul.f32 %v2332, %v2721
        %v2910 = vmul.f32 %v2332, %v2728
        %v2911 = vmul.f32 %v2332, %v2735
        %v2912 = vmul.f32 %v2332, %v2742
        %v2913 = vmul.f32 %v2332, %v2749
        %v2914 = vmul.f32 %v2332, %v2756
        %v2915 = vmul.f32 %v2332, %v2763
        %v2916 = vmul.f32 %v2332, %v2770
        %v2917 = vmul.f32 %v2332, %v2777
        %v2918 = vmul.f32 %v2332, %v2784
        %v2919 = vmul.f32 %v2332, %v2791
        %v2920 = vmul.f32 %v2333, %v2350
        %v2921 = vmul.f32 %v2333, %v2357
        %v2922 = vmul.f32 %v2333, %v2364
        %v2923 = vmul.f32 %v2333, %v2371
        %v2924 = vmul.f32 %v2333, %v2378
        %v2925 = vmul.f32 %v2333, %v2385
        %v2926 = vmul.f32 %v2333, %v2392
        %v2927 = vmul.f32 %v2333, %v2399
        %v2928 = vmul.f32 %v2333, %v2406
        %v2929 = vmul.f32 %v2333, %v2413
        %v2930 = vmul.f32 %v2333, %v2420
        %v2931 = vmul.f32 %v2333, %v2427
        %v2932 = vmul.f32 %v2333, %v2434
        %v2933 = vmul.f32 %v2333, %v2441
        %v2934 = vmul.f32 %v2333, %v2448
        %v2935 = vmul.f32 %v2333, %v2455
        %v2936 = vmul.f32 %v2333, %v2462
        %v2937 = vmul.f32 %v2333, %v2469
        %v2938 = vmul.f32 %v2333, %v2476
        %v2939 = vmul.f32 %v2333, %v2483
        %v2940 = vmul.f32 %v2333, %v2490
        %v2941 = vmul.f32 %v2333, %v2497
        %v2942 = vmul.f32 %v2333, %v2504
        %v2943 = vmul.f32 %v2333, %v2511
        %v2944 = vmul.f32 %v2333, %v2518
        %v2945 = vmul.f32 %v2333, %v2525
        %v2946 = vmul.f32 %v2333, %v2532
        %v2947 = vmul.f32 %v2333, %v2539
        %v2948 = vmul.f32 %v2333, %v2546
        %v2949 = vmul.f32 %v2333, %v2553
        %v2950 = vmul.f32 %v2333, %v2560
        %v2951 = vmul.f32 %v2333, %v2567
        %v2952 = vmul.f32 %v2333, %v2574
        %v2953 = vmul.f32 %v2333, %v2581
        %v2954 = vmul.f32 %v2333, %v2588
        %v2955 = vmul.f32 %v2333, %v2595
        %v2956 = vmul.f32 %v2333, %v2602
        %v2957 = vmul.f32 %v2333, %v2609
        %v2958 = vmul.f32 %v2333, %v2616
        %v2959 = vmul.f32 %v2333, %v2623
        %v2960 = vmul.f32 %v2333, %v2630
        %v2961 = vmul.f32 %v2333, %v2637
        %v2962 = vmul.f32 %v2333, %v2644
        %v2963 = vmul.f32 %v2333, %v2651
        %v2964 = vmul.f32 %v2333, %v2658
        %v2965 = vmul.f32 %v2333, %v2665
        %v2966 = vmul.f32 %v2333, %v2672
        %v2967 = vmul.f32 %v2333, %v2679
        %v2968 = vmul.f32 %v2333, %v2686
        %v2969 = vmul.f32 %v2333, %v2693
        %v2970 = vmul.f32 %v2333, %v2700
        %v2971 = vmul.f32 %v2333, %v2707
        %v2972 = vmul.f32 %v2333, %v2714
        %v2973 = vmul.f32 %v2333, %v2721
        %v2974 = vmul.f32 %v2333, %v2728
        %v2975 = vmul.f32 %v2333, %v2735
        %v2976 = vmul.f32 %v2333, %v2742
        %v2977 = vmul.f32 %v2333, %v2749
        %v2978 = vmul.f32 %v2333, %v2756
        %v2979 = vmul.f32 %v2333, %v2763
        %v2980 = vmul.f32 %v2333, %v2770
        %v2981 = vmul.f32 %v2333, %v2777
        %v2982 = vmul.f32 %v2333, %v2784
        %v2983 = vmul.f32 %v2333, %v2791
        %v2984 = vmul.f32 %v2334, %v2350
        %v2985 = vmul.f32 %v2334, %v2357
        %v2986 = vmul.f32 %v2334, %v2364
        %v2987 = vmul.f32 %v2334, %v2371
        %v2988 = vmul.f32 %v2334, %v2378
        %v2989 = vmul.f32 %v2334, %v2385
        %v2990 = vmul.f32 %v2334, %v2392
        %v2991 = vmul.f32 %v2334, %v2399
        %v2992 = vmul.f32 %v2334, %v2406
        %v2993 = vmul.f32 %v2334, %v2413
        %v2994 = vmul.f32 %v2334, %v2420
        %v2995 = vmul.f32 %v2334, %v2427
        %v2996 = vmul.f32 %v2334, %v2434
        %v2997 = vmul.f32 %v2334, %v2441
        %v2998 = vmul.f32 %v2334, %v2448
        %v2999 = vmul.f32 %v2334, %v2455
        %v3000 = vmul.f32 %v2334, %v2462
        %v3001 = vmul.f32 %v2334, %v2469
        %v3002 = vmul.f32 %v2334, %v2476
        %v3003 = vmul.f32 %v2334, %v2483
        %v3004 = vmul.f32 %v2334, %v2490
        %v3005 = vmul.f32 %v2334, %v2497
        %v3006 = vmul.f32 %v2334, %v2504
        %v3007 = vmul.f32 %v2334, %v2511
        %v3008 = vmul.f32 %v2334, %v2518
        %v3009 = vmul.f32 %v2334, %v2525
        %v3010 = vmul.f32 %v2334, %v2532
        %v3011 = vmul.f32 %v2334, %v2539
        %v3012 = vmul.f32 %v2334, %v2546
        %v3013 = vmul.f32 %v2334, %v2553
        %v3014 = vmul.f32 %v2334, %v2560
        %v3015 = vmul.f32 %v2334, %v2567
        %v3016 = vmul.f32 %v2334, %v2574
        %v3017 = vmul.f32 %v2334, %v2581
        %v3018 = vmul.f32 %v2334, %v2588
        %v3019 = vmul.f32 %v2334, %v2595
        %v3020 = vmul.f32 %v2334, %v2602
        %v3021 = vmul.f32 %v2334, %v2609
        %v3022 = vmul.f32 %v2334, %v2616
        %v3023 = vmul.f32 %v2334, %v2623
        %v3024 = vmul.f32 %v2334, %v2630
        %v3025 = vmul.f32 %v2334, %v2637
        %v3026 = vmul.f32 %v2334, %v2644
        %v3027 = vmul.f32 %v2334, %v2651
        %v3028 = vmul.f32 %v2334, %v2658
        %v3029 = vmul.f32 %v2334, %v2665
        %v3030 = vmul.f32 %v2334, %v2672
        %v3031 = vmul.f32 %v2334, %v2679
        %v3032 = vmul.f32 %v2334, %v2686
        %v3033 = vmul.f32 %v2334, %v2693
        %v3034 = vmul.f32 %v2334, %v2700
        %v3035 = vmul.f32 %v2334, %v2707
        %v3036 = vmul.f32 %v2334, %v2714
        %v3037 = vmul.f32 %v2334, %v2721
        %v3038 = vmul.f32 %v2334, %v2728
        %v3039 = vmul.f32 %v2334, %v2735
        %v3040 = vmul.f32 %v2334, %v2742
        %v3041 = vmul.f32 %v2334, %v2749
        %v3042 = vmul.f32 %v2334, %v2756
        %v3043 = vmul.f32 %v2334, %v2763
        %v3044 = vmul.f32 %v2334, %v2770
        %v3045 = vmul.f32 %v2334, %v2777
        %v3046 = vmul.f32 %v2334, %v2784
        %v3047 = vmul.f32 %v2334, %v2791
        %v3048 = vmul.f32 %v2335, %v2350
        %v3049 = vmul.f32 %v2335, %v2357
        %v3050 = vmul.f32 %v2335, %v2364
        %v3051 = vmul.f32 %v2335, %v2371
        %v3052 = vmul.f32 %v2335, %v2378
        %v3053 = vmul.f32 %v2335, %v2385
        %v3054 = vmul.f32 %v2335, %v2392
        %v3055 = vmul.f32 %v2335, %v2399
        %v3056 = vmul.f32 %v2335, %v2406
        %v3057 = vmul.f32 %v2335, %v2413
        %v3058 = vmul.f32 %v2335, %v2420
        %v3059 = vmul.f32 %v2335, %v2427
        %v3060 = vmul.f32 %v2335, %v2434
        %v3061 = vmul.f32 %v2335, %v2441
        %v3062 = vmul.f32 %v2335, %v2448
        %v3063 = vmul.f32 %v2335, %v2455
        %v3064 = vmul.f32 %v2335, %v2462
        %v3065 = vmul.f32 %v2335, %v2469
        %v3066 = vmul.f32 %v2335, %v2476
        %v3067 = vmul.f32 %v2335, %v2483
        %v3068 = vmul.f32 %v2335, %v2490
        %v3069 = vmul.f32 %v2335, %v2497
        %v3070 = vmul.f32 %v2335, %v2504
        %v3071 = vmul.f32 %v2335, %v2511
        %v3072 = vmul.f32 %v2335, %v2518
        %v3073 = vmul.f32 %v2335, %v2525
        %v3074 = vmul.f32 %v2335, %v2532
        %v3075 = vmul.f32 %v2335, %v2539
        %v3076 = vmul.f32 %v2335, %v2546
        %v3077 = vmul.f32 %v2335, %v2553
        %v3078 = vmul.f32 %v2335, %v2560
        %v3079 = vmul.f32 %v2335, %v2567
        %v3080 = vmul.f32 %v2335, %v2574
        %v3081 = vmul.f32 %v2335, %v2581
        %v3082 = vmul.f32 %v2335, %v2588
        %v3083 = vmul.f32 %v2335, %v2595
        %v3084 = vmul.f32 %v2335, %v2602
        %v3085 = vmul.f32 %v2335, %v2609
        %v3086 = vmul.f32 %v2335, %v2616
        %v3087 = vmul.f32 %v2335, %v2623
        %v3088 = vmul.f32 %v2335, %v2630
        %v3089 = vmul.f32 %v2335, %v2637
        %v3090 = vmul.f32 %v2335, %v2644
        %v3091 = vmul.f32 %v2335, %v2651
        %v3092 = vmul.f32 %v2335, %v2658
        %v3093 = vmul.f32 %v2335, %v2665
        %v3094 = vmul.f32 %v2335, %v2672
        %v3095 = vmul.f32 %v2335, %v2679
        %v3096 = vmul.f32 %v2335, %v2686
        %v3097 = vmul.f32 %v2335, %v2693
        %v3098 = vmul.f32 %v2335, %v2700
        %v3099 = vmul.f32 %v2335, %v2707
        %v3100 = vmul.f32 %v2335, %v2714
        %v3101 = vmul.f32 %v2335, %v2721
        %v3102 = vmul.f32 %v2335, %v2728
        %v3103 = vmul.f32 %v2335, %v2735
        %v3104 = vmul.f32 %v2335, %v2742
        %v3105 = vmul.f32 %v2335, %v2749
        %v3106 = vmul.f32 %v2335, %v2756
        %v3107 = vmul.f32 %v2335, %v2763
        %v3108 = vmul.f32 %v2335, %v2770
        %v3109 = vmul.f32 %v2335, %v2777
        %v3110 = vmul.f32 %v2335, %v2784
        %v3111 = vmul.f32 %v2335, %v2791
        %3368 = vset.pattern.permute.xlu0 0
        %3369 = vperm.xlu0 %3368, %v2856
        %v3370 = vpop.permute.xlu0 %3369
        %3371 = vset.pattern.permute.xlu0 0
        %3372 = vperm.xlu0 %3371, %v2857
        %v3373 = vpop.permute.xlu0 %3372
        %3374 = vset.pattern.permute.xlu0 0
        %3375 = vperm.xlu0 %3374, %v2858
        %v3376 = vpop.permute.xlu0 %3375
        %3377 = vset.pattern.permute.xlu0 0
        %3378 = vperm.xlu0 %3377, %v2859
        %v3379 = vpop.permute.xlu0 %3378
        %3380 = vset.pattern.permute.xlu0 0
        %3381 = vperm.xlu0 %3380, %v2860
        %v3382 = vpop.permute.xlu0 %3381
        %3383 = vset.pattern.permute.xlu0 0
        %3384 = vperm.xlu0 %3383, %v2861
        %v3385 = vpop.permute.xlu0 %3384
        %3386 = vset.pattern.permute.xlu0 0
        %3387 = vperm.xlu0 %3386, %v2862
        %v3388 = vpop.permute.xlu0 %3387
        %3389 = vset.pattern.permute.xlu0 0
        %3390 = vperm.xlu0 %3389, %v2863
        %v3391 = vpop.permute.xlu0 %3390
        %3392 = vset.pattern.permute.xlu0 0
        %3393 = vperm.xlu0 %3392, %v2864
        %v3394 = vpop.permute.xlu0 %3393
        %3395 = vset.pattern.permute.xlu0 0
        %3396 = vperm.xlu0 %3395, %v2865
        %v3397 = vpop.permute.xlu0 %3396
        %3398 = vset.pattern.permute.xlu0 0
        %3399 = vperm.xlu0 %3398, %v2866
        %v3400 = vpop.permute.xlu0 %3399
        %3401 = vset.pattern.permute.xlu0 0
        %3402 = vperm.xlu0 %3401, %v2867
        %v3403 = vpop.permute.xlu0 %3402
        %3404 = vset.pattern.permute.xlu0 0
        %3405 = vperm.xlu0 %3404, %v2868
        %v3406 = vpop.permute.xlu0 %3405
        %3407 = vset.pattern.permute.xlu0 0
        %3408 = vperm.xlu0 %3407, %v2869
        %v3409 = vpop.permute.xlu0 %3408
        %3410 = vset.pattern.permute.xlu0 0
        %3411 = vperm.xlu0 %3410, %v2870
        %v3412 = vpop.permute.xlu0 %3411
        %3413 = vset.pattern.permute.xlu0 0
        %3414 = vperm.xlu0 %3413, %v2871
        %v3415 = vpop.permute.xlu0 %3414
        %3416 = vset.pattern.permute.xlu0 0
        %3417 = vperm.xlu0 %3416, %v2872
        %v3418 = vpop.permute.xlu0 %3417
        %3419 = vset.pattern.permute.xlu0 0
        %3420 = vperm.xlu0 %3419, %v2873
        %v3421 = vpop.permute.xlu0 %3420
        %3422 = vset.pattern.permute.xlu0 0
        %3423 = vperm.xlu0 %3422, %v2874
        %v3424 = vpop.permute.xlu0 %3423
        %3425 = vset.pattern.permute.xlu0 0
        %3426 = vperm.xlu0 %3425, %v2875
        %v3427 = vpop.permute.xlu0 %3426
        %3428 = vset.pattern.permute.xlu0 0
        %3429 = vperm.xlu0 %3428, %v2876
        %v3430 = vpop.permute.xlu0 %3429
        %3431 = vset.pattern.permute.xlu0 0
        %3432 = vperm.xlu0 %3431, %v2877
        %v3433 = vpop.permute.xlu0 %3432
        %3434 = vset.pattern.permute.xlu0 0
        %3435 = vperm.xlu0 %3434, %v2878
        %v3436 = vpop.permute.xlu0 %3435
        %3437 = vset.pattern.permute.xlu0 0
        %3438 = vperm.xlu0 %3437, %v2879
        %v3439 = vpop.permute.xlu0 %3438
        %3440 = vset.pattern.permute.xlu0 0
        %3441 = vperm.xlu0 %3440, %v2880
        %v3442 = vpop.permute.xlu0 %3441
        %3443 = vset.pattern.permute.xlu0 0
        %3444 = vperm.xlu0 %3443, %v2881
        %v3445 = vpop.permute.xlu0 %3444
        %3446 = vset.pattern.permute.xlu0 0
        %3447 = vperm.xlu0 %3446, %v2882
        %v3448 = vpop.permute.xlu0 %3447
        %3449 = vset.pattern.permute.xlu0 0
        %3450 = vperm.xlu0 %3449, %v2883
        %v3451 = vpop.permute.xlu0 %3450
        %3452 = vset.pattern.permute.xlu0 0
        %3453 = vperm.xlu0 %3452, %v2884
        %v3454 = vpop.permute.xlu0 %3453
        %3455 = vset.pattern.permute.xlu0 0
        %3456 = vperm.xlu0 %3455, %v2885
        %v3457 = vpop.permute.xlu0 %3456
        %3458 = vset.pattern.permute.xlu0 0
        %3459 = vperm.xlu0 %3458, %v2886
        %v3460 = vpop.permute.xlu0 %3459
        %3461 = vset.pattern.permute.xlu0 0
        %3462 = vperm.xlu0 %3461, %v2887
        %v3463 = vpop.permute.xlu0 %3462
        %3464 = vset.pattern.permute.xlu0 0
        %3465 = vperm.xlu0 %3464, %v2888
        %v3466 = vpop.permute.xlu0 %3465
        %3467 = vset.pattern.permute.xlu0 0
        %3468 = vperm.xlu0 %3467, %v2889
        %v3469 = vpop.permute.xlu0 %3468
        %3470 = vset.pattern.permute.xlu0 0
        %3471 = vperm.xlu0 %3470, %v2890
        %v3472 = vpop.permute.xlu0 %3471
        %3473 = vset.pattern.permute.xlu0 0
        %3474 = vperm.xlu0 %3473, %v2891
        %v3475 = vpop.permute.xlu0 %3474
        %3476 = vset.pattern.permute.xlu0 0
        %3477 = vperm.xlu0 %3476, %v2892
        %v3478 = vpop.permute.xlu0 %3477
        %3479 = vset.pattern.permute.xlu0 0
        %3480 = vperm.xlu0 %3479, %v2893
        %v3481 = vpop.permute.xlu0 %3480
        %3482 = vset.pattern.permute.xlu0 0
        %3483 = vperm.xlu0 %3482, %v2894
        %v3484 = vpop.permute.xlu0 %3483
        %3485 = vset.pattern.permute.xlu0 0
        %3486 = vperm.xlu0 %3485, %v2895
        %v3487 = vpop.permute.xlu0 %3486
        %3488 = vset.pattern.permute.xlu0 0
        %3489 = vperm.xlu0 %3488, %v2896
        %v3490 = vpop.permute.xlu0 %3489
        %3491 = vset.pattern.permute.xlu0 0
        %3492 = vperm.xlu0 %3491, %v2897
        %v3493 = vpop.permute.xlu0 %3492
        %3494 = vset.pattern.permute.xlu0 0
        %3495 = vperm.xlu0 %3494, %v2898
        %v3496 = vpop.permute.xlu0 %3495
        %3497 = vset.pattern.permute.xlu0 0
        %3498 = vperm.xlu0 %3497, %v2899
        %v3499 = vpop.permute.xlu0 %3498
        %3500 = vset.pattern.permute.xlu0 0
        %3501 = vperm.xlu0 %3500, %v2900
        %v3502 = vpop.permute.xlu0 %3501
        %3503 = vset.pattern.permute.xlu0 0
        %3504 = vperm.xlu0 %3503, %v2901
        %v3505 = vpop.permute.xlu0 %3504
        %3506 = vset.pattern.permute.xlu0 0
        %3507 = vperm.xlu0 %3506, %v2902
        %v3508 = vpop.permute.xlu0 %3507
        %3509 = vset.pattern.permute.xlu0 0
        %3510 = vperm.xlu0 %3509, %v2903
        %v3511 = vpop.permute.xlu0 %3510
        %3512 = vset.pattern.permute.xlu0 0
        %3513 = vperm.xlu0 %3512, %v2904
        %v3514 = vpop.permute.xlu0 %3513
        %3515 = vset.pattern.permute.xlu0 0
        %3516 = vperm.xlu0 %3515, %v2905
        %v3517 = vpop.permute.xlu0 %3516
        %3518 = vset.pattern.permute.xlu0 0
        %3519 = vperm.xlu0 %3518, %v2906
        %v3520 = vpop.permute.xlu0 %3519
        %3521 = vset.pattern.permute.xlu0 0
        %3522 = vperm.xlu0 %3521, %v2907
        %v3523 = vpop.permute.xlu0 %3522
        %3524 = vset.pattern.permute.xlu0 0
        %3525 = vperm.xlu0 %3524, %v2908
        %v3526 = vpop.permute.xlu0 %3525
        %3527 = vset.pattern.permute.xlu0 0
        %3528 = vperm.xlu0 %3527, %v2909
        %v3529 = vpop.permute.xlu0 %3528
        %3530 = vset.pattern.permute.xlu0 0
        %3531 = vperm.xlu0 %3530, %v2910
        %v3532 = vpop.permute.xlu0 %3531
        %3533 = vset.pattern.permute.xlu0 0
        %3534 = vperm.xlu0 %3533, %v2911
        %v3535 = vpop.permute.xlu0 %3534
        %3536 = vset.pattern.permute.xlu0 0
        %3537 = vperm.xlu0 %3536, %v2912
        %v3538 = vpop.permute.xlu0 %3537
        %3539 = vset.pattern.permute.xlu0 0
        %3540 = vperm.xlu0 %3539, %v2913
        %v3541 = vpop.permute.xlu0 %3540
        %3542 = vset.pattern.permute.xlu0 0
        %3543 = vperm.xlu0 %3542, %v2914
        %v3544 = vpop.permute.xlu0 %3543
        %3545 = vset.pattern.permute.xlu0 0
        %3546 = vperm.xlu0 %3545, %v2915
        %v3547 = vpop.permute.xlu0 %3546
        %3548 = vset.pattern.permute.xlu0 0
        %3549 = vperm.xlu0 %3548, %v2916
        %v3550 = vpop.permute.xlu0 %3549
        %3551 = vset.pattern.permute.xlu0 0
        %3552 = vperm.xlu0 %3551, %v2917
        %v3553 = vpop.permute.xlu0 %3552
        %3554 = vset.pattern.permute.xlu0 0
        %3555 = vperm.xlu0 %3554, %v2918
        %v3556 = vpop.permute.xlu0 %3555
        %3557 = vset.pattern.permute.xlu0 0
        %3558 = vperm.xlu0 %3557, %v2919
        %v3559 = vpop.permute.xlu0 %3558
        %3560 = vset.pattern.permute.xlu0 0
        %3561 = vperm.xlu0 %3560, %v2920
        %v3562 = vpop.permute.xlu0 %3561
        %3563 = vset.pattern.permute.xlu0 0
        %3564 = vperm.xlu0 %3563, %v2921
        %v3565 = vpop.permute.xlu0 %3564
        %3566 = vset.pattern.permute.xlu0 0
        %3567 = vperm.xlu0 %3566, %v2922
        %v3568 = vpop.permute.xlu0 %3567
        %3569 = vset.pattern.permute.xlu0 0
        %3570 = vperm.xlu0 %3569, %v2923
        %v3571 = vpop.permute.xlu0 %3570
        %3572 = vset.pattern.permute.xlu0 0
        %3573 = vperm.xlu0 %3572, %v2924
        %v3574 = vpop.permute.xlu0 %3573
        %3575 = vset.pattern.permute.xlu0 0
        %3576 = vperm.xlu0 %3575, %v2925
        %v3577 = vpop.permute.xlu0 %3576
        %3578 = vset.pattern.permute.xlu0 0
        %3579 = vperm.xlu0 %3578, %v2926
        %v3580 = vpop.permute.xlu0 %3579
        %3581 = vset.pattern.permute.xlu0 0
        %3582 = vperm.xlu0 %3581, %v2927
        %v3583 = vpop.permute.xlu0 %3582
        %3584 = vset.pattern.permute.xlu0 0
        %3585 = vperm.xlu0 %3584, %v2928
        %v3586 = vpop.permute.xlu0 %3585
        %3587 = vset.pattern.permute.xlu0 0
        %3588 = vperm.xlu0 %3587, %v2929
        %v3589 = vpop.permute.xlu0 %3588
        %3590 = vset.pattern.permute.xlu0 0
        %3591 = vperm.xlu0 %3590, %v2930
        %v3592 = vpop.permute.xlu0 %3591
        %3593 = vset.pattern.permute.xlu0 0
        %3594 = vperm.xlu0 %3593, %v2931
        %v3595 = vpop.permute.xlu0 %3594
        %3596 = vset.pattern.permute.xlu0 0
        %3597 = vperm.xlu0 %3596, %v2932
        %v3598 = vpop.permute.xlu0 %3597
        %3599 = vset.pattern.permute.xlu0 0
        %3600 = vperm.xlu0 %3599, %v2933
        %v3601 = vpop.permute.xlu0 %3600
        %3602 = vset.pattern.permute.xlu0 0
        %3603 = vperm.xlu0 %3602, %v2934
        %v3604 = vpop.permute.xlu0 %3603
        %3605 = vset.pattern.permute.xlu0 0
        %3606 = vperm.xlu0 %3605, %v2935
        %v3607 = vpop.permute.xlu0 %3606
        %3608 = vset.pattern.permute.xlu0 0
        %3609 = vperm.xlu0 %3608, %v2936
        %v3610 = vpop.permute.xlu0 %3609
        %3611 = vset.pattern.permute.xlu0 0
        %3612 = vperm.xlu0 %3611, %v2937
        %v3613 = vpop.permute.xlu0 %3612
        %3614 = vset.pattern.permute.xlu0 0
        %3615 = vperm.xlu0 %3614, %v2938
        %v3616 = vpop.permute.xlu0 %3615
        %3617 = vset.pattern.permute.xlu0 0
        %3618 = vperm.xlu0 %3617, %v2939
        %v3619 = vpop.permute.xlu0 %3618
        %3620 = vset.pattern.permute.xlu0 0
        %3621 = vperm.xlu0 %3620, %v2940
        %v3622 = vpop.permute.xlu0 %3621
        %3623 = vset.pattern.permute.xlu0 0
        %3624 = vperm.xlu0 %3623, %v2941
        %v3625 = vpop.permute.xlu0 %3624
        %3626 = vset.pattern.permute.xlu0 0
        %3627 = vperm.xlu0 %3626, %v2942
        %v3628 = vpop.permute.xlu0 %3627
        %3629 = vset.pattern.permute.xlu0 0
        %3630 = vperm.xlu0 %3629, %v2943
        %v3631 = vpop.permute.xlu0 %3630
        %3632 = vset.pattern.permute.xlu0 0
        %3633 = vperm.xlu0 %3632, %v2944
        %v3634 = vpop.permute.xlu0 %3633
        %3635 = vset.pattern.permute.xlu0 0
        %3636 = vperm.xlu0 %3635, %v2945
        %v3637 = vpop.permute.xlu0 %3636
        %3638 = vset.pattern.permute.xlu0 0
        %3639 = vperm.xlu0 %3638, %v2946
        %v3640 = vpop.permute.xlu0 %3639
        %3641 = vset.pattern.permute.xlu0 0
        %3642 = vperm.xlu0 %3641, %v2947
        %v3643 = vpop.permute.xlu0 %3642
        %3644 = vset.pattern.permute.xlu0 0
        %3645 = vperm.xlu0 %3644, %v2948
        %v3646 = vpop.permute.xlu0 %3645
        %3647 = vset.pattern.permute.xlu0 0
        %3648 = vperm.xlu0 %3647, %v2949
        %v3649 = vpop.permute.xlu0 %3648
        %3650 = vset.pattern.permute.xlu0 0
        %3651 = vperm.xlu0 %3650, %v2950
        %v3652 = vpop.permute.xlu0 %3651
        %3653 = vset.pattern.permute.xlu0 0
        %3654 = vperm.xlu0 %3653, %v2951
        %v3655 = vpop.permute.xlu0 %3654
        %3656 = vset.pattern.permute.xlu0 0
        %3657 = vperm.xlu0 %3656, %v2952
        %v3658 = vpop.permute.xlu0 %3657
        %3659 = vset.pattern.permute.xlu0 0
        %3660 = vperm.xlu0 %3659, %v2953
        %v3661 = vpop.permute.xlu0 %3660
        %3662 = vset.pattern.permute.xlu0 0
        %3663 = vperm.xlu0 %3662, %v2954
        %v3664 = vpop.permute.xlu0 %3663
        %3665 = vset.pattern.permute.xlu0 0
        %3666 = vperm.xlu0 %3665, %v2955
        %v3667 = vpop.permute.xlu0 %3666
        %3668 = vset.pattern.permute.xlu0 0
        %3669 = vperm.xlu0 %3668, %v2956
        %v3670 = vpop.permute.xlu0 %3669
        %3671 = vset.pattern.permute.xlu0 0
        %3672 = vperm.xlu0 %3671, %v2957
        %v3673 = vpop.permute.xlu0 %3672
        %3674 = vset.pattern.permute.xlu0 0
        %3675 = vperm.xlu0 %3674, %v2958
        %v3676 = vpop.permute.xlu0 %3675
        %3677 = vset.pattern.permute.xlu0 0
        %3678 = vperm.xlu0 %3677, %v2959
        %v3679 = vpop.permute.xlu0 %3678
        %3680 = vset.pattern.permute.xlu0 0
        %3681 = vperm.xlu0 %3680, %v2960
        %v3682 = vpop.permute.xlu0 %3681
        %3683 = vset.pattern.permute.xlu0 0
        %3684 = vperm.xlu0 %3683, %v2961
        %v3685 = vpop.permute.xlu0 %3684
        %3686 = vset.pattern.permute.xlu0 0
        %3687 = vperm.xlu0 %3686, %v2962
        %v3688 = vpop.permute.xlu0 %3687
        %3689 = vset.pattern.permute.xlu0 0
        %3690 = vperm.xlu0 %3689, %v2963
        %v3691 = vpop.permute.xlu0 %3690
        %3692 = vset.pattern.permute.xlu0 0
        %3693 = vperm.xlu0 %3692, %v2964
        %v3694 = vpop.permute.xlu0 %3693
        %3695 = vset.pattern.permute.xlu0 0
        %3696 = vperm.xlu0 %3695, %v2965
        %v3697 = vpop.permute.xlu0 %3696
        %3698 = vset.pattern.permute.xlu0 0
        %3699 = vperm.xlu0 %3698, %v2966
        %v3700 = vpop.permute.xlu0 %3699
        %3701 = vset.pattern.permute.xlu0 0
        %3702 = vperm.xlu0 %3701, %v2967
        %v3703 = vpop.permute.xlu0 %3702
        %3704 = vset.pattern.permute.xlu0 0
        %3705 = vperm.xlu0 %3704, %v2968
        %v3706 = vpop.permute.xlu0 %3705
        %3707 = vset.pattern.permute.xlu0 0
        %3708 = vperm.xlu0 %3707, %v2969
        %v3709 = vpop.permute.xlu0 %3708
        %3710 = vset.pattern.permute.xlu0 0
        %3711 = vperm.xlu0 %3710, %v2970
        %v3712 = vpop.permute.xlu0 %3711
        %3713 = vset.pattern.permute.xlu0 0
        %3714 = vperm.xlu0 %3713, %v2971
        %v3715 = vpop.permute.xlu0 %3714
        %3716 = vset.pattern.permute.xlu0 0
        %3717 = vperm.xlu0 %3716, %v2972
        %v3718 = vpop.permute.xlu0 %3717
        %3719 = vset.pattern.permute.xlu0 0
        %3720 = vperm.xlu0 %3719, %v2973
        %v3721 = vpop.permute.xlu0 %3720
        %3722 = vset.pattern.permute.xlu0 0
        %3723 = vperm.xlu0 %3722, %v2974
        %v3724 = vpop.permute.xlu0 %3723
        %3725 = vset.pattern.permute.xlu0 0
        %3726 = vperm.xlu0 %3725, %v2975
        %v3727 = vpop.permute.xlu0 %3726
        %3728 = vset.pattern.permute.xlu0 0
        %3729 = vperm.xlu0 %3728, %v2976
        %v3730 = vpop.permute.xlu0 %3729
        %3731 = vset.pattern.permute.xlu0 0
        %3732 = vperm.xlu0 %3731, %v2977
        %v3733 = vpop.permute.xlu0 %3732
        %3734 = vset.pattern.permute.xlu0 0
        %3735 = vperm.xlu0 %3734, %v2978
        %v3736 = vpop.permute.xlu0 %3735
        %3737 = vset.pattern.permute.xlu0 0
        %3738 = vperm.xlu0 %3737, %v2979
        %v3739 = vpop.permute.xlu0 %3738
        %3740 = vset.pattern.permute.xlu0 0
        %3741 = vperm.xlu0 %3740, %v2980
        %v3742 = vpop.permute.xlu0 %3741
        %3743 = vset.pattern.permute.xlu0 0
        %3744 = vperm.xlu0 %3743, %v2981
        %v3745 = vpop.permute.xlu0 %3744
        %3746 = vset.pattern.permute.xlu0 0
        %3747 = vperm.xlu0 %3746, %v2982
        %v3748 = vpop.permute.xlu0 %3747
        %3749 = vset.pattern.permute.xlu0 0
        %3750 = vperm.xlu0 %3749, %v2983
        %v3751 = vpop.permute.xlu0 %3750
        %3752 = vset.pattern.permute.xlu0 0
        %3753 = vperm.xlu0 %3752, %v2984
        %v3754 = vpop.permute.xlu0 %3753
        %3755 = vset.pattern.permute.xlu0 0
        %3756 = vperm.xlu0 %3755, %v2985
        %v3757 = vpop.permute.xlu0 %3756
        %3758 = vset.pattern.permute.xlu0 0
        %3759 = vperm.xlu0 %3758, %v2986
        %v3760 = vpop.permute.xlu0 %3759
        %3761 = vset.pattern.permute.xlu0 0
        %3762 = vperm.xlu0 %3761, %v2987
        %v3763 = vpop.permute.xlu0 %3762
        %3764 = vset.pattern.permute.xlu0 0
        %3765 = vperm.xlu0 %3764, %v2988
        %v3766 = vpop.permute.xlu0 %3765
        %3767 = vset.pattern.permute.xlu0 0
        %3768 = vperm.xlu0 %3767, %v2989
        %v3769 = vpop.permute.xlu0 %3768
        %3770 = vset.pattern.permute.xlu0 0
        %3771 = vperm.xlu0 %3770, %v2990
        %v3772 = vpop.permute.xlu0 %3771
        %3773 = vset.pattern.permute.xlu0 0
        %3774 = vperm.xlu0 %3773, %v2991
        %v3775 = vpop.permute.xlu0 %3774
        %3776 = vset.pattern.permute.xlu0 0
        %3777 = vperm.xlu0 %3776, %v2992
        %v3778 = vpop.permute.xlu0 %3777
        %3779 = vset.pattern.permute.xlu0 0
        %3780 = vperm.xlu0 %3779, %v2993
        %v3781 = vpop.permute.xlu0 %3780
        %3782 = vset.pattern.permute.xlu0 0
        %3783 = vperm.xlu0 %3782, %v2994
        %v3784 = vpop.permute.xlu0 %3783
        %3785 = vset.pattern.permute.xlu0 0
        %3786 = vperm.xlu0 %3785, %v2995
        %v3787 = vpop.permute.xlu0 %3786
        %3788 = vset.pattern.permute.xlu0 0
        %3789 = vperm.xlu0 %3788, %v2996
        %v3790 = vpop.permute.xlu0 %3789
        %3791 = vset.pattern.permute.xlu0 0
        %3792 = vperm.xlu0 %3791, %v2997
        %v3793 = vpop.permute.xlu0 %3792
        %3794 = vset.pattern.permute.xlu0 0
        %3795 = vperm.xlu0 %3794, %v2998
        %v3796 = vpop.permute.xlu0 %3795
        %3797 = vset.pattern.permute.xlu0 0
        %3798 = vperm.xlu0 %3797, %v2999
        %v3799 = vpop.permute.xlu0 %3798
        %3800 = vset.pattern.permute.xlu0 0
        %3801 = vperm.xlu0 %3800, %v3000
        %v3802 = vpop.permute.xlu0 %3801
        %3803 = vset.pattern.permute.xlu0 0
        %3804 = vperm.xlu0 %3803, %v3001
        %v3805 = vpop.permute.xlu0 %3804
        %3806 = vset.pattern.permute.xlu0 0
        %3807 = vperm.xlu0 %3806, %v3002
        %v3808 = vpop.permute.xlu0 %3807
        %3809 = vset.pattern.permute.xlu0 0
        %3810 = vperm.xlu0 %3809, %v3003
        %v3811 = vpop.permute.xlu0 %3810
        %3812 = vset.pattern.permute.xlu0 0
        %3813 = vperm.xlu0 %3812, %v3004
        %v3814 = vpop.permute.xlu0 %3813
        %3815 = vset.pattern.permute.xlu0 0
        %3816 = vperm.xlu0 %3815, %v3005
        %v3817 = vpop.permute.xlu0 %3816
        %3818 = vset.pattern.permute.xlu0 0
        %3819 = vperm.xlu0 %3818, %v3006
        %v3820 = vpop.permute.xlu0 %3819
        %3821 = vset.pattern.permute.xlu0 0
        %3822 = vperm.xlu0 %3821, %v3007
        %v3823 = vpop.permute.xlu0 %3822
        %3824 = vset.pattern.permute.xlu0 0
        %3825 = vperm.xlu0 %3824, %v3008
        %v3826 = vpop.permute.xlu0 %3825
        %3827 = vset.pattern.permute.xlu0 0
        %3828 = vperm.xlu0 %3827, %v3009
        %v3829 = vpop.permute.xlu0 %3828
        %3830 = vset.pattern.permute.xlu0 0
        %3831 = vperm.xlu0 %3830, %v3010
        %v3832 = vpop.permute.xlu0 %3831
        %3833 = vset.pattern.permute.xlu0 0
        %3834 = vperm.xlu0 %3833, %v3011
        %v3835 = vpop.permute.xlu0 %3834
        %3836 = vset.pattern.permute.xlu0 0
        %3837 = vperm.xlu0 %3836, %v3012
        %v3838 = vpop.permute.xlu0 %3837
        %3839 = vset.pattern.permute.xlu0 0
        %3840 = vperm.xlu0 %3839, %v3013
        %v3841 = vpop.permute.xlu0 %3840
        %3842 = vset.pattern.permute.xlu0 0
        %3843 = vperm.xlu0 %3842, %v3014
        %v3844 = vpop.permute.xlu0 %3843
        %3845 = vset.pattern.permute.xlu0 0
        %3846 = vperm.xlu0 %3845, %v3015
        %v3847 = vpop.permute.xlu0 %3846
        %3848 = vset.pattern.permute.xlu0 0
        %3849 = vperm.xlu0 %3848, %v3016
        %v3850 = vpop.permute.xlu0 %3849
        %3851 = vset.pattern.permute.xlu0 0
        %3852 = vperm.xlu0 %3851, %v3017
        %v3853 = vpop.permute.xlu0 %3852
        %3854 = vset.pattern.permute.xlu0 0
        %3855 = vperm.xlu0 %3854, %v3018
        %v3856 = vpop.permute.xlu0 %3855
        %3857 = vset.pattern.permute.xlu0 0
        %3858 = vperm.xlu0 %3857, %v3019
        %v3859 = vpop.permute.xlu0 %3858
        %3860 = vset.pattern.permute.xlu0 0
        %3861 = vperm.xlu0 %3860, %v3020
        %v3862 = vpop.permute.xlu0 %3861
        %3863 = vset.pattern.permute.xlu0 0
        %3864 = vperm.xlu0 %3863, %v3021
        %v3865 = vpop.permute.xlu0 %3864
        %3866 = vset.pattern.permute.xlu0 0
        %3867 = vperm.xlu0 %3866, %v3022
        %v3868 = vpop.permute.xlu0 %3867
        %3869 = vset.pattern.permute.xlu0 0
        %3870 = vperm.xlu0 %3869, %v3023
        %v3871 = vpop.permute.xlu0 %3870
        %3872 = vset.pattern.permute.xlu0 0
        %3873 = vperm.xlu0 %3872, %v3024
        %v3874 = vpop.permute.xlu0 %3873
        %3875 = vset.pattern.permute.xlu0 0
        %3876 = vperm.xlu0 %3875, %v3025
        %v3877 = vpop.permute.xlu0 %3876
        %3878 = vset.pattern.permute.xlu0 0
        %3879 = vperm.xlu0 %3878, %v3026
        %v3880 = vpop.permute.xlu0 %3879
        %3881 = vset.pattern.permute.xlu0 0
        %3882 = vperm.xlu0 %3881, %v3027
        %v3883 = vpop.permute.xlu0 %3882
        %3884 = vset.pattern.permute.xlu0 0
        %3885 = vperm.xlu0 %3884, %v3028
        %v3886 = vpop.permute.xlu0 %3885
        %3887 = vset.pattern.permute.xlu0 0
        %3888 = vperm.xlu0 %3887, %v3029
        %v3889 = vpop.permute.xlu0 %3888
        %3890 = vset.pattern.permute.xlu0 0
        %3891 = vperm.xlu0 %3890, %v3030
        %v3892 = vpop.permute.xlu0 %3891
        %3893 = vset.pattern.permute.xlu0 0
        %3894 = vperm.xlu0 %3893, %v3031
        %v3895 = vpop.permute.xlu0 %3894
        %3896 = vset.pattern.permute.xlu0 0
        %3897 = vperm.xlu0 %3896, %v3032
        %v3898 = vpop.permute.xlu0 %3897
        %3899 = vset.pattern.permute.xlu0 0
        %3900 = vperm.xlu0 %3899, %v3033
        %v3901 = vpop.permute.xlu0 %3900
        %3902 = vset.pattern.permute.xlu0 0
        %3903 = vperm.xlu0 %3902, %v3034
        %v3904 = vpop.permute.xlu0 %3903
        %3905 = vset.pattern.permute.xlu0 0
        %3906 = vperm.xlu0 %3905, %v3035
        %v3907 = vpop.permute.xlu0 %3906
        %3908 = vset.pattern.permute.xlu0 0
        %3909 = vperm.xlu0 %3908, %v3036
        %v3910 = vpop.permute.xlu0 %3909
        %3911 = vset.pattern.permute.xlu0 0
        %3912 = vperm.xlu0 %3911, %v3037
        %v3913 = vpop.permute.xlu0 %3912
        %3914 = vset.pattern.permute.xlu0 0
        %3915 = vperm.xlu0 %3914, %v3038
        %v3916 = vpop.permute.xlu0 %3915
        %3917 = vset.pattern.permute.xlu0 0
        %3918 = vperm.xlu0 %3917, %v3039
        %v3919 = vpop.permute.xlu0 %3918
        %3920 = vset.pattern.permute.xlu0 0
        %3921 = vperm.xlu0 %3920, %v3040
        %v3922 = vpop.permute.xlu0 %3921
        %3923 = vset.pattern.permute.xlu0 0
        %3924 = vperm.xlu0 %3923, %v3041
        %v3925 = vpop.permute.xlu0 %3924
        %3926 = vset.pattern.permute.xlu0 0
        %3927 = vperm.xlu0 %3926, %v3042
        %v3928 = vpop.permute.xlu0 %3927
        %3929 = vset.pattern.permute.xlu0 0
        %3930 = vperm.xlu0 %3929, %v3043
        %v3931 = vpop.permute.xlu0 %3930
        %3932 = vset.pattern.permute.xlu0 0
        %3933 = vperm.xlu0 %3932, %v3044
        %v3934 = vpop.permute.xlu0 %3933
        %3935 = vset.pattern.permute.xlu0 0
        %3936 = vperm.xlu0 %3935, %v3045
        %v3937 = vpop.permute.xlu0 %3936
        %3938 = vset.pattern.permute.xlu0 0
        %3939 = vperm.xlu0 %3938, %v3046
        %v3940 = vpop.permute.xlu0 %3939
        %3941 = vset.pattern.permute.xlu0 0
        %3942 = vperm.xlu0 %3941, %v3047
        %v3943 = vpop.permute.xlu0 %3942
        %3944 = vset.pattern.permute.xlu0 0
        %3945 = vperm.xlu0 %3944, %v3048
        %v3946 = vpop.permute.xlu0 %3945
        %3947 = vset.pattern.permute.xlu0 0
        %3948 = vperm.xlu0 %3947, %v3049
        %v3949 = vpop.permute.xlu0 %3948
        %3950 = vset.pattern.permute.xlu0 0
        %3951 = vperm.xlu0 %3950, %v3050
        %v3952 = vpop.permute.xlu0 %3951
        %3953 = vset.pattern.permute.xlu0 0
        %3954 = vperm.xlu0 %3953, %v3051
        %v3955 = vpop.permute.xlu0 %3954
        %3956 = vset.pattern.permute.xlu0 0
        %3957 = vperm.xlu0 %3956, %v3052
        %v3958 = vpop.permute.xlu0 %3957
        %3959 = vset.pattern.permute.xlu0 0
        %3960 = vperm.xlu0 %3959, %v3053
        %v3961 = vpop.permute.xlu0 %3960
        %3962 = vset.pattern.permute.xlu0 0
        %3963 = vperm.xlu0 %3962, %v3054
        %v3964 = vpop.permute.xlu0 %3963
        %3965 = vset.pattern.permute.xlu0 0
        %3966 = vperm.xlu0 %3965, %v3055
        %v3967 = vpop.permute.xlu0 %3966
        %3968 = vset.pattern.permute.xlu0 0
        %3969 = vperm.xlu0 %3968, %v3056
        %v3970 = vpop.permute.xlu0 %3969
        %3971 = vset.pattern.permute.xlu0 0
        %3972 = vperm.xlu0 %3971, %v3057
        %v3973 = vpop.permute.xlu0 %3972
        %3974 = vset.pattern.permute.xlu0 0
        %3975 = vperm.xlu0 %3974, %v3058
        %v3976 = vpop.permute.xlu0 %3975
        %3977 = vset.pattern.permute.xlu0 0
        %3978 = vperm.xlu0 %3977, %v3059
        %v3979 = vpop.permute.xlu0 %3978
        %3980 = vset.pattern.permute.xlu0 0
        %3981 = vperm.xlu0 %3980, %v3060
        %v3982 = vpop.permute.xlu0 %3981
        %3983 = vset.pattern.permute.xlu0 0
        %3984 = vperm.xlu0 %3983, %v3061
        %v3985 = vpop.permute.xlu0 %3984
        %3986 = vset.pattern.permute.xlu0 0
        %3987 = vperm.xlu0 %3986, %v3062
        %v3988 = vpop.permute.xlu0 %3987
        %3989 = vset.pattern.permute.xlu0 0
        %3990 = vperm.xlu0 %3989, %v3063
        %v3991 = vpop.permute.xlu0 %3990
        %3992 = vset.pattern.permute.xlu0 0
        %3993 = vperm.xlu0 %3992, %v3064
        %v3994 = vpop.permute.xlu0 %3993
        %3995 = vset.pattern.permute.xlu0 0
        %3996 = vperm.xlu0 %3995, %v3065
        %v3997 = vpop.permute.xlu0 %3996
        %3998 = vset.pattern.permute.xlu0 0
        %3999 = vperm.xlu0 %3998, %v3066
        %v4000 = vpop.permute.xlu0 %3999
        %4001 = vset.pattern.permute.xlu0 0
        %4002 = vperm.xlu0 %4001, %v3067
        %v4003 = vpop.permute.xlu0 %4002
        %4004 = vset.pattern.permute.xlu0 0
        %4005 = vperm.xlu0 %4004, %v3068
        %v4006 = vpop.permute.xlu0 %4005
        %4007 = vset.pattern.permute.xlu0 0
        %4008 = vperm.xlu0 %4007, %v3069
        %v4009 = vpop.permute.xlu0 %4008
        %4010 = vset.pattern.permute.xlu0 0
        %4011 = vperm.xlu0 %4010, %v3070
        %v4012 = vpop.permute.xlu0 %4011
        %4013 = vset.pattern.permute.xlu0 0
        %4014 = vperm.xlu0 %4013, %v3071
        %v4015 = vpop.permute.xlu0 %4014
        %4016 = vset.pattern.permute.xlu0 0
        %4017 = vperm.xlu0 %4016, %v3072
        %v4018 = vpop.permute.xlu0 %4017
        %4019 = vset.pattern.permute.xlu0 0
        %4020 = vperm.xlu0 %4019, %v3073
        %v4021 = vpop.permute.xlu0 %4020
        %4022 = vset.pattern.permute.xlu0 0
        %4023 = vperm.xlu0 %4022, %v3074
        %v4024 = vpop.permute.xlu0 %4023
        %4025 = vset.pattern.permute.xlu0 0
        %4026 = vperm.xlu0 %4025, %v3075
        %v4027 = vpop.permute.xlu0 %4026
        %4028 = vset.pattern.permute.xlu0 0
        %4029 = vperm.xlu0 %4028, %v3076
        %v4030 = vpop.permute.xlu0 %4029
        %4031 = vset.pattern.permute.xlu0 0
        %4032 = vperm.xlu0 %4031, %v3077
        %v4033 = vpop.permute.xlu0 %4032
        %4034 = vset.pattern.permute.xlu0 0
        %4035 = vperm.xlu0 %4034, %v3078
        %v4036 = vpop.permute.xlu0 %4035
        %4037 = vset.pattern.permute.xlu0 0
        %4038 = vperm.xlu0 %4037, %v3079
        %v4039 = vpop.permute.xlu0 %4038
        %4040 = vset.pattern.permute.xlu0 0
        %4041 = vperm.xlu0 %4040, %v3080
        %v4042 = vpop.permute.xlu0 %4041
        %4043 = vset.pattern.permute.xlu0 0
        %4044 = vperm.xlu0 %4043, %v3081
        %v4045 = vpop.permute.xlu0 %4044
        %4046 = vset.pattern.permute.xlu0 0
        %4047 = vperm.xlu0 %4046, %v3082
        %v4048 = vpop.permute.xlu0 %4047
        %4049 = vset.pattern.permute.xlu0 0
        %4050 = vperm.xlu0 %4049, %v3083
        %v4051 = vpop.permute.xlu0 %4050
        %4052 = vset.pattern.permute.xlu0 0
        %4053 = vperm.xlu0 %4052, %v3084
        %v4054 = vpop.permute.xlu0 %4053
        %4055 = vset.pattern.permute.xlu0 0
        %4056 = vperm.xlu0 %4055, %v3085
        %v4057 = vpop.permute.xlu0 %4056
        %4058 = vset.pattern.permute.xlu0 0
        %4059 = vperm.xlu0 %4058, %v3086
        %v4060 = vpop.permute.xlu0 %4059
        %4061 = vset.pattern.permute.xlu0 0
        %4062 = vperm.xlu0 %4061, %v3087
        %v4063 = vpop.permute.xlu0 %4062
        %4064 = vset.pattern.permute.xlu0 0
        %4065 = vperm.xlu0 %4064, %v3088
        %v4066 = vpop.permute.xlu0 %4065
        %4067 = vset.pattern.permute.xlu0 0
        %4068 = vperm.xlu0 %4067, %v3089
        %v4069 = vpop.permute.xlu0 %4068
        %4070 = vset.pattern.permute.xlu0 0
        %4071 = vperm.xlu0 %4070, %v3090
        %v4072 = vpop.permute.xlu0 %4071
        %4073 = vset.pattern.permute.xlu0 0
        %4074 = vperm.xlu0 %4073, %v3091
        %v4075 = vpop.permute.xlu0 %4074
        %4076 = vset.pattern.permute.xlu0 0
        %4077 = vperm.xlu0 %4076, %v3092
        %v4078 = vpop.permute.xlu0 %4077
        %4079 = vset.pattern.permute.xlu0 0
        %4080 = vperm.xlu0 %4079, %v3093
        %v4081 = vpop.permute.xlu0 %4080
        %4082 = vset.pattern.permute.xlu0 0
        %4083 = vperm.xlu0 %4082, %v3094
        %v4084 = vpop.permute.xlu0 %4083
        %4085 = vset.pattern.permute.xlu0 0
        %4086 = vperm.xlu0 %4085, %v3095
        %v4087 = vpop.permute.xlu0 %4086
        %4088 = vset.pattern.permute.xlu0 0
        %4089 = vperm.xlu0 %4088, %v3096
        %v4090 = vpop.permute.xlu0 %4089
        %4091 = vset.pattern.permute.xlu0 0
        %4092 = vperm.xlu0 %4091, %v3097
        %v4093 = vpop.permute.xlu0 %4092
        %4094 = vset.pattern.permute.xlu0 0
        %4095 = vperm.xlu0 %4094, %v3098
        %v4096 = vpop.permute.xlu0 %4095
        %4097 = vset.pattern.permute.xlu0 0
        %4098 = vperm.xlu0 %4097, %v3099
        %v4099 = vpop.permute.xlu0 %4098
        %4100 = vset.pattern.permute.xlu0 0
        %4101 = vperm.xlu0 %4100, %v3100
        %v4102 = vpop.permute.xlu0 %4101
        %4103 = vset.pattern.permute.xlu0 0
        %4104 = vperm.xlu0 %4103, %v3101
        %v4105 = vpop.permute.xlu0 %4104
        %4106 = vset.pattern.permute.xlu0 0
        %4107 = vperm.xlu0 %4106, %v3102
        %v4108 = vpop.permute.xlu0 %4107
        %4109 = vset.pattern.permute.xlu0 0
        %4110 = vperm.xlu0 %4109, %v3103
        %v4111 = vpop.permute.xlu0 %4110
        %4112 = vset.pattern.permute.xlu0 0
        %4113 = vperm.xlu0 %4112, %v3104
        %v4114 = vpop.permute.xlu0 %4113
        %4115 = vset.pattern.permute.xlu0 0
        %4116 = vperm.xlu0 %4115, %v3105
        %v4117 = vpop.permute.xlu0 %4116
        %4118 = vset.pattern.permute.xlu0 0
        %4119 = vperm.xlu0 %4118, %v3106
        %v4120 = vpop.permute.xlu0 %4119
        %4121 = vset.pattern.permute.xlu0 0
        %4122 = vperm.xlu0 %4121, %v3107
        %v4123 = vpop.permute.xlu0 %4122
        %4124 = vset.pattern.permute.xlu0 0
        %4125 = vperm.xlu0 %4124, %v3108
        %v4126 = vpop.permute.xlu0 %4125
        %4127 = vset.pattern.permute.xlu0 0
        %4128 = vperm.xlu0 %4127, %v3109
        %v4129 = vpop.permute.xlu0 %4128
        %4130 = vset.pattern.permute.xlu0 0
        %4131 = vperm.xlu0 %4130, %v3110
        %v4132 = vpop.permute.xlu0 %4131
        %4133 = vset.pattern.permute.xlu0 0
        %4134 = vperm.xlu0 %4133, %v3111
        %v4135 = vpop.permute.xlu0 %4134
        %v4136 = vlaneseq
        %v4137 = vshrl.u32 %v4136, 7
        %v4138 = vsub.s32 %v1664, %v4137
        %v4139 = vrot.slane %v3370, %v4138
        %v4140 = vlaneseq
        %v4141 = vshrl.u32 %v4140, 7
        %v4142 = vsub.s32 %v1664, %v4141
        %v4143 = vrot.slane %v3373, %v4142
        %v4144 = vlaneseq
        %v4145 = vshrl.u32 %v4144, 7
        %v4146 = vsub.s32 %v1664, %v4145
        %v4147 = vrot.slane %v3376, %v4146
        %v4148 = vlaneseq
        %v4149 = vshrl.u32 %v4148, 7
        %v4150 = vsub.s32 %v1664, %v4149
        %v4151 = vrot.slane %v3379, %v4150
        %v4152 = vlaneseq
        %v4153 = vshrl.u32 %v4152, 7
        %v4154 = vsub.s32 %v1664, %v4153
        %v4155 = vrot.slane %v3382, %v4154
        %v4156 = vlaneseq
        %v4157 = vshrl.u32 %v4156, 7
        %v4158 = vsub.s32 %v1664, %v4157
        %v4159 = vrot.slane %v3385, %v4158
        %v4160 = vlaneseq
        %v4161 = vshrl.u32 %v4160, 7
        %v4162 = vsub.s32 %v1664, %v4161
        %v4163 = vrot.slane %v3388, %v4162
        %v4164 = vlaneseq
        %v4165 = vshrl.u32 %v4164, 7
        %v4166 = vsub.s32 %v1664, %v4165
        %v4167 = vrot.slane %v3391, %v4166
        %v4168 = vlaneseq
        %v4169 = vshrl.u32 %v4168, 7
        %v4170 = vsub.s32 %v1664, %v4169
        %v4171 = vrot.slane %v3394, %v4170
        %v4172 = vlaneseq
        %v4173 = vshrl.u32 %v4172, 7
        %v4174 = vsub.s32 %v1664, %v4173
        %v4175 = vrot.slane %v3397, %v4174
        %v4176 = vlaneseq
        %v4177 = vshrl.u32 %v4176, 7
        %v4178 = vsub.s32 %v1664, %v4177
        %v4179 = vrot.slane %v3400, %v4178
        %v4180 = vlaneseq
        %v4181 = vshrl.u32 %v4180, 7
        %v4182 = vsub.s32 %v1664, %v4181
        %v4183 = vrot.slane %v3403, %v4182
        %v4184 = vlaneseq
        %v4185 = vshrl.u32 %v4184, 7
        %v4186 = vsub.s32 %v1664, %v4185
        %v4187 = vrot.slane %v3406, %v4186
        %v4188 = vlaneseq
        %v4189 = vshrl.u32 %v4188, 7
        %v4190 = vsub.s32 %v1664, %v4189
        %v4191 = vrot.slane %v3409, %v4190
        %v4192 = vlaneseq
        %v4193 = vshrl.u32 %v4192, 7
        %v4194 = vsub.s32 %v1664, %v4193
        %v4195 = vrot.slane %v3412, %v4194
        %v4196 = vlaneseq
        %v4197 = vshrl.u32 %v4196, 7
        %v4198 = vsub.s32 %v1664, %v4197
        %v4199 = vrot.slane %v3415, %v4198
        %v4200 = vlaneseq
        %v4201 = vshrl.u32 %v4200, 7
        %v4202 = vsub.s32 %v1664, %v4201
        %v4203 = vrot.slane %v3418, %v4202
        %v4204 = vlaneseq
        %v4205 = vshrl.u32 %v4204, 7
        %v4206 = vsub.s32 %v1664, %v4205
        %v4207 = vrot.slane %v3421, %v4206
        %v4208 = vlaneseq
        %v4209 = vshrl.u32 %v4208, 7
        %v4210 = vsub.s32 %v1664, %v4209
        %v4211 = vrot.slane %v3424, %v4210
        %v4212 = vlaneseq
        %v4213 = vshrl.u32 %v4212, 7
        %v4214 = vsub.s32 %v1664, %v4213
        %v4215 = vrot.slane %v3427, %v4214
        %v4216 = vlaneseq
        %v4217 = vshrl.u32 %v4216, 7
        %v4218 = vsub.s32 %v1664, %v4217
        %v4219 = vrot.slane %v3430, %v4218
        %v4220 = vlaneseq
        %v4221 = vshrl.u32 %v4220, 7
        %v4222 = vsub.s32 %v1664, %v4221
        %v4223 = vrot.slane %v3433, %v4222
        %v4224 = vlaneseq
        %v4225 = vshrl.u32 %v4224, 7
        %v4226 = vsub.s32 %v1664, %v4225
        %v4227 = vrot.slane %v3436, %v4226
        %v4228 = vlaneseq
        %v4229 = vshrl.u32 %v4228, 7
        %v4230 = vsub.s32 %v1664, %v4229
        %v4231 = vrot.slane %v3439, %v4230
        %v4232 = vlaneseq
        %v4233 = vshrl.u32 %v4232, 7
        %v4234 = vsub.s32 %v1664, %v4233
        %v4235 = vrot.slane %v3442, %v4234
        %v4236 = vlaneseq
        %v4237 = vshrl.u32 %v4236, 7
        %v4238 = vsub.s32 %v1664, %v4237
        %v4239 = vrot.slane %v3445, %v4238
        %v4240 = vlaneseq
        %v4241 = vshrl.u32 %v4240, 7
        %v4242 = vsub.s32 %v1664, %v4241
        %v4243 = vrot.slane %v3448, %v4242
        %v4244 = vlaneseq
        %v4245 = vshrl.u32 %v4244, 7
        %v4246 = vsub.s32 %v1664, %v4245
        %v4247 = vrot.slane %v3451, %v4246
        %v4248 = vlaneseq
        %v4249 = vshrl.u32 %v4248, 7
        %v4250 = vsub.s32 %v1664, %v4249
        %v4251 = vrot.slane %v3454, %v4250
        %v4252 = vlaneseq
        %v4253 = vshrl.u32 %v4252, 7
        %v4254 = vsub.s32 %v1664, %v4253
        %v4255 = vrot.slane %v3457, %v4254
        %v4256 = vlaneseq
        %v4257 = vshrl.u32 %v4256, 7
        %v4258 = vsub.s32 %v1664, %v4257
        %v4259 = vrot.slane %v3460, %v4258
        %v4260 = vlaneseq
        %v4261 = vshrl.u32 %v4260, 7
        %v4262 = vsub.s32 %v1664, %v4261
        %v4263 = vrot.slane %v3463, %v4262
        %v4264 = vlaneseq
        %v4265 = vshrl.u32 %v4264, 7
        %v4266 = vsub.s32 %v1664, %v4265
        %v4267 = vrot.slane %v3466, %v4266
        %v4268 = vlaneseq
        %v4269 = vshrl.u32 %v4268, 7
        %v4270 = vsub.s32 %v1664, %v4269
        %v4271 = vrot.slane %v3469, %v4270
        %v4272 = vlaneseq
        %v4273 = vshrl.u32 %v4272, 7
        %v4274 = vsub.s32 %v1664, %v4273
        %v4275 = vrot.slane %v3472, %v4274
        %v4276 = vlaneseq
        %v4277 = vshrl.u32 %v4276, 7
        %v4278 = vsub.s32 %v1664, %v4277
        %v4279 = vrot.slane %v3475, %v4278
        %v4280 = vlaneseq
        %v4281 = vshrl.u32 %v4280, 7
        %v4282 = vsub.s32 %v1664, %v4281
        %v4283 = vrot.slane %v3478, %v4282
        %v4284 = vlaneseq
        %v4285 = vshrl.u32 %v4284, 7
        %v4286 = vsub.s32 %v1664, %v4285
        %v4287 = vrot.slane %v3481, %v4286
        %v4288 = vlaneseq
        %v4289 = vshrl.u32 %v4288, 7
        %v4290 = vsub.s32 %v1664, %v4289
        %v4291 = vrot.slane %v3484, %v4290
        %v4292 = vlaneseq
        %v4293 = vshrl.u32 %v4292, 7
        %v4294 = vsub.s32 %v1664, %v4293
        %v4295 = vrot.slane %v3487, %v4294
        %v4296 = vlaneseq
        %v4297 = vshrl.u32 %v4296, 7
        %v4298 = vsub.s32 %v1664, %v4297
        %v4299 = vrot.slane %v3490, %v4298
        %v4300 = vlaneseq
        %v4301 = vshrl.u32 %v4300, 7
        %v4302 = vsub.s32 %v1664, %v4301
        %v4303 = vrot.slane %v3493, %v4302
        %v4304 = vlaneseq
        %v4305 = vshrl.u32 %v4304, 7
        %v4306 = vsub.s32 %v1664, %v4305
        %v4307 = vrot.slane %v3496, %v4306
        %v4308 = vlaneseq
        %v4309 = vshrl.u32 %v4308, 7
        %v4310 = vsub.s32 %v1664, %v4309
        %v4311 = vrot.slane %v3499, %v4310
        %v4312 = vlaneseq
        %v4313 = vshrl.u32 %v4312, 7
        %v4314 = vsub.s32 %v1664, %v4313
        %v4315 = vrot.slane %v3502, %v4314
        %v4316 = vlaneseq
        %v4317 = vshrl.u32 %v4316, 7
        %v4318 = vsub.s32 %v1664, %v4317
        %v4319 = vrot.slane %v3505, %v4318
        %v4320 = vlaneseq
        %v4321 = vshrl.u32 %v4320, 7
        %v4322 = vsub.s32 %v1664, %v4321
        %v4323 = vrot.slane %v3508, %v4322
        %v4324 = vlaneseq
        %v4325 = vshrl.u32 %v4324, 7
        %v4326 = vsub.s32 %v1664, %v4325
        %v4327 = vrot.slane %v3511, %v4326
        %v4328 = vlaneseq
        %v4329 = vshrl.u32 %v4328, 7
        %v4330 = vsub.s32 %v1664, %v4329
        %v4331 = vrot.slane %v3514, %v4330
        %v4332 = vlaneseq
        %v4333 = vshrl.u32 %v4332, 7
        %v4334 = vsub.s32 %v1664, %v4333
        %v4335 = vrot.slane %v3517, %v4334
        %v4336 = vlaneseq
        %v4337 = vshrl.u32 %v4336, 7
        %v4338 = vsub.s32 %v1664, %v4337
        %v4339 = vrot.slane %v3520, %v4338
        %v4340 = vlaneseq
        %v4341 = vshrl.u32 %v4340, 7
        %v4342 = vsub.s32 %v1664, %v4341
        %v4343 = vrot.slane %v3523, %v4342
        %v4344 = vlaneseq
        %v4345 = vshrl.u32 %v4344, 7
        %v4346 = vsub.s32 %v1664, %v4345
        %v4347 = vrot.slane %v3526, %v4346
        %v4348 = vlaneseq
        %v4349 = vshrl.u32 %v4348, 7
        %v4350 = vsub.s32 %v1664, %v4349
        %v4351 = vrot.slane %v3529, %v4350
        %v4352 = vlaneseq
        %v4353 = vshrl.u32 %v4352, 7
        %v4354 = vsub.s32 %v1664, %v4353
        %v4355 = vrot.slane %v3532, %v4354
        %v4356 = vlaneseq
        %v4357 = vshrl.u32 %v4356, 7
        %v4358 = vsub.s32 %v1664, %v4357
        %v4359 = vrot.slane %v3535, %v4358
        %v4360 = vlaneseq
        %v4361 = vshrl.u32 %v4360, 7
        %v4362 = vsub.s32 %v1664, %v4361
        %v4363 = vrot.slane %v3538, %v4362
        %v4364 = vlaneseq
        %v4365 = vshrl.u32 %v4364, 7
        %v4366 = vsub.s32 %v1664, %v4365
        %v4367 = vrot.slane %v3541, %v4366
        %v4368 = vlaneseq
        %v4369 = vshrl.u32 %v4368, 7
        %v4370 = vsub.s32 %v1664, %v4369
        %v4371 = vrot.slane %v3544, %v4370
        %v4372 = vlaneseq
        %v4373 = vshrl.u32 %v4372, 7
        %v4374 = vsub.s32 %v1664, %v4373
        %v4375 = vrot.slane %v3547, %v4374
        %v4376 = vlaneseq
        %v4377 = vshrl.u32 %v4376, 7
        %v4378 = vsub.s32 %v1664, %v4377
        %v4379 = vrot.slane %v3550, %v4378
        %v4380 = vlaneseq
        %v4381 = vshrl.u32 %v4380, 7
        %v4382 = vsub.s32 %v1664, %v4381
        %v4383 = vrot.slane %v3553, %v4382
        %v4384 = vlaneseq
        %v4385 = vshrl.u32 %v4384, 7
        %v4386 = vsub.s32 %v1664, %v4385
        %v4387 = vrot.slane %v3556, %v4386
        %v4388 = vlaneseq
        %v4389 = vshrl.u32 %v4388, 7
        %v4390 = vsub.s32 %v1664, %v4389
        %v4391 = vrot.slane %v3559, %v4390
        %v4392 = vlaneseq
        %v4393 = vshrl.u32 %v4392, 7
        %v4394 = vsub.s32 %v1664, %v4393
        %v4395 = vrot.slane %v3562, %v4394
        %v4396 = vlaneseq
        %v4397 = vshrl.u32 %v4396, 7
        %v4398 = vsub.s32 %v1664, %v4397
        %v4399 = vrot.slane %v3565, %v4398
        %v4400 = vlaneseq
        %v4401 = vshrl.u32 %v4400, 7
        %v4402 = vsub.s32 %v1664, %v4401
        %v4403 = vrot.slane %v3568, %v4402
        %v4404 = vlaneseq
        %v4405 = vshrl.u32 %v4404, 7
        %v4406 = vsub.s32 %v1664, %v4405
        %v4407 = vrot.slane %v3571, %v4406
        %v4408 = vlaneseq
        %v4409 = vshrl.u32 %v4408, 7
        %v4410 = vsub.s32 %v1664, %v4409
        %v4411 = vrot.slane %v3574, %v4410
        %v4412 = vlaneseq
        %v4413 = vshrl.u32 %v4412, 7
        %v4414 = vsub.s32 %v1664, %v4413
        %v4415 = vrot.slane %v3577, %v4414
        %v4416 = vlaneseq
        %v4417 = vshrl.u32 %v4416, 7
        %v4418 = vsub.s32 %v1664, %v4417
        %v4419 = vrot.slane %v3580, %v4418
        %v4420 = vlaneseq
        %v4421 = vshrl.u32 %v4420, 7
        %v4422 = vsub.s32 %v1664, %v4421
        %v4423 = vrot.slane %v3583, %v4422
        %v4424 = vlaneseq
        %v4425 = vshrl.u32 %v4424, 7
        %v4426 = vsub.s32 %v1664, %v4425
        %v4427 = vrot.slane %v3586, %v4426
        %v4428 = vlaneseq
        %v4429 = vshrl.u32 %v4428, 7
        %v4430 = vsub.s32 %v1664, %v4429
        %v4431 = vrot.slane %v3589, %v4430
        %v4432 = vlaneseq
        %v4433 = vshrl.u32 %v4432, 7
        %v4434 = vsub.s32 %v1664, %v4433
        %v4435 = vrot.slane %v3592, %v4434
        %v4436 = vlaneseq
        %v4437 = vshrl.u32 %v4436, 7
        %v4438 = vsub.s32 %v1664, %v4437
        %v4439 = vrot.slane %v3595, %v4438
        %v4440 = vlaneseq
        %v4441 = vshrl.u32 %v4440, 7
        %v4442 = vsub.s32 %v1664, %v4441
        %v4443 = vrot.slane %v3598, %v4442
        %v4444 = vlaneseq
        %v4445 = vshrl.u32 %v4444, 7
        %v4446 = vsub.s32 %v1664, %v4445
        %v4447 = vrot.slane %v3601, %v4446
        %v4448 = vlaneseq
        %v4449 = vshrl.u32 %v4448, 7
        %v4450 = vsub.s32 %v1664, %v4449
        %v4451 = vrot.slane %v3604, %v4450
        %v4452 = vlaneseq
        %v4453 = vshrl.u32 %v4452, 7
        %v4454 = vsub.s32 %v1664, %v4453
        %v4455 = vrot.slane %v3607, %v4454
        %v4456 = vlaneseq
        %v4457 = vshrl.u32 %v4456, 7
        %v4458 = vsub.s32 %v1664, %v4457
        %v4459 = vrot.slane %v3610, %v4458
        %v4460 = vlaneseq
        %v4461 = vshrl.u32 %v4460, 7
        %v4462 = vsub.s32 %v1664, %v4461
        %v4463 = vrot.slane %v3613, %v4462
        %v4464 = vlaneseq
        %v4465 = vshrl.u32 %v4464, 7
        %v4466 = vsub.s32 %v1664, %v4465
        %v4467 = vrot.slane %v3616, %v4466
        %v4468 = vlaneseq
        %v4469 = vshrl.u32 %v4468, 7
        %v4470 = vsub.s32 %v1664, %v4469
        %v4471 = vrot.slane %v3619, %v4470
        %v4472 = vlaneseq
        %v4473 = vshrl.u32 %v4472, 7
        %v4474 = vsub.s32 %v1664, %v4473
        %v4475 = vrot.slane %v3622, %v4474
        %v4476 = vlaneseq
        %v4477 = vshrl.u32 %v4476, 7
        %v4478 = vsub.s32 %v1664, %v4477
        %v4479 = vrot.slane %v3625, %v4478
        %v4480 = vlaneseq
        %v4481 = vshrl.u32 %v4480, 7
        %v4482 = vsub.s32 %v1664, %v4481
        %v4483 = vrot.slane %v3628, %v4482
        %v4484 = vlaneseq
        %v4485 = vshrl.u32 %v4484, 7
        %v4486 = vsub.s32 %v1664, %v4485
        %v4487 = vrot.slane %v3631, %v4486
        %v4488 = vlaneseq
        %v4489 = vshrl.u32 %v4488, 7
        %v4490 = vsub.s32 %v1664, %v4489
        %v4491 = vrot.slane %v3634, %v4490
        %v4492 = vlaneseq
        %v4493 = vshrl.u32 %v4492, 7
        %v4494 = vsub.s32 %v1664, %v4493
        %v4495 = vrot.slane %v3637, %v4494
        %v4496 = vlaneseq
        %v4497 = vshrl.u32 %v4496, 7
        %v4498 = vsub.s32 %v1664, %v4497
        %v4499 = vrot.slane %v3640, %v4498
        %v4500 = vlaneseq
        %v4501 = vshrl.u32 %v4500, 7
        %v4502 = vsub.s32 %v1664, %v4501
        %v4503 = vrot.slane %v3643, %v4502
        %v4504 = vlaneseq
        %v4505 = vshrl.u32 %v4504, 7
        %v4506 = vsub.s32 %v1664, %v4505
        %v4507 = vrot.slane %v3646, %v4506
        %v4508 = vlaneseq
        %v4509 = vshrl.u32 %v4508, 7
        %v4510 = vsub.s32 %v1664, %v4509
        %v4511 = vrot.slane %v3649, %v4510
        %v4512 = vlaneseq
        %v4513 = vshrl.u32 %v4512, 7
        %v4514 = vsub.s32 %v1664, %v4513
        %v4515 = vrot.slane %v3652, %v4514
        %v4516 = vlaneseq
        %v4517 = vshrl.u32 %v4516, 7
        %v4518 = vsub.s32 %v1664, %v4517
        %v4519 = vrot.slane %v3655, %v4518
        %v4520 = vlaneseq
        %v4521 = vshrl.u32 %v4520, 7
        %v4522 = vsub.s32 %v1664, %v4521
        %v4523 = vrot.slane %v3658, %v4522
        %v4524 = vlaneseq
        %v4525 = vshrl.u32 %v4524, 7
        %v4526 = vsub.s32 %v1664, %v4525
        %v4527 = vrot.slane %v3661, %v4526
        %v4528 = vlaneseq
        %v4529 = vshrl.u32 %v4528, 7
        %v4530 = vsub.s32 %v1664, %v4529
        %v4531 = vrot.slane %v3664, %v4530
        %v4532 = vlaneseq
        %v4533 = vshrl.u32 %v4532, 7
        %v4534 = vsub.s32 %v1664, %v4533
        %v4535 = vrot.slane %v3667, %v4534
        %v4536 = vlaneseq
        %v4537 = vshrl.u32 %v4536, 7
        %v4538 = vsub.s32 %v1664, %v4537
        %v4539 = vrot.slane %v3670, %v4538
        %v4540 = vlaneseq
        %v4541 = vshrl.u32 %v4540, 7
        %v4542 = vsub.s32 %v1664, %v4541
        %v4543 = vrot.slane %v3673, %v4542
        %v4544 = vlaneseq
        %v4545 = vshrl.u32 %v4544, 7
        %v4546 = vsub.s32 %v1664, %v4545
        %v4547 = vrot.slane %v3676, %v4546
        %v4548 = vlaneseq
        %v4549 = vshrl.u32 %v4548, 7
        %v4550 = vsub.s32 %v1664, %v4549
        %v4551 = vrot.slane %v3679, %v4550
        %v4552 = vlaneseq
        %v4553 = vshrl.u32 %v4552, 7
        %v4554 = vsub.s32 %v1664, %v4553
        %v4555 = vrot.slane %v3682, %v4554
        %v4556 = vlaneseq
        %v4557 = vshrl.u32 %v4556, 7
        %v4558 = vsub.s32 %v1664, %v4557
        %v4559 = vrot.slane %v3685, %v4558
        %v4560 = vlaneseq
        %v4561 = vshrl.u32 %v4560, 7
        %v4562 = vsub.s32 %v1664, %v4561
        %v4563 = vrot.slane %v3688, %v4562
        %v4564 = vlaneseq
        %v4565 = vshrl.u32 %v4564, 7
        %v4566 = vsub.s32 %v1664, %v4565
        %v4567 = vrot.slane %v3691, %v4566
        %v4568 = vlaneseq
        %v4569 = vshrl.u32 %v4568, 7
        %v4570 = vsub.s32 %v1664, %v4569
        %v4571 = vrot.slane %v3694, %v4570
        %v4572 = vlaneseq
        %v4573 = vshrl.u32 %v4572, 7
        %v4574 = vsub.s32 %v1664, %v4573
        %v4575 = vrot.slane %v3697, %v4574
        %v4576 = vlaneseq
        %v4577 = vshrl.u32 %v4576, 7
        %v4578 = vsub.s32 %v1664, %v4577
        %v4579 = vrot.slane %v3700, %v4578
        %v4580 = vlaneseq
        %v4581 = vshrl.u32 %v4580, 7
        %v4582 = vsub.s32 %v1664, %v4581
        %v4583 = vrot.slane %v3703, %v4582
        %v4584 = vlaneseq
        %v4585 = vshrl.u32 %v4584, 7
        %v4586 = vsub.s32 %v1664, %v4585
        %v4587 = vrot.slane %v3706, %v4586
        %v4588 = vlaneseq
        %v4589 = vshrl.u32 %v4588, 7
        %v4590 = vsub.s32 %v1664, %v4589
        %v4591 = vrot.slane %v3709, %v4590
        %v4592 = vlaneseq
        %v4593 = vshrl.u32 %v4592, 7
        %v4594 = vsub.s32 %v1664, %v4593
        %v4595 = vrot.slane %v3712, %v4594
        %v4596 = vlaneseq
        %v4597 = vshrl.u32 %v4596, 7
        %v4598 = vsub.s32 %v1664, %v4597
        %v4599 = vrot.slane %v3715, %v4598
        %v4600 = vlaneseq
        %v4601 = vshrl.u32 %v4600, 7
        %v4602 = vsub.s32 %v1664, %v4601
        %v4603 = vrot.slane %v3718, %v4602
        %v4604 = vlaneseq
        %v4605 = vshrl.u32 %v4604, 7
        %v4606 = vsub.s32 %v1664, %v4605
        %v4607 = vrot.slane %v3721, %v4606
        %v4608 = vlaneseq
        %v4609 = vshrl.u32 %v4608, 7
        %v4610 = vsub.s32 %v1664, %v4609
        %v4611 = vrot.slane %v3724, %v4610
        %v4612 = vlaneseq
        %v4613 = vshrl.u32 %v4612, 7
        %v4614 = vsub.s32 %v1664, %v4613
        %v4615 = vrot.slane %v3727, %v4614
        %v4616 = vlaneseq
        %v4617 = vshrl.u32 %v4616, 7
        %v4618 = vsub.s32 %v1664, %v4617
        %v4619 = vrot.slane %v3730, %v4618
        %v4620 = vlaneseq
        %v4621 = vshrl.u32 %v4620, 7
        %v4622 = vsub.s32 %v1664, %v4621
        %v4623 = vrot.slane %v3733, %v4622
        %v4624 = vlaneseq
        %v4625 = vshrl.u32 %v4624, 7
        %v4626 = vsub.s32 %v1664, %v4625
        %v4627 = vrot.slane %v3736, %v4626
        %v4628 = vlaneseq
        %v4629 = vshrl.u32 %v4628, 7
        %v4630 = vsub.s32 %v1664, %v4629
        %v4631 = vrot.slane %v3739, %v4630
        %v4632 = vlaneseq
        %v4633 = vshrl.u32 %v4632, 7
        %v4634 = vsub.s32 %v1664, %v4633
        %v4635 = vrot.slane %v3742, %v4634
        %v4636 = vlaneseq
        %v4637 = vshrl.u32 %v4636, 7
        %v4638 = vsub.s32 %v1664, %v4637
        %v4639 = vrot.slane %v3745, %v4638
        %v4640 = vlaneseq
        %v4641 = vshrl.u32 %v4640, 7
        %v4642 = vsub.s32 %v1664, %v4641
        %v4643 = vrot.slane %v3748, %v4642
        %v4644 = vlaneseq
        %v4645 = vshrl.u32 %v4644, 7
        %v4646 = vsub.s32 %v1664, %v4645
        %v4647 = vrot.slane %v3751, %v4646
        %v4648 = vlaneseq
        %v4649 = vshrl.u32 %v4648, 7
        %v4650 = vsub.s32 %v1664, %v4649
        %v4651 = vrot.slane %v3754, %v4650
        %v4652 = vlaneseq
        %v4653 = vshrl.u32 %v4652, 7
        %v4654 = vsub.s32 %v1664, %v4653
        %v4655 = vrot.slane %v3757, %v4654
        %v4656 = vlaneseq
        %v4657 = vshrl.u32 %v4656, 7
        %v4658 = vsub.s32 %v1664, %v4657
        %v4659 = vrot.slane %v3760, %v4658
        %v4660 = vlaneseq
        %v4661 = vshrl.u32 %v4660, 7
        %v4662 = vsub.s32 %v1664, %v4661
        %v4663 = vrot.slane %v3763, %v4662
        %v4664 = vlaneseq
        %v4665 = vshrl.u32 %v4664, 7
        %v4666 = vsub.s32 %v1664, %v4665
        %v4667 = vrot.slane %v3766, %v4666
        %v4668 = vlaneseq
        %v4669 = vshrl.u32 %v4668, 7
        %v4670 = vsub.s32 %v1664, %v4669
        %v4671 = vrot.slane %v3769, %v4670
        %v4672 = vlaneseq
        %v4673 = vshrl.u32 %v4672, 7
        %v4674 = vsub.s32 %v1664, %v4673
        %v4675 = vrot.slane %v3772, %v4674
        %v4676 = vlaneseq
        %v4677 = vshrl.u32 %v4676, 7
        %v4678 = vsub.s32 %v1664, %v4677
        %v4679 = vrot.slane %v3775, %v4678
        %v4680 = vlaneseq
        %v4681 = vshrl.u32 %v4680, 7
        %v4682 = vsub.s32 %v1664, %v4681
        %v4683 = vrot.slane %v3778, %v4682
        %v4684 = vlaneseq
        %v4685 = vshrl.u32 %v4684, 7
        %v4686 = vsub.s32 %v1664, %v4685
        %v4687 = vrot.slane %v3781, %v4686
        %v4688 = vlaneseq
        %v4689 = vshrl.u32 %v4688, 7
        %v4690 = vsub.s32 %v1664, %v4689
        %v4691 = vrot.slane %v3784, %v4690
        %v4692 = vlaneseq
        %v4693 = vshrl.u32 %v4692, 7
        %v4694 = vsub.s32 %v1664, %v4693
        %v4695 = vrot.slane %v3787, %v4694
        %v4696 = vlaneseq
        %v4697 = vshrl.u32 %v4696, 7
        %v4698 = vsub.s32 %v1664, %v4697
        %v4699 = vrot.slane %v3790, %v4698
        %v4700 = vlaneseq
        %v4701 = vshrl.u32 %v4700, 7
        %v4702 = vsub.s32 %v1664, %v4701
        %v4703 = vrot.slane %v3793, %v4702
        %v4704 = vlaneseq
        %v4705 = vshrl.u32 %v4704, 7
        %v4706 = vsub.s32 %v1664, %v4705
        %v4707 = vrot.slane %v3796, %v4706
        %v4708 = vlaneseq
        %v4709 = vshrl.u32 %v4708, 7
        %v4710 = vsub.s32 %v1664, %v4709
        %v4711 = vrot.slane %v3799, %v4710
        %v4712 = vlaneseq
        %v4713 = vshrl.u32 %v4712, 7
        %v4714 = vsub.s32 %v1664, %v4713
        %v4715 = vrot.slane %v3802, %v4714
        %v4716 = vlaneseq
        %v4717 = vshrl.u32 %v4716, 7
        %v4718 = vsub.s32 %v1664, %v4717
        %v4719 = vrot.slane %v3805, %v4718
        %v4720 = vlaneseq
        %v4721 = vshrl.u32 %v4720, 7
        %v4722 = vsub.s32 %v1664, %v4721
        %v4723 = vrot.slane %v3808, %v4722
        %v4724 = vlaneseq
        %v4725 = vshrl.u32 %v4724, 7
        %v4726 = vsub.s32 %v1664, %v4725
        %v4727 = vrot.slane %v3811, %v4726
        %v4728 = vlaneseq
        %v4729 = vshrl.u32 %v4728, 7
        %v4730 = vsub.s32 %v1664, %v4729
        %v4731 = vrot.slane %v3814, %v4730
        %v4732 = vlaneseq
        %v4733 = vshrl.u32 %v4732, 7
        %v4734 = vsub.s32 %v1664, %v4733
        %v4735 = vrot.slane %v3817, %v4734
        %v4736 = vlaneseq
        %v4737 = vshrl.u32 %v4736, 7
        %v4738 = vsub.s32 %v1664, %v4737
        %v4739 = vrot.slane %v3820, %v4738
        %v4740 = vlaneseq
        %v4741 = vshrl.u32 %v4740, 7
        %v4742 = vsub.s32 %v1664, %v4741
        %v4743 = vrot.slane %v3823, %v4742
        %v4744 = vlaneseq
        %v4745 = vshrl.u32 %v4744, 7
        %v4746 = vsub.s32 %v1664, %v4745
        %v4747 = vrot.slane %v3826, %v4746
        %v4748 = vlaneseq
        %v4749 = vshrl.u32 %v4748, 7
        %v4750 = vsub.s32 %v1664, %v4749
        %v4751 = vrot.slane %v3829, %v4750
        %v4752 = vlaneseq
        %v4753 = vshrl.u32 %v4752, 7
        %v4754 = vsub.s32 %v1664, %v4753
        %v4755 = vrot.slane %v3832, %v4754
        %v4756 = vlaneseq
        %v4757 = vshrl.u32 %v4756, 7
        %v4758 = vsub.s32 %v1664, %v4757
        %v4759 = vrot.slane %v3835, %v4758
        %v4760 = vlaneseq
        %v4761 = vshrl.u32 %v4760, 7
        %v4762 = vsub.s32 %v1664, %v4761
        %v4763 = vrot.slane %v3838, %v4762
        %v4764 = vlaneseq
        %v4765 = vshrl.u32 %v4764, 7
        %v4766 = vsub.s32 %v1664, %v4765
        %v4767 = vrot.slane %v3841, %v4766
        %v4768 = vlaneseq
        %v4769 = vshrl.u32 %v4768, 7
        %v4770 = vsub.s32 %v1664, %v4769
        %v4771 = vrot.slane %v3844, %v4770
        %v4772 = vlaneseq
        %v4773 = vshrl.u32 %v4772, 7
        %v4774 = vsub.s32 %v1664, %v4773
        %v4775 = vrot.slane %v3847, %v4774
        %v4776 = vlaneseq
        %v4777 = vshrl.u32 %v4776, 7
        %v4778 = vsub.s32 %v1664, %v4777
        %v4779 = vrot.slane %v3850, %v4778
        %v4780 = vlaneseq
        %v4781 = vshrl.u32 %v4780, 7
        %v4782 = vsub.s32 %v1664, %v4781
        %v4783 = vrot.slane %v3853, %v4782
        %v4784 = vlaneseq
        %v4785 = vshrl.u32 %v4784, 7
        %v4786 = vsub.s32 %v1664, %v4785
        %v4787 = vrot.slane %v3856, %v4786
        %v4788 = vlaneseq
        %v4789 = vshrl.u32 %v4788, 7
        %v4790 = vsub.s32 %v1664, %v4789
        %v4791 = vrot.slane %v3859, %v4790
        %v4792 = vlaneseq
        %v4793 = vshrl.u32 %v4792, 7
        %v4794 = vsub.s32 %v1664, %v4793
        %v4795 = vrot.slane %v3862, %v4794
        %v4796 = vlaneseq
        %v4797 = vshrl.u32 %v4796, 7
        %v4798 = vsub.s32 %v1664, %v4797
        %v4799 = vrot.slane %v3865, %v4798
        %v4800 = vlaneseq
        %v4801 = vshrl.u32 %v4800, 7
        %v4802 = vsub.s32 %v1664, %v4801
        %v4803 = vrot.slane %v3868, %v4802
        %v4804 = vlaneseq
        %v4805 = vshrl.u32 %v4804, 7
        %v4806 = vsub.s32 %v1664, %v4805
        %v4807 = vrot.slane %v3871, %v4806
        %v4808 = vlaneseq
        %v4809 = vshrl.u32 %v4808, 7
        %v4810 = vsub.s32 %v1664, %v4809
        %v4811 = vrot.slane %v3874, %v4810
        %v4812 = vlaneseq
        %v4813 = vshrl.u32 %v4812, 7
        %v4814 = vsub.s32 %v1664, %v4813
        %v4815 = vrot.slane %v3877, %v4814
        %v4816 = vlaneseq
        %v4817 = vshrl.u32 %v4816, 7
        %v4818 = vsub.s32 %v1664, %v4817
        %v4819 = vrot.slane %v3880, %v4818
        %v4820 = vlaneseq
        %v4821 = vshrl.u32 %v4820, 7
        %v4822 = vsub.s32 %v1664, %v4821
        %v4823 = vrot.slane %v3883, %v4822
        %v4824 = vlaneseq
        %v4825 = vshrl.u32 %v4824, 7
        %v4826 = vsub.s32 %v1664, %v4825
        %v4827 = vrot.slane %v3886, %v4826
        %v4828 = vlaneseq
        %v4829 = vshrl.u32 %v4828, 7
        %v4830 = vsub.s32 %v1664, %v4829
        %v4831 = vrot.slane %v3889, %v4830
        %v4832 = vlaneseq
        %v4833 = vshrl.u32 %v4832, 7
        %v4834 = vsub.s32 %v1664, %v4833
        %v4835 = vrot.slane %v3892, %v4834
        %v4836 = vlaneseq
        %v4837 = vshrl.u32 %v4836, 7
        %v4838 = vsub.s32 %v1664, %v4837
        %v4839 = vrot.slane %v3895, %v4838
        %v4840 = vlaneseq
        %v4841 = vshrl.u32 %v4840, 7
        %v4842 = vsub.s32 %v1664, %v4841
        %v4843 = vrot.slane %v3898, %v4842
        %v4844 = vlaneseq
        %v4845 = vshrl.u32 %v4844, 7
        %v4846 = vsub.s32 %v1664, %v4845
        %v4847 = vrot.slane %v3901, %v4846
        %v4848 = vlaneseq
        %v4849 = vshrl.u32 %v4848, 7
        %v4850 = vsub.s32 %v1664, %v4849
        %v4851 = vrot.slane %v3904, %v4850
        %v4852 = vlaneseq
        %v4853 = vshrl.u32 %v4852, 7
        %v4854 = vsub.s32 %v1664, %v4853
        %v4855 = vrot.slane %v3907, %v4854
        %v4856 = vlaneseq
        %v4857 = vshrl.u32 %v4856, 7
        %v4858 = vsub.s32 %v1664, %v4857
        %v4859 = vrot.slane %v3910, %v4858
        %v4860 = vlaneseq
        %v4861 = vshrl.u32 %v4860, 7
        %v4862 = vsub.s32 %v1664, %v4861
        %v4863 = vrot.slane %v3913, %v4862
        %v4864 = vlaneseq
        %v4865 = vshrl.u32 %v4864, 7
        %v4866 = vsub.s32 %v1664, %v4865
        %v4867 = vrot.slane %v3916, %v4866
        %v4868 = vlaneseq
        %v4869 = vshrl.u32 %v4868, 7
        %v4870 = vsub.s32 %v1664, %v4869
        %v4871 = vrot.slane %v3919, %v4870
        %v4872 = vlaneseq
        %v4873 = vshrl.u32 %v4872, 7
        %v4874 = vsub.s32 %v1664, %v4873
        %v4875 = vrot.slane %v3922, %v4874
        %v4876 = vlaneseq
        %v4877 = vshrl.u32 %v4876, 7
        %v4878 = vsub.s32 %v1664, %v4877
        %v4879 = vrot.slane %v3925, %v4878
        %v4880 = vlaneseq
        %v4881 = vshrl.u32 %v4880, 7
        %v4882 = vsub.s32 %v1664, %v4881
        %v4883 = vrot.slane %v3928, %v4882
        %v4884 = vlaneseq
        %v4885 = vshrl.u32 %v4884, 7
        %v4886 = vsub.s32 %v1664, %v4885
        %v4887 = vrot.slane %v3931, %v4886
        %v4888 = vlaneseq
        %v4889 = vshrl.u32 %v4888, 7
        %v4890 = vsub.s32 %v1664, %v4889
        %v4891 = vrot.slane %v3934, %v4890
        %v4892 = vlaneseq
        %v4893 = vshrl.u32 %v4892, 7
        %v4894 = vsub.s32 %v1664, %v4893
        %v4895 = vrot.slane %v3937, %v4894
        %v4896 = vlaneseq
        %v4897 = vshrl.u32 %v4896, 7
        %v4898 = vsub.s32 %v1664, %v4897
        %v4899 = vrot.slane %v3940, %v4898
        %v4900 = vlaneseq
        %v4901 = vshrl.u32 %v4900, 7
        %v4902 = vsub.s32 %v1664, %v4901
        %v4903 = vrot.slane %v3943, %v4902
        %v4904 = vlaneseq
        %v4905 = vshrl.u32 %v4904, 7
        %v4906 = vsub.s32 %v1664, %v4905
        %v4907 = vrot.slane %v3946, %v4906
        %v4908 = vlaneseq
        %v4909 = vshrl.u32 %v4908, 7
        %v4910 = vsub.s32 %v1664, %v4909
        %v4911 = vrot.slane %v3949, %v4910
        %v4912 = vlaneseq
        %v4913 = vshrl.u32 %v4912, 7
        %v4914 = vsub.s32 %v1664, %v4913
        %v4915 = vrot.slane %v3952, %v4914
        %v4916 = vlaneseq
        %v4917 = vshrl.u32 %v4916, 7
        %v4918 = vsub.s32 %v1664, %v4917
        %v4919 = vrot.slane %v3955, %v4918
        %v4920 = vlaneseq
        %v4921 = vshrl.u32 %v4920, 7
        %v4922 = vsub.s32 %v1664, %v4921
        %v4923 = vrot.slane %v3958, %v4922
        %v4924 = vlaneseq
        %v4925 = vshrl.u32 %v4924, 7
        %v4926 = vsub.s32 %v1664, %v4925
        %v4927 = vrot.slane %v3961, %v4926
        %v4928 = vlaneseq
        %v4929 = vshrl.u32 %v4928, 7
        %v4930 = vsub.s32 %v1664, %v4929
        %v4931 = vrot.slane %v3964, %v4930
        %v4932 = vlaneseq
        %v4933 = vshrl.u32 %v4932, 7
        %v4934 = vsub.s32 %v1664, %v4933
        %v4935 = vrot.slane %v3967, %v4934
        %v4936 = vlaneseq
        %v4937 = vshrl.u32 %v4936, 7
        %v4938 = vsub.s32 %v1664, %v4937
        %v4939 = vrot.slane %v3970, %v4938
        %v4940 = vlaneseq
        %v4941 = vshrl.u32 %v4940, 7
        %v4942 = vsub.s32 %v1664, %v4941
        %v4943 = vrot.slane %v3973, %v4942
        %v4944 = vlaneseq
        %v4945 = vshrl.u32 %v4944, 7
        %v4946 = vsub.s32 %v1664, %v4945
        %v4947 = vrot.slane %v3976, %v4946
        %v4948 = vlaneseq
        %v4949 = vshrl.u32 %v4948, 7
        %v4950 = vsub.s32 %v1664, %v4949
        %v4951 = vrot.slane %v3979, %v4950
        %v4952 = vlaneseq
        %v4953 = vshrl.u32 %v4952, 7
        %v4954 = vsub.s32 %v1664, %v4953
        %v4955 = vrot.slane %v3982, %v4954
        %v4956 = vlaneseq
        %v4957 = vshrl.u32 %v4956, 7
        %v4958 = vsub.s32 %v1664, %v4957
        %v4959 = vrot.slane %v3985, %v4958
        %v4960 = vlaneseq
        %v4961 = vshrl.u32 %v4960, 7
        %v4962 = vsub.s32 %v1664, %v4961
        %v4963 = vrot.slane %v3988, %v4962
        %v4964 = vlaneseq
        %v4965 = vshrl.u32 %v4964, 7
        %v4966 = vsub.s32 %v1664, %v4965
        %v4967 = vrot.slane %v3991, %v4966
        %v4968 = vlaneseq
        %v4969 = vshrl.u32 %v4968, 7
        %v4970 = vsub.s32 %v1664, %v4969
        %v4971 = vrot.slane %v3994, %v4970
        %v4972 = vlaneseq
        %v4973 = vshrl.u32 %v4972, 7
        %v4974 = vsub.s32 %v1664, %v4973
        %v4975 = vrot.slane %v3997, %v4974
        %v4976 = vlaneseq
        %v4977 = vshrl.u32 %v4976, 7
        %v4978 = vsub.s32 %v1664, %v4977
        %v4979 = vrot.slane %v4000, %v4978
        %v4980 = vlaneseq
        %v4981 = vshrl.u32 %v4980, 7
        %v4982 = vsub.s32 %v1664, %v4981
        %v4983 = vrot.slane %v4003, %v4982
        %v4984 = vlaneseq
        %v4985 = vshrl.u32 %v4984, 7
        %v4986 = vsub.s32 %v1664, %v4985
        %v4987 = vrot.slane %v4006, %v4986
        %v4988 = vlaneseq
        %v4989 = vshrl.u32 %v4988, 7
        %v4990 = vsub.s32 %v1664, %v4989
        %v4991 = vrot.slane %v4009, %v4990
        %v4992 = vlaneseq
        %v4993 = vshrl.u32 %v4992, 7
        %v4994 = vsub.s32 %v1664, %v4993
        %v4995 = vrot.slane %v4012, %v4994
        %v4996 = vlaneseq
        %v4997 = vshrl.u32 %v4996, 7
        %v4998 = vsub.s32 %v1664, %v4997
        %v4999 = vrot.slane %v4015, %v4998
        %v5000 = vlaneseq
        %v5001 = vshrl.u32 %v5000, 7
        %v5002 = vsub.s32 %v1664, %v5001
        %v5003 = vrot.slane %v4018, %v5002
        %v5004 = vlaneseq
        %v5005 = vshrl.u32 %v5004, 7
        %v5006 = vsub.s32 %v1664, %v5005
        %v5007 = vrot.slane %v4021, %v5006
        %v5008 = vlaneseq
        %v5009 = vshrl.u32 %v5008, 7
        %v5010 = vsub.s32 %v1664, %v5009
        %v5011 = vrot.slane %v4024, %v5010
        %v5012 = vlaneseq
        %v5013 = vshrl.u32 %v5012, 7
        %v5014 = vsub.s32 %v1664, %v5013
        %v5015 = vrot.slane %v4027, %v5014
        %v5016 = vlaneseq
        %v5017 = vshrl.u32 %v5016, 7
        %v5018 = vsub.s32 %v1664, %v5017
        %v5019 = vrot.slane %v4030, %v5018
        %v5020 = vlaneseq
        %v5021 = vshrl.u32 %v5020, 7
        %v5022 = vsub.s32 %v1664, %v5021
        %v5023 = vrot.slane %v4033, %v5022
        %v5024 = vlaneseq
        %v5025 = vshrl.u32 %v5024, 7
        %v5026 = vsub.s32 %v1664, %v5025
        %v5027 = vrot.slane %v4036, %v5026
        %v5028 = vlaneseq
        %v5029 = vshrl.u32 %v5028, 7
        %v5030 = vsub.s32 %v1664, %v5029
        %v5031 = vrot.slane %v4039, %v5030
        %v5032 = vlaneseq
        %v5033 = vshrl.u32 %v5032, 7
        %v5034 = vsub.s32 %v1664, %v5033
        %v5035 = vrot.slane %v4042, %v5034
        %v5036 = vlaneseq
        %v5037 = vshrl.u32 %v5036, 7
        %v5038 = vsub.s32 %v1664, %v5037
        %v5039 = vrot.slane %v4045, %v5038
        %v5040 = vlaneseq
        %v5041 = vshrl.u32 %v5040, 7
        %v5042 = vsub.s32 %v1664, %v5041
        %v5043 = vrot.slane %v4048, %v5042
        %v5044 = vlaneseq
        %v5045 = vshrl.u32 %v5044, 7
        %v5046 = vsub.s32 %v1664, %v5045
        %v5047 = vrot.slane %v4051, %v5046
        %v5048 = vlaneseq
        %v5049 = vshrl.u32 %v5048, 7
        %v5050 = vsub.s32 %v1664, %v5049
        %v5051 = vrot.slane %v4054, %v5050
        %v5052 = vlaneseq
        %v5053 = vshrl.u32 %v5052, 7
        %v5054 = vsub.s32 %v1664, %v5053
        %v5055 = vrot.slane %v4057, %v5054
        %v5056 = vlaneseq
        %v5057 = vshrl.u32 %v5056, 7
        %v5058 = vsub.s32 %v1664, %v5057
        %v5059 = vrot.slane %v4060, %v5058
        %v5060 = vlaneseq
        %v5061 = vshrl.u32 %v5060, 7
        %v5062 = vsub.s32 %v1664, %v5061
        %v5063 = vrot.slane %v4063, %v5062
        %v5064 = vlaneseq
        %v5065 = vshrl.u32 %v5064, 7
        %v5066 = vsub.s32 %v1664, %v5065
        %v5067 = vrot.slane %v4066, %v5066
        %v5068 = vlaneseq
        %v5069 = vshrl.u32 %v5068, 7
        %v5070 = vsub.s32 %v1664, %v5069
        %v5071 = vrot.slane %v4069, %v5070
        %v5072 = vlaneseq
        %v5073 = vshrl.u32 %v5072, 7
        %v5074 = vsub.s32 %v1664, %v5073
        %v5075 = vrot.slane %v4072, %v5074
        %v5076 = vlaneseq
        %v5077 = vshrl.u32 %v5076, 7
        %v5078 = vsub.s32 %v1664, %v5077
        %v5079 = vrot.slane %v4075, %v5078
        %v5080 = vlaneseq
        %v5081 = vshrl.u32 %v5080, 7
        %v5082 = vsub.s32 %v1664, %v5081
        %v5083 = vrot.slane %v4078, %v5082
        %v5084 = vlaneseq
        %v5085 = vshrl.u32 %v5084, 7
        %v5086 = vsub.s32 %v1664, %v5085
        %v5087 = vrot.slane %v4081, %v5086
        %v5088 = vlaneseq
        %v5089 = vshrl.u32 %v5088, 7
        %v5090 = vsub.s32 %v1664, %v5089
        %v5091 = vrot.slane %v4084, %v5090
        %v5092 = vlaneseq
        %v5093 = vshrl.u32 %v5092, 7
        %v5094 = vsub.s32 %v1664, %v5093
        %v5095 = vrot.slane %v4087, %v5094
        %v5096 = vlaneseq
        %v5097 = vshrl.u32 %v5096, 7
        %v5098 = vsub.s32 %v1664, %v5097
        %v5099 = vrot.slane %v4090, %v5098
        %v5100 = vlaneseq
        %v5101 = vshrl.u32 %v5100, 7
        %v5102 = vsub.s32 %v1664, %v5101
        %v5103 = vrot.slane %v4093, %v5102
        %v5104 = vlaneseq
        %v5105 = vshrl.u32 %v5104, 7
        %v5106 = vsub.s32 %v1664, %v5105
        %v5107 = vrot.slane %v4096, %v5106
        %v5108 = vlaneseq
        %v5109 = vshrl.u32 %v5108, 7
        %v5110 = vsub.s32 %v1664, %v5109
        %v5111 = vrot.slane %v4099, %v5110
        %v5112 = vlaneseq
        %v5113 = vshrl.u32 %v5112, 7
        %v5114 = vsub.s32 %v1664, %v5113
        %v5115 = vrot.slane %v4102, %v5114
        %v5116 = vlaneseq
        %v5117 = vshrl.u32 %v5116, 7
        %v5118 = vsub.s32 %v1664, %v5117
        %v5119 = vrot.slane %v4105, %v5118
        %v5120 = vlaneseq
        %v5121 = vshrl.u32 %v5120, 7
        %v5122 = vsub.s32 %v1664, %v5121
        %v5123 = vrot.slane %v4108, %v5122
        %v5124 = vlaneseq
        %v5125 = vshrl.u32 %v5124, 7
        %v5126 = vsub.s32 %v1664, %v5125
        %v5127 = vrot.slane %v4111, %v5126
        %v5128 = vlaneseq
        %v5129 = vshrl.u32 %v5128, 7
        %v5130 = vsub.s32 %v1664, %v5129
        %v5131 = vrot.slane %v4114, %v5130
        %v5132 = vlaneseq
        %v5133 = vshrl.u32 %v5132, 7
        %v5134 = vsub.s32 %v1664, %v5133
        %v5135 = vrot.slane %v4117, %v5134
        %v5136 = vlaneseq
        %v5137 = vshrl.u32 %v5136, 7
        %v5138 = vsub.s32 %v1664, %v5137
        %v5139 = vrot.slane %v4120, %v5138
        %v5140 = vlaneseq
        %v5141 = vshrl.u32 %v5140, 7
        %v5142 = vsub.s32 %v1664, %v5141
        %v5143 = vrot.slane %v4123, %v5142
        %v5144 = vlaneseq
        %v5145 = vshrl.u32 %v5144, 7
        %v5146 = vsub.s32 %v1664, %v5145
        %v5147 = vrot.slane %v4126, %v5146
        %v5148 = vlaneseq
        %v5149 = vshrl.u32 %v5148, 7
        %v5150 = vsub.s32 %v1664, %v5149
        %v5151 = vrot.slane %v4129, %v5150
        %v5152 = vlaneseq
        %v5153 = vshrl.u32 %v5152, 7
        %v5154 = vsub.s32 %v1664, %v5153
        %v5155 = vrot.slane %v4132, %v5154
        %v5156 = vlaneseq
        %v5157 = vshrl.u32 %v5156, 7
        %v5158 = vsub.s32 %v1664, %v5157
        %v5159 = vrot.slane %v4135, %v5158
        %v5160 = vsel %vm612, %v4143, %v4139
        %v5161 = vsel %vm614, %v4147, %v5160
        %v5162 = vsel %vm616, %v4151, %v5161
        %vm5163 = vcmask 1044484
        %v5164 = vsel %vm5163, %v4155, %v5162
        %vm5165 = vcmask 1045509
        %v5166 = vsel %vm5165, %v4159, %v5164
        %vm5167 = vcmask 1046534
        %v5168 = vsel %vm5167, %v4163, %v5166
        %vm5169 = vcmask 1047559
        %v5170 = vsel %vm5169, %v4167, %v5168
        %v5171 = vsel %vm612, %v4175, %v4171
        %v5172 = vsel %vm614, %v4179, %v5171
        %v5173 = vsel %vm616, %v4183, %v5172
        %v5174 = vsel %vm5163, %v4187, %v5173
        %v5175 = vsel %vm5165, %v4191, %v5174
        %v5176 = vsel %vm5167, %v4195, %v5175
        %v5177 = vsel %vm5169, %v4199, %v5176
        %v5178 = vsel %vm612, %v4207, %v4203
        %v5179 = vsel %vm614, %v4211, %v5178
        %v5180 = vsel %vm616, %v4215, %v5179
        %v5181 = vsel %vm5163, %v4219, %v5180
        %v5182 = vsel %vm5165, %v4223, %v5181
        %v5183 = vsel %vm5167, %v4227, %v5182
        %v5184 = vsel %vm5169, %v4231, %v5183
        %v5185 = vsel %vm612, %v4239, %v4235
        %v5186 = vsel %vm614, %v4243, %v5185
        %v5187 = vsel %vm616, %v4247, %v5186
        %v5188 = vsel %vm5163, %v4251, %v5187
        %v5189 = vsel %vm5165, %v4255, %v5188
        %v5190 = vsel %vm5167, %v4259, %v5189
        %v5191 = vsel %vm5169, %v4263, %v5190
        %v5192 = vsel %vm612, %v4271, %v4267
        %v5193 = vsel %vm614, %v4275, %v5192
        %v5194 = vsel %vm616, %v4279, %v5193
        %v5195 = vsel %vm5163, %v4283, %v5194
        %v5196 = vsel %vm5165, %v4287, %v5195
        %v5197 = vsel %vm5167, %v4291, %v5196
        %v5198 = vsel %vm5169, %v4295, %v5197
        %v5199 = vsel %vm612, %v4303, %v4299
        %v5200 = vsel %vm614, %v4307, %v5199
        %v5201 = vsel %vm616, %v4311, %v5200
        %v5202 = vsel %vm5163, %v4315, %v5201
        %v5203 = vsel %vm5165, %v4319, %v5202
        %v5204 = vsel %vm5167, %v4323, %v5203
        %v5205 = vsel %vm5169, %v4327, %v5204
        %v5206 = vsel %vm612, %v4335, %v4331
        %v5207 = vsel %vm614, %v4339, %v5206
        %v5208 = vsel %vm616, %v4343, %v5207
        %v5209 = vsel %vm5163, %v4347, %v5208
        %v5210 = vsel %vm5165, %v4351, %v5209
        %v5211 = vsel %vm5167, %v4355, %v5210
        %v5212 = vsel %vm5169, %v4359, %v5211
        %v5213 = vsel %vm612, %v4367, %v4363
        %v5214 = vsel %vm614, %v4371, %v5213
        %v5215 = vsel %vm616, %v4375, %v5214
        %v5216 = vsel %vm5163, %v4379, %v5215
        %v5217 = vsel %vm5165, %v4383, %v5216
        %v5218 = vsel %vm5167, %v4387, %v5217
        %v5219 = vsel %vm5169, %v4391, %v5218
        %v5220 = vsel %vm612, %v4399, %v4395
        %v5221 = vsel %vm614, %v4403, %v5220
        %v5222 = vsel %vm616, %v4407, %v5221
        %v5223 = vsel %vm5163, %v4411, %v5222
        %v5224 = vsel %vm5165, %v4415, %v5223
        %v5225 = vsel %vm5167, %v4419, %v5224
        %v5226 = vsel %vm5169, %v4423, %v5225
        %v5227 = vsel %vm612, %v4431, %v4427
        %v5228 = vsel %vm614, %v4435, %v5227
        %v5229 = vsel %vm616, %v4439, %v5228
        %v5230 = vsel %vm5163, %v4443, %v5229
        %v5231 = vsel %vm5165, %v4447, %v5230
        %v5232 = vsel %vm5167, %v4451, %v5231
        %v5233 = vsel %vm5169, %v4455, %v5232
        %v5234 = vsel %vm612, %v4463, %v4459
        %v5235 = vsel %vm614, %v4467, %v5234
        %v5236 = vsel %vm616, %v4471, %v5235
        %v5237 = vsel %vm5163, %v4475, %v5236
        %v5238 = vsel %vm5165, %v4479, %v5237
        %v5239 = vsel %vm5167, %v4483, %v5238
        %v5240 = vsel %vm5169, %v4487, %v5239
        %v5241 = vsel %vm612, %v4495, %v4491
        %v5242 = vsel %vm614, %v4499, %v5241
        %v5243 = vsel %vm616, %v4503, %v5242
        %v5244 = vsel %vm5163, %v4507, %v5243
        %v5245 = vsel %vm5165, %v4511, %v5244
        %v5246 = vsel %vm5167, %v4515, %v5245
        %v5247 = vsel %vm5169, %v4519, %v5246
        %v5248 = vsel %vm612, %v4527, %v4523
        %v5249 = vsel %vm614, %v4531, %v5248
        %v5250 = vsel %vm616, %v4535, %v5249
        %v5251 = vsel %vm5163, %v4539, %v5250
        %v5252 = vsel %vm5165, %v4543, %v5251
        %v5253 = vsel %vm5167, %v4547, %v5252
        %v5254 = vsel %vm5169, %v4551, %v5253
        %v5255 = vsel %vm612, %v4559, %v4555
        %v5256 = vsel %vm614, %v4563, %v5255
        %v5257 = vsel %vm616, %v4567, %v5256
        %v5258 = vsel %vm5163, %v4571, %v5257
        %v5259 = vsel %vm5165, %v4575, %v5258
        %v5260 = vsel %vm5167, %v4579, %v5259
        %v5261 = vsel %vm5169, %v4583, %v5260
        %v5262 = vsel %vm612, %v4591, %v4587
        %v5263 = vsel %vm614, %v4595, %v5262
        %v5264 = vsel %vm616, %v4599, %v5263
        %v5265 = vsel %vm5163, %v4603, %v5264
        %v5266 = vsel %vm5165, %v4607, %v5265
        %v5267 = vsel %vm5167, %v4611, %v5266
        %v5268 = vsel %vm5169, %v4615, %v5267
        %v5269 = vsel %vm612, %v4623, %v4619
        %v5270 = vsel %vm614, %v4627, %v5269
        %v5271 = vsel %vm616, %v4631, %v5270
        %v5272 = vsel %vm5163, %v4635, %v5271
        %v5273 = vsel %vm5165, %v4639, %v5272
        %v5274 = vsel %vm5167, %v4643, %v5273
        %v5275 = vsel %vm5169, %v4647, %v5274
        %v5276 = vsel %vm612, %v4655, %v4651
        %v5277 = vsel %vm614, %v4659, %v5276
        %v5278 = vsel %vm616, %v4663, %v5277
        %v5279 = vsel %vm5163, %v4667, %v5278
        %v5280 = vsel %vm5165, %v4671, %v5279
        %v5281 = vsel %vm5167, %v4675, %v5280
        %v5282 = vsel %vm5169, %v4679, %v5281
        %v5283 = vsel %vm612, %v4687, %v4683
        %v5284 = vsel %vm614, %v4691, %v5283
        %v5285 = vsel %vm616, %v4695, %v5284
        %v5286 = vsel %vm5163, %v4699, %v5285
        %v5287 = vsel %vm5165, %v4703, %v5286
        %v5288 = vsel %vm5167, %v4707, %v5287
        %v5289 = vsel %vm5169, %v4711, %v5288
        %v5290 = vsel %vm612, %v4719, %v4715
        %v5291 = vsel %vm614, %v4723, %v5290
        %v5292 = vsel %vm616, %v4727, %v5291
        %v5293 = vsel %vm5163, %v4731, %v5292
        %v5294 = vsel %vm5165, %v4735, %v5293
        %v5295 = vsel %vm5167, %v4739, %v5294
        %v5296 = vsel %vm5169, %v4743, %v5295
        %v5297 = vsel %vm612, %v4751, %v4747
        %v5298 = vsel %vm614, %v4755, %v5297
        %v5299 = vsel %vm616, %v4759, %v5298
        %v5300 = vsel %vm5163, %v4763, %v5299
        %v5301 = vsel %vm5165, %v4767, %v5300
        %v5302 = vsel %vm5167, %v4771, %v5301
        %v5303 = vsel %vm5169, %v4775, %v5302
        %v5304 = vsel %vm612, %v4783, %v4779
        %v5305 = vsel %vm614, %v4787, %v5304
        %v5306 = vsel %vm616, %v4791, %v5305
        %v5307 = vsel %vm5163, %v4795, %v5306
        %v5308 = vsel %vm5165, %v4799, %v5307
        %v5309 = vsel %vm5167, %v4803, %v5308
        %v5310 = vsel %vm5169, %v4807, %v5309
        %v5311 = vsel %vm612, %v4815, %v4811
        %v5312 = vsel %vm614, %v4819, %v5311
        %v5313 = vsel %vm616, %v4823, %v5312
        %v5314 = vsel %vm5163, %v4827, %v5313
        %v5315 = vsel %vm5165, %v4831, %v5314
        %v5316 = vsel %vm5167, %v4835, %v5315
        %v5317 = vsel %vm5169, %v4839, %v5316
        %v5318 = vsel %vm612, %v4847, %v4843
        %v5319 = vsel %vm614, %v4851, %v5318
        %v5320 = vsel %vm616, %v4855, %v5319
        %v5321 = vsel %vm5163, %v4859, %v5320
        %v5322 = vsel %vm5165, %v4863, %v5321
        %v5323 = vsel %vm5167, %v4867, %v5322
        %v5324 = vsel %vm5169, %v4871, %v5323
        %v5325 = vsel %vm612, %v4879, %v4875
        %v5326 = vsel %vm614, %v4883, %v5325
        %v5327 = vsel %vm616, %v4887, %v5326
        %v5328 = vsel %vm5163, %v4891, %v5327
        %v5329 = vsel %vm5165, %v4895, %v5328
        %v5330 = vsel %vm5167, %v4899, %v5329
        %v5331 = vsel %vm5169, %v4903, %v5330
        %v5332 = vsel %vm612, %v4911, %v4907
        %v5333 = vsel %vm614, %v4915, %v5332
        %v5334 = vsel %vm616, %v4919, %v5333
        %v5335 = vsel %vm5163, %v4923, %v5334
        %v5336 = vsel %vm5165, %v4927, %v5335
        %v5337 = vsel %vm5167, %v4931, %v5336
        %v5338 = vsel %vm5169, %v4935, %v5337
        %v5339 = vsel %vm612, %v4943, %v4939
        %v5340 = vsel %vm614, %v4947, %v5339
        %v5341 = vsel %vm616, %v4951, %v5340
        %v5342 = vsel %vm5163, %v4955, %v5341
        %v5343 = vsel %vm5165, %v4959, %v5342
        %v5344 = vsel %vm5167, %v4963, %v5343
        %v5345 = vsel %vm5169, %v4967, %v5344
        %v5346 = vsel %vm612, %v4975, %v4971
        %v5347 = vsel %vm614, %v4979, %v5346
        %v5348 = vsel %vm616, %v4983, %v5347
        %v5349 = vsel %vm5163, %v4987, %v5348
        %v5350 = vsel %vm5165, %v4991, %v5349
        %v5351 = vsel %vm5167, %v4995, %v5350
        %v5352 = vsel %vm5169, %v4999, %v5351
        %v5353 = vsel %vm612, %v5007, %v5003
        %v5354 = vsel %vm614, %v5011, %v5353
        %v5355 = vsel %vm616, %v5015, %v5354
        %v5356 = vsel %vm5163, %v5019, %v5355
        %v5357 = vsel %vm5165, %v5023, %v5356
        %v5358 = vsel %vm5167, %v5027, %v5357
        %v5359 = vsel %vm5169, %v5031, %v5358
        %v5360 = vsel %vm612, %v5039, %v5035
        %v5361 = vsel %vm614, %v5043, %v5360
        %v5362 = vsel %vm616, %v5047, %v5361
        %v5363 = vsel %vm5163, %v5051, %v5362
        %v5364 = vsel %vm5165, %v5055, %v5363
        %v5365 = vsel %vm5167, %v5059, %v5364
        %v5366 = vsel %vm5169, %v5063, %v5365
        %v5367 = vsel %vm612, %v5071, %v5067
        %v5368 = vsel %vm614, %v5075, %v5367
        %v5369 = vsel %vm616, %v5079, %v5368
        %v5370 = vsel %vm5163, %v5083, %v5369
        %v5371 = vsel %vm5165, %v5087, %v5370
        %v5372 = vsel %vm5167, %v5091, %v5371
        %v5373 = vsel %vm5169, %v5095, %v5372
        %v5374 = vsel %vm612, %v5103, %v5099
        %v5375 = vsel %vm614, %v5107, %v5374
        %v5376 = vsel %vm616, %v5111, %v5375
        %v5377 = vsel %vm5163, %v5115, %v5376
        %v5378 = vsel %vm5165, %v5119, %v5377
        %v5379 = vsel %vm5167, %v5123, %v5378
        %v5380 = vsel %vm5169, %v5127, %v5379
        %v5381 = vsel %vm612, %v5135, %v5131
        %v5382 = vsel %vm614, %v5139, %v5381
        %v5383 = vsel %vm616, %v5143, %v5382
        %v5384 = vsel %vm5163, %v5147, %v5383
        %v5385 = vsel %vm5165, %v5151, %v5384
        %v5386 = vsel %vm5167, %v5155, %v5385
        %v5387 = vsel %vm5169, %v5159, %v5386
        %vm5420 = vcmask 31744
        %v5421 = vsel %vm5420, %v5170, 0.0
        %5422 = vadd.xlane.f32.xlu0 %v5421
        %v5423 = vpop.xlane.xlu0 %5422
        %v5424 = vsel %vm5420, %v5177, 0.0
        %5425 = vadd.xlane.f32.xlu0 %v5424
        %v5426 = vpop.xlane.xlu0 %5425
        %v5427 = vsel %vm5420, %v5184, 0.0
        %5428 = vadd.xlane.f32.xlu0 %v5427
        %v5429 = vpop.xlane.xlu0 %5428
        %v5430 = vsel %vm5420, %v5191, 0.0
        %5431 = vadd.xlane.f32.xlu0 %v5430
        %v5432 = vpop.xlane.xlu0 %5431
        %v5433 = vsel %vm5420, %v5198, 0.0
        %5434 = vadd.xlane.f32.xlu0 %v5433
        %v5435 = vpop.xlane.xlu0 %5434
        %v5436 = vsel %vm5420, %v5205, 0.0
        %5437 = vadd.xlane.f32.xlu0 %v5436
        %v5438 = vpop.xlane.xlu0 %5437
        %v5439 = vsel %vm5420, %v5212, 0.0
        %5440 = vadd.xlane.f32.xlu0 %v5439
        %v5441 = vpop.xlane.xlu0 %5440
        %v5442 = vsel %vm5420, %v5219, 0.0
        %5443 = vadd.xlane.f32.xlu0 %v5442
        %v5444 = vpop.xlane.xlu0 %5443
        %v5445 = vsel %vm5420, %v5226, 0.0
        %5446 = vadd.xlane.f32.xlu0 %v5445
        %v5447 = vpop.xlane.xlu0 %5446
        %v5448 = vsel %vm5420, %v5233, 0.0
        %5449 = vadd.xlane.f32.xlu0 %v5448
        %v5450 = vpop.xlane.xlu0 %5449
        %v5451 = vsel %vm5420, %v5240, 0.0
        %5452 = vadd.xlane.f32.xlu0 %v5451
        %v5453 = vpop.xlane.xlu0 %5452
        %v5454 = vsel %vm5420, %v5247, 0.0
        %5455 = vadd.xlane.f32.xlu0 %v5454
        %v5456 = vpop.xlane.xlu0 %5455
        %v5457 = vsel %vm5420, %v5254, 0.0
        %5458 = vadd.xlane.f32.xlu0 %v5457
        %v5459 = vpop.xlane.xlu0 %5458
        %v5460 = vsel %vm5420, %v5261, 0.0
        %5461 = vadd.xlane.f32.xlu0 %v5460
        %v5462 = vpop.xlane.xlu0 %5461
        %v5463 = vsel %vm5420, %v5268, 0.0
        %5464 = vadd.xlane.f32.xlu0 %v5463
        %v5465 = vpop.xlane.xlu0 %5464
        %v5466 = vsel %vm5420, %v5275, 0.0
        %5467 = vadd.xlane.f32.xlu0 %v5466
        %v5468 = vpop.xlane.xlu0 %5467
        %v5469 = vsel %vm5420, %v5282, 0.0
        %5470 = vadd.xlane.f32.xlu0 %v5469
        %v5471 = vpop.xlane.xlu0 %5470
        %v5472 = vsel %vm5420, %v5289, 0.0
        %5473 = vadd.xlane.f32.xlu0 %v5472
        %v5474 = vpop.xlane.xlu0 %5473
        %v5475 = vsel %vm5420, %v5296, 0.0
        %5476 = vadd.xlane.f32.xlu0 %v5475
        %v5477 = vpop.xlane.xlu0 %5476
        %v5478 = vsel %vm5420, %v5303, 0.0
        %5479 = vadd.xlane.f32.xlu0 %v5478
        %v5480 = vpop.xlane.xlu0 %5479
        %v5481 = vsel %vm5420, %v5310, 0.0
        %5482 = vadd.xlane.f32.xlu0 %v5481
        %v5483 = vpop.xlane.xlu0 %5482
        %v5484 = vsel %vm5420, %v5317, 0.0
        %5485 = vadd.xlane.f32.xlu0 %v5484
        %v5486 = vpop.xlane.xlu0 %5485
        %v5487 = vsel %vm5420, %v5324, 0.0
        %5488 = vadd.xlane.f32.xlu0 %v5487
        %v5489 = vpop.xlane.xlu0 %5488
        %v5490 = vsel %vm5420, %v5331, 0.0
        %5491 = vadd.xlane.f32.xlu0 %v5490
        %v5492 = vpop.xlane.xlu0 %5491
        %v5493 = vsel %vm5420, %v5338, 0.0
        %5494 = vadd.xlane.f32.xlu0 %v5493
        %v5495 = vpop.xlane.xlu0 %5494
        %v5496 = vsel %vm5420, %v5345, 0.0
        %5497 = vadd.xlane.f32.xlu0 %v5496
        %v5498 = vpop.xlane.xlu0 %5497
        %v5499 = vsel %vm5420, %v5352, 0.0
        %5500 = vadd.xlane.f32.xlu0 %v5499
        %v5501 = vpop.xlane.xlu0 %5500
        %v5502 = vsel %vm5420, %v5359, 0.0
        %5503 = vadd.xlane.f32.xlu0 %v5502
        %v5504 = vpop.xlane.xlu0 %5503
        %v5505 = vsel %vm5420, %v5366, 0.0
        %5506 = vadd.xlane.f32.xlu0 %v5505
        %v5507 = vpop.xlane.xlu0 %5506
        %v5508 = vsel %vm5420, %v5373, 0.0
        %5509 = vadd.xlane.f32.xlu0 %v5508
        %v5510 = vpop.xlane.xlu0 %5509
        %v5511 = vsel %vm5420, %v5380, 0.0
        %5512 = vadd.xlane.f32.xlu0 %v5511
        %v5513 = vpop.xlane.xlu0 %5512
        %v5514 = vsel %vm5420, %v5387, 0.0
        %5515 = vadd.xlane.f32.xlu0 %v5514
        %v5516 = vpop.xlane.xlu0 %5515
        %v5517 = vsub.f32 0.0, %v5423
        %v5518 = vsub.f32 0.0, %v5426
        %v5519 = vsub.f32 0.0, %v5429
        %v5520 = vsub.f32 0.0, %v5432
        %v5521 = vsub.f32 0.0, %v5435
        %v5522 = vsub.f32 0.0, %v5438
        %v5523 = vsub.f32 0.0, %v5441
        %v5524 = vsub.f32 0.0, %v5444
        %v5525 = vsub.f32 0.0, %v5447
        %v5526 = vsub.f32 0.0, %v5450
        %v5527 = vsub.f32 0.0, %v5453
        %v5528 = vsub.f32 0.0, %v5456
        %v5529 = vsub.f32 0.0, %v5459
        %v5530 = vsub.f32 0.0, %v5462
        %v5531 = vsub.f32 0.0, %v5465
        %v5532 = vsub.f32 0.0, %v5468
        %v5533 = vsub.f32 0.0, %v5471
        %v5534 = vsub.f32 0.0, %v5474
        %v5535 = vsub.f32 0.0, %v5477
        %v5536 = vsub.f32 0.0, %v5480
        %v5537 = vsub.f32 0.0, %v5483
        %v5538 = vsub.f32 0.0, %v5486
        %v5539 = vsub.f32 0.0, %v5489
        %v5540 = vsub.f32 0.0, %v5492
        %v5541 = vsub.f32 0.0, %v5495
        %v5542 = vsub.f32 0.0, %v5498
        %v5543 = vsub.f32 0.0, %v5501
        %v5544 = vsub.f32 0.0, %v5504
        %v5545 = vsub.f32 0.0, %v5507
        %v5546 = vsub.f32 0.0, %v5510
        %v5547 = vsub.f32 0.0, %v5513
        %v5548 = vsub.f32 0.0, %v5516
        %v5549 = vmul.f32 %v5517, 1.442695
        %v5550 = vpow.pop %v5549
        %v5551 = vmul.f32 %v5518, 1.442695
        %v5552 = vpow.pop %v5551
        %v5553 = vmul.f32 %v5519, 1.442695
        %v5554 = vpow.pop %v5553
        %v5555 = vmul.f32 %v5520, 1.442695
        %v5556 = vpow.pop %v5555
        %v5557 = vmul.f32 %v5521, 1.442695
        %v5558 = vpow.pop %v5557
        %v5559 = vmul.f32 %v5522, 1.442695
        %v5560 = vpow.pop %v5559
        %v5561 = vmul.f32 %v5523, 1.442695
        %v5562 = vpow.pop %v5561
        %v5563 = vmul.f32 %v5524, 1.442695
        %v5564 = vpow.pop %v5563
        %v5565 = vmul.f32 %v5525, 1.442695
        %v5566 = vpow.pop %v5565
        %v5567 = vmul.f32 %v5526, 1.442695
        %v5568 = vpow.pop %v5567
        %v5569 = vmul.f32 %v5527, 1.442695
        %v5570 = vpow.pop %v5569
        %v5571 = vmul.f32 %v5528, 1.442695
        %v5572 = vpow.pop %v5571
        %v5573 = vmul.f32 %v5529, 1.442695
        %v5574 = vpow.pop %v5573
        %v5575 = vmul.f32 %v5530, 1.442695
        %v5576 = vpow.pop %v5575
        %v5577 = vmul.f32 %v5531, 1.442695
        %v5578 = vpow.pop %v5577
        %v5579 = vmul.f32 %v5532, 1.442695
        %v5580 = vpow.pop %v5579
        %v5581 = vmul.f32 %v5533, 1.442695
        %v5582 = vpow.pop %v5581
        %v5583 = vmul.f32 %v5534, 1.442695
        %v5584 = vpow.pop %v5583
        %v5585 = vmul.f32 %v5535, 1.442695
        %v5586 = vpow.pop %v5585
        %v5587 = vmul.f32 %v5536, 1.442695
        %v5588 = vpow.pop %v5587
        %v5589 = vmul.f32 %v5537, 1.442695
        %v5590 = vpow.pop %v5589
        %v5591 = vmul.f32 %v5538, 1.442695
        %v5592 = vpow.pop %v5591
        %v5593 = vmul.f32 %v5539, 1.442695
        %v5594 = vpow.pop %v5593
        %v5595 = vmul.f32 %v5540, 1.442695
        %v5596 = vpow.pop %v5595
        %v5597 = vmul.f32 %v5541, 1.442695
        %v5598 = vpow.pop %v5597
        %v5599 = vmul.f32 %v5542, 1.442695
        %v5600 = vpow.pop %v5599
        %v5601 = vmul.f32 %v5543, 1.442695
        %v5602 = vpow.pop %v5601
        %v5603 = vmul.f32 %v5544, 1.442695
        %v5604 = vpow.pop %v5603
        %v5605 = vmul.f32 %v5545, 1.442695
        %v5606 = vpow.pop %v5605
        %v5607 = vmul.f32 %v5546, 1.442695
        %v5608 = vpow.pop %v5607
        %v5609 = vmul.f32 %v5547, 1.442695
        %v5610 = vpow.pop %v5609
        %v5611 = vmul.f32 %v5548, 1.442695
        %v5612 = vpow.pop %v5611
        %v5613 = vadd.f32 %v5550, 1.0
        %v5614 = vadd.f32 %v5552, 1.0
        %v5615 = vadd.f32 %v5554, 1.0
        %v5616 = vadd.f32 %v5556, 1.0
        %v5617 = vadd.f32 %v5558, 1.0
        %v5618 = vadd.f32 %v5560, 1.0
        %v5619 = vadd.f32 %v5562, 1.0
        %v5620 = vadd.f32 %v5564, 1.0
        %v5621 = vadd.f32 %v5566, 1.0
        %v5622 = vadd.f32 %v5568, 1.0
        %v5623 = vadd.f32 %v5570, 1.0
        %v5624 = vadd.f32 %v5572, 1.0
        %v5625 = vadd.f32 %v5574, 1.0
        %v5626 = vadd.f32 %v5576, 1.0
        %v5627 = vadd.f32 %v5578, 1.0
        %v5628 = vadd.f32 %v5580, 1.0
        %v5629 = vadd.f32 %v5582, 1.0
        %v5630 = vadd.f32 %v5584, 1.0
        %v5631 = vadd.f32 %v5586, 1.0
        %v5632 = vadd.f32 %v5588, 1.0
        %v5633 = vadd.f32 %v5590, 1.0
        %v5634 = vadd.f32 %v5592, 1.0
        %v5635 = vadd.f32 %v5594, 1.0
        %v5636 = vadd.f32 %v5596, 1.0
        %v5637 = vadd.f32 %v5598, 1.0
        %v5638 = vadd.f32 %v5600, 1.0
        %v5639 = vadd.f32 %v5602, 1.0
        %v5640 = vadd.f32 %v5604, 1.0
        %v5641 = vadd.f32 %v5606, 1.0
        %v5642 = vadd.f32 %v5608, 1.0
        %v5643 = vadd.f32 %v5610, 1.0
        %v5644 = vadd.f32 %v5612, 1.0
        %v5645 = vrcp.pop %v5613
        %v5646 = vmul.f32 1.0, %v5645
        %v5647 = vrcp.pop %v5614
        %v5648 = vmul.f32 1.0, %v5647
        %v5649 = vrcp.pop %v5615
        %v5650 = vmul.f32 1.0, %v5649
        %v5651 = vrcp.pop %v5616
        %v5652 = vmul.f32 1.0, %v5651
        %v5653 = vrcp.pop %v5617
        %v5654 = vmul.f32 1.0, %v5653
        %v5655 = vrcp.pop %v5618
        %v5656 = vmul.f32 1.0, %v5655
        %v5657 = vrcp.pop %v5619
        %v5658 = vmul.f32 1.0, %v5657
        %v5659 = vrcp.pop %v5620
        %v5660 = vmul.f32 1.0, %v5659
        %v5661 = vrcp.pop %v5621
        %v5662 = vmul.f32 1.0, %v5661
        %v5663 = vrcp.pop %v5622
        %v5664 = vmul.f32 1.0, %v5663
        %v5665 = vrcp.pop %v5623
        %v5666 = vmul.f32 1.0, %v5665
        %v5667 = vrcp.pop %v5624
        %v5668 = vmul.f32 1.0, %v5667
        %v5669 = vrcp.pop %v5625
        %v5670 = vmul.f32 1.0, %v5669
        %v5671 = vrcp.pop %v5626
        %v5672 = vmul.f32 1.0, %v5671
        %v5673 = vrcp.pop %v5627
        %v5674 = vmul.f32 1.0, %v5673
        %v5675 = vrcp.pop %v5628
        %v5676 = vmul.f32 1.0, %v5675
        %v5677 = vrcp.pop %v5629
        %v5678 = vmul.f32 1.0, %v5677
        %v5679 = vrcp.pop %v5630
        %v5680 = vmul.f32 1.0, %v5679
        %v5681 = vrcp.pop %v5631
        %v5682 = vmul.f32 1.0, %v5681
        %v5683 = vrcp.pop %v5632
        %v5684 = vmul.f32 1.0, %v5683
        %v5685 = vrcp.pop %v5633
        %v5686 = vmul.f32 1.0, %v5685
        %v5687 = vrcp.pop %v5634
        %v5688 = vmul.f32 1.0, %v5687
        %v5689 = vrcp.pop %v5635
        %v5690 = vmul.f32 1.0, %v5689
        %v5691 = vrcp.pop %v5636
        %v5692 = vmul.f32 1.0, %v5691
        %v5693 = vrcp.pop %v5637
        %v5694 = vmul.f32 1.0, %v5693
        %v5695 = vrcp.pop %v5638
        %v5696 = vmul.f32 1.0, %v5695
        %v5697 = vrcp.pop %v5639
        %v5698 = vmul.f32 1.0, %v5697
        %v5699 = vrcp.pop %v5640
        %v5700 = vmul.f32 1.0, %v5699
        %v5701 = vrcp.pop %v5641
        %v5702 = vmul.f32 1.0, %v5701
        %v5703 = vrcp.pop %v5642
        %v5704 = vmul.f32 1.0, %v5703
        %v5705 = vrcp.pop %v5643
        %v5706 = vmul.f32 1.0, %v5705
        %v5707 = vrcp.pop %v5644
        %v5708 = vmul.f32 1.0, %v5707
        %v5709 = vsel %vm419, 1, 0
        %v5710 = vsel %vm420, 1, 0
        %v5711 = vsel %vm421, 1, 0
        %v5712 = vsel %vm422, 1, 0
        %v5713 = vlaneseq
        %v5714 = vshrl.u32 %v5713, 7
        %v5715 = vsub.s32 0, %v5714
        %v5716 = vrot.slane %v5709, %v5715
        %v5717 = vlaneseq
        %v5718 = vshrl.u32 %v5717, 7
        %v5719 = vsub.s32 0, %v5718
        %v5720 = vrot.slane %v5710, %v5719
        %v5721 = vlaneseq
        %v5722 = vshrl.u32 %v5721, 7
        %v5723 = vsub.s32 0, %v5722
        %v5724 = vrot.slane %v5711, %v5723
        %v5725 = vlaneseq
        %v5726 = vshrl.u32 %v5725, 7
        %v5727 = vsub.s32 0, %v5726
        %v5728 = vrot.slane %v5712, %v5727
        %vm5729 = vcmp.eq.s32.totalorder %v5716, 1
        %vm5730 = vcmp.eq.s32.totalorder %v5720, 1
        %vm5731 = vcmp.eq.s32.totalorder %v5724, 1
        %vm5732 = vcmp.eq.s32.totalorder %v5728, 1
        %v5733 = vsel %vm5729, 0.0, %v5646
        %v5734 = vsel %vm5729, 0.0, %v5648
        %v5735 = vsel %vm5729, 0.0, %v5650
        %v5736 = vsel %vm5729, 0.0, %v5652
        %v5737 = vsel %vm5729, 0.0, %v5654
        %v5738 = vsel %vm5729, 0.0, %v5656
        %v5739 = vsel %vm5729, 0.0, %v5658
        %v5740 = vsel %vm5729, 0.0, %v5660
        %v5741 = vsel %vm5730, 0.0, %v5662
        %v5742 = vsel %vm5730, 0.0, %v5664
        %v5743 = vsel %vm5730, 0.0, %v5666
        %v5744 = vsel %vm5730, 0.0, %v5668
        %v5745 = vsel %vm5730, 0.0, %v5670
        %v5746 = vsel %vm5730, 0.0, %v5672
        %v5747 = vsel %vm5730, 0.0, %v5674
        %v5748 = vsel %vm5730, 0.0, %v5676
        %v5749 = vsel %vm5731, 0.0, %v5678
        %v5750 = vsel %vm5731, 0.0, %v5680
        %v5751 = vsel %vm5731, 0.0, %v5682
        %v5752 = vsel %vm5731, 0.0, %v5684
        %v5753 = vsel %vm5731, 0.0, %v5686
        %v5754 = vsel %vm5731, 0.0, %v5688
        %v5755 = vsel %vm5731, 0.0, %v5690
        %v5756 = vsel %vm5731, 0.0, %v5692
        %v5757 = vsel %vm5732, 0.0, %v5694
        %v5758 = vsel %vm5732, 0.0, %v5696
        %v5759 = vsel %vm5732, 0.0, %v5698
        %v5760 = vsel %vm5732, 0.0, %v5700
        %v5761 = vsel %vm5732, 0.0, %v5702
        %v5762 = vsel %vm5732, 0.0, %v5704
        %v5763 = vsel %vm5732, 0.0, %v5706
        %v5764 = vsel %vm5732, 0.0, %v5708
        %v5765 = vmul.f32 %v375, %v5733
        %v5766 = vmul.f32 %v376, %v5734
        %v5767 = vmul.f32 %v377, %v5735
        %v5768 = vmul.f32 %v378, %v5736
        %v5769 = vmul.f32 %v379, %v5737
        %v5770 = vmul.f32 %v380, %v5738
        %v5771 = vmul.f32 %v381, %v5739
        %v5772 = vmul.f32 %v382, %v5740
        %v5773 = vmul.f32 %v383, %v5741
        %v5774 = vmul.f32 %v384, %v5742
        %v5775 = vmul.f32 %v385, %v5743
        %v5776 = vmul.f32 %v386, %v5744
        %v5777 = vmul.f32 %v387, %v5745
        %v5778 = vmul.f32 %v388, %v5746
        %v5779 = vmul.f32 %v389, %v5747
        %v5780 = vmul.f32 %v390, %v5748
        %v5781 = vmul.f32 %v391, %v5749
        %v5782 = vmul.f32 %v392, %v5750
        %v5783 = vmul.f32 %v393, %v5751
        %v5784 = vmul.f32 %v394, %v5752
        %v5785 = vmul.f32 %v395, %v5753
        %v5786 = vmul.f32 %v396, %v5754
        %v5787 = vmul.f32 %v397, %v5755
        %v5788 = vmul.f32 %v398, %v5756
        %v5789 = vmul.f32 %v399, %v5757
        %v5790 = vmul.f32 %v400, %v5758
        %v5791 = vmul.f32 %v401, %v5759
        %v5792 = vmul.f32 %v402, %v5760
        %v5793 = vmul.f32 %v403, %v5761
        %v5794 = vmul.f32 %v404, %v5762
        %v5795 = vmul.f32 %v405, %v5763
        %v5796 = vmul.f32 %v406, %v5764
        %vm5797 = vcmask 23552
        %5798 = vst.msk [vmem:[#allocation2] sm:$0xff] %vm5797, 0.0
        %5799 = vst.msk [vmem:[#allocation2 + $0x8] sm:$0xff] %vm5797, 0.0
        %5800 = vst.msk [vmem:[#allocation2 + $0x10] sm:$0xff] %vm5797, 0.0
        %5801 = vst.msk [vmem:[#allocation2 + $0x18] sm:$0xff] %vm5797, 0.0
        %5802 = vst.msk [vmem:[#allocation2 + $0x20] sm:$0xff] %vm5797, 0.0
        %5803 = vst.msk [vmem:[#allocation2 + $0x28] sm:$0xff] %vm5797, 0.0
        %5804 = vst.msk [vmem:[#allocation2 + $0x30] sm:$0xff] %vm5797, 0.0
        %5805 = vst.msk [vmem:[#allocation2 + $0x38] sm:$0xff] %vm5797, 0.0
        %5806 = vst.msk [vmem:[#allocation2 + $0x40] sm:$0xff] %vm5797, 0.0
        %5807 = vst.msk [vmem:[#allocation2 + $0x48] sm:$0xff] %vm5797, 0.0
        %5808 = vst.msk [vmem:[#allocation2 + $0x50] sm:$0xff] %vm5797, 0.0
        %5809 = vst.msk [vmem:[#allocation2 + $0x58] sm:$0xff] %vm5797, 0.0
        %5810 = vst.msk [vmem:[#allocation2 + $0x60] sm:$0xff] %vm5797, 0.0
        %5811 = vst.msk [vmem:[#allocation2 + $0x68] sm:$0xff] %vm5797, 0.0
        %5812 = vst.msk [vmem:[#allocation2 + $0x70] sm:$0xff] %vm5797, 0.0
        %5813 = vst.msk [vmem:[#allocation2 + $0x78] sm:$0xff] %vm5797, 0.0
        %5814 = vst.msk [vmem:[#allocation2 + $0x80] sm:$0xff] %vm5797, 0.0
        %5815 = vst.msk [vmem:[#allocation2 + $0x88] sm:$0xff] %vm5797, 0.0
        %5816 = vst.msk [vmem:[#allocation2 + $0x90] sm:$0xff] %vm5797, 0.0
        %5817 = vst.msk [vmem:[#allocation2 + $0x98] sm:$0xff] %vm5797, 0.0
        %5818 = vst.msk [vmem:[#allocation2 + $0xa0] sm:$0xff] %vm5797, 0.0
        %5819 = vst.msk [vmem:[#allocation2 + $0xa8] sm:$0xff] %vm5797, 0.0
        %5820 = vst.msk [vmem:[#allocation2 + $0xb0] sm:$0xff] %vm5797, 0.0
        %5821 = vst.msk [vmem:[#allocation2 + $0xb8] sm:$0xff] %vm5797, 0.0
        %5822 = vst.msk [vmem:[#allocation2 + $0xc0] sm:$0xff] %vm5797, 0.0
        %5823 = vst.msk [vmem:[#allocation2 + $0xc8] sm:$0xff] %vm5797, 0.0
        %5824 = vst.msk [vmem:[#allocation2 + $0xd0] sm:$0xff] %vm5797, 0.0
        %5825 = vst.msk [vmem:[#allocation2 + $0xd8] sm:$0xff] %vm5797, 0.0
        %5826 = vst.msk [vmem:[#allocation2 + $0xe0] sm:$0xff] %vm5797, 0.0
        %5827 = vst.msk [vmem:[#allocation2 + $0xe8] sm:$0xff] %vm5797, 0.0
        %5828 = vst.msk [vmem:[#allocation2 + $0xf0] sm:$0xff] %vm5797, 0.0
        %5829 = vst.msk [vmem:[#allocation2 + $0xf8] sm:$0xff] %vm5797, 0.0
        %vm5830 = vcmask 179352
        %5831 = vst.msk [vmem:[#allocation2] sm:$0xff] %vm5830, 0.0
        %5832 = vst.msk [vmem:[#allocation2 + $0x8] sm:$0xff] %vm5830, 0.0
        %5833 = vst.msk [vmem:[#allocation2 + $0x10] sm:$0xff] %vm5830, 0.0
        %5834 = vst.msk [vmem:[#allocation2 + $0x18] sm:$0xff] %vm5830, 0.0
        %5835 = vst.msk [vmem:[#allocation2 + $0x20] sm:$0xff] %vm5830, 0.0
        %5836 = vst.msk [vmem:[#allocation2 + $0x28] sm:$0xff] %vm5830, 0.0
        %5837 = vst.msk [vmem:[#allocation2 + $0x30] sm:$0xff] %vm5830, 0.0
        %5838 = vst.msk [vmem:[#allocation2 + $0x38] sm:$0xff] %vm5830, 0.0
        %5839 = vst.msk [vmem:[#allocation2 + $0x40] sm:$0xff] %vm5830, 0.0
        %5840 = vst.msk [vmem:[#allocation2 + $0x48] sm:$0xff] %vm5830, 0.0
        %5841 = vst.msk [vmem:[#allocation2 + $0x50] sm:$0xff] %vm5830, 0.0
        %5842 = vst.msk [vmem:[#allocation2 + $0x58] sm:$0xff] %vm5830, 0.0
        %5843 = vst.msk [vmem:[#allocation2 + $0x60] sm:$0xff] %vm5830, 0.0
        %5844 = vst.msk [vmem:[#allocation2 + $0x68] sm:$0xff] %vm5830, 0.0
        %5845 = vst.msk [vmem:[#allocation2 + $0x70] sm:$0xff] %vm5830, 0.0
        %5846 = vst.msk [vmem:[#allocation2 + $0x78] sm:$0xff] %vm5830, 0.0
        %5847 = vst.msk [vmem:[#allocation2 + $0x80] sm:$0xff] %vm5830, 0.0
        %5848 = vst.msk [vmem:[#allocation2 + $0x88] sm:$0xff] %vm5830, 0.0
        %5849 = vst.msk [vmem:[#allocation2 + $0x90] sm:$0xff] %vm5830, 0.0
        %5850 = vst.msk [vmem:[#allocation2 + $0x98] sm:$0xff] %vm5830, 0.0
        %5851 = vst.msk [vmem:[#allocation2 + $0xa0] sm:$0xff] %vm5830, 0.0
        %5852 = vst.msk [vmem:[#allocation2 + $0xa8] sm:$0xff] %vm5830, 0.0
        %5853 = vst.msk [vmem:[#allocation2 + $0xb0] sm:$0xff] %vm5830, 0.0
        %5854 = vst.msk [vmem:[#allocation2 + $0xb8] sm:$0xff] %vm5830, 0.0
        %5855 = vst.msk [vmem:[#allocation2 + $0xc0] sm:$0xff] %vm5830, 0.0
        %5856 = vst.msk [vmem:[#allocation2 + $0xc8] sm:$0xff] %vm5830, 0.0
        %5857 = vst.msk [vmem:[#allocation2 + $0xd0] sm:$0xff] %vm5830, 0.0
        %5858 = vst.msk [vmem:[#allocation2 + $0xd8] sm:$0xff] %vm5830, 0.0
        %5859 = vst.msk [vmem:[#allocation2 + $0xe0] sm:$0xff] %vm5830, 0.0
        %5860 = vst.msk [vmem:[#allocation2 + $0xe8] sm:$0xff] %vm5830, 0.0
        %5861 = vst.msk [vmem:[#allocation2 + $0xf0] sm:$0xff] %vm5830, 0.0
        %5862 = vst.msk [vmem:[#allocation2 + $0xf8] sm:$0xff] %vm5830, 0.0
        %5895 = vrot.lane.b32.xlu0 %v5765, 3
        %v5896 = vpop.permute.xlu0 %5895
        %5897 = vrot.lane.b32.xlu0 %v5766, 3
        %v5898 = vpop.permute.xlu0 %5897
        %5899 = vrot.lane.b32.xlu0 %v5767, 3
        %v5900 = vpop.permute.xlu0 %5899
        %5901 = vrot.lane.b32.xlu0 %v5768, 3
        %v5902 = vpop.permute.xlu0 %5901
        %5903 = vrot.lane.b32.xlu0 %v5769, 3
        %v5904 = vpop.permute.xlu0 %5903
        %5905 = vrot.lane.b32.xlu0 %v5770, 3
        %v5906 = vpop.permute.xlu0 %5905
        %5907 = vrot.lane.b32.xlu0 %v5771, 3
        %v5908 = vpop.permute.xlu0 %5907
        %5909 = vrot.lane.b32.xlu0 %v5772, 3
        %v5910 = vpop.permute.xlu0 %5909
        %5911 = vrot.lane.b32.xlu0 %v5773, 3
        %v5912 = vpop.permute.xlu0 %5911
        %5913 = vrot.lane.b32.xlu0 %v5774, 3
        %v5914 = vpop.permute.xlu0 %5913
        %5915 = vrot.lane.b32.xlu0 %v5775, 3
        %v5916 = vpop.permute.xlu0 %5915
        %5917 = vrot.lane.b32.xlu0 %v5776, 3
        %v5918 = vpop.permute.xlu0 %5917
        %5919 = vrot.lane.b32.xlu0 %v5777, 3
        %v5920 = vpop.permute.xlu0 %5919
        %5921 = vrot.lane.b32.xlu0 %v5778, 3
        %v5922 = vpop.permute.xlu0 %5921
        %5923 = vrot.lane.b32.xlu0 %v5779, 3
        %v5924 = vpop.permute.xlu0 %5923
        %5925 = vrot.lane.b32.xlu0 %v5780, 3
        %v5926 = vpop.permute.xlu0 %5925
        %5927 = vrot.lane.b32.xlu0 %v5781, 3
        %v5928 = vpop.permute.xlu0 %5927
        %5929 = vrot.lane.b32.xlu0 %v5782, 3
        %v5930 = vpop.permute.xlu0 %5929
        %5931 = vrot.lane.b32.xlu0 %v5783, 3
        %v5932 = vpop.permute.xlu0 %5931
        %5933 = vrot.lane.b32.xlu0 %v5784, 3
        %v5934 = vpop.permute.xlu0 %5933
        %5935 = vrot.lane.b32.xlu0 %v5785, 3
        %v5936 = vpop.permute.xlu0 %5935
        %5937 = vrot.lane.b32.xlu0 %v5786, 3
        %v5938 = vpop.permute.xlu0 %5937
        %5939 = vrot.lane.b32.xlu0 %v5787, 3
        %v5940 = vpop.permute.xlu0 %5939
        %5941 = vrot.lane.b32.xlu0 %v5788, 3
        %v5942 = vpop.permute.xlu0 %5941
        %5943 = vrot.lane.b32.xlu0 %v5789, 3
        %v5944 = vpop.permute.xlu0 %5943
        %5945 = vrot.lane.b32.xlu0 %v5790, 3
        %v5946 = vpop.permute.xlu0 %5945
        %5947 = vrot.lane.b32.xlu0 %v5791, 3
        %v5948 = vpop.permute.xlu0 %5947
        %5949 = vrot.lane.b32.xlu0 %v5792, 3
        %v5950 = vpop.permute.xlu0 %5949
        %5951 = vrot.lane.b32.xlu0 %v5793, 3
        %v5952 = vpop.permute.xlu0 %5951
        %5953 = vrot.lane.b32.xlu0 %v5794, 3
        %v5954 = vpop.permute.xlu0 %5953
        %5955 = vrot.lane.b32.xlu0 %v5795, 3
        %v5956 = vpop.permute.xlu0 %5955
        %5957 = vrot.lane.b32.xlu0 %v5796, 3
        %v5958 = vpop.permute.xlu0 %5957
        %vm5991 = vcmask 154648
        %5992 = vst.msk [vmem:[#allocation2] sm:$0xff] %vm5991, %v5896
        %5993 = vst.msk [vmem:[#allocation2 + $0x8] sm:$0xff] %vm5991, %v5898
        %5994 = vst.msk [vmem:[#allocation2 + $0x10] sm:$0xff] %vm5991, %v5900
        %5995 = vst.msk [vmem:[#allocation2 + $0x18] sm:$0xff] %vm5991, %v5902
        %5996 = vst.msk [vmem:[#allocation2 + $0x20] sm:$0xff] %vm5991, %v5904
        %5997 = vst.msk [vmem:[#allocation2 + $0x28] sm:$0xff] %vm5991, %v5906
        %5998 = vst.msk [vmem:[#allocation2 + $0x30] sm:$0xff] %vm5991, %v5908
        %5999 = vst.msk [vmem:[#allocation2 + $0x38] sm:$0xff] %vm5991, %v5910
        %6000 = vst.msk [vmem:[#allocation2 + $0x40] sm:$0xff] %vm5991, %v5912
        %6001 = vst.msk [vmem:[#allocation2 + $0x48] sm:$0xff] %vm5991, %v5914
        %6002 = vst.msk [vmem:[#allocation2 + $0x50] sm:$0xff] %vm5991, %v5916
        %6003 = vst.msk [vmem:[#allocation2 + $0x58] sm:$0xff] %vm5991, %v5918
        %6004 = vst.msk [vmem:[#allocation2 + $0x60] sm:$0xff] %vm5991, %v5920
        %6005 = vst.msk [vmem:[#allocation2 + $0x68] sm:$0xff] %vm5991, %v5922
        %6006 = vst.msk [vmem:[#allocation2 + $0x70] sm:$0xff] %vm5991, %v5924
        %6007 = vst.msk [vmem:[#allocation2 + $0x78] sm:$0xff] %vm5991, %v5926
        %6008 = vst.msk [vmem:[#allocation2 + $0x80] sm:$0xff] %vm5991, %v5928
        %6009 = vst.msk [vmem:[#allocation2 + $0x88] sm:$0xff] %vm5991, %v5930
        %6010 = vst.msk [vmem:[#allocation2 + $0x90] sm:$0xff] %vm5991, %v5932
        %6011 = vst.msk [vmem:[#allocation2 + $0x98] sm:$0xff] %vm5991, %v5934
        %6012 = vst.msk [vmem:[#allocation2 + $0xa0] sm:$0xff] %vm5991, %v5936
        %6013 = vst.msk [vmem:[#allocation2 + $0xa8] sm:$0xff] %vm5991, %v5938
        %6014 = vst.msk [vmem:[#allocation2 + $0xb0] sm:$0xff] %vm5991, %v5940
        %6015 = vst.msk [vmem:[#allocation2 + $0xb8] sm:$0xff] %vm5991, %v5942
        %6016 = vst.msk [vmem:[#allocation2 + $0xc0] sm:$0xff] %vm5991, %v5944
        %6017 = vst.msk [vmem:[#allocation2 + $0xc8] sm:$0xff] %vm5991, %v5946
        %6018 = vst.msk [vmem:[#allocation2 + $0xd0] sm:$0xff] %vm5991, %v5948
        %6019 = vst.msk [vmem:[#allocation2 + $0xd8] sm:$0xff] %vm5991, %v5950
        %6020 = vst.msk [vmem:[#allocation2 + $0xe0] sm:$0xff] %vm5991, %v5952
        %6021 = vst.msk [vmem:[#allocation2 + $0xe8] sm:$0xff] %vm5991, %v5954
        %6022 = vst.msk [vmem:[#allocation2 + $0xf0] sm:$0xff] %vm5991, %v5956
        %6023 = vst.msk [vmem:[#allocation2 + $0xf8] sm:$0xff] %vm5991, %v5958
        %v6024 = vld [vmem:[%s5] sm:$0xff]
        %v6025 = vld [vmem:[%s5 + $0x8] sm:$0xff]
        %v6026 = vld [vmem:[%s5 + $0x10] sm:$0xff]
        %v6027 = vld [vmem:[%s5 + $0x18] sm:$0xff]
        %v6028 = vld [vmem:[%s5 + $0x20] sm:$0xff]
        %v6029 = vld [vmem:[%s5 + $0x28] sm:$0xff]
        %v6030 = vld [vmem:[%s5 + $0x30] sm:$0xff]
        %v6031 = vld [vmem:[%s5 + $0x38] sm:$0xff]
        %v6032 = vld [vmem:[%s5 + $0x40] sm:$0xff]
        %v6033 = vld [vmem:[%s5 + $0x48] sm:$0xff]
        %v6034 = vld [vmem:[%s5 + $0x50] sm:$0xff]
        %v6035 = vld [vmem:[%s5 + $0x58] sm:$0xff]
        %v6036 = vld [vmem:[%s5 + $0x60] sm:$0xff]
        %v6037 = vld [vmem:[%s5 + $0x68] sm:$0xff]
        %v6038 = vld [vmem:[%s5 + $0x70] sm:$0xff]
        %v6039 = vld [vmem:[%s5 + $0x78] sm:$0xff]
        %v6040 = vld [vmem:[%s5 + $0x80] sm:$0xff]
        %v6041 = vld [vmem:[%s5 + $0x88] sm:$0xff]
        %v6042 = vld [vmem:[%s5 + $0x90] sm:$0xff]
        %v6043 = vld [vmem:[%s5 + $0x98] sm:$0xff]
        %v6044 = vld [vmem:[%s5 + $0xa0] sm:$0xff]
        %v6045 = vld [vmem:[%s5 + $0xa8] sm:$0xff]
        %v6046 = vld [vmem:[%s5 + $0xb0] sm:$0xff]
        %v6047 = vld [vmem:[%s5 + $0xb8] sm:$0xff]
        %v6048 = vld [vmem:[%s5 + $0xc0] sm:$0xff]
        %v6049 = vld [vmem:[%s5 + $0xc8] sm:$0xff]
        %v6050 = vld [vmem:[%s5 + $0xd0] sm:$0xff]
        %v6051 = vld [vmem:[%s5 + $0xd8] sm:$0xff]
        %v6052 = vld [vmem:[%s5 + $0xe0] sm:$0xff]
        %v6053 = vld [vmem:[%s5 + $0xe8] sm:$0xff]
        %v6054 = vld [vmem:[%s5 + $0xf0] sm:$0xff]
        %v6055 = vld [vmem:[%s5 + $0xf8] sm:$0xff]
        %v6056 = vld [vmem:[%s6] sm:$0xf]
        %s6057 = sld [smem:[#allocation5]]
        %v6058 = vstv %s6057
        %v6059 = vadd.f32 %v6058, 0.0
        %s6060 = sld [smem:[#allocation5 + $0x1]]
        %v6061 = vstv %s6060
        %v6062 = vadd.f32 %v6061, 0.0
        %s6063 = sld [smem:[#allocation5 + $0x2]]
        %v6064 = vstv %s6063
        %v6065 = vadd.f32 %v6064, 0.0
        %s6066 = sld [smem:[#allocation5 + $0x3]]
        %v6067 = vstv %s6066
        %v6068 = vadd.f32 %v6067, 0.0
        %v6069 = vld [vmem:[#allocation2] sm:$0xff]
        %v6070 = vld [vmem:[#allocation2 + $0x8] sm:$0xff]
        %v6071 = vld [vmem:[#allocation2 + $0x10] sm:$0xff]
        %v6072 = vld [vmem:[#allocation2 + $0x18] sm:$0xff]
        %v6073 = vld [vmem:[#allocation2 + $0x20] sm:$0xff]
        %v6074 = vld [vmem:[#allocation2 + $0x28] sm:$0xff]
        %v6075 = vld [vmem:[#allocation2 + $0x30] sm:$0xff]
        %v6076 = vld [vmem:[#allocation2 + $0x38] sm:$0xff]
        %v6077 = vld [vmem:[#allocation2 + $0x40] sm:$0xff]
        %v6078 = vld [vmem:[#allocation2 + $0x48] sm:$0xff]
        %v6079 = vld [vmem:[#allocation2 + $0x50] sm:$0xff]
        %v6080 = vld [vmem:[#allocation2 + $0x58] sm:$0xff]
        %v6081 = vld [vmem:[#allocation2 + $0x60] sm:$0xff]
        %v6082 = vld [vmem:[#allocation2 + $0x68] sm:$0xff]
        %v6083 = vld [vmem:[#allocation2 + $0x70] sm:$0xff]
        %v6084 = vld [vmem:[#allocation2 + $0x78] sm:$0xff]
        %v6085 = vld [vmem:[#allocation2 + $0x80] sm:$0xff]
        %v6086 = vld [vmem:[#allocation2 + $0x88] sm:$0xff]
        %v6087 = vld [vmem:[#allocation2 + $0x90] sm:$0xff]
        %v6088 = vld [vmem:[#allocation2 + $0x98] sm:$0xff]
        %v6089 = vld [vmem:[#allocation2 + $0xa0] sm:$0xff]
        %v6090 = vld [vmem:[#allocation2 + $0xa8] sm:$0xff]
        %v6091 = vld [vmem:[#allocation2 + $0xb0] sm:$0xff]
        %v6092 = vld [vmem:[#allocation2 + $0xb8] sm:$0xff]
        %v6093 = vld [vmem:[#allocation2 + $0xc0] sm:$0xff]
        %v6094 = vld [vmem:[#allocation2 + $0xc8] sm:$0xff]
        %v6095 = vld [vmem:[#allocation2 + $0xd0] sm:$0xff]
        %v6096 = vld [vmem:[#allocation2 + $0xd8] sm:$0xff]
        %v6097 = vld [vmem:[#allocation2 + $0xe0] sm:$0xff]
        %v6098 = vld [vmem:[#allocation2 + $0xe8] sm:$0xff]
        %v6099 = vld [vmem:[#allocation2 + $0xf0] sm:$0xff]
        %v6100 = vld [vmem:[#allocation2 + $0xf8] sm:$0xff]
        %6102 = vset.pattern.permute.xlu0 0
        %6103 = vperm.xlu0 %6102, %v6024
        %v6104 = vpop.permute.xlu0 %6103
        %6107 = vset.pattern.permute.xlu0 0
        %6108 = vperm.xlu0 %6107, %v6025
        %v6109 = vpop.permute.xlu0 %6108
        %6112 = vset.pattern.permute.xlu0 0
        %6113 = vperm.xlu0 %6112, %v6026
        %v6114 = vpop.permute.xlu0 %6113
        %6117 = vset.pattern.permute.xlu0 0
        %6118 = vperm.xlu0 %6117, %v6027
        %v6119 = vpop.permute.xlu0 %6118
        %6122 = vset.pattern.permute.xlu0 0
        %6123 = vperm.xlu0 %6122, %v6028
        %v6124 = vpop.permute.xlu0 %6123
        %6127 = vset.pattern.permute.xlu0 0
        %6128 = vperm.xlu0 %6127, %v6029
        %v6129 = vpop.permute.xlu0 %6128
        %6132 = vset.pattern.permute.xlu0 0
        %6133 = vperm.xlu0 %6132, %v6030
        %v6134 = vpop.permute.xlu0 %6133
        %6137 = vset.pattern.permute.xlu0 0
        %6138 = vperm.xlu0 %6137, %v6031
        %v6139 = vpop.permute.xlu0 %6138
        %v6141 = vmul.f32 %v6069, %v6104
        %v6142 = vmul.f32 %v6070, %v6109
        %v6143 = vmul.f32 %v6071, %v6114
        %v6144 = vmul.f32 %v6072, %v6119
        %v6145 = vmul.f32 %v6073, %v6124
        %v6146 = vmul.f32 %v6074, %v6129
        %v6147 = vmul.f32 %v6075, %v6134
        %v6148 = vmul.f32 %v6076, %v6139
        %v6149 = vmul.f32 %v6077, %v6104
        %v6150 = vmul.f32 %v6078, %v6109
        %v6151 = vmul.f32 %v6079, %v6114
        %v6152 = vmul.f32 %v6080, %v6119
        %v6153 = vmul.f32 %v6081, %v6124
        %v6154 = vmul.f32 %v6082, %v6129
        %v6155 = vmul.f32 %v6083, %v6134
        %v6156 = vmul.f32 %v6084, %v6139
        %v6157 = vmul.f32 %v6085, %v6104
        %v6158 = vmul.f32 %v6086, %v6109
        %v6159 = vmul.f32 %v6087, %v6114
        %v6160 = vmul.f32 %v6088, %v6119
        %v6161 = vmul.f32 %v6089, %v6124
        %v6162 = vmul.f32 %v6090, %v6129
        %v6163 = vmul.f32 %v6091, %v6134
        %v6164 = vmul.f32 %v6092, %v6139
        %v6165 = vmul.f32 %v6093, %v6104
        %v6166 = vmul.f32 %v6094, %v6109
        %v6167 = vmul.f32 %v6095, %v6114
        %v6168 = vmul.f32 %v6096, %v6119
        %v6169 = vmul.f32 %v6097, %v6124
        %v6170 = vmul.f32 %v6098, %v6129
        %v6171 = vmul.f32 %v6099, %v6134
        %v6172 = vmul.f32 %v6100, %v6139
        %v6173 = vsel %vm503, %v6141, 0.0
        %v6174 = vsel %vm503, %v6142, 0.0
        %v6175 = vadd.f32 %v6173, %v6174
        %v6176 = vsel %vm503, %v6143, 0.0
        %v6177 = vadd.f32 %v6175, %v6176
        %v6178 = vsel %vm503, %v6144, 0.0
        %v6179 = vadd.f32 %v6177, %v6178
        %v6180 = vsel %vm503, %v6145, 0.0
        %v6181 = vadd.f32 %v6179, %v6180
        %v6182 = vsel %vm503, %v6146, 0.0
        %v6183 = vadd.f32 %v6181, %v6182
        %v6184 = vsel %vm503, %v6147, 0.0
        %v6185 = vadd.f32 %v6183, %v6184
        %v6186 = vsel %vm503, %v6148, 0.0
        %v6187 = vadd.f32 %v6185, %v6186
        %v6188 = vrot.slane %v6187, 4
        %v6189 = vadd.f32 %v6187, %v6188
        %v6190 = vrot.slane %v6189, 2
        %v6191 = vadd.f32 %v6189, %v6190
        %v6192 = vrot.slane %v6191, 1
        %v6193 = vadd.f32 %v6191, %v6192
        %v6194 = vsel %vm503, %v6149, 0.0
        %v6195 = vsel %vm503, %v6150, 0.0
        %v6196 = vadd.f32 %v6194, %v6195
        %v6197 = vsel %vm503, %v6151, 0.0
        %v6198 = vadd.f32 %v6196, %v6197
        %v6199 = vsel %vm503, %v6152, 0.0
        %v6200 = vadd.f32 %v6198, %v6199
        %v6201 = vsel %vm503, %v6153, 0.0
        %v6202 = vadd.f32 %v6200, %v6201
        %v6203 = vsel %vm503, %v6154, 0.0
        %v6204 = vadd.f32 %v6202, %v6203
        %v6205 = vsel %vm503, %v6155, 0.0
        %v6206 = vadd.f32 %v6204, %v6205
        %v6207 = vsel %vm503, %v6156, 0.0
        %v6208 = vadd.f32 %v6206, %v6207
        %v6209 = vrot.slane %v6208, 4
        %v6210 = vadd.f32 %v6208, %v6209
        %v6211 = vrot.slane %v6210, 2
        %v6212 = vadd.f32 %v6210, %v6211
        %v6213 = vrot.slane %v6212, 1
        %v6214 = vadd.f32 %v6212, %v6213
        %v6215 = vsel %vm503, %v6157, 0.0
        %v6216 = vsel %vm503, %v6158, 0.0
        %v6217 = vadd.f32 %v6215, %v6216
        %v6218 = vsel %vm503, %v6159, 0.0
        %v6219 = vadd.f32 %v6217, %v6218
        %v6220 = vsel %vm503, %v6160, 0.0
        %v6221 = vadd.f32 %v6219, %v6220
        %v6222 = vsel %vm503, %v6161, 0.0
        %v6223 = vadd.f32 %v6221, %v6222
        %v6224 = vsel %vm503, %v6162, 0.0
        %v6225 = vadd.f32 %v6223, %v6224
        %v6226 = vsel %vm503, %v6163, 0.0
        %v6227 = vadd.f32 %v6225, %v6226
        %v6228 = vsel %vm503, %v6164, 0.0
        %v6229 = vadd.f32 %v6227, %v6228
        %v6230 = vrot.slane %v6229, 4
        %v6231 = vadd.f32 %v6229, %v6230
        %v6232 = vrot.slane %v6231, 2
        %v6233 = vadd.f32 %v6231, %v6232
        %v6234 = vrot.slane %v6233, 1
        %v6235 = vadd.f32 %v6233, %v6234
        %v6236 = vsel %vm503, %v6165, 0.0
        %v6237 = vsel %vm503, %v6166, 0.0
        %v6238 = vadd.f32 %v6236, %v6237
        %v6239 = vsel %vm503, %v6167, 0.0
        %v6240 = vadd.f32 %v6238, %v6239
        %v6241 = vsel %vm503, %v6168, 0.0
        %v6242 = vadd.f32 %v6240, %v6241
        %v6243 = vsel %vm503, %v6169, 0.0
        %v6244 = vadd.f32 %v6242, %v6243
        %v6245 = vsel %vm503, %v6170, 0.0
        %v6246 = vadd.f32 %v6244, %v6245
        %v6247 = vsel %vm503, %v6171, 0.0
        %v6248 = vadd.f32 %v6246, %v6247
        %v6249 = vsel %vm503, %v6172, 0.0
        %v6250 = vadd.f32 %v6248, %v6249
        %v6251 = vrot.slane %v6250, 4
        %v6252 = vadd.f32 %v6250, %v6251
        %v6253 = vrot.slane %v6252, 2
        %v6254 = vadd.f32 %v6252, %v6253
        %v6255 = vrot.slane %v6254, 1
        %v6256 = vadd.f32 %v6254, %v6255
        %v6257 = vadd.f32 %v6059, %v6193
        %v6258 = vadd.f32 %v6059, %v6214
        %v6259 = vadd.f32 %v6059, %v6235
        %v6260 = vadd.f32 %v6059, %v6256
        %6262 = vset.pattern.permute.xlu0 0
        %6263 = vperm.xlu0 %6262, %v6032
        %v6264 = vpop.permute.xlu0 %6263
        %6267 = vset.pattern.permute.xlu0 0
        %6268 = vperm.xlu0 %6267, %v6033
        %v6269 = vpop.permute.xlu0 %6268
        %6272 = vset.pattern.permute.xlu0 0
        %6273 = vperm.xlu0 %6272, %v6034
        %v6274 = vpop.permute.xlu0 %6273
        %6277 = vset.pattern.permute.xlu0 0
        %6278 = vperm.xlu0 %6277, %v6035
        %v6279 = vpop.permute.xlu0 %6278
        %6282 = vset.pattern.permute.xlu0 0
        %6283 = vperm.xlu0 %6282, %v6036
        %v6284 = vpop.permute.xlu0 %6283
        %6287 = vset.pattern.permute.xlu0 0
        %6288 = vperm.xlu0 %6287, %v6037
        %v6289 = vpop.permute.xlu0 %6288
        %6292 = vset.pattern.permute.xlu0 0
        %6293 = vperm.xlu0 %6292, %v6038
        %v6294 = vpop.permute.xlu0 %6293
        %6297 = vset.pattern.permute.xlu0 0
        %6298 = vperm.xlu0 %6297, %v6039
        %v6299 = vpop.permute.xlu0 %6298
        %v6301 = vmul.f32 %v6069, %v6264
        %v6302 = vmul.f32 %v6070, %v6269
        %v6303 = vmul.f32 %v6071, %v6274
        %v6304 = vmul.f32 %v6072, %v6279
        %v6305 = vmul.f32 %v6073, %v6284
        %v6306 = vmul.f32 %v6074, %v6289
        %v6307 = vmul.f32 %v6075, %v6294
        %v6308 = vmul.f32 %v6076, %v6299
        %v6309 = vmul.f32 %v6077, %v6264
        %v6310 = vmul.f32 %v6078, %v6269
        %v6311 = vmul.f32 %v6079, %v6274
        %v6312 = vmul.f32 %v6080, %v6279
        %v6313 = vmul.f32 %v6081, %v6284
        %v6314 = vmul.f32 %v6082, %v6289
        %v6315 = vmul.f32 %v6083, %v6294
        %v6316 = vmul.f32 %v6084, %v6299
        %v6317 = vmul.f32 %v6085, %v6264
        %v6318 = vmul.f32 %v6086, %v6269
        %v6319 = vmul.f32 %v6087, %v6274
        %v6320 = vmul.f32 %v6088, %v6279
        %v6321 = vmul.f32 %v6089, %v6284
        %v6322 = vmul.f32 %v6090, %v6289
        %v6323 = vmul.f32 %v6091, %v6294
        %v6324 = vmul.f32 %v6092, %v6299
        %v6325 = vmul.f32 %v6093, %v6264
        %v6326 = vmul.f32 %v6094, %v6269
        %v6327 = vmul.f32 %v6095, %v6274
        %v6328 = vmul.f32 %v6096, %v6279
        %v6329 = vmul.f32 %v6097, %v6284
        %v6330 = vmul.f32 %v6098, %v6289
        %v6331 = vmul.f32 %v6099, %v6294
        %v6332 = vmul.f32 %v6100, %v6299
        %v6333 = vsel %vm503, %v6301, 0.0
        %v6334 = vsel %vm503, %v6302, 0.0
        %v6335 = vadd.f32 %v6333, %v6334
        %v6336 = vsel %vm503, %v6303, 0.0
        %v6337 = vadd.f32 %v6335, %v6336
        %v6338 = vsel %vm503, %v6304, 0.0
        %v6339 = vadd.f32 %v6337, %v6338
        %v6340 = vsel %vm503, %v6305, 0.0
        %v6341 = vadd.f32 %v6339, %v6340
        %v6342 = vsel %vm503, %v6306, 0.0
        %v6343 = vadd.f32 %v6341, %v6342
        %v6344 = vsel %vm503, %v6307, 0.0
        %v6345 = vadd.f32 %v6343, %v6344
        %v6346 = vsel %vm503, %v6308, 0.0
        %v6347 = vadd.f32 %v6345, %v6346
        %v6348 = vrot.slane %v6347, 4
        %v6349 = vadd.f32 %v6347, %v6348
        %v6350 = vrot.slane %v6349, 2
        %v6351 = vadd.f32 %v6349, %v6350
        %v6352 = vrot.slane %v6351, 1
        %v6353 = vadd.f32 %v6351, %v6352
        %v6354 = vsel %vm503, %v6309, 0.0
        %v6355 = vsel %vm503, %v6310, 0.0
        %v6356 = vadd.f32 %v6354, %v6355
        %v6357 = vsel %vm503, %v6311, 0.0
        %v6358 = vadd.f32 %v6356, %v6357
        %v6359 = vsel %vm503, %v6312, 0.0
        %v6360 = vadd.f32 %v6358, %v6359
        %v6361 = vsel %vm503, %v6313, 0.0
        %v6362 = vadd.f32 %v6360, %v6361
        %v6363 = vsel %vm503, %v6314, 0.0
        %v6364 = vadd.f32 %v6362, %v6363
        %v6365 = vsel %vm503, %v6315, 0.0
        %v6366 = vadd.f32 %v6364, %v6365
        %v6367 = vsel %vm503, %v6316, 0.0
        %v6368 = vadd.f32 %v6366, %v6367
        %v6369 = vrot.slane %v6368, 4
        %v6370 = vadd.f32 %v6368, %v6369
        %v6371 = vrot.slane %v6370, 2
        %v6372 = vadd.f32 %v6370, %v6371
        %v6373 = vrot.slane %v6372, 1
        %v6374 = vadd.f32 %v6372, %v6373
        %v6375 = vsel %vm503, %v6317, 0.0
        %v6376 = vsel %vm503, %v6318, 0.0
        %v6377 = vadd.f32 %v6375, %v6376
        %v6378 = vsel %vm503, %v6319, 0.0
        %v6379 = vadd.f32 %v6377, %v6378
        %v6380 = vsel %vm503, %v6320, 0.0
        %v6381 = vadd.f32 %v6379, %v6380
        %v6382 = vsel %vm503, %v6321, 0.0
        %v6383 = vadd.f32 %v6381, %v6382
        %v6384 = vsel %vm503, %v6322, 0.0
        %v6385 = vadd.f32 %v6383, %v6384
        %v6386 = vsel %vm503, %v6323, 0.0
        %v6387 = vadd.f32 %v6385, %v6386
        %v6388 = vsel %vm503, %v6324, 0.0
        %v6389 = vadd.f32 %v6387, %v6388
        %v6390 = vrot.slane %v6389, 4
        %v6391 = vadd.f32 %v6389, %v6390
        %v6392 = vrot.slane %v6391, 2
        %v6393 = vadd.f32 %v6391, %v6392
        %v6394 = vrot.slane %v6393, 1
        %v6395 = vadd.f32 %v6393, %v6394
        %v6396 = vsel %vm503, %v6325, 0.0
        %v6397 = vsel %vm503, %v6326, 0.0
        %v6398 = vadd.f32 %v6396, %v6397
        %v6399 = vsel %vm503, %v6327, 0.0
        %v6400 = vadd.f32 %v6398, %v6399
        %v6401 = vsel %vm503, %v6328, 0.0
        %v6402 = vadd.f32 %v6400, %v6401
        %v6403 = vsel %vm503, %v6329, 0.0
        %v6404 = vadd.f32 %v6402, %v6403
        %v6405 = vsel %vm503, %v6330, 0.0
        %v6406 = vadd.f32 %v6404, %v6405
        %v6407 = vsel %vm503, %v6331, 0.0
        %v6408 = vadd.f32 %v6406, %v6407
        %v6409 = vsel %vm503, %v6332, 0.0
        %v6410 = vadd.f32 %v6408, %v6409
        %v6411 = vrot.slane %v6410, 4
        %v6412 = vadd.f32 %v6410, %v6411
        %v6413 = vrot.slane %v6412, 2
        %v6414 = vadd.f32 %v6412, %v6413
        %v6415 = vrot.slane %v6414, 1
        %v6416 = vadd.f32 %v6414, %v6415
        %v6417 = vadd.f32 %v6062, %v6353
        %v6418 = vadd.f32 %v6062, %v6374
        %v6419 = vadd.f32 %v6062, %v6395
        %v6420 = vadd.f32 %v6062, %v6416
        %6422 = vset.pattern.permute.xlu0 0
        %6423 = vperm.xlu0 %6422, %v6040
        %v6424 = vpop.permute.xlu0 %6423
        %6427 = vset.pattern.permute.xlu0 0
        %6428 = vperm.xlu0 %6427, %v6041
        %v6429 = vpop.permute.xlu0 %6428
        %6432 = vset.pattern.permute.xlu0 0
        %6433 = vperm.xlu0 %6432, %v6042
        %v6434 = vpop.permute.xlu0 %6433
        %6437 = vset.pattern.permute.xlu0 0
        %6438 = vperm.xlu0 %6437, %v6043
        %v6439 = vpop.permute.xlu0 %6438
        %6442 = vset.pattern.permute.xlu0 0
        %6443 = vperm.xlu0 %6442, %v6044
        %v6444 = vpop.permute.xlu0 %6443
        %6447 = vset.pattern.permute.xlu0 0
        %6448 = vperm.xlu0 %6447, %v6045
        %v6449 = vpop.permute.xlu0 %6448
        %6452 = vset.pattern.permute.xlu0 0
        %6453 = vperm.xlu0 %6452, %v6046
        %v6454 = vpop.permute.xlu0 %6453
        %6457 = vset.pattern.permute.xlu0 0
        %6458 = vperm.xlu0 %6457, %v6047
        %v6459 = vpop.permute.xlu0 %6458
        %v6461 = vmul.f32 %v6069, %v6424
        %v6462 = vmul.f32 %v6070, %v6429
        %v6463 = vmul.f32 %v6071, %v6434
        %v6464 = vmul.f32 %v6072, %v6439
        %v6465 = vmul.f32 %v6073, %v6444
        %v6466 = vmul.f32 %v6074, %v6449
        %v6467 = vmul.f32 %v6075, %v6454
        %v6468 = vmul.f32 %v6076, %v6459
        %v6469 = vmul.f32 %v6077, %v6424
        %v6470 = vmul.f32 %v6078, %v6429
        %v6471 = vmul.f32 %v6079, %v6434
        %v6472 = vmul.f32 %v6080, %v6439
        %v6473 = vmul.f32 %v6081, %v6444
        %v6474 = vmul.f32 %v6082, %v6449
        %v6475 = vmul.f32 %v6083, %v6454
        %v6476 = vmul.f32 %v6084, %v6459
        %v6477 = vmul.f32 %v6085, %v6424
        %v6478 = vmul.f32 %v6086, %v6429
        %v6479 = vmul.f32 %v6087, %v6434
        %v6480 = vmul.f32 %v6088, %v6439
        %v6481 = vmul.f32 %v6089, %v6444
        %v6482 = vmul.f32 %v6090, %v6449
        %v6483 = vmul.f32 %v6091, %v6454
        %v6484 = vmul.f32 %v6092, %v6459
        %v6485 = vmul.f32 %v6093, %v6424
        %v6486 = vmul.f32 %v6094, %v6429
        %v6487 = vmul.f32 %v6095, %v6434
        %v6488 = vmul.f32 %v6096, %v6439
        %v6489 = vmul.f32 %v6097, %v6444
        %v6490 = vmul.f32 %v6098, %v6449
        %v6491 = vmul.f32 %v6099, %v6454
        %v6492 = vmul.f32 %v6100, %v6459
        %v6493 = vsel %vm503, %v6461, 0.0
        %v6494 = vsel %vm503, %v6462, 0.0
        %v6495 = vadd.f32 %v6493, %v6494
        %v6496 = vsel %vm503, %v6463, 0.0
        %v6497 = vadd.f32 %v6495, %v6496
        %v6498 = vsel %vm503, %v6464, 0.0
        %v6499 = vadd.f32 %v6497, %v6498
        %v6500 = vsel %vm503, %v6465, 0.0
        %v6501 = vadd.f32 %v6499, %v6500
        %v6502 = vsel %vm503, %v6466, 0.0
        %v6503 = vadd.f32 %v6501, %v6502
        %v6504 = vsel %vm503, %v6467, 0.0
        %v6505 = vadd.f32 %v6503, %v6504
        %v6506 = vsel %vm503, %v6468, 0.0
        %v6507 = vadd.f32 %v6505, %v6506
        %v6508 = vrot.slane %v6507, 4
        %v6509 = vadd.f32 %v6507, %v6508
        %v6510 = vrot.slane %v6509, 2
        %v6511 = vadd.f32 %v6509, %v6510
        %v6512 = vrot.slane %v6511, 1
        %v6513 = vadd.f32 %v6511, %v6512
        %v6514 = vsel %vm503, %v6469, 0.0
        %v6515 = vsel %vm503, %v6470, 0.0
        %v6516 = vadd.f32 %v6514, %v6515
        %v6517 = vsel %vm503, %v6471, 0.0
        %v6518 = vadd.f32 %v6516, %v6517
        %v6519 = vsel %vm503, %v6472, 0.0
        %v6520 = vadd.f32 %v6518, %v6519
        %v6521 = vsel %vm503, %v6473, 0.0
        %v6522 = vadd.f32 %v6520, %v6521
        %v6523 = vsel %vm503, %v6474, 0.0
        %v6524 = vadd.f32 %v6522, %v6523
        %v6525 = vsel %vm503, %v6475, 0.0
        %v6526 = vadd.f32 %v6524, %v6525
        %v6527 = vsel %vm503, %v6476, 0.0
        %v6528 = vadd.f32 %v6526, %v6527
        %v6529 = vrot.slane %v6528, 4
        %v6530 = vadd.f32 %v6528, %v6529
        %v6531 = vrot.slane %v6530, 2
        %v6532 = vadd.f32 %v6530, %v6531
        %v6533 = vrot.slane %v6532, 1
        %v6534 = vadd.f32 %v6532, %v6533
        %v6535 = vsel %vm503, %v6477, 0.0
        %v6536 = vsel %vm503, %v6478, 0.0
        %v6537 = vadd.f32 %v6535, %v6536
        %v6538 = vsel %vm503, %v6479, 0.0
        %v6539 = vadd.f32 %v6537, %v6538
        %v6540 = vsel %vm503, %v6480, 0.0
        %v6541 = vadd.f32 %v6539, %v6540
        %v6542 = vsel %vm503, %v6481, 0.0
        %v6543 = vadd.f32 %v6541, %v6542
        %v6544 = vsel %vm503, %v6482, 0.0
        %v6545 = vadd.f32 %v6543, %v6544
        %v6546 = vsel %vm503, %v6483, 0.0
        %v6547 = vadd.f32 %v6545, %v6546
        %v6548 = vsel %vm503, %v6484, 0.0
        %v6549 = vadd.f32 %v6547, %v6548
        %v6550 = vrot.slane %v6549, 4
        %v6551 = vadd.f32 %v6549, %v6550
        %v6552 = vrot.slane %v6551, 2
        %v6553 = vadd.f32 %v6551, %v6552
        %v6554 = vrot.slane %v6553, 1
        %v6555 = vadd.f32 %v6553, %v6554
        %v6556 = vsel %vm503, %v6485, 0.0
        %v6557 = vsel %vm503, %v6486, 0.0
        %v6558 = vadd.f32 %v6556, %v6557
        %v6559 = vsel %vm503, %v6487, 0.0
        %v6560 = vadd.f32 %v6558, %v6559
        %v6561 = vsel %vm503, %v6488, 0.0
        %v6562 = vadd.f32 %v6560, %v6561
        %v6563 = vsel %vm503, %v6489, 0.0
        %v6564 = vadd.f32 %v6562, %v6563
        %v6565 = vsel %vm503, %v6490, 0.0
        %v6566 = vadd.f32 %v6564, %v6565
        %v6567 = vsel %vm503, %v6491, 0.0
        %v6568 = vadd.f32 %v6566, %v6567
        %v6569 = vsel %vm503, %v6492, 0.0
        %v6570 = vadd.f32 %v6568, %v6569
        %v6571 = vrot.slane %v6570, 4
        %v6572 = vadd.f32 %v6570, %v6571
        %v6573 = vrot.slane %v6572, 2
        %v6574 = vadd.f32 %v6572, %v6573
        %v6575 = vrot.slane %v6574, 1
        %v6576 = vadd.f32 %v6574, %v6575
        %v6577 = vadd.f32 %v6065, %v6513
        %v6578 = vadd.f32 %v6065, %v6534
        %v6579 = vadd.f32 %v6065, %v6555
        %v6580 = vadd.f32 %v6065, %v6576
        %6582 = vset.pattern.permute.xlu0 0
        %6583 = vperm.xlu0 %6582, %v6048
        %v6584 = vpop.permute.xlu0 %6583
        %6587 = vset.pattern.permute.xlu0 0
        %6588 = vperm.xlu0 %6587, %v6049
        %v6589 = vpop.permute.xlu0 %6588
        %6592 = vset.pattern.permute.xlu0 0
        %6593 = vperm.xlu0 %6592, %v6050
        %v6594 = vpop.permute.xlu0 %6593
        %6597 = vset.pattern.permute.xlu0 0
        %6598 = vperm.xlu0 %6597, %v6051
        %v6599 = vpop.permute.xlu0 %6598
        %6602 = vset.pattern.permute.xlu0 0
        %6603 = vperm.xlu0 %6602, %v6052
        %v6604 = vpop.permute.xlu0 %6603
        %6607 = vset.pattern.permute.xlu0 0
        %6608 = vperm.xlu0 %6607, %v6053
        %v6609 = vpop.permute.xlu0 %6608
        %6612 = vset.pattern.permute.xlu0 0
        %6613 = vperm.xlu0 %6612, %v6054
        %v6614 = vpop.permute.xlu0 %6613
        %6617 = vset.pattern.permute.xlu0 0
        %6618 = vperm.xlu0 %6617, %v6055
        %v6619 = vpop.permute.xlu0 %6618
        %v6621 = vmul.f32 %v6069, %v6584
        %v6622 = vmul.f32 %v6070, %v6589
        %v6623 = vmul.f32 %v6071, %v6594
        %v6624 = vmul.f32 %v6072, %v6599
        %v6625 = vmul.f32 %v6073, %v6604
        %v6626 = vmul.f32 %v6074, %v6609
        %v6627 = vmul.f32 %v6075, %v6614
        %v6628 = vmul.f32 %v6076, %v6619
        %v6629 = vmul.f32 %v6077, %v6584
        %v6630 = vmul.f32 %v6078, %v6589
        %v6631 = vmul.f32 %v6079, %v6594
        %v6632 = vmul.f32 %v6080, %v6599
        %v6633 = vmul.f32 %v6081, %v6604
        %v6634 = vmul.f32 %v6082, %v6609
        %v6635 = vmul.f32 %v6083, %v6614
        %v6636 = vmul.f32 %v6084, %v6619
        %v6637 = vmul.f32 %v6085, %v6584
        %v6638 = vmul.f32 %v6086, %v6589
        %v6639 = vmul.f32 %v6087, %v6594
        %v6640 = vmul.f32 %v6088, %v6599
        %v6641 = vmul.f32 %v6089, %v6604
        %v6642 = vmul.f32 %v6090, %v6609
        %v6643 = vmul.f32 %v6091, %v6614
        %v6644 = vmul.f32 %v6092, %v6619
        %v6645 = vmul.f32 %v6093, %v6584
        %v6646 = vmul.f32 %v6094, %v6589
        %v6647 = vmul.f32 %v6095, %v6594
        %v6648 = vmul.f32 %v6096, %v6599
        %v6649 = vmul.f32 %v6097, %v6604
        %v6650 = vmul.f32 %v6098, %v6609
        %v6651 = vmul.f32 %v6099, %v6614
        %v6652 = vmul.f32 %v6100, %v6619
        %v6653 = vsel %vm503, %v6621, 0.0
        %v6654 = vsel %vm503, %v6622, 0.0
        %v6655 = vadd.f32 %v6653, %v6654
        %v6656 = vsel %vm503, %v6623, 0.0
        %v6657 = vadd.f32 %v6655, %v6656
        %v6658 = vsel %vm503, %v6624, 0.0
        %v6659 = vadd.f32 %v6657, %v6658
        %v6660 = vsel %vm503, %v6625, 0.0
        %v6661 = vadd.f32 %v6659, %v6660
        %v6662 = vsel %vm503, %v6626, 0.0
        %v6663 = vadd.f32 %v6661, %v6662
        %v6664 = vsel %vm503, %v6627, 0.0
        %v6665 = vadd.f32 %v6663, %v6664
        %v6666 = vsel %vm503, %v6628, 0.0
        %v6667 = vadd.f32 %v6665, %v6666
        %v6668 = vrot.slane %v6667, 4
        %v6669 = vadd.f32 %v6667, %v6668
        %v6670 = vrot.slane %v6669, 2
        %v6671 = vadd.f32 %v6669, %v6670
        %v6672 = vrot.slane %v6671, 1
        %v6673 = vadd.f32 %v6671, %v6672
        %v6674 = vsel %vm503, %v6629, 0.0
        %v6675 = vsel %vm503, %v6630, 0.0
        %v6676 = vadd.f32 %v6674, %v6675
        %v6677 = vsel %vm503, %v6631, 0.0
        %v6678 = vadd.f32 %v6676, %v6677
        %v6679 = vsel %vm503, %v6632, 0.0
        %v6680 = vadd.f32 %v6678, %v6679
        %v6681 = vsel %vm503, %v6633, 0.0
        %v6682 = vadd.f32 %v6680, %v6681
        %v6683 = vsel %vm503, %v6634, 0.0
        %v6684 = vadd.f32 %v6682, %v6683
        %v6685 = vsel %vm503, %v6635, 0.0
        %v6686 = vadd.f32 %v6684, %v6685
        %v6687 = vsel %vm503, %v6636, 0.0
        %v6688 = vadd.f32 %v6686, %v6687
        %v6689 = vrot.slane %v6688, 4
        %v6690 = vadd.f32 %v6688, %v6689
        %v6691 = vrot.slane %v6690, 2
        %v6692 = vadd.f32 %v6690, %v6691
        %v6693 = vrot.slane %v6692, 1
        %v6694 = vadd.f32 %v6692, %v6693
        %v6695 = vsel %vm503, %v6637, 0.0
        %v6696 = vsel %vm503, %v6638, 0.0
        %v6697 = vadd.f32 %v6695, %v6696
        %v6698 = vsel %vm503, %v6639, 0.0
        %v6699 = vadd.f32 %v6697, %v6698
        %v6700 = vsel %vm503, %v6640, 0.0
        %v6701 = vadd.f32 %v6699, %v6700
        %v6702 = vsel %vm503, %v6641, 0.0
        %v6703 = vadd.f32 %v6701, %v6702
        %v6704 = vsel %vm503, %v6642, 0.0
        %v6705 = vadd.f32 %v6703, %v6704
        %v6706 = vsel %vm503, %v6643, 0.0
        %v6707 = vadd.f32 %v6705, %v6706
        %v6708 = vsel %vm503, %v6644, 0.0
        %v6709 = vadd.f32 %v6707, %v6708
        %v6710 = vrot.slane %v6709, 4
        %v6711 = vadd.f32 %v6709, %v6710
        %v6712 = vrot.slane %v6711, 2
        %v6713 = vadd.f32 %v6711, %v6712
        %v6714 = vrot.slane %v6713, 1
        %v6715 = vadd.f32 %v6713, %v6714
        %v6716 = vsel %vm503, %v6645, 0.0
        %v6717 = vsel %vm503, %v6646, 0.0
        %v6718 = vadd.f32 %v6716, %v6717
        %v6719 = vsel %vm503, %v6647, 0.0
        %v6720 = vadd.f32 %v6718, %v6719
        %v6721 = vsel %vm503, %v6648, 0.0
        %v6722 = vadd.f32 %v6720, %v6721
        %v6723 = vsel %vm503, %v6649, 0.0
        %v6724 = vadd.f32 %v6722, %v6723
        %v6725 = vsel %vm503, %v6650, 0.0
        %v6726 = vadd.f32 %v6724, %v6725
        %v6727 = vsel %vm503, %v6651, 0.0
        %v6728 = vadd.f32 %v6726, %v6727
        %v6729 = vsel %vm503, %v6652, 0.0
        %v6730 = vadd.f32 %v6728, %v6729
        %v6731 = vrot.slane %v6730, 4
        %v6732 = vadd.f32 %v6730, %v6731
        %v6733 = vrot.slane %v6732, 2
        %v6734 = vadd.f32 %v6732, %v6733
        %v6735 = vrot.slane %v6734, 1
        %v6736 = vadd.f32 %v6734, %v6735
        %v6737 = vadd.f32 %v6068, %v6673
        %v6738 = vadd.f32 %v6068, %v6694
        %v6739 = vadd.f32 %v6068, %v6715
        %v6740 = vadd.f32 %v6068, %v6736
        %6741 = vset.pattern.permute.xlu0 1
        %6742 = vperm.xlu0 %6741, %v6024
        %v6743 = vpop.permute.xlu0 %6742
        %6745 = vset.pattern.permute.xlu0 1
        %6746 = vperm.xlu0 %6745, %v6025
        %v6747 = vpop.permute.xlu0 %6746
        %6749 = vset.pattern.permute.xlu0 1
        %6750 = vperm.xlu0 %6749, %v6026
        %v6751 = vpop.permute.xlu0 %6750
        %6753 = vset.pattern.permute.xlu0 1
        %6754 = vperm.xlu0 %6753, %v6027
        %v6755 = vpop.permute.xlu0 %6754
        %6757 = vset.pattern.permute.xlu0 1
        %6758 = vperm.xlu0 %6757, %v6028
        %v6759 = vpop.permute.xlu0 %6758
        %6761 = vset.pattern.permute.xlu0 1
        %6762 = vperm.xlu0 %6761, %v6029
        %v6763 = vpop.permute.xlu0 %6762
        %6765 = vset.pattern.permute.xlu0 1
        %6766 = vperm.xlu0 %6765, %v6030
        %v6767 = vpop.permute.xlu0 %6766
        %6769 = vset.pattern.permute.xlu0 1
        %6770 = vperm.xlu0 %6769, %v6031
        %v6771 = vpop.permute.xlu0 %6770
        %v6773 = vmul.f32 %v6069, %v6743
        %v6774 = vmul.f32 %v6070, %v6747
        %v6775 = vmul.f32 %v6071, %v6751
        %v6776 = vmul.f32 %v6072, %v6755
        %v6777 = vmul.f32 %v6073, %v6759
        %v6778 = vmul.f32 %v6074, %v6763
        %v6779 = vmul.f32 %v6075, %v6767
        %v6780 = vmul.f32 %v6076, %v6771
        %v6781 = vmul.f32 %v6077, %v6743
        %v6782 = vmul.f32 %v6078, %v6747
        %v6783 = vmul.f32 %v6079, %v6751
        %v6784 = vmul.f32 %v6080, %v6755
        %v6785 = vmul.f32 %v6081, %v6759
        %v6786 = vmul.f32 %v6082, %v6763
        %v6787 = vmul.f32 %v6083, %v6767
        %v6788 = vmul.f32 %v6084, %v6771
        %v6789 = vmul.f32 %v6085, %v6743
        %v6790 = vmul.f32 %v6086, %v6747
        %v6791 = vmul.f32 %v6087, %v6751
        %v6792 = vmul.f32 %v6088, %v6755
        %v6793 = vmul.f32 %v6089, %v6759
        %v6794 = vmul.f32 %v6090, %v6763
        %v6795 = vmul.f32 %v6091, %v6767
        %v6796 = vmul.f32 %v6092, %v6771
        %v6797 = vmul.f32 %v6093, %v6743
        %v6798 = vmul.f32 %v6094, %v6747
        %v6799 = vmul.f32 %v6095, %v6751
        %v6800 = vmul.f32 %v6096, %v6755
        %v6801 = vmul.f32 %v6097, %v6759
        %v6802 = vmul.f32 %v6098, %v6763
        %v6803 = vmul.f32 %v6099, %v6767
        %v6804 = vmul.f32 %v6100, %v6771
        %vm6805 = vcmask 138248
        %v6806 = vsel %vm6805, %v6773, 0.0
        %v6807 = vsel %vm6805, %v6774, 0.0
        %v6808 = vadd.f32 %v6806, %v6807
        %v6809 = vsel %vm6805, %v6775, 0.0
        %v6810 = vadd.f32 %v6808, %v6809
        %v6811 = vsel %vm6805, %v6776, 0.0
        %v6812 = vadd.f32 %v6810, %v6811
        %v6813 = vsel %vm6805, %v6777, 0.0
        %v6814 = vadd.f32 %v6812, %v6813
        %v6815 = vsel %vm6805, %v6778, 0.0
        %v6816 = vadd.f32 %v6814, %v6815
        %v6817 = vsel %vm6805, %v6779, 0.0
        %v6818 = vadd.f32 %v6816, %v6817
        %v6819 = vsel %vm6805, %v6780, 0.0
        %v6820 = vadd.f32 %v6818, %v6819
        %v6821 = vrot.slane %v6820, 4
        %v6822 = vadd.f32 %v6820, %v6821
        %v6823 = vrot.slane %v6822, 2
        %v6824 = vadd.f32 %v6822, %v6823
        %v6825 = vrot.slane %v6824, 1
        %v6826 = vadd.f32 %v6824, %v6825
        %v6827 = vsel %vm6805, %v6781, 0.0
        %v6828 = vsel %vm6805, %v6782, 0.0
        %v6829 = vadd.f32 %v6827, %v6828
        %v6830 = vsel %vm6805, %v6783, 0.0
        %v6831 = vadd.f32 %v6829, %v6830
        %v6832 = vsel %vm6805, %v6784, 0.0
        %v6833 = vadd.f32 %v6831, %v6832
        %v6834 = vsel %vm6805, %v6785, 0.0
        %v6835 = vadd.f32 %v6833, %v6834
        %v6836 = vsel %vm6805, %v6786, 0.0
        %v6837 = vadd.f32 %v6835, %v6836
        %v6838 = vsel %vm6805, %v6787, 0.0
        %v6839 = vadd.f32 %v6837, %v6838
        %v6840 = vsel %vm6805, %v6788, 0.0
        %v6841 = vadd.f32 %v6839, %v6840
        %v6842 = vrot.slane %v6841, 4
        %v6843 = vadd.f32 %v6841, %v6842
        %v6844 = vrot.slane %v6843, 2
        %v6845 = vadd.f32 %v6843, %v6844
        %v6846 = vrot.slane %v6845, 1
        %v6847 = vadd.f32 %v6845, %v6846
        %v6848 = vsel %vm6805, %v6789, 0.0
        %v6849 = vsel %vm6805, %v6790, 0.0
        %v6850 = vadd.f32 %v6848, %v6849
        %v6851 = vsel %vm6805, %v6791, 0.0
        %v6852 = vadd.f32 %v6850, %v6851
        %v6853 = vsel %vm6805, %v6792, 0.0
        %v6854 = vadd.f32 %v6852, %v6853
        %v6855 = vsel %vm6805, %v6793, 0.0
        %v6856 = vadd.f32 %v6854, %v6855
        %v6857 = vsel %vm6805, %v6794, 0.0
        %v6858 = vadd.f32 %v6856, %v6857
        %v6859 = vsel %vm6805, %v6795, 0.0
        %v6860 = vadd.f32 %v6858, %v6859
        %v6861 = vsel %vm6805, %v6796, 0.0
        %v6862 = vadd.f32 %v6860, %v6861
        %v6863 = vrot.slane %v6862, 4
        %v6864 = vadd.f32 %v6862, %v6863
        %v6865 = vrot.slane %v6864, 2
        %v6866 = vadd.f32 %v6864, %v6865
        %v6867 = vrot.slane %v6866, 1
        %v6868 = vadd.f32 %v6866, %v6867
        %v6869 = vsel %vm6805, %v6797, 0.0
        %v6870 = vsel %vm6805, %v6798, 0.0
        %v6871 = vadd.f32 %v6869, %v6870
        %v6872 = vsel %vm6805, %v6799, 0.0
        %v6873 = vadd.f32 %v6871, %v6872
        %v6874 = vsel %vm6805, %v6800, 0.0
        %v6875 = vadd.f32 %v6873, %v6874
        %v6876 = vsel %vm6805, %v6801, 0.0
        %v6877 = vadd.f32 %v6875, %v6876
        %v6878 = vsel %vm6805, %v6802, 0.0
        %v6879 = vadd.f32 %v6877, %v6878
        %v6880 = vsel %vm6805, %v6803, 0.0
        %v6881 = vadd.f32 %v6879, %v6880
        %v6882 = vsel %vm6805, %v6804, 0.0
        %v6883 = vadd.f32 %v6881, %v6882
        %v6884 = vrot.slane %v6883, 4
        %v6885 = vadd.f32 %v6883, %v6884
        %v6886 = vrot.slane %v6885, 2
        %v6887 = vadd.f32 %v6885, %v6886
        %v6888 = vrot.slane %v6887, 1
        %v6889 = vadd.f32 %v6887, %v6888
        %6894 = vrot.lane.b32.xlu0 %v6826, 127
        %v6895 = vpop.permute.xlu0 %6894
        %6896 = vrot.lane.b32.xlu0 %v6847, 127
        %v6897 = vpop.permute.xlu0 %6896
        %6898 = vrot.lane.b32.xlu0 %v6868, 127
        %v6899 = vpop.permute.xlu0 %6898
        %6900 = vrot.lane.b32.xlu0 %v6889, 127
        %v6901 = vpop.permute.xlu0 %6900
        %v6906 = vadd.f32 %v6257, %v6895
        %v6907 = vadd.f32 %v6258, %v6897
        %v6908 = vadd.f32 %v6259, %v6899
        %v6909 = vadd.f32 %v6260, %v6901
        %6910 = vset.pattern.permute.xlu0 1
        %6911 = vperm.xlu0 %6910, %v6032
        %v6912 = vpop.permute.xlu0 %6911
        %6914 = vset.pattern.permute.xlu0 1
        %6915 = vperm.xlu0 %6914, %v6033
        %v6916 = vpop.permute.xlu0 %6915
        %6918 = vset.pattern.permute.xlu0 1
        %6919 = vperm.xlu0 %6918, %v6034
        %v6920 = vpop.permute.xlu0 %6919
        %6922 = vset.pattern.permute.xlu0 1
        %6923 = vperm.xlu0 %6922, %v6035
        %v6924 = vpop.permute.xlu0 %6923
        %6926 = vset.pattern.permute.xlu0 1
        %6927 = vperm.xlu0 %6926, %v6036
        %v6928 = vpop.permute.xlu0 %6927
        %6930 = vset.pattern.permute.xlu0 1
        %6931 = vperm.xlu0 %6930, %v6037
        %v6932 = vpop.permute.xlu0 %6931
        %6934 = vset.pattern.permute.xlu0 1
        %6935 = vperm.xlu0 %6934, %v6038
        %v6936 = vpop.permute.xlu0 %6935
        %6938 = vset.pattern.permute.xlu0 1
        %6939 = vperm.xlu0 %6938, %v6039
        %v6940 = vpop.permute.xlu0 %6939
        %v6942 = vmul.f32 %v6069, %v6912
        %v6943 = vmul.f32 %v6070, %v6916
        %v6944 = vmul.f32 %v6071, %v6920
        %v6945 = vmul.f32 %v6072, %v6924
        %v6946 = vmul.f32 %v6073, %v6928
        %v6947 = vmul.f32 %v6074, %v6932
        %v6948 = vmul.f32 %v6075, %v6936
        %v6949 = vmul.f32 %v6076, %v6940
        %v6950 = vmul.f32 %v6077, %v6912
        %v6951 = vmul.f32 %v6078, %v6916
        %v6952 = vmul.f32 %v6079, %v6920
        %v6953 = vmul.f32 %v6080, %v6924
        %v6954 = vmul.f32 %v6081, %v6928
        %v6955 = vmul.f32 %v6082, %v6932
        %v6956 = vmul.f32 %v6083, %v6936
        %v6957 = vmul.f32 %v6084, %v6940
        %v6958 = vmul.f32 %v6085, %v6912
        %v6959 = vmul.f32 %v6086, %v6916
        %v6960 = vmul.f32 %v6087, %v6920
        %v6961 = vmul.f32 %v6088, %v6924
        %v6962 = vmul.f32 %v6089, %v6928
        %v6963 = vmul.f32 %v6090, %v6932
        %v6964 = vmul.f32 %v6091, %v6936
        %v6965 = vmul.f32 %v6092, %v6940
        %v6966 = vmul.f32 %v6093, %v6912
        %v6967 = vmul.f32 %v6094, %v6916
        %v6968 = vmul.f32 %v6095, %v6920
        %v6969 = vmul.f32 %v6096, %v6924
        %v6970 = vmul.f32 %v6097, %v6928
        %v6971 = vmul.f32 %v6098, %v6932
        %v6972 = vmul.f32 %v6099, %v6936
        %v6973 = vmul.f32 %v6100, %v6940
        %v6974 = vsel %vm6805, %v6942, 0.0
        %v6975 = vsel %vm6805, %v6943, 0.0
        %v6976 = vadd.f32 %v6974, %v6975
        %v6977 = vsel %vm6805, %v6944, 0.0
        %v6978 = vadd.f32 %v6976, %v6977
        %v6979 = vsel %vm6805, %v6945, 0.0
        %v6980 = vadd.f32 %v6978, %v6979
        %v6981 = vsel %vm6805, %v6946, 0.0
        %v6982 = vadd.f32 %v6980, %v6981
        %v6983 = vsel %vm6805, %v6947, 0.0
        %v6984 = vadd.f32 %v6982, %v6983
        %v6985 = vsel %vm6805, %v6948, 0.0
        %v6986 = vadd.f32 %v6984, %v6985
        %v6987 = vsel %vm6805, %v6949, 0.0
        %v6988 = vadd.f32 %v6986, %v6987
        %v6989 = vrot.slane %v6988, 4
        %v6990 = vadd.f32 %v6988, %v6989
        %v6991 = vrot.slane %v6990, 2
        %v6992 = vadd.f32 %v6990, %v6991
        %v6993 = vrot.slane %v6992, 1
        %v6994 = vadd.f32 %v6992, %v6993
        %v6995 = vsel %vm6805, %v6950, 0.0
        %v6996 = vsel %vm6805, %v6951, 0.0
        %v6997 = vadd.f32 %v6995, %v6996
        %v6998 = vsel %vm6805, %v6952, 0.0
        %v6999 = vadd.f32 %v6997, %v6998
        %v7000 = vsel %vm6805, %v6953, 0.0
        %v7001 = vadd.f32 %v6999, %v7000
        %v7002 = vsel %vm6805, %v6954, 0.0
        %v7003 = vadd.f32 %v7001, %v7002
        %v7004 = vsel %vm6805, %v6955, 0.0
        %v7005 = vadd.f32 %v7003, %v7004
        %v7006 = vsel %vm6805, %v6956, 0.0
        %v7007 = vadd.f32 %v7005, %v7006
        %v7008 = vsel %vm6805, %v6957, 0.0
        %v7009 = vadd.f32 %v7007, %v7008
        %v7010 = vrot.slane %v7009, 4
        %v7011 = vadd.f32 %v7009, %v7010
        %v7012 = vrot.slane %v7011, 2
        %v7013 = vadd.f32 %v7011, %v7012
        %v7014 = vrot.slane %v7013, 1
        %v7015 = vadd.f32 %v7013, %v7014
        %v7016 = vsel %vm6805, %v6958, 0.0
        %v7017 = vsel %vm6805, %v6959, 0.0
        %v7018 = vadd.f32 %v7016, %v7017
        %v7019 = vsel %vm6805, %v6960, 0.0
        %v7020 = vadd.f32 %v7018, %v7019
        %v7021 = vsel %vm6805, %v6961, 0.0
        %v7022 = vadd.f32 %v7020, %v7021
        %v7023 = vsel %vm6805, %v6962, 0.0
        %v7024 = vadd.f32 %v7022, %v7023
        %v7025 = vsel %vm6805, %v6963, 0.0
        %v7026 = vadd.f32 %v7024, %v7025
        %v7027 = vsel %vm6805, %v6964, 0.0
        %v7028 = vadd.f32 %v7026, %v7027
        %v7029 = vsel %vm6805, %v6965, 0.0
        %v7030 = vadd.f32 %v7028, %v7029
        %v7031 = vrot.slane %v7030, 4
        %v7032 = vadd.f32 %v7030, %v7031
        %v7033 = vrot.slane %v7032, 2
        %v7034 = vadd.f32 %v7032, %v7033
        %v7035 = vrot.slane %v7034, 1
        %v7036 = vadd.f32 %v7034, %v7035
        %v7037 = vsel %vm6805, %v6966, 0.0
        %v7038 = vsel %vm6805, %v6967, 0.0
        %v7039 = vadd.f32 %v7037, %v7038
        %v7040 = vsel %vm6805, %v6968, 0.0
        %v7041 = vadd.f32 %v7039, %v7040
        %v7042 = vsel %vm6805, %v6969, 0.0
        %v7043 = vadd.f32 %v7041, %v7042
        %v7044 = vsel %vm6805, %v6970, 0.0
        %v7045 = vadd.f32 %v7043, %v7044
        %v7046 = vsel %vm6805, %v6971, 0.0
        %v7047 = vadd.f32 %v7045, %v7046
        %v7048 = vsel %vm6805, %v6972, 0.0
        %v7049 = vadd.f32 %v7047, %v7048
        %v7050 = vsel %vm6805, %v6973, 0.0
        %v7051 = vadd.f32 %v7049, %v7050
        %v7052 = vrot.slane %v7051, 4
        %v7053 = vadd.f32 %v7051, %v7052
        %v7054 = vrot.slane %v7053, 2
        %v7055 = vadd.f32 %v7053, %v7054
        %v7056 = vrot.slane %v7055, 1
        %v7057 = vadd.f32 %v7055, %v7056
        %7062 = vrot.lane.b32.xlu0 %v6994, 127
        %v7063 = vpop.permute.xlu0 %7062
        %7064 = vrot.lane.b32.xlu0 %v7015, 127
        %v7065 = vpop.permute.xlu0 %7064
        %7066 = vrot.lane.b32.xlu0 %v7036, 127
        %v7067 = vpop.permute.xlu0 %7066
        %7068 = vrot.lane.b32.xlu0 %v7057, 127
        %v7069 = vpop.permute.xlu0 %7068
        %v7074 = vadd.f32 %v6417, %v7063
        %v7075 = vadd.f32 %v6418, %v7065
        %v7076 = vadd.f32 %v6419, %v7067
        %v7077 = vadd.f32 %v6420, %v7069
        %7078 = vset.pattern.permute.xlu0 1
        %7079 = vperm.xlu0 %7078, %v6040
        %v7080 = vpop.permute.xlu0 %7079
        %7082 = vset.pattern.permute.xlu0 1
        %7083 = vperm.xlu0 %7082, %v6041
        %v7084 = vpop.permute.xlu0 %7083
        %7086 = vset.pattern.permute.xlu0 1
        %7087 = vperm.xlu0 %7086, %v6042
        %v7088 = vpop.permute.xlu0 %7087
        %7090 = vset.pattern.permute.xlu0 1
        %7091 = vperm.xlu0 %7090, %v6043
        %v7092 = vpop.permute.xlu0 %7091
        %7094 = vset.pattern.permute.xlu0 1
        %7095 = vperm.xlu0 %7094, %v6044
        %v7096 = vpop.permute.xlu0 %7095
        %7098 = vset.pattern.permute.xlu0 1
        %7099 = vperm.xlu0 %7098, %v6045
        %v7100 = vpop.permute.xlu0 %7099
        %7102 = vset.pattern.permute.xlu0 1
        %7103 = vperm.xlu0 %7102, %v6046
        %v7104 = vpop.permute.xlu0 %7103
        %7106 = vset.pattern.permute.xlu0 1
        %7107 = vperm.xlu0 %7106, %v6047
        %v7108 = vpop.permute.xlu0 %7107
        %v7110 = vmul.f32 %v6069, %v7080
        %v7111 = vmul.f32 %v6070, %v7084
        %v7112 = vmul.f32 %v6071, %v7088
        %v7113 = vmul.f32 %v6072, %v7092
        %v7114 = vmul.f32 %v6073, %v7096
        %v7115 = vmul.f32 %v6074, %v7100
        %v7116 = vmul.f32 %v6075, %v7104
        %v7117 = vmul.f32 %v6076, %v7108
        %v7118 = vmul.f32 %v6077, %v7080
        %v7119 = vmul.f32 %v6078, %v7084
        %v7120 = vmul.f32 %v6079, %v7088
        %v7121 = vmul.f32 %v6080, %v7092
        %v7122 = vmul.f32 %v6081, %v7096
        %v7123 = vmul.f32 %v6082, %v7100
        %v7124 = vmul.f32 %v6083, %v7104
        %v7125 = vmul.f32 %v6084, %v7108
        %v7126 = vmul.f32 %v6085, %v7080
        %v7127 = vmul.f32 %v6086, %v7084
        %v7128 = vmul.f32 %v6087, %v7088
        %v7129 = vmul.f32 %v6088, %v7092
        %v7130 = vmul.f32 %v6089, %v7096
        %v7131 = vmul.f32 %v6090, %v7100
        %v7132 = vmul.f32 %v6091, %v7104
        %v7133 = vmul.f32 %v6092, %v7108
        %v7134 = vmul.f32 %v6093, %v7080
        %v7135 = vmul.f32 %v6094, %v7084
        %v7136 = vmul.f32 %v6095, %v7088
        %v7137 = vmul.f32 %v6096, %v7092
        %v7138 = vmul.f32 %v6097, %v7096
        %v7139 = vmul.f32 %v6098, %v7100
        %v7140 = vmul.f32 %v6099, %v7104
        %v7141 = vmul.f32 %v6100, %v7108
        %v7142 = vsel %vm6805, %v7110, 0.0
        %v7143 = vsel %vm6805, %v7111, 0.0
        %v7144 = vadd.f32 %v7142, %v7143
        %v7145 = vsel %vm6805, %v7112, 0.0
        %v7146 = vadd.f32 %v7144, %v7145
        %v7147 = vsel %vm6805, %v7113, 0.0
        %v7148 = vadd.f32 %v7146, %v7147
        %v7149 = vsel %vm6805, %v7114, 0.0
        %v7150 = vadd.f32 %v7148, %v7149
        %v7151 = vsel %vm6805, %v7115, 0.0
        %v7152 = vadd.f32 %v7150, %v7151
        %v7153 = vsel %vm6805, %v7116, 0.0
        %v7154 = vadd.f32 %v7152, %v7153
        %v7155 = vsel %vm6805, %v7117, 0.0
        %v7156 = vadd.f32 %v7154, %v7155
        %v7157 = vrot.slane %v7156, 4
        %v7158 = vadd.f32 %v7156, %v7157
        %v7159 = vrot.slane %v7158, 2
        %v7160 = vadd.f32 %v7158, %v7159
        %v7161 = vrot.slane %v7160, 1
        %v7162 = vadd.f32 %v7160, %v7161
        %v7163 = vsel %vm6805, %v7118, 0.0
        %v7164 = vsel %vm6805, %v7119, 0.0
        %v7165 = vadd.f32 %v7163, %v7164
        %v7166 = vsel %vm6805, %v7120, 0.0
        %v7167 = vadd.f32 %v7165, %v7166
        %v7168 = vsel %vm6805, %v7121, 0.0
        %v7169 = vadd.f32 %v7167, %v7168
        %v7170 = vsel %vm6805, %v7122, 0.0
        %v7171 = vadd.f32 %v7169, %v7170
        %v7172 = vsel %vm6805, %v7123, 0.0
        %v7173 = vadd.f32 %v7171, %v7172
        %v7174 = vsel %vm6805, %v7124, 0.0
        %v7175 = vadd.f32 %v7173, %v7174
        %v7176 = vsel %vm6805, %v7125, 0.0
        %v7177 = vadd.f32 %v7175, %v7176
        %v7178 = vrot.slane %v7177, 4
        %v7179 = vadd.f32 %v7177, %v7178
        %v7180 = vrot.slane %v7179, 2
        %v7181 = vadd.f32 %v7179, %v7180
        %v7182 = vrot.slane %v7181, 1
        %v7183 = vadd.f32 %v7181, %v7182
        %v7184 = vsel %vm6805, %v7126, 0.0
        %v7185 = vsel %vm6805, %v7127, 0.0
        %v7186 = vadd.f32 %v7184, %v7185
        %v7187 = vsel %vm6805, %v7128, 0.0
        %v7188 = vadd.f32 %v7186, %v7187
        %v7189 = vsel %vm6805, %v7129, 0.0
        %v7190 = vadd.f32 %v7188, %v7189
        %v7191 = vsel %vm6805, %v7130, 0.0
        %v7192 = vadd.f32 %v7190, %v7191
        %v7193 = vsel %vm6805, %v7131, 0.0
        %v7194 = vadd.f32 %v7192, %v7193
        %v7195 = vsel %vm6805, %v7132, 0.0
        %v7196 = vadd.f32 %v7194, %v7195
        %v7197 = vsel %vm6805, %v7133, 0.0
        %v7198 = vadd.f32 %v7196, %v7197
        %v7199 = vrot.slane %v7198, 4
        %v7200 = vadd.f32 %v7198, %v7199
        %v7201 = vrot.slane %v7200, 2
        %v7202 = vadd.f32 %v7200, %v7201
        %v7203 = vrot.slane %v7202, 1
        %v7204 = vadd.f32 %v7202, %v7203
        %v7205 = vsel %vm6805, %v7134, 0.0
        %v7206 = vsel %vm6805, %v7135, 0.0
        %v7207 = vadd.f32 %v7205, %v7206
        %v7208 = vsel %vm6805, %v7136, 0.0
        %v7209 = vadd.f32 %v7207, %v7208
        %v7210 = vsel %vm6805, %v7137, 0.0
        %v7211 = vadd.f32 %v7209, %v7210
        %v7212 = vsel %vm6805, %v7138, 0.0
        %v7213 = vadd.f32 %v7211, %v7212
        %v7214 = vsel %vm6805, %v7139, 0.0
        %v7215 = vadd.f32 %v7213, %v7214
        %v7216 = vsel %vm6805, %v7140, 0.0
        %v7217 = vadd.f32 %v7215, %v7216
        %v7218 = vsel %vm6805, %v7141, 0.0
        %v7219 = vadd.f32 %v7217, %v7218
        %v7220 = vrot.slane %v7219, 4
        %v7221 = vadd.f32 %v7219, %v7220
        %v7222 = vrot.slane %v7221, 2
        %v7223 = vadd.f32 %v7221, %v7222
        %v7224 = vrot.slane %v7223, 1
        %v7225 = vadd.f32 %v7223, %v7224
        %7230 = vrot.lane.b32.xlu0 %v7162, 127
        %v7231 = vpop.permute.xlu0 %7230
        %7232 = vrot.lane.b32.xlu0 %v7183, 127
        %v7233 = vpop.permute.xlu0 %7232
        %7234 = vrot.lane.b32.xlu0 %v7204, 127
        %v7235 = vpop.permute.xlu0 %7234
        %7236 = vrot.lane.b32.xlu0 %v7225, 127
        %v7237 = vpop.permute.xlu0 %7236
        %v7242 = vadd.f32 %v6577, %v7231
        %v7243 = vadd.f32 %v6578, %v7233
        %v7244 = vadd.f32 %v6579, %v7235
        %v7245 = vadd.f32 %v6580, %v7237
        %7246 = vset.pattern.permute.xlu0 1
        %7247 = vperm.xlu0 %7246, %v6048
        %v7248 = vpop.permute.xlu0 %7247
        %7250 = vset.pattern.permute.xlu0 1
        %7251 = vperm.xlu0 %7250, %v6049
        %v7252 = vpop.permute.xlu0 %7251
        %7254 = vset.pattern.permute.xlu0 1
        %7255 = vperm.xlu0 %7254, %v6050
        %v7256 = vpop.permute.xlu0 %7255
        %7258 = vset.pattern.permute.xlu0 1
        %7259 = vperm.xlu0 %7258, %v6051
        %v7260 = vpop.permute.xlu0 %7259
        %7262 = vset.pattern.permute.xlu0 1
        %7263 = vperm.xlu0 %7262, %v6052
        %v7264 = vpop.permute.xlu0 %7263
        %7266 = vset.pattern.permute.xlu0 1
        %7267 = vperm.xlu0 %7266, %v6053
        %v7268 = vpop.permute.xlu0 %7267
        %7270 = vset.pattern.permute.xlu0 1
        %7271 = vperm.xlu0 %7270, %v6054
        %v7272 = vpop.permute.xlu0 %7271
        %7274 = vset.pattern.permute.xlu0 1
        %7275 = vperm.xlu0 %7274, %v6055
        %v7276 = vpop.permute.xlu0 %7275
        %v7278 = vmul.f32 %v6069, %v7248
        %v7279 = vmul.f32 %v6070, %v7252
        %v7280 = vmul.f32 %v6071, %v7256
        %v7281 = vmul.f32 %v6072, %v7260
        %v7282 = vmul.f32 %v6073, %v7264
        %v7283 = vmul.f32 %v6074, %v7268
        %v7284 = vmul.f32 %v6075, %v7272
        %v7285 = vmul.f32 %v6076, %v7276
        %v7286 = vmul.f32 %v6077, %v7248
        %v7287 = vmul.f32 %v6078, %v7252
        %v7288 = vmul.f32 %v6079, %v7256
        %v7289 = vmul.f32 %v6080, %v7260
        %v7290 = vmul.f32 %v6081, %v7264
        %v7291 = vmul.f32 %v6082, %v7268
        %v7292 = vmul.f32 %v6083, %v7272
        %v7293 = vmul.f32 %v6084, %v7276
        %v7294 = vmul.f32 %v6085, %v7248
        %v7295 = vmul.f32 %v6086, %v7252
        %v7296 = vmul.f32 %v6087, %v7256
        %v7297 = vmul.f32 %v6088, %v7260
        %v7298 = vmul.f32 %v6089, %v7264
        %v7299 = vmul.f32 %v6090, %v7268
        %v7300 = vmul.f32 %v6091, %v7272
        %v7301 = vmul.f32 %v6092, %v7276
        %v7302 = vmul.f32 %v6093, %v7248
        %v7303 = vmul.f32 %v6094, %v7252
        %v7304 = vmul.f32 %v6095, %v7256
        %v7305 = vmul.f32 %v6096, %v7260
        %v7306 = vmul.f32 %v6097, %v7264
        %v7307 = vmul.f32 %v6098, %v7268
        %v7308 = vmul.f32 %v6099, %v7272
        %v7309 = vmul.f32 %v6100, %v7276
        %v7310 = vsel %vm6805, %v7278, 0.0
        %v7311 = vsel %vm6805, %v7279, 0.0
        %v7312 = vadd.f32 %v7310, %v7311
        %v7313 = vsel %vm6805, %v7280, 0.0
        %v7314 = vadd.f32 %v7312, %v7313
        %v7315 = vsel %vm6805, %v7281, 0.0
        %v7316 = vadd.f32 %v7314, %v7315
        %v7317 = vsel %vm6805, %v7282, 0.0
        %v7318 = vadd.f32 %v7316, %v7317
        %v7319 = vsel %vm6805, %v7283, 0.0
        %v7320 = vadd.f32 %v7318, %v7319
        %v7321 = vsel %vm6805, %v7284, 0.0
        %v7322 = vadd.f32 %v7320, %v7321
        %v7323 = vsel %vm6805, %v7285, 0.0
        %v7324 = vadd.f32 %v7322, %v7323
        %v7325 = vrot.slane %v7324, 4
        %v7326 = vadd.f32 %v7324, %v7325
        %v7327 = vrot.slane %v7326, 2
        %v7328 = vadd.f32 %v7326, %v7327
        %v7329 = vrot.slane %v7328, 1
        %v7330 = vadd.f32 %v7328, %v7329
        %v7331 = vsel %vm6805, %v7286, 0.0
        %v7332 = vsel %vm6805, %v7287, 0.0
        %v7333 = vadd.f32 %v7331, %v7332
        %v7334 = vsel %vm6805, %v7288, 0.0
        %v7335 = vadd.f32 %v7333, %v7334
        %v7336 = vsel %vm6805, %v7289, 0.0
        %v7337 = vadd.f32 %v7335, %v7336
        %v7338 = vsel %vm6805, %v7290, 0.0
        %v7339 = vadd.f32 %v7337, %v7338
        %v7340 = vsel %vm6805, %v7291, 0.0
        %v7341 = vadd.f32 %v7339, %v7340
        %v7342 = vsel %vm6805, %v7292, 0.0
        %v7343 = vadd.f32 %v7341, %v7342
        %v7344 = vsel %vm6805, %v7293, 0.0
        %v7345 = vadd.f32 %v7343, %v7344
        %v7346 = vrot.slane %v7345, 4
        %v7347 = vadd.f32 %v7345, %v7346
        %v7348 = vrot.slane %v7347, 2
        %v7349 = vadd.f32 %v7347, %v7348
        %v7350 = vrot.slane %v7349, 1
        %v7351 = vadd.f32 %v7349, %v7350
        %v7352 = vsel %vm6805, %v7294, 0.0
        %v7353 = vsel %vm6805, %v7295, 0.0
        %v7354 = vadd.f32 %v7352, %v7353
        %v7355 = vsel %vm6805, %v7296, 0.0
        %v7356 = vadd.f32 %v7354, %v7355
        %v7357 = vsel %vm6805, %v7297, 0.0
        %v7358 = vadd.f32 %v7356, %v7357
        %v7359 = vsel %vm6805, %v7298, 0.0
        %v7360 = vadd.f32 %v7358, %v7359
        %v7361 = vsel %vm6805, %v7299, 0.0
        %v7362 = vadd.f32 %v7360, %v7361
        %v7363 = vsel %vm6805, %v7300, 0.0
        %v7364 = vadd.f32 %v7362, %v7363
        %v7365 = vsel %vm6805, %v7301, 0.0
        %v7366 = vadd.f32 %v7364, %v7365
        %v7367 = vrot.slane %v7366, 4
        %v7368 = vadd.f32 %v7366, %v7367
        %v7369 = vrot.slane %v7368, 2
        %v7370 = vadd.f32 %v7368, %v7369
        %v7371 = vrot.slane %v7370, 1
        %v7372 = vadd.f32 %v7370, %v7371
        %v7373 = vsel %vm6805, %v7302, 0.0
        %v7374 = vsel %vm6805, %v7303, 0.0
        %v7375 = vadd.f32 %v7373, %v7374
        %v7376 = vsel %vm6805, %v7304, 0.0
        %v7377 = vadd.f32 %v7375, %v7376
        %v7378 = vsel %vm6805, %v7305, 0.0
        %v7379 = vadd.f32 %v7377, %v7378
        %v7380 = vsel %vm6805, %v7306, 0.0
        %v7381 = vadd.f32 %v7379, %v7380
        %v7382 = vsel %vm6805, %v7307, 0.0
        %v7383 = vadd.f32 %v7381, %v7382
        %v7384 = vsel %vm6805, %v7308, 0.0
        %v7385 = vadd.f32 %v7383, %v7384
        %v7386 = vsel %vm6805, %v7309, 0.0
        %v7387 = vadd.f32 %v7385, %v7386
        %v7388 = vrot.slane %v7387, 4
        %v7389 = vadd.f32 %v7387, %v7388
        %v7390 = vrot.slane %v7389, 2
        %v7391 = vadd.f32 %v7389, %v7390
        %v7392 = vrot.slane %v7391, 1
        %v7393 = vadd.f32 %v7391, %v7392
        %7398 = vrot.lane.b32.xlu0 %v7330, 127
        %v7399 = vpop.permute.xlu0 %7398
        %7400 = vrot.lane.b32.xlu0 %v7351, 127
        %v7401 = vpop.permute.xlu0 %7400
        %7402 = vrot.lane.b32.xlu0 %v7372, 127
        %v7403 = vpop.permute.xlu0 %7402
        %7404 = vrot.lane.b32.xlu0 %v7393, 127
        %v7405 = vpop.permute.xlu0 %7404
        %v7410 = vadd.f32 %v6737, %v7399
        %v7411 = vadd.f32 %v6738, %v7401
        %v7412 = vadd.f32 %v6739, %v7403
        %v7413 = vadd.f32 %v6740, %v7405
        %7414 = vset.pattern.permute.xlu0 2
        %7415 = vperm.xlu0 %7414, %v6024
        %v7416 = vpop.permute.xlu0 %7415
        %7418 = vset.pattern.permute.xlu0 2
        %7419 = vperm.xlu0 %7418, %v6025
        %v7420 = vpop.permute.xlu0 %7419
        %7422 = vset.pattern.permute.xlu0 2
        %7423 = vperm.xlu0 %7422, %v6026
        %v7424 = vpop.permute.xlu0 %7423
        %7426 = vset.pattern.permute.xlu0 2
        %7427 = vperm.xlu0 %7426, %v6027
        %v7428 = vpop.permute.xlu0 %7427
        %7430 = vset.pattern.permute.xlu0 2
        %7431 = vperm.xlu0 %7430, %v6028
        %v7432 = vpop.permute.xlu0 %7431
        %7434 = vset.pattern.permute.xlu0 2
        %7435 = vperm.xlu0 %7434, %v6029
        %v7436 = vpop.permute.xlu0 %7435
        %7438 = vset.pattern.permute.xlu0 2
        %7439 = vperm.xlu0 %7438, %v6030
        %v7440 = vpop.permute.xlu0 %7439
        %7442 = vset.pattern.permute.xlu0 2
        %7443 = vperm.xlu0 %7442, %v6031
        %v7444 = vpop.permute.xlu0 %7443
        %v7446 = vmul.f32 %v6069, %v7416
        %v7447 = vmul.f32 %v6070, %v7420
        %v7448 = vmul.f32 %v6071, %v7424
        %v7449 = vmul.f32 %v6072, %v7428
        %v7450 = vmul.f32 %v6073, %v7432
        %v7451 = vmul.f32 %v6074, %v7436
        %v7452 = vmul.f32 %v6075, %v7440
        %v7453 = vmul.f32 %v6076, %v7444
        %v7454 = vmul.f32 %v6077, %v7416
        %v7455 = vmul.f32 %v6078, %v7420
        %v7456 = vmul.f32 %v6079, %v7424
        %v7457 = vmul.f32 %v6080, %v7428
        %v7458 = vmul.f32 %v6081, %v7432
        %v7459 = vmul.f32 %v6082, %v7436
        %v7460 = vmul.f32 %v6083, %v7440
        %v7461 = vmul.f32 %v6084, %v7444
        %v7462 = vmul.f32 %v6085, %v7416
        %v7463 = vmul.f32 %v6086, %v7420
        %v7464 = vmul.f32 %v6087, %v7424
        %v7465 = vmul.f32 %v6088, %v7428
        %v7466 = vmul.f32 %v6089, %v7432
        %v7467 = vmul.f32 %v6090, %v7436
        %v7468 = vmul.f32 %v6091, %v7440
        %v7469 = vmul.f32 %v6092, %v7444
        %v7470 = vmul.f32 %v6093, %v7416
        %v7471 = vmul.f32 %v6094, %v7420
        %v7472 = vmul.f32 %v6095, %v7424
        %v7473 = vmul.f32 %v6096, %v7428
        %v7474 = vmul.f32 %v6097, %v7432
        %v7475 = vmul.f32 %v6098, %v7436
        %v7476 = vmul.f32 %v6099, %v7440
        %v7477 = vmul.f32 %v6100, %v7444
        %vm7478 = vcmask 146448
        %v7479 = vsel %vm7478, %v7446, 0.0
        %v7480 = vsel %vm7478, %v7447, 0.0
        %v7481 = vadd.f32 %v7479, %v7480
        %v7482 = vsel %vm7478, %v7448, 0.0
        %v7483 = vadd.f32 %v7481, %v7482
        %v7484 = vsel %vm7478, %v7449, 0.0
        %v7485 = vadd.f32 %v7483, %v7484
        %v7486 = vsel %vm7478, %v7450, 0.0
        %v7487 = vadd.f32 %v7485, %v7486
        %v7488 = vsel %vm7478, %v7451, 0.0
        %v7489 = vadd.f32 %v7487, %v7488
        %v7490 = vsel %vm7478, %v7452, 0.0
        %v7491 = vadd.f32 %v7489, %v7490
        %v7492 = vsel %vm7478, %v7453, 0.0
        %v7493 = vadd.f32 %v7491, %v7492
        %v7494 = vrot.slane %v7493, 4
        %v7495 = vadd.f32 %v7493, %v7494
        %v7496 = vrot.slane %v7495, 2
        %v7497 = vadd.f32 %v7495, %v7496
        %v7498 = vrot.slane %v7497, 1
        %v7499 = vadd.f32 %v7497, %v7498
        %v7500 = vsel %vm7478, %v7454, 0.0
        %v7501 = vsel %vm7478, %v7455, 0.0
        %v7502 = vadd.f32 %v7500, %v7501
        %v7503 = vsel %vm7478, %v7456, 0.0
        %v7504 = vadd.f32 %v7502, %v7503
        %v7505 = vsel %vm7478, %v7457, 0.0
        %v7506 = vadd.f32 %v7504, %v7505
        %v7507 = vsel %vm7478, %v7458, 0.0
        %v7508 = vadd.f32 %v7506, %v7507
        %v7509 = vsel %vm7478, %v7459, 0.0
        %v7510 = vadd.f32 %v7508, %v7509
        %v7511 = vsel %vm7478, %v7460, 0.0
        %v7512 = vadd.f32 %v7510, %v7511
        %v7513 = vsel %vm7478, %v7461, 0.0
        %v7514 = vadd.f32 %v7512, %v7513
        %v7515 = vrot.slane %v7514, 4
        %v7516 = vadd.f32 %v7514, %v7515
        %v7517 = vrot.slane %v7516, 2
        %v7518 = vadd.f32 %v7516, %v7517
        %v7519 = vrot.slane %v7518, 1
        %v7520 = vadd.f32 %v7518, %v7519
        %v7521 = vsel %vm7478, %v7462, 0.0
        %v7522 = vsel %vm7478, %v7463, 0.0
        %v7523 = vadd.f32 %v7521, %v7522
        %v7524 = vsel %vm7478, %v7464, 0.0
        %v7525 = vadd.f32 %v7523, %v7524
        %v7526 = vsel %vm7478, %v7465, 0.0
        %v7527 = vadd.f32 %v7525, %v7526
        %v7528 = vsel %vm7478, %v7466, 0.0
        %v7529 = vadd.f32 %v7527, %v7528
        %v7530 = vsel %vm7478, %v7467, 0.0
        %v7531 = vadd.f32 %v7529, %v7530
        %v7532 = vsel %vm7478, %v7468, 0.0
        %v7533 = vadd.f32 %v7531, %v7532
        %v7534 = vsel %vm7478, %v7469, 0.0
        %v7535 = vadd.f32 %v7533, %v7534
        %v7536 = vrot.slane %v7535, 4
        %v7537 = vadd.f32 %v7535, %v7536
        %v7538 = vrot.slane %v7537, 2
        %v7539 = vadd.f32 %v7537, %v7538
        %v7540 = vrot.slane %v7539, 1
        %v7541 = vadd.f32 %v7539, %v7540
        %v7542 = vsel %vm7478, %v7470, 0.0
        %v7543 = vsel %vm7478, %v7471, 0.0
        %v7544 = vadd.f32 %v7542, %v7543
        %v7545 = vsel %vm7478, %v7472, 0.0
        %v7546 = vadd.f32 %v7544, %v7545
        %v7547 = vsel %vm7478, %v7473, 0.0
        %v7548 = vadd.f32 %v7546, %v7547
        %v7549 = vsel %vm7478, %v7474, 0.0
        %v7550 = vadd.f32 %v7548, %v7549
        %v7551 = vsel %vm7478, %v7475, 0.0
        %v7552 = vadd.f32 %v7550, %v7551
        %v7553 = vsel %vm7478, %v7476, 0.0
        %v7554 = vadd.f32 %v7552, %v7553
        %v7555 = vsel %vm7478, %v7477, 0.0
        %v7556 = vadd.f32 %v7554, %v7555
        %v7557 = vrot.slane %v7556, 4
        %v7558 = vadd.f32 %v7556, %v7557
        %v7559 = vrot.slane %v7558, 2
        %v7560 = vadd.f32 %v7558, %v7559
        %v7561 = vrot.slane %v7560, 1
        %v7562 = vadd.f32 %v7560, %v7561
        %7567 = vrot.lane.b32.xlu0 %v7499, 126
        %v7568 = vpop.permute.xlu0 %7567
        %7569 = vrot.lane.b32.xlu0 %v7520, 126
        %v7570 = vpop.permute.xlu0 %7569
        %7571 = vrot.lane.b32.xlu0 %v7541, 126
        %v7572 = vpop.permute.xlu0 %7571
        %7573 = vrot.lane.b32.xlu0 %v7562, 126
        %v7574 = vpop.permute.xlu0 %7573
        %v7579 = vadd.f32 %v6906, %v7568
        %v7580 = vadd.f32 %v6907, %v7570
        %v7581 = vadd.f32 %v6908, %v7572
        %v7582 = vadd.f32 %v6909, %v7574
        %7583 = vset.pattern.permute.xlu0 2
        %7584 = vperm.xlu0 %7583, %v6032
        %v7585 = vpop.permute.xlu0 %7584
        %7587 = vset.pattern.permute.xlu0 2
        %7588 = vperm.xlu0 %7587, %v6033
        %v7589 = vpop.permute.xlu0 %7588
        %7591 = vset.pattern.permute.xlu0 2
        %7592 = vperm.xlu0 %7591, %v6034
        %v7593 = vpop.permute.xlu0 %7592
        %7595 = vset.pattern.permute.xlu0 2
        %7596 = vperm.xlu0 %7595, %v6035
        %v7597 = vpop.permute.xlu0 %7596
        %7599 = vset.pattern.permute.xlu0 2
        %7600 = vperm.xlu0 %7599, %v6036
        %v7601 = vpop.permute.xlu0 %7600
        %7603 = vset.pattern.permute.xlu0 2
        %7604 = vperm.xlu0 %7603, %v6037
        %v7605 = vpop.permute.xlu0 %7604
        %7607 = vset.pattern.permute.xlu0 2
        %7608 = vperm.xlu0 %7607, %v6038
        %v7609 = vpop.permute.xlu0 %7608
        %7611 = vset.pattern.permute.xlu0 2
        %7612 = vperm.xlu0 %7611, %v6039
        %v7613 = vpop.permute.xlu0 %7612
        %v7615 = vmul.f32 %v6069, %v7585
        %v7616 = vmul.f32 %v6070, %v7589
        %v7617 = vmul.f32 %v6071, %v7593
        %v7618 = vmul.f32 %v6072, %v7597
        %v7619 = vmul.f32 %v6073, %v7601
        %v7620 = vmul.f32 %v6074, %v7605
        %v7621 = vmul.f32 %v6075, %v7609
        %v7622 = vmul.f32 %v6076, %v7613
        %v7623 = vmul.f32 %v6077, %v7585
        %v7624 = vmul.f32 %v6078, %v7589
        %v7625 = vmul.f32 %v6079, %v7593
        %v7626 = vmul.f32 %v6080, %v7597
        %v7627 = vmul.f32 %v6081, %v7601
        %v7628 = vmul.f32 %v6082, %v7605
        %v7629 = vmul.f32 %v6083, %v7609
        %v7630 = vmul.f32 %v6084, %v7613
        %v7631 = vmul.f32 %v6085, %v7585
        %v7632 = vmul.f32 %v6086, %v7589
        %v7633 = vmul.f32 %v6087, %v7593
        %v7634 = vmul.f32 %v6088, %v7597
        %v7635 = vmul.f32 %v6089, %v7601
        %v7636 = vmul.f32 %v6090, %v7605
        %v7637 = vmul.f32 %v6091, %v7609
        %v7638 = vmul.f32 %v6092, %v7613
        %v7639 = vmul.f32 %v6093, %v7585
        %v7640 = vmul.f32 %v6094, %v7589
        %v7641 = vmul.f32 %v6095, %v7593
        %v7642 = vmul.f32 %v6096, %v7597
        %v7643 = vmul.f32 %v6097, %v7601
        %v7644 = vmul.f32 %v6098, %v7605
        %v7645 = vmul.f32 %v6099, %v7609
        %v7646 = vmul.f32 %v6100, %v7613
        %v7647 = vsel %vm7478, %v7615, 0.0
        %v7648 = vsel %vm7478, %v7616, 0.0
        %v7649 = vadd.f32 %v7647, %v7648
        %v7650 = vsel %vm7478, %v7617, 0.0
        %v7651 = vadd.f32 %v7649, %v7650
        %v7652 = vsel %vm7478, %v7618, 0.0
        %v7653 = vadd.f32 %v7651, %v7652
        %v7654 = vsel %vm7478, %v7619, 0.0
        %v7655 = vadd.f32 %v7653, %v7654
        %v7656 = vsel %vm7478, %v7620, 0.0
        %v7657 = vadd.f32 %v7655, %v7656
        %v7658 = vsel %vm7478, %v7621, 0.0
        %v7659 = vadd.f32 %v7657, %v7658
        %v7660 = vsel %vm7478, %v7622, 0.0
        %v7661 = vadd.f32 %v7659, %v7660
        %v7662 = vrot.slane %v7661, 4
        %v7663 = vadd.f32 %v7661, %v7662
        %v7664 = vrot.slane %v7663, 2
        %v7665 = vadd.f32 %v7663, %v7664
        %v7666 = vrot.slane %v7665, 1
        %v7667 = vadd.f32 %v7665, %v7666
        %v7668 = vsel %vm7478, %v7623, 0.0
        %v7669 = vsel %vm7478, %v7624, 0.0
        %v7670 = vadd.f32 %v7668, %v7669
        %v7671 = vsel %vm7478, %v7625, 0.0
        %v7672 = vadd.f32 %v7670, %v7671
        %v7673 = vsel %vm7478, %v7626, 0.0
        %v7674 = vadd.f32 %v7672, %v7673
        %v7675 = vsel %vm7478, %v7627, 0.0
        %v7676 = vadd.f32 %v7674, %v7675
        %v7677 = vsel %vm7478, %v7628, 0.0
        %v7678 = vadd.f32 %v7676, %v7677
        %v7679 = vsel %vm7478, %v7629, 0.0
        %v7680 = vadd.f32 %v7678, %v7679
        %v7681 = vsel %vm7478, %v7630, 0.0
        %v7682 = vadd.f32 %v7680, %v7681
        %v7683 = vrot.slane %v7682, 4
        %v7684 = vadd.f32 %v7682, %v7683
        %v7685 = vrot.slane %v7684, 2
        %v7686 = vadd.f32 %v7684, %v7685
        %v7687 = vrot.slane %v7686, 1
        %v7688 = vadd.f32 %v7686, %v7687
        %v7689 = vsel %vm7478, %v7631, 0.0
        %v7690 = vsel %vm7478, %v7632, 0.0
        %v7691 = vadd.f32 %v7689, %v7690
        %v7692 = vsel %vm7478, %v7633, 0.0
        %v7693 = vadd.f32 %v7691, %v7692
        %v7694 = vsel %vm7478, %v7634, 0.0
        %v7695 = vadd.f32 %v7693, %v7694
        %v7696 = vsel %vm7478, %v7635, 0.0
        %v7697 = vadd.f32 %v7695, %v7696
        %v7698 = vsel %vm7478, %v7636, 0.0
        %v7699 = vadd.f32 %v7697, %v7698
        %v7700 = vsel %vm7478, %v7637, 0.0
        %v7701 = vadd.f32 %v7699, %v7700
        %v7702 = vsel %vm7478, %v7638, 0.0
        %v7703 = vadd.f32 %v7701, %v7702
        %v7704 = vrot.slane %v7703, 4
        %v7705 = vadd.f32 %v7703, %v7704
        %v7706 = vrot.slane %v7705, 2
        %v7707 = vadd.f32 %v7705, %v7706
        %v7708 = vrot.slane %v7707, 1
        %v7709 = vadd.f32 %v7707, %v7708
        %v7710 = vsel %vm7478, %v7639, 0.0
        %v7711 = vsel %vm7478, %v7640, 0.0
        %v7712 = vadd.f32 %v7710, %v7711
        %v7713 = vsel %vm7478, %v7641, 0.0
        %v7714 = vadd.f32 %v7712, %v7713
        %v7715 = vsel %vm7478, %v7642, 0.0
        %v7716 = vadd.f32 %v7714, %v7715
        %v7717 = vsel %vm7478, %v7643, 0.0
        %v7718 = vadd.f32 %v7716, %v7717
        %v7719 = vsel %vm7478, %v7644, 0.0
        %v7720 = vadd.f32 %v7718, %v7719
        %v7721 = vsel %vm7478, %v7645, 0.0
        %v7722 = vadd.f32 %v7720, %v7721
        %v7723 = vsel %vm7478, %v7646, 0.0
        %v7724 = vadd.f32 %v7722, %v7723
        %v7725 = vrot.slane %v7724, 4
        %v7726 = vadd.f32 %v7724, %v7725
        %v7727 = vrot.slane %v7726, 2
        %v7728 = vadd.f32 %v7726, %v7727
        %v7729 = vrot.slane %v7728, 1
        %v7730 = vadd.f32 %v7728, %v7729
        %7735 = vrot.lane.b32.xlu0 %v7667, 126
        %v7736 = vpop.permute.xlu0 %7735
        %7737 = vrot.lane.b32.xlu0 %v7688, 126
        %v7738 = vpop.permute.xlu0 %7737
        %7739 = vrot.lane.b32.xlu0 %v7709, 126
        %v7740 = vpop.permute.xlu0 %7739
        %7741 = vrot.lane.b32.xlu0 %v7730, 126
        %v7742 = vpop.permute.xlu0 %7741
        %v7747 = vadd.f32 %v7074, %v7736
        %v7748 = vadd.f32 %v7075, %v7738
        %v7749 = vadd.f32 %v7076, %v7740
        %v7750 = vadd.f32 %v7077, %v7742
        %7751 = vset.pattern.permute.xlu0 2
        %7752 = vperm.xlu0 %7751, %v6040
        %v7753 = vpop.permute.xlu0 %7752
        %7755 = vset.pattern.permute.xlu0 2
        %7756 = vperm.xlu0 %7755, %v6041
        %v7757 = vpop.permute.xlu0 %7756
        %7759 = vset.pattern.permute.xlu0 2
        %7760 = vperm.xlu0 %7759, %v6042
        %v7761 = vpop.permute.xlu0 %7760
        %7763 = vset.pattern.permute.xlu0 2
        %7764 = vperm.xlu0 %7763, %v6043
        %v7765 = vpop.permute.xlu0 %7764
        %7767 = vset.pattern.permute.xlu0 2
        %7768 = vperm.xlu0 %7767, %v6044
        %v7769 = vpop.permute.xlu0 %7768
        %7771 = vset.pattern.permute.xlu0 2
        %7772 = vperm.xlu0 %7771, %v6045
        %v7773 = vpop.permute.xlu0 %7772
        %7775 = vset.pattern.permute.xlu0 2
        %7776 = vperm.xlu0 %7775, %v6046
        %v7777 = vpop.permute.xlu0 %7776
        %7779 = vset.pattern.permute.xlu0 2
        %7780 = vperm.xlu0 %7779, %v6047
        %v7781 = vpop.permute.xlu0 %7780
        %v7783 = vmul.f32 %v6069, %v7753
        %v7784 = vmul.f32 %v6070, %v7757
        %v7785 = vmul.f32 %v6071, %v7761
        %v7786 = vmul.f32 %v6072, %v7765
        %v7787 = vmul.f32 %v6073, %v7769
        %v7788 = vmul.f32 %v6074, %v7773
        %v7789 = vmul.f32 %v6075, %v7777
        %v7790 = vmul.f32 %v6076, %v7781
        %v7791 = vmul.f32 %v6077, %v7753
        %v7792 = vmul.f32 %v6078, %v7757
        %v7793 = vmul.f32 %v6079, %v7761
        %v7794 = vmul.f32 %v6080, %v7765
        %v7795 = vmul.f32 %v6081, %v7769
        %v7796 = vmul.f32 %v6082, %v7773
        %v7797 = vmul.f32 %v6083, %v7777
        %v7798 = vmul.f32 %v6084, %v7781
        %v7799 = vmul.f32 %v6085, %v7753
        %v7800 = vmul.f32 %v6086, %v7757
        %v7801 = vmul.f32 %v6087, %v7761
        %v7802 = vmul.f32 %v6088, %v7765
        %v7803 = vmul.f32 %v6089, %v7769
        %v7804 = vmul.f32 %v6090, %v7773
        %v7805 = vmul.f32 %v6091, %v7777
        %v7806 = vmul.f32 %v6092, %v7781
        %v7807 = vmul.f32 %v6093, %v7753
        %v7808 = vmul.f32 %v6094, %v7757
        %v7809 = vmul.f32 %v6095, %v7761
        %v7810 = vmul.f32 %v6096, %v7765
        %v7811 = vmul.f32 %v6097, %v7769
        %v7812 = vmul.f32 %v6098, %v7773
        %v7813 = vmul.f32 %v6099, %v7777
        %v7814 = vmul.f32 %v6100, %v7781
        %v7815 = vsel %vm7478, %v7783, 0.0
        %v7816 = vsel %vm7478, %v7784, 0.0
        %v7817 = vadd.f32 %v7815, %v7816
        %v7818 = vsel %vm7478, %v7785, 0.0
        %v7819 = vadd.f32 %v7817, %v7818
        %v7820 = vsel %vm7478, %v7786, 0.0
        %v7821 = vadd.f32 %v7819, %v7820
        %v7822 = vsel %vm7478, %v7787, 0.0
        %v7823 = vadd.f32 %v7821, %v7822
        %v7824 = vsel %vm7478, %v7788, 0.0
        %v7825 = vadd.f32 %v7823, %v7824
        %v7826 = vsel %vm7478, %v7789, 0.0
        %v7827 = vadd.f32 %v7825, %v7826
        %v7828 = vsel %vm7478, %v7790, 0.0
        %v7829 = vadd.f32 %v7827, %v7828
        %v7830 = vrot.slane %v7829, 4
        %v7831 = vadd.f32 %v7829, %v7830
        %v7832 = vrot.slane %v7831, 2
        %v7833 = vadd.f32 %v7831, %v7832
        %v7834 = vrot.slane %v7833, 1
        %v7835 = vadd.f32 %v7833, %v7834
        %v7836 = vsel %vm7478, %v7791, 0.0
        %v7837 = vsel %vm7478, %v7792, 0.0
        %v7838 = vadd.f32 %v7836, %v7837
        %v7839 = vsel %vm7478, %v7793, 0.0
        %v7840 = vadd.f32 %v7838, %v7839
        %v7841 = vsel %vm7478, %v7794, 0.0
        %v7842 = vadd.f32 %v7840, %v7841
        %v7843 = vsel %vm7478, %v7795, 0.0
        %v7844 = vadd.f32 %v7842, %v7843
        %v7845 = vsel %vm7478, %v7796, 0.0
        %v7846 = vadd.f32 %v7844, %v7845
        %v7847 = vsel %vm7478, %v7797, 0.0
        %v7848 = vadd.f32 %v7846, %v7847
        %v7849 = vsel %vm7478, %v7798, 0.0
        %v7850 = vadd.f32 %v7848, %v7849
        %v7851 = vrot.slane %v7850, 4
        %v7852 = vadd.f32 %v7850, %v7851
        %v7853 = vrot.slane %v7852, 2
        %v7854 = vadd.f32 %v7852, %v7853
        %v7855 = vrot.slane %v7854, 1
        %v7856 = vadd.f32 %v7854, %v7855
        %v7857 = vsel %vm7478, %v7799, 0.0
        %v7858 = vsel %vm7478, %v7800, 0.0
        %v7859 = vadd.f32 %v7857, %v7858
        %v7860 = vsel %vm7478, %v7801, 0.0
        %v7861 = vadd.f32 %v7859, %v7860
        %v7862 = vsel %vm7478, %v7802, 0.0
        %v7863 = vadd.f32 %v7861, %v7862
        %v7864 = vsel %vm7478, %v7803, 0.0
        %v7865 = vadd.f32 %v7863, %v7864
        %v7866 = vsel %vm7478, %v7804, 0.0
        %v7867 = vadd.f32 %v7865, %v7866
        %v7868 = vsel %vm7478, %v7805, 0.0
        %v7869 = vadd.f32 %v7867, %v7868
        %v7870 = vsel %vm7478, %v7806, 0.0
        %v7871 = vadd.f32 %v7869, %v7870
        %v7872 = vrot.slane %v7871, 4
        %v7873 = vadd.f32 %v7871, %v7872
        %v7874 = vrot.slane %v7873, 2
        %v7875 = vadd.f32 %v7873, %v7874
        %v7876 = vrot.slane %v7875, 1
        %v7877 = vadd.f32 %v7875, %v7876
        %v7878 = vsel %vm7478, %v7807, 0.0
        %v7879 = vsel %vm7478, %v7808, 0.0
        %v7880 = vadd.f32 %v7878, %v7879
        %v7881 = vsel %vm7478, %v7809, 0.0
        %v7882 = vadd.f32 %v7880, %v7881
        %v7883 = vsel %vm7478, %v7810, 0.0
        %v7884 = vadd.f32 %v7882, %v7883
        %v7885 = vsel %vm7478, %v7811, 0.0
        %v7886 = vadd.f32 %v7884, %v7885
        %v7887 = vsel %vm7478, %v7812, 0.0
        %v7888 = vadd.f32 %v7886, %v7887
        %v7889 = vsel %vm7478, %v7813, 0.0
        %v7890 = vadd.f32 %v7888, %v7889
        %v7891 = vsel %vm7478, %v7814, 0.0
        %v7892 = vadd.f32 %v7890, %v7891
        %v7893 = vrot.slane %v7892, 4
        %v7894 = vadd.f32 %v7892, %v7893
        %v7895 = vrot.slane %v7894, 2
        %v7896 = vadd.f32 %v7894, %v7895
        %v7897 = vrot.slane %v7896, 1
        %v7898 = vadd.f32 %v7896, %v7897
        %7903 = vrot.lane.b32.xlu0 %v7835, 126
        %v7904 = vpop.permute.xlu0 %7903
        %7905 = vrot.lane.b32.xlu0 %v7856, 126
        %v7906 = vpop.permute.xlu0 %7905
        %7907 = vrot.lane.b32.xlu0 %v7877, 126
        %v7908 = vpop.permute.xlu0 %7907
        %7909 = vrot.lane.b32.xlu0 %v7898, 126
        %v7910 = vpop.permute.xlu0 %7909
        %v7915 = vadd.f32 %v7242, %v7904
        %v7916 = vadd.f32 %v7243, %v7906
        %v7917 = vadd.f32 %v7244, %v7908
        %v7918 = vadd.f32 %v7245, %v7910
        %7919 = vset.pattern.permute.xlu0 2
        %7920 = vperm.xlu0 %7919, %v6048
        %v7921 = vpop.permute.xlu0 %7920
        %7923 = vset.pattern.permute.xlu0 2
        %7924 = vperm.xlu0 %7923, %v6049
        %v7925 = vpop.permute.xlu0 %7924
        %7927 = vset.pattern.permute.xlu0 2
        %7928 = vperm.xlu0 %7927, %v6050
        %v7929 = vpop.permute.xlu0 %7928
        %7931 = vset.pattern.permute.xlu0 2
        %7932 = vperm.xlu0 %7931, %v6051
        %v7933 = vpop.permute.xlu0 %7932
        %7935 = vset.pattern.permute.xlu0 2
        %7936 = vperm.xlu0 %7935, %v6052
        %v7937 = vpop.permute.xlu0 %7936
        %7939 = vset.pattern.permute.xlu0 2
        %7940 = vperm.xlu0 %7939, %v6053
        %v7941 = vpop.permute.xlu0 %7940
        %7943 = vset.pattern.permute.xlu0 2
        %7944 = vperm.xlu0 %7943, %v6054
        %v7945 = vpop.permute.xlu0 %7944
        %7947 = vset.pattern.permute.xlu0 2
        %7948 = vperm.xlu0 %7947, %v6055
        %v7949 = vpop.permute.xlu0 %7948
        %v7951 = vmul.f32 %v6069, %v7921
        %v7952 = vmul.f32 %v6070, %v7925
        %v7953 = vmul.f32 %v6071, %v7929
        %v7954 = vmul.f32 %v6072, %v7933
        %v7955 = vmul.f32 %v6073, %v7937
        %v7956 = vmul.f32 %v6074, %v7941
        %v7957 = vmul.f32 %v6075, %v7945
        %v7958 = vmul.f32 %v6076, %v7949
        %v7959 = vmul.f32 %v6077, %v7921
        %v7960 = vmul.f32 %v6078, %v7925
        %v7961 = vmul.f32 %v6079, %v7929
        %v7962 = vmul.f32 %v6080, %v7933
        %v7963 = vmul.f32 %v6081, %v7937
        %v7964 = vmul.f32 %v6082, %v7941
        %v7965 = vmul.f32 %v6083, %v7945
        %v7966 = vmul.f32 %v6084, %v7949
        %v7967 = vmul.f32 %v6085, %v7921
        %v7968 = vmul.f32 %v6086, %v7925
        %v7969 = vmul.f32 %v6087, %v7929
        %v7970 = vmul.f32 %v6088, %v7933
        %v7971 = vmul.f32 %v6089, %v7937
        %v7972 = vmul.f32 %v6090, %v7941
        %v7973 = vmul.f32 %v6091, %v7945
        %v7974 = vmul.f32 %v6092, %v7949
        %v7975 = vmul.f32 %v6093, %v7921
        %v7976 = vmul.f32 %v6094, %v7925
        %v7977 = vmul.f32 %v6095, %v7929
        %v7978 = vmul.f32 %v6096, %v7933
        %v7979 = vmul.f32 %v6097, %v7937
        %v7980 = vmul.f32 %v6098, %v7941
        %v7981 = vmul.f32 %v6099, %v7945
        %v7982 = vmul.f32 %v6100, %v7949
        %v7983 = vsel %vm7478, %v7951, 0.0
        %v7984 = vsel %vm7478, %v7952, 0.0
        %v7985 = vadd.f32 %v7983, %v7984
        %v7986 = vsel %vm7478, %v7953, 0.0
        %v7987 = vadd.f32 %v7985, %v7986
        %v7988 = vsel %vm7478, %v7954, 0.0
        %v7989 = vadd.f32 %v7987, %v7988
        %v7990 = vsel %vm7478, %v7955, 0.0
        %v7991 = vadd.f32 %v7989, %v7990
        %v7992 = vsel %vm7478, %v7956, 0.0
        %v7993 = vadd.f32 %v7991, %v7992
        %v7994 = vsel %vm7478, %v7957, 0.0
        %v7995 = vadd.f32 %v7993, %v7994
        %v7996 = vsel %vm7478, %v7958, 0.0
        %v7997 = vadd.f32 %v7995, %v7996
        %v7998 = vrot.slane %v7997, 4
        %v7999 = vadd.f32 %v7997, %v7998
        %v8000 = vrot.slane %v7999, 2
        %v8001 = vadd.f32 %v7999, %v8000
        %v8002 = vrot.slane %v8001, 1
        %v8003 = vadd.f32 %v8001, %v8002
        %v8004 = vsel %vm7478, %v7959, 0.0
        %v8005 = vsel %vm7478, %v7960, 0.0
        %v8006 = vadd.f32 %v8004, %v8005
        %v8007 = vsel %vm7478, %v7961, 0.0
        %v8008 = vadd.f32 %v8006, %v8007
        %v8009 = vsel %vm7478, %v7962, 0.0
        %v8010 = vadd.f32 %v8008, %v8009
        %v8011 = vsel %vm7478, %v7963, 0.0
        %v8012 = vadd.f32 %v8010, %v8011
        %v8013 = vsel %vm7478, %v7964, 0.0
        %v8014 = vadd.f32 %v8012, %v8013
        %v8015 = vsel %vm7478, %v7965, 0.0
        %v8016 = vadd.f32 %v8014, %v8015
        %v8017 = vsel %vm7478, %v7966, 0.0
        %v8018 = vadd.f32 %v8016, %v8017
        %v8019 = vrot.slane %v8018, 4
        %v8020 = vadd.f32 %v8018, %v8019
        %v8021 = vrot.slane %v8020, 2
        %v8022 = vadd.f32 %v8020, %v8021
        %v8023 = vrot.slane %v8022, 1
        %v8024 = vadd.f32 %v8022, %v8023
        %v8025 = vsel %vm7478, %v7967, 0.0
        %v8026 = vsel %vm7478, %v7968, 0.0
        %v8027 = vadd.f32 %v8025, %v8026
        %v8028 = vsel %vm7478, %v7969, 0.0
        %v8029 = vadd.f32 %v8027, %v8028
        %v8030 = vsel %vm7478, %v7970, 0.0
        %v8031 = vadd.f32 %v8029, %v8030
        %v8032 = vsel %vm7478, %v7971, 0.0
        %v8033 = vadd.f32 %v8031, %v8032
        %v8034 = vsel %vm7478, %v7972, 0.0
        %v8035 = vadd.f32 %v8033, %v8034
        %v8036 = vsel %vm7478, %v7973, 0.0
        %v8037 = vadd.f32 %v8035, %v8036
        %v8038 = vsel %vm7478, %v7974, 0.0
        %v8039 = vadd.f32 %v8037, %v8038
        %v8040 = vrot.slane %v8039, 4
        %v8041 = vadd.f32 %v8039, %v8040
        %v8042 = vrot.slane %v8041, 2
        %v8043 = vadd.f32 %v8041, %v8042
        %v8044 = vrot.slane %v8043, 1
        %v8045 = vadd.f32 %v8043, %v8044
        %v8046 = vsel %vm7478, %v7975, 0.0
        %v8047 = vsel %vm7478, %v7976, 0.0
        %v8048 = vadd.f32 %v8046, %v8047
        %v8049 = vsel %vm7478, %v7977, 0.0
        %v8050 = vadd.f32 %v8048, %v8049
        %v8051 = vsel %vm7478, %v7978, 0.0
        %v8052 = vadd.f32 %v8050, %v8051
        %v8053 = vsel %vm7478, %v7979, 0.0
        %v8054 = vadd.f32 %v8052, %v8053
        %v8055 = vsel %vm7478, %v7980, 0.0
        %v8056 = vadd.f32 %v8054, %v8055
        %v8057 = vsel %vm7478, %v7981, 0.0
        %v8058 = vadd.f32 %v8056, %v8057
        %v8059 = vsel %vm7478, %v7982, 0.0
        %v8060 = vadd.f32 %v8058, %v8059
        %v8061 = vrot.slane %v8060, 4
        %v8062 = vadd.f32 %v8060, %v8061
        %v8063 = vrot.slane %v8062, 2
        %v8064 = vadd.f32 %v8062, %v8063
        %v8065 = vrot.slane %v8064, 1
        %v8066 = vadd.f32 %v8064, %v8065
        %8071 = vrot.lane.b32.xlu0 %v8003, 126
        %v8072 = vpop.permute.xlu0 %8071
        %8073 = vrot.lane.b32.xlu0 %v8024, 126
        %v8074 = vpop.permute.xlu0 %8073
        %8075 = vrot.lane.b32.xlu0 %v8045, 126
        %v8076 = vpop.permute.xlu0 %8075
        %8077 = vrot.lane.b32.xlu0 %v8066, 126
        %v8078 = vpop.permute.xlu0 %8077
        %v8083 = vadd.f32 %v7410, %v8072
        %v8084 = vadd.f32 %v7411, %v8074
        %v8085 = vadd.f32 %v7412, %v8076
        %v8086 = vadd.f32 %v7413, %v8078
        %8087 = vset.pattern.permute.xlu0 3
        %8088 = vperm.xlu0 %8087, %v6024
        %v8089 = vpop.permute.xlu0 %8088
        %8091 = vset.pattern.permute.xlu0 3
        %8092 = vperm.xlu0 %8091, %v6025
        %v8093 = vpop.permute.xlu0 %8092
        %8095 = vset.pattern.permute.xlu0 3
        %8096 = vperm.xlu0 %8095, %v6026
        %v8097 = vpop.permute.xlu0 %8096
        %8099 = vset.pattern.permute.xlu0 3
        %8100 = vperm.xlu0 %8099, %v6027
        %v8101 = vpop.permute.xlu0 %8100
        %8103 = vset.pattern.permute.xlu0 3
        %8104 = vperm.xlu0 %8103, %v6028
        %v8105 = vpop.permute.xlu0 %8104
        %8107 = vset.pattern.permute.xlu0 3
        %8108 = vperm.xlu0 %8107, %v6029
        %v8109 = vpop.permute.xlu0 %8108
        %8111 = vset.pattern.permute.xlu0 3
        %8112 = vperm.xlu0 %8111, %v6030
        %v8113 = vpop.permute.xlu0 %8112
        %8115 = vset.pattern.permute.xlu0 3
        %8116 = vperm.xlu0 %8115, %v6031
        %v8117 = vpop.permute.xlu0 %8116
        %v8119 = vmul.f32 %v6069, %v8089
        %v8120 = vmul.f32 %v6070, %v8093
        %v8121 = vmul.f32 %v6071, %v8097
        %v8122 = vmul.f32 %v6072, %v8101
        %v8123 = vmul.f32 %v6073, %v8105
        %v8124 = vmul.f32 %v6074, %v8109
        %v8125 = vmul.f32 %v6075, %v8113
        %v8126 = vmul.f32 %v6076, %v8117
        %v8127 = vmul.f32 %v6077, %v8089
        %v8128 = vmul.f32 %v6078, %v8093
        %v8129 = vmul.f32 %v6079, %v8097
        %v8130 = vmul.f32 %v6080, %v8101
        %v8131 = vmul.f32 %v6081, %v8105
        %v8132 = vmul.f32 %v6082, %v8109
        %v8133 = vmul.f32 %v6083, %v8113
        %v8134 = vmul.f32 %v6084, %v8117
        %v8135 = vmul.f32 %v6085, %v8089
        %v8136 = vmul.f32 %v6086, %v8093
        %v8137 = vmul.f32 %v6087, %v8097
        %v8138 = vmul.f32 %v6088, %v8101
        %v8139 = vmul.f32 %v6089, %v8105
        %v8140 = vmul.f32 %v6090, %v8109
        %v8141 = vmul.f32 %v6091, %v8113
        %v8142 = vmul.f32 %v6092, %v8117
        %v8143 = vmul.f32 %v6093, %v8089
        %v8144 = vmul.f32 %v6094, %v8093
        %v8145 = vmul.f32 %v6095, %v8097
        %v8146 = vmul.f32 %v6096, %v8101
        %v8147 = vmul.f32 %v6097, %v8105
        %v8148 = vmul.f32 %v6098, %v8109
        %v8149 = vmul.f32 %v6099, %v8113
        %v8150 = vmul.f32 %v6100, %v8117
        %v8151 = vsel %vm5991, %v8119, 0.0
        %v8152 = vsel %vm5991, %v8120, 0.0
        %v8153 = vadd.f32 %v8151, %v8152
        %v8154 = vsel %vm5991, %v8121, 0.0
        %v8155 = vadd.f32 %v8153, %v8154
        %v8156 = vsel %vm5991, %v8122, 0.0
        %v8157 = vadd.f32 %v8155, %v8156
        %v8158 = vsel %vm5991, %v8123, 0.0
        %v8159 = vadd.f32 %v8157, %v8158
        %v8160 = vsel %vm5991, %v8124, 0.0
        %v8161 = vadd.f32 %v8159, %v8160
        %v8162 = vsel %vm5991, %v8125, 0.0
        %v8163 = vadd.f32 %v8161, %v8162
        %v8164 = vsel %vm5991, %v8126, 0.0
        %v8165 = vadd.f32 %v8163, %v8164
        %v8166 = vrot.slane %v8165, 4
        %v8167 = vadd.f32 %v8165, %v8166
        %v8168 = vrot.slane %v8167, 2
        %v8169 = vadd.f32 %v8167, %v8168
        %v8170 = vrot.slane %v8169, 1
        %v8171 = vadd.f32 %v8169, %v8170
        %v8172 = vsel %vm5991, %v8127, 0.0
        %v8173 = vsel %vm5991, %v8128, 0.0
        %v8174 = vadd.f32 %v8172, %v8173
        %v8175 = vsel %vm5991, %v8129, 0.0
        %v8176 = vadd.f32 %v8174, %v8175
        %v8177 = vsel %vm5991, %v8130, 0.0
        %v8178 = vadd.f32 %v8176, %v8177
        %v8179 = vsel %vm5991, %v8131, 0.0
        %v8180 = vadd.f32 %v8178, %v8179
        %v8181 = vsel %vm5991, %v8132, 0.0
        %v8182 = vadd.f32 %v8180, %v8181
        %v8183 = vsel %vm5991, %v8133, 0.0
        %v8184 = vadd.f32 %v8182, %v8183
        %v8185 = vsel %vm5991, %v8134, 0.0
        %v8186 = vadd.f32 %v8184, %v8185
        %v8187 = vrot.slane %v8186, 4
        %v8188 = vadd.f32 %v8186, %v8187
        %v8189 = vrot.slane %v8188, 2
        %v8190 = vadd.f32 %v8188, %v8189
        %v8191 = vrot.slane %v8190, 1
        %v8192 = vadd.f32 %v8190, %v8191
        %v8193 = vsel %vm5991, %v8135, 0.0
        %v8194 = vsel %vm5991, %v8136, 0.0
        %v8195 = vadd.f32 %v8193, %v8194
        %v8196 = vsel %vm5991, %v8137, 0.0
        %v8197 = vadd.f32 %v8195, %v8196
        %v8198 = vsel %vm5991, %v8138, 0.0
        %v8199 = vadd.f32 %v8197, %v8198
        %v8200 = vsel %vm5991, %v8139, 0.0
        %v8201 = vadd.f32 %v8199, %v8200
        %v8202 = vsel %vm5991, %v8140, 0.0
        %v8203 = vadd.f32 %v8201, %v8202
        %v8204 = vsel %vm5991, %v8141, 0.0
        %v8205 = vadd.f32 %v8203, %v8204
        %v8206 = vsel %vm5991, %v8142, 0.0
        %v8207 = vadd.f32 %v8205, %v8206
        %v8208 = vrot.slane %v8207, 4
        %v8209 = vadd.f32 %v8207, %v8208
        %v8210 = vrot.slane %v8209, 2
        %v8211 = vadd.f32 %v8209, %v8210
        %v8212 = vrot.slane %v8211, 1
        %v8213 = vadd.f32 %v8211, %v8212
        %v8214 = vsel %vm5991, %v8143, 0.0
        %v8215 = vsel %vm5991, %v8144, 0.0
        %v8216 = vadd.f32 %v8214, %v8215
        %v8217 = vsel %vm5991, %v8145, 0.0
        %v8218 = vadd.f32 %v8216, %v8217
        %v8219 = vsel %vm5991, %v8146, 0.0
        %v8220 = vadd.f32 %v8218, %v8219
        %v8221 = vsel %vm5991, %v8147, 0.0
        %v8222 = vadd.f32 %v8220, %v8221
        %v8223 = vsel %vm5991, %v8148, 0.0
        %v8224 = vadd.f32 %v8222, %v8223
        %v8225 = vsel %vm5991, %v8149, 0.0
        %v8226 = vadd.f32 %v8224, %v8225
        %v8227 = vsel %vm5991, %v8150, 0.0
        %v8228 = vadd.f32 %v8226, %v8227
        %v8229 = vrot.slane %v8228, 4
        %v8230 = vadd.f32 %v8228, %v8229
        %v8231 = vrot.slane %v8230, 2
        %v8232 = vadd.f32 %v8230, %v8231
        %v8233 = vrot.slane %v8232, 1
        %v8234 = vadd.f32 %v8232, %v8233
        %8239 = vrot.lane.b32.xlu0 %v8171, 125
        %v8240 = vpop.permute.xlu0 %8239
        %8241 = vrot.lane.b32.xlu0 %v8192, 125
        %v8242 = vpop.permute.xlu0 %8241
        %8243 = vrot.lane.b32.xlu0 %v8213, 125
        %v8244 = vpop.permute.xlu0 %8243
        %8245 = vrot.lane.b32.xlu0 %v8234, 125
        %v8246 = vpop.permute.xlu0 %8245
        %v8251 = vadd.f32 %v7579, %v8240
        %v8252 = vadd.f32 %v7580, %v8242
        %v8253 = vadd.f32 %v7581, %v8244
        %v8254 = vadd.f32 %v7582, %v8246
        %8255 = vset.pattern.permute.xlu0 3
        %8256 = vperm.xlu0 %8255, %v6032
        %v8257 = vpop.permute.xlu0 %8256
        %8259 = vset.pattern.permute.xlu0 3
        %8260 = vperm.xlu0 %8259, %v6033
        %v8261 = vpop.permute.xlu0 %8260
        %8263 = vset.pattern.permute.xlu0 3
        %8264 = vperm.xlu0 %8263, %v6034
        %v8265 = vpop.permute.xlu0 %8264
        %8267 = vset.pattern.permute.xlu0 3
        %8268 = vperm.xlu0 %8267, %v6035
        %v8269 = vpop.permute.xlu0 %8268
        %8271 = vset.pattern.permute.xlu0 3
        %8272 = vperm.xlu0 %8271, %v6036
        %v8273 = vpop.permute.xlu0 %8272
        %8275 = vset.pattern.permute.xlu0 3
        %8276 = vperm.xlu0 %8275, %v6037
        %v8277 = vpop.permute.xlu0 %8276
        %8279 = vset.pattern.permute.xlu0 3
        %8280 = vperm.xlu0 %8279, %v6038
        %v8281 = vpop.permute.xlu0 %8280
        %8283 = vset.pattern.permute.xlu0 3
        %8284 = vperm.xlu0 %8283, %v6039
        %v8285 = vpop.permute.xlu0 %8284
        %v8287 = vmul.f32 %v6069, %v8257
        %v8288 = vmul.f32 %v6070, %v8261
        %v8289 = vmul.f32 %v6071, %v8265
        %v8290 = vmul.f32 %v6072, %v8269
        %v8291 = vmul.f32 %v6073, %v8273
        %v8292 = vmul.f32 %v6074, %v8277
        %v8293 = vmul.f32 %v6075, %v8281
        %v8294 = vmul.f32 %v6076, %v8285
        %v8295 = vmul.f32 %v6077, %v8257
        %v8296 = vmul.f32 %v6078, %v8261
        %v8297 = vmul.f32 %v6079, %v8265
        %v8298 = vmul.f32 %v6080, %v8269
        %v8299 = vmul.f32 %v6081, %v8273
        %v8300 = vmul.f32 %v6082, %v8277
        %v8301 = vmul.f32 %v6083, %v8281
        %v8302 = vmul.f32 %v6084, %v8285
        %v8303 = vmul.f32 %v6085, %v8257
        %v8304 = vmul.f32 %v6086, %v8261
        %v8305 = vmul.f32 %v6087, %v8265
        %v8306 = vmul.f32 %v6088, %v8269
        %v8307 = vmul.f32 %v6089, %v8273
        %v8308 = vmul.f32 %v6090, %v8277
        %v8309 = vmul.f32 %v6091, %v8281
        %v8310 = vmul.f32 %v6092, %v8285
        %v8311 = vmul.f32 %v6093, %v8257
        %v8312 = vmul.f32 %v6094, %v8261
        %v8313 = vmul.f32 %v6095, %v8265
        %v8314 = vmul.f32 %v6096, %v8269
        %v8315 = vmul.f32 %v6097, %v8273
        %v8316 = vmul.f32 %v6098, %v8277
        %v8317 = vmul.f32 %v6099, %v8281
        %v8318 = vmul.f32 %v6100, %v8285
        %v8319 = vsel %vm5991, %v8287, 0.0
        %v8320 = vsel %vm5991, %v8288, 0.0
        %v8321 = vadd.f32 %v8319, %v8320
        %v8322 = vsel %vm5991, %v8289, 0.0
        %v8323 = vadd.f32 %v8321, %v8322
        %v8324 = vsel %vm5991, %v8290, 0.0
        %v8325 = vadd.f32 %v8323, %v8324
        %v8326 = vsel %vm5991, %v8291, 0.0
        %v8327 = vadd.f32 %v8325, %v8326
        %v8328 = vsel %vm5991, %v8292, 0.0
        %v8329 = vadd.f32 %v8327, %v8328
        %v8330 = vsel %vm5991, %v8293, 0.0
        %v8331 = vadd.f32 %v8329, %v8330
        %v8332 = vsel %vm5991, %v8294, 0.0
        %v8333 = vadd.f32 %v8331, %v8332
        %v8334 = vrot.slane %v8333, 4
        %v8335 = vadd.f32 %v8333, %v8334
        %v8336 = vrot.slane %v8335, 2
        %v8337 = vadd.f32 %v8335, %v8336
        %v8338 = vrot.slane %v8337, 1
        %v8339 = vadd.f32 %v8337, %v8338
        %v8340 = vsel %vm5991, %v8295, 0.0
        %v8341 = vsel %vm5991, %v8296, 0.0
        %v8342 = vadd.f32 %v8340, %v8341
        %v8343 = vsel %vm5991, %v8297, 0.0
        %v8344 = vadd.f32 %v8342, %v8343
        %v8345 = vsel %vm5991, %v8298, 0.0
        %v8346 = vadd.f32 %v8344, %v8345
        %v8347 = vsel %vm5991, %v8299, 0.0
        %v8348 = vadd.f32 %v8346, %v8347
        %v8349 = vsel %vm5991, %v8300, 0.0
        %v8350 = vadd.f32 %v8348, %v8349
        %v8351 = vsel %vm5991, %v8301, 0.0
        %v8352 = vadd.f32 %v8350, %v8351
        %v8353 = vsel %vm5991, %v8302, 0.0
        %v8354 = vadd.f32 %v8352, %v8353
        %v8355 = vrot.slane %v8354, 4
        %v8356 = vadd.f32 %v8354, %v8355
        %v8357 = vrot.slane %v8356, 2
        %v8358 = vadd.f32 %v8356, %v8357
        %v8359 = vrot.slane %v8358, 1
        %v8360 = vadd.f32 %v8358, %v8359
        %v8361 = vsel %vm5991, %v8303, 0.0
        %v8362 = vsel %vm5991, %v8304, 0.0
        %v8363 = vadd.f32 %v8361, %v8362
        %v8364 = vsel %vm5991, %v8305, 0.0
        %v8365 = vadd.f32 %v8363, %v8364
        %v8366 = vsel %vm5991, %v8306, 0.0
        %v8367 = vadd.f32 %v8365, %v8366
        %v8368 = vsel %vm5991, %v8307, 0.0
        %v8369 = vadd.f32 %v8367, %v8368
        %v8370 = vsel %vm5991, %v8308, 0.0
        %v8371 = vadd.f32 %v8369, %v8370
        %v8372 = vsel %vm5991, %v8309, 0.0
        %v8373 = vadd.f32 %v8371, %v8372
        %v8374 = vsel %vm5991, %v8310, 0.0
        %v8375 = vadd.f32 %v8373, %v8374
        %v8376 = vrot.slane %v8375, 4
        %v8377 = vadd.f32 %v8375, %v8376
        %v8378 = vrot.slane %v8377, 2
        %v8379 = vadd.f32 %v8377, %v8378
        %v8380 = vrot.slane %v8379, 1
        %v8381 = vadd.f32 %v8379, %v8380
        %v8382 = vsel %vm5991, %v8311, 0.0
        %v8383 = vsel %vm5991, %v8312, 0.0
        %v8384 = vadd.f32 %v8382, %v8383
        %v8385 = vsel %vm5991, %v8313, 0.0
        %v8386 = vadd.f32 %v8384, %v8385
        %v8387 = vsel %vm5991, %v8314, 0.0
        %v8388 = vadd.f32 %v8386, %v8387
        %v8389 = vsel %vm5991, %v8315, 0.0
        %v8390 = vadd.f32 %v8388, %v8389
        %v8391 = vsel %vm5991, %v8316, 0.0
        %v8392 = vadd.f32 %v8390, %v8391
        %v8393 = vsel %vm5991, %v8317, 0.0
        %v8394 = vadd.f32 %v8392, %v8393
        %v8395 = vsel %vm5991, %v8318, 0.0
        %v8396 = vadd.f32 %v8394, %v8395
        %v8397 = vrot.slane %v8396, 4
        %v8398 = vadd.f32 %v8396, %v8397
        %v8399 = vrot.slane %v8398, 2
        %v8400 = vadd.f32 %v8398, %v8399
        %v8401 = vrot.slane %v8400, 1
        %v8402 = vadd.f32 %v8400, %v8401
        %8407 = vrot.lane.b32.xlu0 %v8339, 125
        %v8408 = vpop.permute.xlu0 %8407
        %8409 = vrot.lane.b32.xlu0 %v8360, 125
        %v8410 = vpop.permute.xlu0 %8409
        %8411 = vrot.lane.b32.xlu0 %v8381, 125
        %v8412 = vpop.permute.xlu0 %8411
        %8413 = vrot.lane.b32.xlu0 %v8402, 125
        %v8414 = vpop.permute.xlu0 %8413
        %v8419 = vadd.f32 %v7747, %v8408
        %v8420 = vadd.f32 %v7748, %v8410
        %v8421 = vadd.f32 %v7749, %v8412
        %v8422 = vadd.f32 %v7750, %v8414
        %8423 = vset.pattern.permute.xlu0 3
        %8424 = vperm.xlu0 %8423, %v6040
        %v8425 = vpop.permute.xlu0 %8424
        %8427 = vset.pattern.permute.xlu0 3
        %8428 = vperm.xlu0 %8427, %v6041
        %v8429 = vpop.permute.xlu0 %8428
        %8431 = vset.pattern.permute.xlu0 3
        %8432 = vperm.xlu0 %8431, %v6042
        %v8433 = vpop.permute.xlu0 %8432
        %8435 = vset.pattern.permute.xlu0 3
        %8436 = vperm.xlu0 %8435, %v6043
        %v8437 = vpop.permute.xlu0 %8436
        %8439 = vset.pattern.permute.xlu0 3
        %8440 = vperm.xlu0 %8439, %v6044
        %v8441 = vpop.permute.xlu0 %8440
        %8443 = vset.pattern.permute.xlu0 3
        %8444 = vperm.xlu0 %8443, %v6045
        %v8445 = vpop.permute.xlu0 %8444
        %8447 = vset.pattern.permute.xlu0 3
        %8448 = vperm.xlu0 %8447, %v6046
        %v8449 = vpop.permute.xlu0 %8448
        %8451 = vset.pattern.permute.xlu0 3
        %8452 = vperm.xlu0 %8451, %v6047
        %v8453 = vpop.permute.xlu0 %8452
        %v8455 = vmul.f32 %v6069, %v8425
        %v8456 = vmul.f32 %v6070, %v8429
        %v8457 = vmul.f32 %v6071, %v8433
        %v8458 = vmul.f32 %v6072, %v8437
        %v8459 = vmul.f32 %v6073, %v8441
        %v8460 = vmul.f32 %v6074, %v8445
        %v8461 = vmul.f32 %v6075, %v8449
        %v8462 = vmul.f32 %v6076, %v8453
        %v8463 = vmul.f32 %v6077, %v8425
        %v8464 = vmul.f32 %v6078, %v8429
        %v8465 = vmul.f32 %v6079, %v8433
        %v8466 = vmul.f32 %v6080, %v8437
        %v8467 = vmul.f32 %v6081, %v8441
        %v8468 = vmul.f32 %v6082, %v8445
        %v8469 = vmul.f32 %v6083, %v8449
        %v8470 = vmul.f32 %v6084, %v8453
        %v8471 = vmul.f32 %v6085, %v8425
        %v8472 = vmul.f32 %v6086, %v8429
        %v8473 = vmul.f32 %v6087, %v8433
        %v8474 = vmul.f32 %v6088, %v8437
        %v8475 = vmul.f32 %v6089, %v8441
        %v8476 = vmul.f32 %v6090, %v8445
        %v8477 = vmul.f32 %v6091, %v8449
        %v8478 = vmul.f32 %v6092, %v8453
        %v8479 = vmul.f32 %v6093, %v8425
        %v8480 = vmul.f32 %v6094, %v8429
        %v8481 = vmul.f32 %v6095, %v8433
        %v8482 = vmul.f32 %v6096, %v8437
        %v8483 = vmul.f32 %v6097, %v8441
        %v8484 = vmul.f32 %v6098, %v8445
        %v8485 = vmul.f32 %v6099, %v8449
        %v8486 = vmul.f32 %v6100, %v8453
        %v8487 = vsel %vm5991, %v8455, 0.0
        %v8488 = vsel %vm5991, %v8456, 0.0
        %v8489 = vadd.f32 %v8487, %v8488
        %v8490 = vsel %vm5991, %v8457, 0.0
        %v8491 = vadd.f32 %v8489, %v8490
        %v8492 = vsel %vm5991, %v8458, 0.0
        %v8493 = vadd.f32 %v8491, %v8492
        %v8494 = vsel %vm5991, %v8459, 0.0
        %v8495 = vadd.f32 %v8493, %v8494
        %v8496 = vsel %vm5991, %v8460, 0.0
        %v8497 = vadd.f32 %v8495, %v8496
        %v8498 = vsel %vm5991, %v8461, 0.0
        %v8499 = vadd.f32 %v8497, %v8498
        %v8500 = vsel %vm5991, %v8462, 0.0
        %v8501 = vadd.f32 %v8499, %v8500
        %v8502 = vrot.slane %v8501, 4
        %v8503 = vadd.f32 %v8501, %v8502
        %v8504 = vrot.slane %v8503, 2
        %v8505 = vadd.f32 %v8503, %v8504
        %v8506 = vrot.slane %v8505, 1
        %v8507 = vadd.f32 %v8505, %v8506
        %v8508 = vsel %vm5991, %v8463, 0.0
        %v8509 = vsel %vm5991, %v8464, 0.0
        %v8510 = vadd.f32 %v8508, %v8509
        %v8511 = vsel %vm5991, %v8465, 0.0
        %v8512 = vadd.f32 %v8510, %v8511
        %v8513 = vsel %vm5991, %v8466, 0.0
        %v8514 = vadd.f32 %v8512, %v8513
        %v8515 = vsel %vm5991, %v8467, 0.0
        %v8516 = vadd.f32 %v8514, %v8515
        %v8517 = vsel %vm5991, %v8468, 0.0
        %v8518 = vadd.f32 %v8516, %v8517
        %v8519 = vsel %vm5991, %v8469, 0.0
        %v8520 = vadd.f32 %v8518, %v8519
        %v8521 = vsel %vm5991, %v8470, 0.0
        %v8522 = vadd.f32 %v8520, %v8521
        %v8523 = vrot.slane %v8522, 4
        %v8524 = vadd.f32 %v8522, %v8523
        %v8525 = vrot.slane %v8524, 2
        %v8526 = vadd.f32 %v8524, %v8525
        %v8527 = vrot.slane %v8526, 1
        %v8528 = vadd.f32 %v8526, %v8527
        %v8529 = vsel %vm5991, %v8471, 0.0
        %v8530 = vsel %vm5991, %v8472, 0.0
        %v8531 = vadd.f32 %v8529, %v8530
        %v8532 = vsel %vm5991, %v8473, 0.0
        %v8533 = vadd.f32 %v8531, %v8532
        %v8534 = vsel %vm5991, %v8474, 0.0
        %v8535 = vadd.f32 %v8533, %v8534
        %v8536 = vsel %vm5991, %v8475, 0.0
        %v8537 = vadd.f32 %v8535, %v8536
        %v8538 = vsel %vm5991, %v8476, 0.0
        %v8539 = vadd.f32 %v8537, %v8538
        %v8540 = vsel %vm5991, %v8477, 0.0
        %v8541 = vadd.f32 %v8539, %v8540
        %v8542 = vsel %vm5991, %v8478, 0.0
        %v8543 = vadd.f32 %v8541, %v8542
        %v8544 = vrot.slane %v8543, 4
        %v8545 = vadd.f32 %v8543, %v8544
        %v8546 = vrot.slane %v8545, 2
        %v8547 = vadd.f32 %v8545, %v8546
        %v8548 = vrot.slane %v8547, 1
        %v8549 = vadd.f32 %v8547, %v8548
        %v8550 = vsel %vm5991, %v8479, 0.0
        %v8551 = vsel %vm5991, %v8480, 0.0
        %v8552 = vadd.f32 %v8550, %v8551
        %v8553 = vsel %vm5991, %v8481, 0.0
        %v8554 = vadd.f32 %v8552, %v8553
        %v8555 = vsel %vm5991, %v8482, 0.0
        %v8556 = vadd.f32 %v8554, %v8555
        %v8557 = vsel %vm5991, %v8483, 0.0
        %v8558 = vadd.f32 %v8556, %v8557
        %v8559 = vsel %vm5991, %v8484, 0.0
        %v8560 = vadd.f32 %v8558, %v8559
        %v8561 = vsel %vm5991, %v8485, 0.0
        %v8562 = vadd.f32 %v8560, %v8561
        %v8563 = vsel %vm5991, %v8486, 0.0
        %v8564 = vadd.f32 %v8562, %v8563
        %v8565 = vrot.slane %v8564, 4
        %v8566 = vadd.f32 %v8564, %v8565
        %v8567 = vrot.slane %v8566, 2
        %v8568 = vadd.f32 %v8566, %v8567
        %v8569 = vrot.slane %v8568, 1
        %v8570 = vadd.f32 %v8568, %v8569
        %8575 = vrot.lane.b32.xlu0 %v8507, 125
        %v8576 = vpop.permute.xlu0 %8575
        %8577 = vrot.lane.b32.xlu0 %v8528, 125
        %v8578 = vpop.permute.xlu0 %8577
        %8579 = vrot.lane.b32.xlu0 %v8549, 125
        %v8580 = vpop.permute.xlu0 %8579
        %8581 = vrot.lane.b32.xlu0 %v8570, 125
        %v8582 = vpop.permute.xlu0 %8581
        %v8587 = vadd.f32 %v7915, %v8576
        %v8588 = vadd.f32 %v7916, %v8578
        %v8589 = vadd.f32 %v7917, %v8580
        %v8590 = vadd.f32 %v7918, %v8582
        %8591 = vset.pattern.permute.xlu0 3
        %8592 = vperm.xlu0 %8591, %v6048
        %v8593 = vpop.permute.xlu0 %8592
        %8595 = vset.pattern.permute.xlu0 3
        %8596 = vperm.xlu0 %8595, %v6049
        %v8597 = vpop.permute.xlu0 %8596
        %8599 = vset.pattern.permute.xlu0 3
        %8600 = vperm.xlu0 %8599, %v6050
        %v8601 = vpop.permute.xlu0 %8600
        %8603 = vset.pattern.permute.xlu0 3
        %8604 = vperm.xlu0 %8603, %v6051
        %v8605 = vpop.permute.xlu0 %8604
        %8607 = vset.pattern.permute.xlu0 3
        %8608 = vperm.xlu0 %8607, %v6052
        %v8609 = vpop.permute.xlu0 %8608
        %8611 = vset.pattern.permute.xlu0 3
        %8612 = vperm.xlu0 %8611, %v6053
        %v8613 = vpop.permute.xlu0 %8612
        %8615 = vset.pattern.permute.xlu0 3
        %8616 = vperm.xlu0 %8615, %v6054
        %v8617 = vpop.permute.xlu0 %8616
        %8619 = vset.pattern.permute.xlu0 3
        %8620 = vperm.xlu0 %8619, %v6055
        %v8621 = vpop.permute.xlu0 %8620
        %v8623 = vmul.f32 %v6069, %v8593
        %v8624 = vmul.f32 %v6070, %v8597
        %v8625 = vmul.f32 %v6071, %v8601
        %v8626 = vmul.f32 %v6072, %v8605
        %v8627 = vmul.f32 %v6073, %v8609
        %v8628 = vmul.f32 %v6074, %v8613
        %v8629 = vmul.f32 %v6075, %v8617
        %v8630 = vmul.f32 %v6076, %v8621
        %v8631 = vmul.f32 %v6077, %v8593
        %v8632 = vmul.f32 %v6078, %v8597
        %v8633 = vmul.f32 %v6079, %v8601
        %v8634 = vmul.f32 %v6080, %v8605
        %v8635 = vmul.f32 %v6081, %v8609
        %v8636 = vmul.f32 %v6082, %v8613
        %v8637 = vmul.f32 %v6083, %v8617
        %v8638 = vmul.f32 %v6084, %v8621
        %v8639 = vmul.f32 %v6085, %v8593
        %v8640 = vmul.f32 %v6086, %v8597
        %v8641 = vmul.f32 %v6087, %v8601
        %v8642 = vmul.f32 %v6088, %v8605
        %v8643 = vmul.f32 %v6089, %v8609
        %v8644 = vmul.f32 %v6090, %v8613
        %v8645 = vmul.f32 %v6091, %v8617
        %v8646 = vmul.f32 %v6092, %v8621
        %v8647 = vmul.f32 %v6093, %v8593
        %v8648 = vmul.f32 %v6094, %v8597
        %v8649 = vmul.f32 %v6095, %v8601
        %v8650 = vmul.f32 %v6096, %v8605
        %v8651 = vmul.f32 %v6097, %v8609
        %v8652 = vmul.f32 %v6098, %v8613
        %v8653 = vmul.f32 %v6099, %v8617
        %v8654 = vmul.f32 %v6100, %v8621
        %v8655 = vsel %vm5991, %v8623, 0.0
        %v8656 = vsel %vm5991, %v8624, 0.0
        %v8657 = vadd.f32 %v8655, %v8656
        %v8658 = vsel %vm5991, %v8625, 0.0
        %v8659 = vadd.f32 %v8657, %v8658
        %v8660 = vsel %vm5991, %v8626, 0.0
        %v8661 = vadd.f32 %v8659, %v8660
        %v8662 = vsel %vm5991, %v8627, 0.0
        %v8663 = vadd.f32 %v8661, %v8662
        %v8664 = vsel %vm5991, %v8628, 0.0
        %v8665 = vadd.f32 %v8663, %v8664
        %v8666 = vsel %vm5991, %v8629, 0.0
        %v8667 = vadd.f32 %v8665, %v8666
        %v8668 = vsel %vm5991, %v8630, 0.0
        %v8669 = vadd.f32 %v8667, %v8668
        %v8670 = vrot.slane %v8669, 4
        %v8671 = vadd.f32 %v8669, %v8670
        %v8672 = vrot.slane %v8671, 2
        %v8673 = vadd.f32 %v8671, %v8672
        %v8674 = vrot.slane %v8673, 1
        %v8675 = vadd.f32 %v8673, %v8674
        %v8676 = vsel %vm5991, %v8631, 0.0
        %v8677 = vsel %vm5991, %v8632, 0.0
        %v8678 = vadd.f32 %v8676, %v8677
        %v8679 = vsel %vm5991, %v8633, 0.0
        %v8680 = vadd.f32 %v8678, %v8679
        %v8681 = vsel %vm5991, %v8634, 0.0
        %v8682 = vadd.f32 %v8680, %v8681
        %v8683 = vsel %vm5991, %v8635, 0.0
        %v8684 = vadd.f32 %v8682, %v8683
        %v8685 = vsel %vm5991, %v8636, 0.0
        %v8686 = vadd.f32 %v8684, %v8685
        %v8687 = vsel %vm5991, %v8637, 0.0
        %v8688 = vadd.f32 %v8686, %v8687
        %v8689 = vsel %vm5991, %v8638, 0.0
        %v8690 = vadd.f32 %v8688, %v8689
        %v8691 = vrot.slane %v8690, 4
        %v8692 = vadd.f32 %v8690, %v8691
        %v8693 = vrot.slane %v8692, 2
        %v8694 = vadd.f32 %v8692, %v8693
        %v8695 = vrot.slane %v8694, 1
        %v8696 = vadd.f32 %v8694, %v8695
        %v8697 = vsel %vm5991, %v8639, 0.0
        %v8698 = vsel %vm5991, %v8640, 0.0
        %v8699 = vadd.f32 %v8697, %v8698
        %v8700 = vsel %vm5991, %v8641, 0.0
        %v8701 = vadd.f32 %v8699, %v8700
        %v8702 = vsel %vm5991, %v8642, 0.0
        %v8703 = vadd.f32 %v8701, %v8702
        %v8704 = vsel %vm5991, %v8643, 0.0
        %v8705 = vadd.f32 %v8703, %v8704
        %v8706 = vsel %vm5991, %v8644, 0.0
        %v8707 = vadd.f32 %v8705, %v8706
        %v8708 = vsel %vm5991, %v8645, 0.0
        %v8709 = vadd.f32 %v8707, %v8708
        %v8710 = vsel %vm5991, %v8646, 0.0
        %v8711 = vadd.f32 %v8709, %v8710
        %v8712 = vrot.slane %v8711, 4
        %v8713 = vadd.f32 %v8711, %v8712
        %v8714 = vrot.slane %v8713, 2
        %v8715 = vadd.f32 %v8713, %v8714
        %v8716 = vrot.slane %v8715, 1
        %v8717 = vadd.f32 %v8715, %v8716
        %v8718 = vsel %vm5991, %v8647, 0.0
        %v8719 = vsel %vm5991, %v8648, 0.0
        %v8720 = vadd.f32 %v8718, %v8719
        %v8721 = vsel %vm5991, %v8649, 0.0
        %v8722 = vadd.f32 %v8720, %v8721
        %v8723 = vsel %vm5991, %v8650, 0.0
        %v8724 = vadd.f32 %v8722, %v8723
        %v8725 = vsel %vm5991, %v8651, 0.0
        %v8726 = vadd.f32 %v8724, %v8725
        %v8727 = vsel %vm5991, %v8652, 0.0
        %v8728 = vadd.f32 %v8726, %v8727
        %v8729 = vsel %vm5991, %v8653, 0.0
        %v8730 = vadd.f32 %v8728, %v8729
        %v8731 = vsel %vm5991, %v8654, 0.0
        %v8732 = vadd.f32 %v8730, %v8731
        %v8733 = vrot.slane %v8732, 4
        %v8734 = vadd.f32 %v8732, %v8733
        %v8735 = vrot.slane %v8734, 2
        %v8736 = vadd.f32 %v8734, %v8735
        %v8737 = vrot.slane %v8736, 1
        %v8738 = vadd.f32 %v8736, %v8737
        %8743 = vrot.lane.b32.xlu0 %v8675, 125
        %v8744 = vpop.permute.xlu0 %8743
        %8745 = vrot.lane.b32.xlu0 %v8696, 125
        %v8746 = vpop.permute.xlu0 %8745
        %8747 = vrot.lane.b32.xlu0 %v8717, 125
        %v8748 = vpop.permute.xlu0 %8747
        %8749 = vrot.lane.b32.xlu0 %v8738, 125
        %v8750 = vpop.permute.xlu0 %8749
        %v8755 = vadd.f32 %v8083, %v8744
        %v8756 = vadd.f32 %v8084, %v8746
        %v8757 = vadd.f32 %v8085, %v8748
        %v8758 = vadd.f32 %v8086, %v8750
        %8759 = vset.pattern.permute.xlu0 4
        %8760 = vperm.xlu0 %8759, %v6024
        %v8761 = vpop.permute.xlu0 %8760
        %8763 = vset.pattern.permute.xlu0 4
        %8764 = vperm.xlu0 %8763, %v6025
        %v8765 = vpop.permute.xlu0 %8764
        %8767 = vset.pattern.permute.xlu0 4
        %8768 = vperm.xlu0 %8767, %v6026
        %v8769 = vpop.permute.xlu0 %8768
        %8771 = vset.pattern.permute.xlu0 4
        %8772 = vperm.xlu0 %8771, %v6027
        %v8773 = vpop.permute.xlu0 %8772
        %8775 = vset.pattern.permute.xlu0 4
        %8776 = vperm.xlu0 %8775, %v6028
        %v8777 = vpop.permute.xlu0 %8776
        %8779 = vset.pattern.permute.xlu0 4
        %8780 = vperm.xlu0 %8779, %v6029
        %v8781 = vpop.permute.xlu0 %8780
        %8783 = vset.pattern.permute.xlu0 4
        %8784 = vperm.xlu0 %8783, %v6030
        %v8785 = vpop.permute.xlu0 %8784
        %8787 = vset.pattern.permute.xlu0 4
        %8788 = vperm.xlu0 %8787, %v6031
        %v8789 = vpop.permute.xlu0 %8788
        %v8791 = vmul.f32 %v6069, %v8761
        %v8792 = vmul.f32 %v6070, %v8765
        %v8793 = vmul.f32 %v6071, %v8769
        %v8794 = vmul.f32 %v6072, %v8773
        %v8795 = vmul.f32 %v6073, %v8777
        %v8796 = vmul.f32 %v6074, %v8781
        %v8797 = vmul.f32 %v6075, %v8785
        %v8798 = vmul.f32 %v6076, %v8789
        %v8799 = vmul.f32 %v6077, %v8761
        %v8800 = vmul.f32 %v6078, %v8765
        %v8801 = vmul.f32 %v6079, %v8769
        %v8802 = vmul.f32 %v6080, %v8773
        %v8803 = vmul.f32 %v6081, %v8777
        %v8804 = vmul.f32 %v6082, %v8781
        %v8805 = vmul.f32 %v6083, %v8785
        %v8806 = vmul.f32 %v6084, %v8789
        %v8807 = vmul.f32 %v6085, %v8761
        %v8808 = vmul.f32 %v6086, %v8765
        %v8809 = vmul.f32 %v6087, %v8769
        %v8810 = vmul.f32 %v6088, %v8773
        %v8811 = vmul.f32 %v6089, %v8777
        %v8812 = vmul.f32 %v6090, %v8781
        %v8813 = vmul.f32 %v6091, %v8785
        %v8814 = vmul.f32 %v6092, %v8789
        %v8815 = vmul.f32 %v6093, %v8761
        %v8816 = vmul.f32 %v6094, %v8765
        %v8817 = vmul.f32 %v6095, %v8769
        %v8818 = vmul.f32 %v6096, %v8773
        %v8819 = vmul.f32 %v6097, %v8777
        %v8820 = vmul.f32 %v6098, %v8781
        %v8821 = vmul.f32 %v6099, %v8785
        %v8822 = vmul.f32 %v6100, %v8789
        %vm8823 = vcmask 162848
        %v8824 = vsel %vm8823, %v8791, 0.0
        %v8825 = vsel %vm8823, %v8792, 0.0
        %v8826 = vadd.f32 %v8824, %v8825
        %v8827 = vsel %vm8823, %v8793, 0.0
        %v8828 = vadd.f32 %v8826, %v8827
        %v8829 = vsel %vm8823, %v8794, 0.0
        %v8830 = vadd.f32 %v8828, %v8829
        %v8831 = vsel %vm8823, %v8795, 0.0
        %v8832 = vadd.f32 %v8830, %v8831
        %v8833 = vsel %vm8823, %v8796, 0.0
        %v8834 = vadd.f32 %v8832, %v8833
        %v8835 = vsel %vm8823, %v8797, 0.0
        %v8836 = vadd.f32 %v8834, %v8835
        %v8837 = vsel %vm8823, %v8798, 0.0
        %v8838 = vadd.f32 %v8836, %v8837
        %v8839 = vrot.slane %v8838, 4
        %v8840 = vadd.f32 %v8838, %v8839
        %v8841 = vrot.slane %v8840, 2
        %v8842 = vadd.f32 %v8840, %v8841
        %v8843 = vrot.slane %v8842, 1
        %v8844 = vadd.f32 %v8842, %v8843
        %v8845 = vsel %vm8823, %v8799, 0.0
        %v8846 = vsel %vm8823, %v8800, 0.0
        %v8847 = vadd.f32 %v8845, %v8846
        %v8848 = vsel %vm8823, %v8801, 0.0
        %v8849 = vadd.f32 %v8847, %v8848
        %v8850 = vsel %vm8823, %v8802, 0.0
        %v8851 = vadd.f32 %v8849, %v8850
        %v8852 = vsel %vm8823, %v8803, 0.0
        %v8853 = vadd.f32 %v8851, %v8852
        %v8854 = vsel %vm8823, %v8804, 0.0
        %v8855 = vadd.f32 %v8853, %v8854
        %v8856 = vsel %vm8823, %v8805, 0.0
        %v8857 = vadd.f32 %v8855, %v8856
        %v8858 = vsel %vm8823, %v8806, 0.0
        %v8859 = vadd.f32 %v8857, %v8858
        %v8860 = vrot.slane %v8859, 4
        %v8861 = vadd.f32 %v8859, %v8860
        %v8862 = vrot.slane %v8861, 2
        %v8863 = vadd.f32 %v8861, %v8862
        %v8864 = vrot.slane %v8863, 1
        %v8865 = vadd.f32 %v8863, %v8864
        %v8866 = vsel %vm8823, %v8807, 0.0
        %v8867 = vsel %vm8823, %v8808, 0.0
        %v8868 = vadd.f32 %v8866, %v8867
        %v8869 = vsel %vm8823, %v8809, 0.0
        %v8870 = vadd.f32 %v8868, %v8869
        %v8871 = vsel %vm8823, %v8810, 0.0
        %v8872 = vadd.f32 %v8870, %v8871
        %v8873 = vsel %vm8823, %v8811, 0.0
        %v8874 = vadd.f32 %v8872, %v8873
        %v8875 = vsel %vm8823, %v8812, 0.0
        %v8876 = vadd.f32 %v8874, %v8875
        %v8877 = vsel %vm8823, %v8813, 0.0
        %v8878 = vadd.f32 %v8876, %v8877
        %v8879 = vsel %vm8823, %v8814, 0.0
        %v8880 = vadd.f32 %v8878, %v8879
        %v8881 = vrot.slane %v8880, 4
        %v8882 = vadd.f32 %v8880, %v8881
        %v8883 = vrot.slane %v8882, 2
        %v8884 = vadd.f32 %v8882, %v8883
        %v8885 = vrot.slane %v8884, 1
        %v8886 = vadd.f32 %v8884, %v8885
        %v8887 = vsel %vm8823, %v8815, 0.0
        %v8888 = vsel %vm8823, %v8816, 0.0
        %v8889 = vadd.f32 %v8887, %v8888
        %v8890 = vsel %vm8823, %v8817, 0.0
        %v8891 = vadd.f32 %v8889, %v8890
        %v8892 = vsel %vm8823, %v8818, 0.0
        %v8893 = vadd.f32 %v8891, %v8892
        %v8894 = vsel %vm8823, %v8819, 0.0
        %v8895 = vadd.f32 %v8893, %v8894
        %v8896 = vsel %vm8823, %v8820, 0.0
        %v8897 = vadd.f32 %v8895, %v8896
        %v8898 = vsel %vm8823, %v8821, 0.0
        %v8899 = vadd.f32 %v8897, %v8898
        %v8900 = vsel %vm8823, %v8822, 0.0
        %v8901 = vadd.f32 %v8899, %v8900
        %v8902 = vrot.slane %v8901, 4
        %v8903 = vadd.f32 %v8901, %v8902
        %v8904 = vrot.slane %v8903, 2
        %v8905 = vadd.f32 %v8903, %v8904
        %v8906 = vrot.slane %v8905, 1
        %v8907 = vadd.f32 %v8905, %v8906
        %8912 = vrot.lane.b32.xlu0 %v8844, 124
        %v8913 = vpop.permute.xlu0 %8912
        %8914 = vrot.lane.b32.xlu0 %v8865, 124
        %v8915 = vpop.permute.xlu0 %8914
        %8916 = vrot.lane.b32.xlu0 %v8886, 124
        %v8917 = vpop.permute.xlu0 %8916
        %8918 = vrot.lane.b32.xlu0 %v8907, 124
        %v8919 = vpop.permute.xlu0 %8918
        %v8924 = vadd.f32 %v8251, %v8913
        %v8925 = vadd.f32 %v8252, %v8915
        %v8926 = vadd.f32 %v8253, %v8917
        %v8927 = vadd.f32 %v8254, %v8919
        %8928 = vset.pattern.permute.xlu0 4
        %8929 = vperm.xlu0 %8928, %v6032
        %v8930 = vpop.permute.xlu0 %8929
        %8932 = vset.pattern.permute.xlu0 4
        %8933 = vperm.xlu0 %8932, %v6033
        %v8934 = vpop.permute.xlu0 %8933
        %8936 = vset.pattern.permute.xlu0 4
        %8937 = vperm.xlu0 %8936, %v6034
        %v8938 = vpop.permute.xlu0 %8937
        %8940 = vset.pattern.permute.xlu0 4
        %8941 = vperm.xlu0 %8940, %v6035
        %v8942 = vpop.permute.xlu0 %8941
        %8944 = vset.pattern.permute.xlu0 4
        %8945 = vperm.xlu0 %8944, %v6036
        %v8946 = vpop.permute.xlu0 %8945
        %8948 = vset.pattern.permute.xlu0 4
        %8949 = vperm.xlu0 %8948, %v6037
        %v8950 = vpop.permute.xlu0 %8949
        %8952 = vset.pattern.permute.xlu0 4
        %8953 = vperm.xlu0 %8952, %v6038
        %v8954 = vpop.permute.xlu0 %8953
        %8956 = vset.pattern.permute.xlu0 4
        %8957 = vperm.xlu0 %8956, %v6039
        %v8958 = vpop.permute.xlu0 %8957
        %v8960 = vmul.f32 %v6069, %v8930
        %v8961 = vmul.f32 %v6070, %v8934
        %v8962 = vmul.f32 %v6071, %v8938
        %v8963 = vmul.f32 %v6072, %v8942
        %v8964 = vmul.f32 %v6073, %v8946
        %v8965 = vmul.f32 %v6074, %v8950
        %v8966 = vmul.f32 %v6075, %v8954
        %v8967 = vmul.f32 %v6076, %v8958
        %v8968 = vmul.f32 %v6077, %v8930
        %v8969 = vmul.f32 %v6078, %v8934
        %v8970 = vmul.f32 %v6079, %v8938
        %v8971 = vmul.f32 %v6080, %v8942
        %v8972 = vmul.f32 %v6081, %v8946
        %v8973 = vmul.f32 %v6082, %v8950
        %v8974 = vmul.f32 %v6083, %v8954
        %v8975 = vmul.f32 %v6084, %v8958
        %v8976 = vmul.f32 %v6085, %v8930
        %v8977 = vmul.f32 %v6086, %v8934
        %v8978 = vmul.f32 %v6087, %v8938
        %v8979 = vmul.f32 %v6088, %v8942
        %v8980 = vmul.f32 %v6089, %v8946
        %v8981 = vmul.f32 %v6090, %v8950
        %v8982 = vmul.f32 %v6091, %v8954
        %v8983 = vmul.f32 %v6092, %v8958
        %v8984 = vmul.f32 %v6093, %v8930
        %v8985 = vmul.f32 %v6094, %v8934
        %v8986 = vmul.f32 %v6095, %v8938
        %v8987 = vmul.f32 %v6096, %v8942
        %v8988 = vmul.f32 %v6097, %v8946
        %v8989 = vmul.f32 %v6098, %v8950
        %v8990 = vmul.f32 %v6099, %v8954
        %v8991 = vmul.f32 %v6100, %v8958
        %v8992 = vsel %vm8823, %v8960, 0.0
        %v8993 = vsel %vm8823, %v8961, 0.0
        %v8994 = vadd.f32 %v8992, %v8993
        %v8995 = vsel %vm8823, %v8962, 0.0
        %v8996 = vadd.f32 %v8994, %v8995
        %v8997 = vsel %vm8823, %v8963, 0.0
        %v8998 = vadd.f32 %v8996, %v8997
        %v8999 = vsel %vm8823, %v8964, 0.0
        %v9000 = vadd.f32 %v8998, %v8999
        %v9001 = vsel %vm8823, %v8965, 0.0
        %v9002 = vadd.f32 %v9000, %v9001
        %v9003 = vsel %vm8823, %v8966, 0.0
        %v9004 = vadd.f32 %v9002, %v9003
        %v9005 = vsel %vm8823, %v8967, 0.0
        %v9006 = vadd.f32 %v9004, %v9005
        %v9007 = vrot.slane %v9006, 4
        %v9008 = vadd.f32 %v9006, %v9007
        %v9009 = vrot.slane %v9008, 2
        %v9010 = vadd.f32 %v9008, %v9009
        %v9011 = vrot.slane %v9010, 1
        %v9012 = vadd.f32 %v9010, %v9011
        %v9013 = vsel %vm8823, %v8968, 0.0
        %v9014 = vsel %vm8823, %v8969, 0.0
        %v9015 = vadd.f32 %v9013, %v9014
        %v9016 = vsel %vm8823, %v8970, 0.0
        %v9017 = vadd.f32 %v9015, %v9016
        %v9018 = vsel %vm8823, %v8971, 0.0
        %v9019 = vadd.f32 %v9017, %v9018
        %v9020 = vsel %vm8823, %v8972, 0.0
        %v9021 = vadd.f32 %v9019, %v9020
        %v9022 = vsel %vm8823, %v8973, 0.0
        %v9023 = vadd.f32 %v9021, %v9022
        %v9024 = vsel %vm8823, %v8974, 0.0
        %v9025 = vadd.f32 %v9023, %v9024
        %v9026 = vsel %vm8823, %v8975, 0.0
        %v9027 = vadd.f32 %v9025, %v9026
        %v9028 = vrot.slane %v9027, 4
        %v9029 = vadd.f32 %v9027, %v9028
        %v9030 = vrot.slane %v9029, 2
        %v9031 = vadd.f32 %v9029, %v9030
        %v9032 = vrot.slane %v9031, 1
        %v9033 = vadd.f32 %v9031, %v9032
        %v9034 = vsel %vm8823, %v8976, 0.0
        %v9035 = vsel %vm8823, %v8977, 0.0
        %v9036 = vadd.f32 %v9034, %v9035
        %v9037 = vsel %vm8823, %v8978, 0.0
        %v9038 = vadd.f32 %v9036, %v9037
        %v9039 = vsel %vm8823, %v8979, 0.0
        %v9040 = vadd.f32 %v9038, %v9039
        %v9041 = vsel %vm8823, %v8980, 0.0
        %v9042 = vadd.f32 %v9040, %v9041
        %v9043 = vsel %vm8823, %v8981, 0.0
        %v9044 = vadd.f32 %v9042, %v9043
        %v9045 = vsel %vm8823, %v8982, 0.0
        %v9046 = vadd.f32 %v9044, %v9045
        %v9047 = vsel %vm8823, %v8983, 0.0
        %v9048 = vadd.f32 %v9046, %v9047
        %v9049 = vrot.slane %v9048, 4
        %v9050 = vadd.f32 %v9048, %v9049
        %v9051 = vrot.slane %v9050, 2
        %v9052 = vadd.f32 %v9050, %v9051
        %v9053 = vrot.slane %v9052, 1
        %v9054 = vadd.f32 %v9052, %v9053
        %v9055 = vsel %vm8823, %v8984, 0.0
        %v9056 = vsel %vm8823, %v8985, 0.0
        %v9057 = vadd.f32 %v9055, %v9056
        %v9058 = vsel %vm8823, %v8986, 0.0
        %v9059 = vadd.f32 %v9057, %v9058
        %v9060 = vsel %vm8823, %v8987, 0.0
        %v9061 = vadd.f32 %v9059, %v9060
        %v9062 = vsel %vm8823, %v8988, 0.0
        %v9063 = vadd.f32 %v9061, %v9062
        %v9064 = vsel %vm8823, %v8989, 0.0
        %v9065 = vadd.f32 %v9063, %v9064
        %v9066 = vsel %vm8823, %v8990, 0.0
        %v9067 = vadd.f32 %v9065, %v9066
        %v9068 = vsel %vm8823, %v8991, 0.0
        %v9069 = vadd.f32 %v9067, %v9068
        %v9070 = vrot.slane %v9069, 4
        %v9071 = vadd.f32 %v9069, %v9070
        %v9072 = vrot.slane %v9071, 2
        %v9073 = vadd.f32 %v9071, %v9072
        %v9074 = vrot.slane %v9073, 1
        %v9075 = vadd.f32 %v9073, %v9074
        %9080 = vrot.lane.b32.xlu0 %v9012, 124
        %v9081 = vpop.permute.xlu0 %9080
        %9082 = vrot.lane.b32.xlu0 %v9033, 124
        %v9083 = vpop.permute.xlu0 %9082
        %9084 = vrot.lane.b32.xlu0 %v9054, 124
        %v9085 = vpop.permute.xlu0 %9084
        %9086 = vrot.lane.b32.xlu0 %v9075, 124
        %v9087 = vpop.permute.xlu0 %9086
        %v9092 = vadd.f32 %v8419, %v9081
        %v9093 = vadd.f32 %v8420, %v9083
        %v9094 = vadd.f32 %v8421, %v9085
        %v9095 = vadd.f32 %v8422, %v9087
        %9096 = vset.pattern.permute.xlu0 4
        %9097 = vperm.xlu0 %9096, %v6040
        %v9098 = vpop.permute.xlu0 %9097
        %9100 = vset.pattern.permute.xlu0 4
        %9101 = vperm.xlu0 %9100, %v6041
        %v9102 = vpop.permute.xlu0 %9101
        %9104 = vset.pattern.permute.xlu0 4
        %9105 = vperm.xlu0 %9104, %v6042
        %v9106 = vpop.permute.xlu0 %9105
        %9108 = vset.pattern.permute.xlu0 4
        %9109 = vperm.xlu0 %9108, %v6043
        %v9110 = vpop.permute.xlu0 %9109
        %9112 = vset.pattern.permute.xlu0 4
        %9113 = vperm.xlu0 %9112, %v6044
        %v9114 = vpop.permute.xlu0 %9113
        %9116 = vset.pattern.permute.xlu0 4
        %9117 = vperm.xlu0 %9116, %v6045
        %v9118 = vpop.permute.xlu0 %9117
        %9120 = vset.pattern.permute.xlu0 4
        %9121 = vperm.xlu0 %9120, %v6046
        %v9122 = vpop.permute.xlu0 %9121
        %9124 = vset.pattern.permute.xlu0 4
        %9125 = vperm.xlu0 %9124, %v6047
        %v9126 = vpop.permute.xlu0 %9125
        %v9128 = vmul.f32 %v6069, %v9098
        %v9129 = vmul.f32 %v6070, %v9102
        %v9130 = vmul.f32 %v6071, %v9106
        %v9131 = vmul.f32 %v6072, %v9110
        %v9132 = vmul.f32 %v6073, %v9114
        %v9133 = vmul.f32 %v6074, %v9118
        %v9134 = vmul.f32 %v6075, %v9122
        %v9135 = vmul.f32 %v6076, %v9126
        %v9136 = vmul.f32 %v6077, %v9098
        %v9137 = vmul.f32 %v6078, %v9102
        %v9138 = vmul.f32 %v6079, %v9106
        %v9139 = vmul.f32 %v6080, %v9110
        %v9140 = vmul.f32 %v6081, %v9114
        %v9141 = vmul.f32 %v6082, %v9118
        %v9142 = vmul.f32 %v6083, %v9122
        %v9143 = vmul.f32 %v6084, %v9126
        %v9144 = vmul.f32 %v6085, %v9098
        %v9145 = vmul.f32 %v6086, %v9102
        %v9146 = vmul.f32 %v6087, %v9106
        %v9147 = vmul.f32 %v6088, %v9110
        %v9148 = vmul.f32 %v6089, %v9114
        %v9149 = vmul.f32 %v6090, %v9118
        %v9150 = vmul.f32 %v6091, %v9122
        %v9151 = vmul.f32 %v6092, %v9126
        %v9152 = vmul.f32 %v6093, %v9098
        %v9153 = vmul.f32 %v6094, %v9102
        %v9154 = vmul.f32 %v6095, %v9106
        %v9155 = vmul.f32 %v6096, %v9110
        %v9156 = vmul.f32 %v6097, %v9114
        %v9157 = vmul.f32 %v6098, %v9118
        %v9158 = vmul.f32 %v6099, %v9122
        %v9159 = vmul.f32 %v6100, %v9126
        %v9160 = vsel %vm8823, %v9128, 0.0
        %v9161 = vsel %vm8823, %v9129, 0.0
        %v9162 = vadd.f32 %v9160, %v9161
        %v9163 = vsel %vm8823, %v9130, 0.0
        %v9164 = vadd.f32 %v9162, %v9163
        %v9165 = vsel %vm8823, %v9131, 0.0
        %v9166 = vadd.f32 %v9164, %v9165
        %v9167 = vsel %vm8823, %v9132, 0.0
        %v9168 = vadd.f32 %v9166, %v9167
        %v9169 = vsel %vm8823, %v9133, 0.0
        %v9170 = vadd.f32 %v9168, %v9169
        %v9171 = vsel %vm8823, %v9134, 0.0
        %v9172 = vadd.f32 %v9170, %v9171
        %v9173 = vsel %vm8823, %v9135, 0.0
        %v9174 = vadd.f32 %v9172, %v9173
        %v9175 = vrot.slane %v9174, 4
        %v9176 = vadd.f32 %v9174, %v9175
        %v9177 = vrot.slane %v9176, 2
        %v9178 = vadd.f32 %v9176, %v9177
        %v9179 = vrot.slane %v9178, 1
        %v9180 = vadd.f32 %v9178, %v9179
        %v9181 = vsel %vm8823, %v9136, 0.0
        %v9182 = vsel %vm8823, %v9137, 0.0
        %v9183 = vadd.f32 %v9181, %v9182
        %v9184 = vsel %vm8823, %v9138, 0.0
        %v9185 = vadd.f32 %v9183, %v9184
        %v9186 = vsel %vm8823, %v9139, 0.0
        %v9187 = vadd.f32 %v9185, %v9186
        %v9188 = vsel %vm8823, %v9140, 0.0
        %v9189 = vadd.f32 %v9187, %v9188
        %v9190 = vsel %vm8823, %v9141, 0.0
        %v9191 = vadd.f32 %v9189, %v9190
        %v9192 = vsel %vm8823, %v9142, 0.0
        %v9193 = vadd.f32 %v9191, %v9192
        %v9194 = vsel %vm8823, %v9143, 0.0
        %v9195 = vadd.f32 %v9193, %v9194
        %v9196 = vrot.slane %v9195, 4
        %v9197 = vadd.f32 %v9195, %v9196
        %v9198 = vrot.slane %v9197, 2
        %v9199 = vadd.f32 %v9197, %v9198
        %v9200 = vrot.slane %v9199, 1
        %v9201 = vadd.f32 %v9199, %v9200
        %v9202 = vsel %vm8823, %v9144, 0.0
        %v9203 = vsel %vm8823, %v9145, 0.0
        %v9204 = vadd.f32 %v9202, %v9203
        %v9205 = vsel %vm8823, %v9146, 0.0
        %v9206 = vadd.f32 %v9204, %v9205
        %v9207 = vsel %vm8823, %v9147, 0.0
        %v9208 = vadd.f32 %v9206, %v9207
        %v9209 = vsel %vm8823, %v9148, 0.0
        %v9210 = vadd.f32 %v9208, %v9209
        %v9211 = vsel %vm8823, %v9149, 0.0
        %v9212 = vadd.f32 %v9210, %v9211
        %v9213 = vsel %vm8823, %v9150, 0.0
        %v9214 = vadd.f32 %v9212, %v9213
        %v9215 = vsel %vm8823, %v9151, 0.0
        %v9216 = vadd.f32 %v9214, %v9215
        %v9217 = vrot.slane %v9216, 4
        %v9218 = vadd.f32 %v9216, %v9217
        %v9219 = vrot.slane %v9218, 2
        %v9220 = vadd.f32 %v9218, %v9219
        %v9221 = vrot.slane %v9220, 1
        %v9222 = vadd.f32 %v9220, %v9221
        %v9223 = vsel %vm8823, %v9152, 0.0
        %v9224 = vsel %vm8823, %v9153, 0.0
        %v9225 = vadd.f32 %v9223, %v9224
        %v9226 = vsel %vm8823, %v9154, 0.0
        %v9227 = vadd.f32 %v9225, %v9226
        %v9228 = vsel %vm8823, %v9155, 0.0
        %v9229 = vadd.f32 %v9227, %v9228
        %v9230 = vsel %vm8823, %v9156, 0.0
        %v9231 = vadd.f32 %v9229, %v9230
        %v9232 = vsel %vm8823, %v9157, 0.0
        %v9233 = vadd.f32 %v9231, %v9232
        %v9234 = vsel %vm8823, %v9158, 0.0
        %v9235 = vadd.f32 %v9233, %v9234
        %v9236 = vsel %vm8823, %v9159, 0.0
        %v9237 = vadd.f32 %v9235, %v9236
        %v9238 = vrot.slane %v9237, 4
        %v9239 = vadd.f32 %v9237, %v9238
        %v9240 = vrot.slane %v9239, 2
        %v9241 = vadd.f32 %v9239, %v9240
        %v9242 = vrot.slane %v9241, 1
        %v9243 = vadd.f32 %v9241, %v9242
        %9248 = vrot.lane.b32.xlu0 %v9180, 124
        %v9249 = vpop.permute.xlu0 %9248
        %9250 = vrot.lane.b32.xlu0 %v9201, 124
        %v9251 = vpop.permute.xlu0 %9250
        %9252 = vrot.lane.b32.xlu0 %v9222, 124
        %v9253 = vpop.permute.xlu0 %9252
        %9254 = vrot.lane.b32.xlu0 %v9243, 124
        %v9255 = vpop.permute.xlu0 %9254
        %v9260 = vadd.f32 %v8587, %v9249
        %v9261 = vadd.f32 %v8588, %v9251
        %v9262 = vadd.f32 %v8589, %v9253
        %v9263 = vadd.f32 %v8590, %v9255
        %9264 = vset.pattern.permute.xlu0 4
        %9265 = vperm.xlu0 %9264, %v6048
        %v9266 = vpop.permute.xlu0 %9265
        %9268 = vset.pattern.permute.xlu0 4
        %9269 = vperm.xlu0 %9268, %v6049
        %v9270 = vpop.permute.xlu0 %9269
        %9272 = vset.pattern.permute.xlu0 4
        %9273 = vperm.xlu0 %9272, %v6050
        %v9274 = vpop.permute.xlu0 %9273
        %9276 = vset.pattern.permute.xlu0 4
        %9277 = vperm.xlu0 %9276, %v6051
        %v9278 = vpop.permute.xlu0 %9277
        %9280 = vset.pattern.permute.xlu0 4
        %9281 = vperm.xlu0 %9280, %v6052
        %v9282 = vpop.permute.xlu0 %9281
        %9284 = vset.pattern.permute.xlu0 4
        %9285 = vperm.xlu0 %9284, %v6053
        %v9286 = vpop.permute.xlu0 %9285
        %9288 = vset.pattern.permute.xlu0 4
        %9289 = vperm.xlu0 %9288, %v6054
        %v9290 = vpop.permute.xlu0 %9289
        %9292 = vset.pattern.permute.xlu0 4
        %9293 = vperm.xlu0 %9292, %v6055
        %v9294 = vpop.permute.xlu0 %9293
        %v9296 = vmul.f32 %v6069, %v9266
        %v9297 = vmul.f32 %v6070, %v9270
        %v9298 = vmul.f32 %v6071, %v9274
        %v9299 = vmul.f32 %v6072, %v9278
        %v9300 = vmul.f32 %v6073, %v9282
        %v9301 = vmul.f32 %v6074, %v9286
        %v9302 = vmul.f32 %v6075, %v9290
        %v9303 = vmul.f32 %v6076, %v9294
        %v9304 = vmul.f32 %v6077, %v9266
        %v9305 = vmul.f32 %v6078, %v9270
        %v9306 = vmul.f32 %v6079, %v9274
        %v9307 = vmul.f32 %v6080, %v9278
        %v9308 = vmul.f32 %v6081, %v9282
        %v9309 = vmul.f32 %v6082, %v9286
        %v9310 = vmul.f32 %v6083, %v9290
        %v9311 = vmul.f32 %v6084, %v9294
        %v9312 = vmul.f32 %v6085, %v9266
        %v9313 = vmul.f32 %v6086, %v9270
        %v9314 = vmul.f32 %v6087, %v9274
        %v9315 = vmul.f32 %v6088, %v9278
        %v9316 = vmul.f32 %v6089, %v9282
        %v9317 = vmul.f32 %v6090, %v9286
        %v9318 = vmul.f32 %v6091, %v9290
        %v9319 = vmul.f32 %v6092, %v9294
        %v9320 = vmul.f32 %v6093, %v9266
        %v9321 = vmul.f32 %v6094, %v9270
        %v9322 = vmul.f32 %v6095, %v9274
        %v9323 = vmul.f32 %v6096, %v9278
        %v9324 = vmul.f32 %v6097, %v9282
        %v9325 = vmul.f32 %v6098, %v9286
        %v9326 = vmul.f32 %v6099, %v9290
        %v9327 = vmul.f32 %v6100, %v9294
        %v9328 = vsel %vm8823, %v9296, 0.0
        %v9329 = vsel %vm8823, %v9297, 0.0
        %v9330 = vadd.f32 %v9328, %v9329
        %v9331 = vsel %vm8823, %v9298, 0.0
        %v9332 = vadd.f32 %v9330, %v9331
        %v9333 = vsel %vm8823, %v9299, 0.0
        %v9334 = vadd.f32 %v9332, %v9333
        %v9335 = vsel %vm8823, %v9300, 0.0
        %v9336 = vadd.f32 %v9334, %v9335
        %v9337 = vsel %vm8823, %v9301, 0.0
        %v9338 = vadd.f32 %v9336, %v9337
        %v9339 = vsel %vm8823, %v9302, 0.0
        %v9340 = vadd.f32 %v9338, %v9339
        %v9341 = vsel %vm8823, %v9303, 0.0
        %v9342 = vadd.f32 %v9340, %v9341
        %v9343 = vrot.slane %v9342, 4
        %v9344 = vadd.f32 %v9342, %v9343
        %v9345 = vrot.slane %v9344, 2
        %v9346 = vadd.f32 %v9344, %v9345
        %v9347 = vrot.slane %v9346, 1
        %v9348 = vadd.f32 %v9346, %v9347
        %v9349 = vsel %vm8823, %v9304, 0.0
        %v9350 = vsel %vm8823, %v9305, 0.0
        %v9351 = vadd.f32 %v9349, %v9350
        %v9352 = vsel %vm8823, %v9306, 0.0
        %v9353 = vadd.f32 %v9351, %v9352
        %v9354 = vsel %vm8823, %v9307, 0.0
        %v9355 = vadd.f32 %v9353, %v9354
        %v9356 = vsel %vm8823, %v9308, 0.0
        %v9357 = vadd.f32 %v9355, %v9356
        %v9358 = vsel %vm8823, %v9309, 0.0
        %v9359 = vadd.f32 %v9357, %v9358
        %v9360 = vsel %vm8823, %v9310, 0.0
        %v9361 = vadd.f32 %v9359, %v9360
        %v9362 = vsel %vm8823, %v9311, 0.0
        %v9363 = vadd.f32 %v9361, %v9362
        %v9364 = vrot.slane %v9363, 4
        %v9365 = vadd.f32 %v9363, %v9364
        %v9366 = vrot.slane %v9365, 2
        %v9367 = vadd.f32 %v9365, %v9366
        %v9368 = vrot.slane %v9367, 1
        %v9369 = vadd.f32 %v9367, %v9368
        %v9370 = vsel %vm8823, %v9312, 0.0
        %v9371 = vsel %vm8823, %v9313, 0.0
        %v9372 = vadd.f32 %v9370, %v9371
        %v9373 = vsel %vm8823, %v9314, 0.0
        %v9374 = vadd.f32 %v9372, %v9373
        %v9375 = vsel %vm8823, %v9315, 0.0
        %v9376 = vadd.f32 %v9374, %v9375
        %v9377 = vsel %vm8823, %v9316, 0.0
        %v9378 = vadd.f32 %v9376, %v9377
        %v9379 = vsel %vm8823, %v9317, 0.0
        %v9380 = vadd.f32 %v9378, %v9379
        %v9381 = vsel %vm8823, %v9318, 0.0
        %v9382 = vadd.f32 %v9380, %v9381
        %v9383 = vsel %vm8823, %v9319, 0.0
        %v9384 = vadd.f32 %v9382, %v9383
        %v9385 = vrot.slane %v9384, 4
        %v9386 = vadd.f32 %v9384, %v9385
        %v9387 = vrot.slane %v9386, 2
        %v9388 = vadd.f32 %v9386, %v9387
        %v9389 = vrot.slane %v9388, 1
        %v9390 = vadd.f32 %v9388, %v9389
        %v9391 = vsel %vm8823, %v9320, 0.0
        %v9392 = vsel %vm8823, %v9321, 0.0
        %v9393 = vadd.f32 %v9391, %v9392
        %v9394 = vsel %vm8823, %v9322, 0.0
        %v9395 = vadd.f32 %v9393, %v9394
        %v9396 = vsel %vm8823, %v9323, 0.0
        %v9397 = vadd.f32 %v9395, %v9396
        %v9398 = vsel %vm8823, %v9324, 0.0
        %v9399 = vadd.f32 %v9397, %v9398
        %v9400 = vsel %vm8823, %v9325, 0.0
        %v9401 = vadd.f32 %v9399, %v9400
        %v9402 = vsel %vm8823, %v9326, 0.0
        %v9403 = vadd.f32 %v9401, %v9402
        %v9404 = vsel %vm8823, %v9327, 0.0
        %v9405 = vadd.f32 %v9403, %v9404
        %v9406 = vrot.slane %v9405, 4
        %v9407 = vadd.f32 %v9405, %v9406
        %v9408 = vrot.slane %v9407, 2
        %v9409 = vadd.f32 %v9407, %v9408
        %v9410 = vrot.slane %v9409, 1
        %v9411 = vadd.f32 %v9409, %v9410
        %9416 = vrot.lane.b32.xlu0 %v9348, 124
        %v9417 = vpop.permute.xlu0 %9416
        %9418 = vrot.lane.b32.xlu0 %v9369, 124
        %v9419 = vpop.permute.xlu0 %9418
        %9420 = vrot.lane.b32.xlu0 %v9390, 124
        %v9421 = vpop.permute.xlu0 %9420
        %9422 = vrot.lane.b32.xlu0 %v9411, 124
        %v9423 = vpop.permute.xlu0 %9422
        %v9428 = vadd.f32 %v8755, %v9417
        %v9429 = vadd.f32 %v8756, %v9419
        %v9430 = vadd.f32 %v8757, %v9421
        %v9431 = vadd.f32 %v8758, %v9423
        %9432 = vset.pattern.permute.xlu0 5
        %9433 = vperm.xlu0 %9432, %v6024
        %v9434 = vpop.permute.xlu0 %9433
        %9436 = vset.pattern.permute.xlu0 5
        %9437 = vperm.xlu0 %9436, %v6025
        %v9438 = vpop.permute.xlu0 %9437
        %9440 = vset.pattern.permute.xlu0 5
        %9441 = vperm.xlu0 %9440, %v6026
        %v9442 = vpop.permute.xlu0 %9441
        %9444 = vset.pattern.permute.xlu0 5
        %9445 = vperm.xlu0 %9444, %v6027
        %v9446 = vpop.permute.xlu0 %9445
        %9448 = vset.pattern.permute.xlu0 5
        %9449 = vperm.xlu0 %9448, %v6028
        %v9450 = vpop.permute.xlu0 %9449
        %9452 = vset.pattern.permute.xlu0 5
        %9453 = vperm.xlu0 %9452, %v6029
        %v9454 = vpop.permute.xlu0 %9453
        %9456 = vset.pattern.permute.xlu0 5
        %9457 = vperm.xlu0 %9456, %v6030
        %v9458 = vpop.permute.xlu0 %9457
        %9460 = vset.pattern.permute.xlu0 5
        %9461 = vperm.xlu0 %9460, %v6031
        %v9462 = vpop.permute.xlu0 %9461
        %v9464 = vmul.f32 %v6069, %v9434
        %v9465 = vmul.f32 %v6070, %v9438
        %v9466 = vmul.f32 %v6071, %v9442
        %v9467 = vmul.f32 %v6072, %v9446
        %v9468 = vmul.f32 %v6073, %v9450
        %v9469 = vmul.f32 %v6074, %v9454
        %v9470 = vmul.f32 %v6075, %v9458
        %v9471 = vmul.f32 %v6076, %v9462
        %v9472 = vmul.f32 %v6077, %v9434
        %v9473 = vmul.f32 %v6078, %v9438
        %v9474 = vmul.f32 %v6079, %v9442
        %v9475 = vmul.f32 %v6080, %v9446
        %v9476 = vmul.f32 %v6081, %v9450
        %v9477 = vmul.f32 %v6082, %v9454
        %v9478 = vmul.f32 %v6083, %v9458
        %v9479 = vmul.f32 %v6084, %v9462
        %v9480 = vmul.f32 %v6085, %v9434
        %v9481 = vmul.f32 %v6086, %v9438
        %v9482 = vmul.f32 %v6087, %v9442
        %v9483 = vmul.f32 %v6088, %v9446
        %v9484 = vmul.f32 %v6089, %v9450
        %v9485 = vmul.f32 %v6090, %v9454
        %v9486 = vmul.f32 %v6091, %v9458
        %v9487 = vmul.f32 %v6092, %v9462
        %v9488 = vmul.f32 %v6093, %v9434
        %v9489 = vmul.f32 %v6094, %v9438
        %v9490 = vmul.f32 %v6095, %v9442
        %v9491 = vmul.f32 %v6096, %v9446
        %v9492 = vmul.f32 %v6097, %v9450
        %v9493 = vmul.f32 %v6098, %v9454
        %v9494 = vmul.f32 %v6099, %v9458
        %v9495 = vmul.f32 %v6100, %v9462
        %vm9496 = vcmask 171048
        %v9497 = vsel %vm9496, %v9464, 0.0
        %v9498 = vsel %vm9496, %v9465, 0.0
        %v9499 = vadd.f32 %v9497, %v9498
        %v9500 = vsel %vm9496, %v9466, 0.0
        %v9501 = vadd.f32 %v9499, %v9500
        %v9502 = vsel %vm9496, %v9467, 0.0
        %v9503 = vadd.f32 %v9501, %v9502
        %v9504 = vsel %vm9496, %v9468, 0.0
        %v9505 = vadd.f32 %v9503, %v9504
        %v9506 = vsel %vm9496, %v9469, 0.0
        %v9507 = vadd.f32 %v9505, %v9506
        %v9508 = vsel %vm9496, %v9470, 0.0
        %v9509 = vadd.f32 %v9507, %v9508
        %v9510 = vsel %vm9496, %v9471, 0.0
        %v9511 = vadd.f32 %v9509, %v9510
        %v9512 = vrot.slane %v9511, 4
        %v9513 = vadd.f32 %v9511, %v9512
        %v9514 = vrot.slane %v9513, 2
        %v9515 = vadd.f32 %v9513, %v9514
        %v9516 = vrot.slane %v9515, 1
        %v9517 = vadd.f32 %v9515, %v9516
        %v9518 = vsel %vm9496, %v9472, 0.0
        %v9519 = vsel %vm9496, %v9473, 0.0
        %v9520 = vadd.f32 %v9518, %v9519
        %v9521 = vsel %vm9496, %v9474, 0.0
        %v9522 = vadd.f32 %v9520, %v9521
        %v9523 = vsel %vm9496, %v9475, 0.0
        %v9524 = vadd.f32 %v9522, %v9523
        %v9525 = vsel %vm9496, %v9476, 0.0
        %v9526 = vadd.f32 %v9524, %v9525
        %v9527 = vsel %vm9496, %v9477, 0.0
        %v9528 = vadd.f32 %v9526, %v9527
        %v9529 = vsel %vm9496, %v9478, 0.0
        %v9530 = vadd.f32 %v9528, %v9529
        %v9531 = vsel %vm9496, %v9479, 0.0
        %v9532 = vadd.f32 %v9530, %v9531
        %v9533 = vrot.slane %v9532, 4
        %v9534 = vadd.f32 %v9532, %v9533
        %v9535 = vrot.slane %v9534, 2
        %v9536 = vadd.f32 %v9534, %v9535
        %v9537 = vrot.slane %v9536, 1
        %v9538 = vadd.f32 %v9536, %v9537
        %v9539 = vsel %vm9496, %v9480, 0.0
        %v9540 = vsel %vm9496, %v9481, 0.0
        %v9541 = vadd.f32 %v9539, %v9540
        %v9542 = vsel %vm9496, %v9482, 0.0
        %v9543 = vadd.f32 %v9541, %v9542
        %v9544 = vsel %vm9496, %v9483, 0.0
        %v9545 = vadd.f32 %v9543, %v9544
        %v9546 = vsel %vm9496, %v9484, 0.0
        %v9547 = vadd.f32 %v9545, %v9546
        %v9548 = vsel %vm9496, %v9485, 0.0
        %v9549 = vadd.f32 %v9547, %v9548
        %v9550 = vsel %vm9496, %v9486, 0.0
        %v9551 = vadd.f32 %v9549, %v9550
        %v9552 = vsel %vm9496, %v9487, 0.0
        %v9553 = vadd.f32 %v9551, %v9552
        %v9554 = vrot.slane %v9553, 4
        %v9555 = vadd.f32 %v9553, %v9554
        %v9556 = vrot.slane %v9555, 2
        %v9557 = vadd.f32 %v9555, %v9556
        %v9558 = vrot.slane %v9557, 1
        %v9559 = vadd.f32 %v9557, %v9558
        %v9560 = vsel %vm9496, %v9488, 0.0
        %v9561 = vsel %vm9496, %v9489, 0.0
        %v9562 = vadd.f32 %v9560, %v9561
        %v9563 = vsel %vm9496, %v9490, 0.0
        %v9564 = vadd.f32 %v9562, %v9563
        %v9565 = vsel %vm9496, %v9491, 0.0
        %v9566 = vadd.f32 %v9564, %v9565
        %v9567 = vsel %vm9496, %v9492, 0.0
        %v9568 = vadd.f32 %v9566, %v9567
        %v9569 = vsel %vm9496, %v9493, 0.0
        %v9570 = vadd.f32 %v9568, %v9569
        %v9571 = vsel %vm9496, %v9494, 0.0
        %v9572 = vadd.f32 %v9570, %v9571
        %v9573 = vsel %vm9496, %v9495, 0.0
        %v9574 = vadd.f32 %v9572, %v9573
        %v9575 = vrot.slane %v9574, 4
        %v9576 = vadd.f32 %v9574, %v9575
        %v9577 = vrot.slane %v9576, 2
        %v9578 = vadd.f32 %v9576, %v9577
        %v9579 = vrot.slane %v9578, 1
        %v9580 = vadd.f32 %v9578, %v9579
        %9585 = vrot.lane.b32.xlu0 %v9517, 123
        %v9586 = vpop.permute.xlu0 %9585
        %9587 = vrot.lane.b32.xlu0 %v9538, 123
        %v9588 = vpop.permute.xlu0 %9587
        %9589 = vrot.lane.b32.xlu0 %v9559, 123
        %v9590 = vpop.permute.xlu0 %9589
        %9591 = vrot.lane.b32.xlu0 %v9580, 123
        %v9592 = vpop.permute.xlu0 %9591
        %v9597 = vadd.f32 %v8924, %v9586
        %v9598 = vadd.f32 %v8925, %v9588
        %v9599 = vadd.f32 %v8926, %v9590
        %v9600 = vadd.f32 %v8927, %v9592
        %9601 = vset.pattern.permute.xlu0 5
        %9602 = vperm.xlu0 %9601, %v6032
        %v9603 = vpop.permute.xlu0 %9602
        %9605 = vset.pattern.permute.xlu0 5
        %9606 = vperm.xlu0 %9605, %v6033
        %v9607 = vpop.permute.xlu0 %9606
        %9609 = vset.pattern.permute.xlu0 5
        %9610 = vperm.xlu0 %9609, %v6034
        %v9611 = vpop.permute.xlu0 %9610
        %9613 = vset.pattern.permute.xlu0 5
        %9614 = vperm.xlu0 %9613, %v6035
        %v9615 = vpop.permute.xlu0 %9614
        %9617 = vset.pattern.permute.xlu0 5
        %9618 = vperm.xlu0 %9617, %v6036
        %v9619 = vpop.permute.xlu0 %9618
        %9621 = vset.pattern.permute.xlu0 5
        %9622 = vperm.xlu0 %9621, %v6037
        %v9623 = vpop.permute.xlu0 %9622
        %9625 = vset.pattern.permute.xlu0 5
        %9626 = vperm.xlu0 %9625, %v6038
        %v9627 = vpop.permute.xlu0 %9626
        %9629 = vset.pattern.permute.xlu0 5
        %9630 = vperm.xlu0 %9629, %v6039
        %v9631 = vpop.permute.xlu0 %9630
        %v9633 = vmul.f32 %v6069, %v9603
        %v9634 = vmul.f32 %v6070, %v9607
        %v9635 = vmul.f32 %v6071, %v9611
        %v9636 = vmul.f32 %v6072, %v9615
        %v9637 = vmul.f32 %v6073, %v9619
        %v9638 = vmul.f32 %v6074, %v9623
        %v9639 = vmul.f32 %v6075, %v9627
        %v9640 = vmul.f32 %v6076, %v9631
        %v9641 = vmul.f32 %v6077, %v9603
        %v9642 = vmul.f32 %v6078, %v9607
        %v9643 = vmul.f32 %v6079, %v9611
        %v9644 = vmul.f32 %v6080, %v9615
        %v9645 = vmul.f32 %v6081, %v9619
        %v9646 = vmul.f32 %v6082, %v9623
        %v9647 = vmul.f32 %v6083, %v9627
        %v9648 = vmul.f32 %v6084, %v9631
        %v9649 = vmul.f32 %v6085, %v9603
        %v9650 = vmul.f32 %v6086, %v9607
        %v9651 = vmul.f32 %v6087, %v9611
        %v9652 = vmul.f32 %v6088, %v9615
        %v9653 = vmul.f32 %v6089, %v9619
        %v9654 = vmul.f32 %v6090, %v9623
        %v9655 = vmul.f32 %v6091, %v9627
        %v9656 = vmul.f32 %v6092, %v9631
        %v9657 = vmul.f32 %v6093, %v9603
        %v9658 = vmul.f32 %v6094, %v9607
        %v9659 = vmul.f32 %v6095, %v9611
        %v9660 = vmul.f32 %v6096, %v9615
        %v9661 = vmul.f32 %v6097, %v9619
        %v9662 = vmul.f32 %v6098, %v9623
        %v9663 = vmul.f32 %v6099, %v9627
        %v9664 = vmul.f32 %v6100, %v9631
        %v9665 = vsel %vm9496, %v9633, 0.0
        %v9666 = vsel %vm9496, %v9634, 0.0
        %v9667 = vadd.f32 %v9665, %v9666
        %v9668 = vsel %vm9496, %v9635, 0.0
        %v9669 = vadd.f32 %v9667, %v9668
        %v9670 = vsel %vm9496, %v9636, 0.0
        %v9671 = vadd.f32 %v9669, %v9670
        %v9672 = vsel %vm9496, %v9637, 0.0
        %v9673 = vadd.f32 %v9671, %v9672
        %v9674 = vsel %vm9496, %v9638, 0.0
        %v9675 = vadd.f32 %v9673, %v9674
        %v9676 = vsel %vm9496, %v9639, 0.0
        %v9677 = vadd.f32 %v9675, %v9676
        %v9678 = vsel %vm9496, %v9640, 0.0
        %v9679 = vadd.f32 %v9677, %v9678
        %v9680 = vrot.slane %v9679, 4
        %v9681 = vadd.f32 %v9679, %v9680
        %v9682 = vrot.slane %v9681, 2
        %v9683 = vadd.f32 %v9681, %v9682
        %v9684 = vrot.slane %v9683, 1
        %v9685 = vadd.f32 %v9683, %v9684
        %v9686 = vsel %vm9496, %v9641, 0.0
        %v9687 = vsel %vm9496, %v9642, 0.0
        %v9688 = vadd.f32 %v9686, %v9687
        %v9689 = vsel %vm9496, %v9643, 0.0
        %v9690 = vadd.f32 %v9688, %v9689
        %v9691 = vsel %vm9496, %v9644, 0.0
        %v9692 = vadd.f32 %v9690, %v9691
        %v9693 = vsel %vm9496, %v9645, 0.0
        %v9694 = vadd.f32 %v9692, %v9693
        %v9695 = vsel %vm9496, %v9646, 0.0
        %v9696 = vadd.f32 %v9694, %v9695
        %v9697 = vsel %vm9496, %v9647, 0.0
        %v9698 = vadd.f32 %v9696, %v9697
        %v9699 = vsel %vm9496, %v9648, 0.0
        %v9700 = vadd.f32 %v9698, %v9699
        %v9701 = vrot.slane %v9700, 4
        %v9702 = vadd.f32 %v9700, %v9701
        %v9703 = vrot.slane %v9702, 2
        %v9704 = vadd.f32 %v9702, %v9703
        %v9705 = vrot.slane %v9704, 1
        %v9706 = vadd.f32 %v9704, %v9705
        %v9707 = vsel %vm9496, %v9649, 0.0
        %v9708 = vsel %vm9496, %v9650, 0.0
        %v9709 = vadd.f32 %v9707, %v9708
        %v9710 = vsel %vm9496, %v9651, 0.0
        %v9711 = vadd.f32 %v9709, %v9710
        %v9712 = vsel %vm9496, %v9652, 0.0
        %v9713 = vadd.f32 %v9711, %v9712
        %v9714 = vsel %vm9496, %v9653, 0.0
        %v9715 = vadd.f32 %v9713, %v9714
        %v9716 = vsel %vm9496, %v9654, 0.0
        %v9717 = vadd.f32 %v9715, %v9716
        %v9718 = vsel %vm9496, %v9655, 0.0
        %v9719 = vadd.f32 %v9717, %v9718
        %v9720 = vsel %vm9496, %v9656, 0.0
        %v9721 = vadd.f32 %v9719, %v9720
        %v9722 = vrot.slane %v9721, 4
        %v9723 = vadd.f32 %v9721, %v9722
        %v9724 = vrot.slane %v9723, 2
        %v9725 = vadd.f32 %v9723, %v9724
        %v9726 = vrot.slane %v9725, 1
        %v9727 = vadd.f32 %v9725, %v9726
        %v9728 = vsel %vm9496, %v9657, 0.0
        %v9729 = vsel %vm9496, %v9658, 0.0
        %v9730 = vadd.f32 %v9728, %v9729
        %v9731 = vsel %vm9496, %v9659, 0.0
        %v9732 = vadd.f32 %v9730, %v9731
        %v9733 = vsel %vm9496, %v9660, 0.0
        %v9734 = vadd.f32 %v9732, %v9733
        %v9735 = vsel %vm9496, %v9661, 0.0
        %v9736 = vadd.f32 %v9734, %v9735
        %v9737 = vsel %vm9496, %v9662, 0.0
        %v9738 = vadd.f32 %v9736, %v9737
        %v9739 = vsel %vm9496, %v9663, 0.0
        %v9740 = vadd.f32 %v9738, %v9739
        %v9741 = vsel %vm9496, %v9664, 0.0
        %v9742 = vadd.f32 %v9740, %v9741
        %v9743 = vrot.slane %v9742, 4
        %v9744 = vadd.f32 %v9742, %v9743
        %v9745 = vrot.slane %v9744, 2
        %v9746 = vadd.f32 %v9744, %v9745
        %v9747 = vrot.slane %v9746, 1
        %v9748 = vadd.f32 %v9746, %v9747
        %9753 = vrot.lane.b32.xlu0 %v9685, 123
        %v9754 = vpop.permute.xlu0 %9753
        %9755 = vrot.lane.b32.xlu0 %v9706, 123
        %v9756 = vpop.permute.xlu0 %9755
        %9757 = vrot.lane.b32.xlu0 %v9727, 123
        %v9758 = vpop.permute.xlu0 %9757
        %9759 = vrot.lane.b32.xlu0 %v9748, 123
        %v9760 = vpop.permute.xlu0 %9759
        %v9765 = vadd.f32 %v9092, %v9754
        %v9766 = vadd.f32 %v9093, %v9756
        %v9767 = vadd.f32 %v9094, %v9758
        %v9768 = vadd.f32 %v9095, %v9760
        %9769 = vset.pattern.permute.xlu0 5
        %9770 = vperm.xlu0 %9769, %v6040
        %v9771 = vpop.permute.xlu0 %9770
        %9773 = vset.pattern.permute.xlu0 5
        %9774 = vperm.xlu0 %9773, %v6041
        %v9775 = vpop.permute.xlu0 %9774
        %9777 = vset.pattern.permute.xlu0 5
        %9778 = vperm.xlu0 %9777, %v6042
        %v9779 = vpop.permute.xlu0 %9778
        %9781 = vset.pattern.permute.xlu0 5
        %9782 = vperm.xlu0 %9781, %v6043
        %v9783 = vpop.permute.xlu0 %9782
        %9785 = vset.pattern.permute.xlu0 5
        %9786 = vperm.xlu0 %9785, %v6044
        %v9787 = vpop.permute.xlu0 %9786
        %9789 = vset.pattern.permute.xlu0 5
        %9790 = vperm.xlu0 %9789, %v6045
        %v9791 = vpop.permute.xlu0 %9790
        %9793 = vset.pattern.permute.xlu0 5
        %9794 = vperm.xlu0 %9793, %v6046
        %v9795 = vpop.permute.xlu0 %9794
        %9797 = vset.pattern.permute.xlu0 5
        %9798 = vperm.xlu0 %9797, %v6047
        %v9799 = vpop.permute.xlu0 %9798
        %v9801 = vmul.f32 %v6069, %v9771
        %v9802 = vmul.f32 %v6070, %v9775
        %v9803 = vmul.f32 %v6071, %v9779
        %v9804 = vmul.f32 %v6072, %v9783
        %v9805 = vmul.f32 %v6073, %v9787
        %v9806 = vmul.f32 %v6074, %v9791
        %v9807 = vmul.f32 %v6075, %v9795
        %v9808 = vmul.f32 %v6076, %v9799
        %v9809 = vmul.f32 %v6077, %v9771
        %v9810 = vmul.f32 %v6078, %v9775
        %v9811 = vmul.f32 %v6079, %v9779
        %v9812 = vmul.f32 %v6080, %v9783
        %v9813 = vmul.f32 %v6081, %v9787
        %v9814 = vmul.f32 %v6082, %v9791
        %v9815 = vmul.f32 %v6083, %v9795
        %v9816 = vmul.f32 %v6084, %v9799
        %v9817 = vmul.f32 %v6085, %v9771
        %v9818 = vmul.f32 %v6086, %v9775
        %v9819 = vmul.f32 %v6087, %v9779
        %v9820 = vmul.f32 %v6088, %v9783
        %v9821 = vmul.f32 %v6089, %v9787
        %v9822 = vmul.f32 %v6090, %v9791
        %v9823 = vmul.f32 %v6091, %v9795
        %v9824 = vmul.f32 %v6092, %v9799
        %v9825 = vmul.f32 %v6093, %v9771
        %v9826 = vmul.f32 %v6094, %v9775
        %v9827 = vmul.f32 %v6095, %v9779
        %v9828 = vmul.f32 %v6096, %v9783
        %v9829 = vmul.f32 %v6097, %v9787
        %v9830 = vmul.f32 %v6098, %v9791
        %v9831 = vmul.f32 %v6099, %v9795
        %v9832 = vmul.f32 %v6100, %v9799
        %v9833 = vsel %vm9496, %v9801, 0.0
        %v9834 = vsel %vm9496, %v9802, 0.0
        %v9835 = vadd.f32 %v9833, %v9834
        %v9836 = vsel %vm9496, %v9803, 0.0
        %v9837 = vadd.f32 %v9835, %v9836
        %v9838 = vsel %vm9496, %v9804, 0.0
        %v9839 = vadd.f32 %v9837, %v9838
        %v9840 = vsel %vm9496, %v9805, 0.0
        %v9841 = vadd.f32 %v9839, %v9840
        %v9842 = vsel %vm9496, %v9806, 0.0
        %v9843 = vadd.f32 %v9841, %v9842
        %v9844 = vsel %vm9496, %v9807, 0.0
        %v9845 = vadd.f32 %v9843, %v9844
        %v9846 = vsel %vm9496, %v9808, 0.0
        %v9847 = vadd.f32 %v9845, %v9846
        %v9848 = vrot.slane %v9847, 4
        %v9849 = vadd.f32 %v9847, %v9848
        %v9850 = vrot.slane %v9849, 2
        %v9851 = vadd.f32 %v9849, %v9850
        %v9852 = vrot.slane %v9851, 1
        %v9853 = vadd.f32 %v9851, %v9852
        %v9854 = vsel %vm9496, %v9809, 0.0
        %v9855 = vsel %vm9496, %v9810, 0.0
        %v9856 = vadd.f32 %v9854, %v9855
        %v9857 = vsel %vm9496, %v9811, 0.0
        %v9858 = vadd.f32 %v9856, %v9857
        %v9859 = vsel %vm9496, %v9812, 0.0
        %v9860 = vadd.f32 %v9858, %v9859
        %v9861 = vsel %vm9496, %v9813, 0.0
        %v9862 = vadd.f32 %v9860, %v9861
        %v9863 = vsel %vm9496, %v9814, 0.0
        %v9864 = vadd.f32 %v9862, %v9863
        %v9865 = vsel %vm9496, %v9815, 0.0
        %v9866 = vadd.f32 %v9864, %v9865
        %v9867 = vsel %vm9496, %v9816, 0.0
        %v9868 = vadd.f32 %v9866, %v9867
        %v9869 = vrot.slane %v9868, 4
        %v9870 = vadd.f32 %v9868, %v9869
        %v9871 = vrot.slane %v9870, 2
        %v9872 = vadd.f32 %v9870, %v9871
        %v9873 = vrot.slane %v9872, 1
        %v9874 = vadd.f32 %v9872, %v9873
        %v9875 = vsel %vm9496, %v9817, 0.0
        %v9876 = vsel %vm9496, %v9818, 0.0
        %v9877 = vadd.f32 %v9875, %v9876
        %v9878 = vsel %vm9496, %v9819, 0.0
        %v9879 = vadd.f32 %v9877, %v9878
        %v9880 = vsel %vm9496, %v9820, 0.0
        %v9881 = vadd.f32 %v9879, %v9880
        %v9882 = vsel %vm9496, %v9821, 0.0
        %v9883 = vadd.f32 %v9881, %v9882
        %v9884 = vsel %vm9496, %v9822, 0.0
        %v9885 = vadd.f32 %v9883, %v9884
        %v9886 = vsel %vm9496, %v9823, 0.0
        %v9887 = vadd.f32 %v9885, %v9886
        %v9888 = vsel %vm9496, %v9824, 0.0
        %v9889 = vadd.f32 %v9887, %v9888
        %v9890 = vrot.slane %v9889, 4
        %v9891 = vadd.f32 %v9889, %v9890
        %v9892 = vrot.slane %v9891, 2
        %v9893 = vadd.f32 %v9891, %v9892
        %v9894 = vrot.slane %v9893, 1
        %v9895 = vadd.f32 %v9893, %v9894
        %v9896 = vsel %vm9496, %v9825, 0.0
        %v9897 = vsel %vm9496, %v9826, 0.0
        %v9898 = vadd.f32 %v9896, %v9897
        %v9899 = vsel %vm9496, %v9827, 0.0
        %v9900 = vadd.f32 %v9898, %v9899
        %v9901 = vsel %vm9496, %v9828, 0.0
        %v9902 = vadd.f32 %v9900, %v9901
        %v9903 = vsel %vm9496, %v9829, 0.0
        %v9904 = vadd.f32 %v9902, %v9903
        %v9905 = vsel %vm9496, %v9830, 0.0
        %v9906 = vadd.f32 %v9904, %v9905
        %v9907 = vsel %vm9496, %v9831, 0.0
        %v9908 = vadd.f32 %v9906, %v9907
        %v9909 = vsel %vm9496, %v9832, 0.0
        %v9910 = vadd.f32 %v9908, %v9909
        %v9911 = vrot.slane %v9910, 4
        %v9912 = vadd.f32 %v9910, %v9911
        %v9913 = vrot.slane %v9912, 2
        %v9914 = vadd.f32 %v9912, %v9913
        %v9915 = vrot.slane %v9914, 1
        %v9916 = vadd.f32 %v9914, %v9915
        %9921 = vrot.lane.b32.xlu0 %v9853, 123
        %v9922 = vpop.permute.xlu0 %9921
        %9923 = vrot.lane.b32.xlu0 %v9874, 123
        %v9924 = vpop.permute.xlu0 %9923
        %9925 = vrot.lane.b32.xlu0 %v9895, 123
        %v9926 = vpop.permute.xlu0 %9925
        %9927 = vrot.lane.b32.xlu0 %v9916, 123
        %v9928 = vpop.permute.xlu0 %9927
        %v9933 = vadd.f32 %v9260, %v9922
        %v9934 = vadd.f32 %v9261, %v9924
        %v9935 = vadd.f32 %v9262, %v9926
        %v9936 = vadd.f32 %v9263, %v9928
        %9937 = vset.pattern.permute.xlu0 5
        %9938 = vperm.xlu0 %9937, %v6048
        %v9939 = vpop.permute.xlu0 %9938
        %9941 = vset.pattern.permute.xlu0 5
        %9942 = vperm.xlu0 %9941, %v6049
        %v9943 = vpop.permute.xlu0 %9942
        %9945 = vset.pattern.permute.xlu0 5
        %9946 = vperm.xlu0 %9945, %v6050
        %v9947 = vpop.permute.xlu0 %9946
        %9949 = vset.pattern.permute.xlu0 5
        %9950 = vperm.xlu0 %9949, %v6051
        %v9951 = vpop.permute.xlu0 %9950
        %9953 = vset.pattern.permute.xlu0 5
        %9954 = vperm.xlu0 %9953, %v6052
        %v9955 = vpop.permute.xlu0 %9954
        %9957 = vset.pattern.permute.xlu0 5
        %9958 = vperm.xlu0 %9957, %v6053
        %v9959 = vpop.permute.xlu0 %9958
        %9961 = vset.pattern.permute.xlu0 5
        %9962 = vperm.xlu0 %9961, %v6054
        %v9963 = vpop.permute.xlu0 %9962
        %9965 = vset.pattern.permute.xlu0 5
        %9966 = vperm.xlu0 %9965, %v6055
        %v9967 = vpop.permute.xlu0 %9966
        %v9969 = vmul.f32 %v6069, %v9939
        %v9970 = vmul.f32 %v6070, %v9943
        %v9971 = vmul.f32 %v6071, %v9947
        %v9972 = vmul.f32 %v6072, %v9951
        %v9973 = vmul.f32 %v6073, %v9955
        %v9974 = vmul.f32 %v6074, %v9959
        %v9975 = vmul.f32 %v6075, %v9963
        %v9976 = vmul.f32 %v6076, %v9967
        %v9977 = vmul.f32 %v6077, %v9939
        %v9978 = vmul.f32 %v6078, %v9943
        %v9979 = vmul.f32 %v6079, %v9947
        %v9980 = vmul.f32 %v6080, %v9951
        %v9981 = vmul.f32 %v6081, %v9955
        %v9982 = vmul.f32 %v6082, %v9959
        %v9983 = vmul.f32 %v6083, %v9963
        %v9984 = vmul.f32 %v6084, %v9967
        %v9985 = vmul.f32 %v6085, %v9939
        %v9986 = vmul.f32 %v6086, %v9943
        %v9987 = vmul.f32 %v6087, %v9947
        %v9988 = vmul.f32 %v6088, %v9951
        %v9989 = vmul.f32 %v6089, %v9955
        %v9990 = vmul.f32 %v6090, %v9959
        %v9991 = vmul.f32 %v6091, %v9963
        %v9992 = vmul.f32 %v6092, %v9967
        %v9993 = vmul.f32 %v6093, %v9939
        %v9994 = vmul.f32 %v6094, %v9943
        %v9995 = vmul.f32 %v6095, %v9947
        %v9996 = vmul.f32 %v6096, %v9951
        %v9997 = vmul.f32 %v6097, %v9955
        %v9998 = vmul.f32 %v6098, %v9959
        %v9999 = vmul.f32 %v6099, %v9963
        %v10000 = vmul.f32 %v6100, %v9967
        %v10001 = vsel %vm9496, %v9969, 0.0
        %v10002 = vsel %vm9496, %v9970, 0.0
        %v10003 = vadd.f32 %v10001, %v10002
        %v10004 = vsel %vm9496, %v9971, 0.0
        %v10005 = vadd.f32 %v10003, %v10004
        %v10006 = vsel %vm9496, %v9972, 0.0
        %v10007 = vadd.f32 %v10005, %v10006
        %v10008 = vsel %vm9496, %v9973, 0.0
        %v10009 = vadd.f32 %v10007, %v10008
        %v10010 = vsel %vm9496, %v9974, 0.0
        %v10011 = vadd.f32 %v10009, %v10010
        %v10012 = vsel %vm9496, %v9975, 0.0
        %v10013 = vadd.f32 %v10011, %v10012
        %v10014 = vsel %vm9496, %v9976, 0.0
        %v10015 = vadd.f32 %v10013, %v10014
        %v10016 = vrot.slane %v10015, 4
        %v10017 = vadd.f32 %v10015, %v10016
        %v10018 = vrot.slane %v10017, 2
        %v10019 = vadd.f32 %v10017, %v10018
        %v10020 = vrot.slane %v10019, 1
        %v10021 = vadd.f32 %v10019, %v10020
        %v10022 = vsel %vm9496, %v9977, 0.0
        %v10023 = vsel %vm9496, %v9978, 0.0
        %v10024 = vadd.f32 %v10022, %v10023
        %v10025 = vsel %vm9496, %v9979, 0.0
        %v10026 = vadd.f32 %v10024, %v10025
        %v10027 = vsel %vm9496, %v9980, 0.0
        %v10028 = vadd.f32 %v10026, %v10027
        %v10029 = vsel %vm9496, %v9981, 0.0
        %v10030 = vadd.f32 %v10028, %v10029
        %v10031 = vsel %vm9496, %v9982, 0.0
        %v10032 = vadd.f32 %v10030, %v10031
        %v10033 = vsel %vm9496, %v9983, 0.0
        %v10034 = vadd.f32 %v10032, %v10033
        %v10035 = vsel %vm9496, %v9984, 0.0
        %v10036 = vadd.f32 %v10034, %v10035
        %v10037 = vrot.slane %v10036, 4
        %v10038 = vadd.f32 %v10036, %v10037
        %v10039 = vrot.slane %v10038, 2
        %v10040 = vadd.f32 %v10038, %v10039
        %v10041 = vrot.slane %v10040, 1
        %v10042 = vadd.f32 %v10040, %v10041
        %v10043 = vsel %vm9496, %v9985, 0.0
        %v10044 = vsel %vm9496, %v9986, 0.0
        %v10045 = vadd.f32 %v10043, %v10044
        %v10046 = vsel %vm9496, %v9987, 0.0
        %v10047 = vadd.f32 %v10045, %v10046
        %v10048 = vsel %vm9496, %v9988, 0.0
        %v10049 = vadd.f32 %v10047, %v10048
        %v10050 = vsel %vm9496, %v9989, 0.0
        %v10051 = vadd.f32 %v10049, %v10050
        %v10052 = vsel %vm9496, %v9990, 0.0
        %v10053 = vadd.f32 %v10051, %v10052
        %v10054 = vsel %vm9496, %v9991, 0.0
        %v10055 = vadd.f32 %v10053, %v10054
        %v10056 = vsel %vm9496, %v9992, 0.0
        %v10057 = vadd.f32 %v10055, %v10056
        %v10058 = vrot.slane %v10057, 4
        %v10059 = vadd.f32 %v10057, %v10058
        %v10060 = vrot.slane %v10059, 2
        %v10061 = vadd.f32 %v10059, %v10060
        %v10062 = vrot.slane %v10061, 1
        %v10063 = vadd.f32 %v10061, %v10062
        %v10064 = vsel %vm9496, %v9993, 0.0
        %v10065 = vsel %vm9496, %v9994, 0.0
        %v10066 = vadd.f32 %v10064, %v10065
        %v10067 = vsel %vm9496, %v9995, 0.0
        %v10068 = vadd.f32 %v10066, %v10067
        %v10069 = vsel %vm9496, %v9996, 0.0
        %v10070 = vadd.f32 %v10068, %v10069
        %v10071 = vsel %vm9496, %v9997, 0.0
        %v10072 = vadd.f32 %v10070, %v10071
        %v10073 = vsel %vm9496, %v9998, 0.0
        %v10074 = vadd.f32 %v10072, %v10073
        %v10075 = vsel %vm9496, %v9999, 0.0
        %v10076 = vadd.f32 %v10074, %v10075
        %v10077 = vsel %vm9496, %v10000, 0.0
        %v10078 = vadd.f32 %v10076, %v10077
        %v10079 = vrot.slane %v10078, 4
        %v10080 = vadd.f32 %v10078, %v10079
        %v10081 = vrot.slane %v10080, 2
        %v10082 = vadd.f32 %v10080, %v10081
        %v10083 = vrot.slane %v10082, 1
        %v10084 = vadd.f32 %v10082, %v10083
        %10089 = vrot.lane.b32.xlu0 %v10021, 123
        %v10090 = vpop.permute.xlu0 %10089
        %10091 = vrot.lane.b32.xlu0 %v10042, 123
        %v10092 = vpop.permute.xlu0 %10091
        %10093 = vrot.lane.b32.xlu0 %v10063, 123
        %v10094 = vpop.permute.xlu0 %10093
        %10095 = vrot.lane.b32.xlu0 %v10084, 123
        %v10096 = vpop.permute.xlu0 %10095
        %v10101 = vadd.f32 %v9428, %v10090
        %v10102 = vadd.f32 %v9429, %v10092
        %v10103 = vadd.f32 %v9430, %v10094
        %v10104 = vadd.f32 %v9431, %v10096
        %10105 = vset.pattern.permute.xlu0 6
        %10106 = vperm.xlu0 %10105, %v6024
        %v10107 = vpop.permute.xlu0 %10106
        %10109 = vset.pattern.permute.xlu0 6
        %10110 = vperm.xlu0 %10109, %v6025
        %v10111 = vpop.permute.xlu0 %10110
        %10113 = vset.pattern.permute.xlu0 6
        %10114 = vperm.xlu0 %10113, %v6026
        %v10115 = vpop.permute.xlu0 %10114
        %10117 = vset.pattern.permute.xlu0 6
        %10118 = vperm.xlu0 %10117, %v6027
        %v10119 = vpop.permute.xlu0 %10118
        %10121 = vset.pattern.permute.xlu0 6
        %10122 = vperm.xlu0 %10121, %v6028
        %v10123 = vpop.permute.xlu0 %10122
        %10125 = vset.pattern.permute.xlu0 6
        %10126 = vperm.xlu0 %10125, %v6029
        %v10127 = vpop.permute.xlu0 %10126
        %10129 = vset.pattern.permute.xlu0 6
        %10130 = vperm.xlu0 %10129, %v6030
        %v10131 = vpop.permute.xlu0 %10130
        %10133 = vset.pattern.permute.xlu0 6
        %10134 = vperm.xlu0 %10133, %v6031
        %v10135 = vpop.permute.xlu0 %10134
        %v10137 = vmul.f32 %v6069, %v10107
        %v10138 = vmul.f32 %v6070, %v10111
        %v10139 = vmul.f32 %v6071, %v10115
        %v10140 = vmul.f32 %v6072, %v10119
        %v10141 = vmul.f32 %v6073, %v10123
        %v10142 = vmul.f32 %v6074, %v10127
        %v10143 = vmul.f32 %v6075, %v10131
        %v10144 = vmul.f32 %v6076, %v10135
        %v10145 = vmul.f32 %v6077, %v10107
        %v10146 = vmul.f32 %v6078, %v10111
        %v10147 = vmul.f32 %v6079, %v10115
        %v10148 = vmul.f32 %v6080, %v10119
        %v10149 = vmul.f32 %v6081, %v10123
        %v10150 = vmul.f32 %v6082, %v10127
        %v10151 = vmul.f32 %v6083, %v10131
        %v10152 = vmul.f32 %v6084, %v10135
        %v10153 = vmul.f32 %v6085, %v10107
        %v10154 = vmul.f32 %v6086, %v10111
        %v10155 = vmul.f32 %v6087, %v10115
        %v10156 = vmul.f32 %v6088, %v10119
        %v10157 = vmul.f32 %v6089, %v10123
        %v10158 = vmul.f32 %v6090, %v10127
        %v10159 = vmul.f32 %v6091, %v10131
        %v10160 = vmul.f32 %v6092, %v10135
        %v10161 = vmul.f32 %v6093, %v10107
        %v10162 = vmul.f32 %v6094, %v10111
        %v10163 = vmul.f32 %v6095, %v10115
        %v10164 = vmul.f32 %v6096, %v10119
        %v10165 = vmul.f32 %v6097, %v10123
        %v10166 = vmul.f32 %v6098, %v10127
        %v10167 = vmul.f32 %v6099, %v10131
        %v10168 = vmul.f32 %v6100, %v10135
        %vm10169 = vcmask 179248
        %v10170 = vsel %vm10169, %v10137, 0.0
        %v10171 = vsel %vm10169, %v10138, 0.0
        %v10172 = vadd.f32 %v10170, %v10171
        %v10173 = vsel %vm10169, %v10139, 0.0
        %v10174 = vadd.f32 %v10172, %v10173
        %v10175 = vsel %vm10169, %v10140, 0.0
        %v10176 = vadd.f32 %v10174, %v10175
        %v10177 = vsel %vm10169, %v10141, 0.0
        %v10178 = vadd.f32 %v10176, %v10177
        %v10179 = vsel %vm10169, %v10142, 0.0
        %v10180 = vadd.f32 %v10178, %v10179
        %v10181 = vsel %vm10169, %v10143, 0.0
        %v10182 = vadd.f32 %v10180, %v10181
        %v10183 = vsel %vm10169, %v10144, 0.0
        %v10184 = vadd.f32 %v10182, %v10183
        %v10185 = vrot.slane %v10184, 4
        %v10186 = vadd.f32 %v10184, %v10185
        %v10187 = vrot.slane %v10186, 2
        %v10188 = vadd.f32 %v10186, %v10187
        %v10189 = vrot.slane %v10188, 1
        %v10190 = vadd.f32 %v10188, %v10189
        %v10191 = vsel %vm10169, %v10145, 0.0
        %v10192 = vsel %vm10169, %v10146, 0.0
        %v10193 = vadd.f32 %v10191, %v10192
        %v10194 = vsel %vm10169, %v10147, 0.0
        %v10195 = vadd.f32 %v10193, %v10194
        %v10196 = vsel %vm10169, %v10148, 0.0
        %v10197 = vadd.f32 %v10195, %v10196
        %v10198 = vsel %vm10169, %v10149, 0.0
        %v10199 = vadd.f32 %v10197, %v10198
        %v10200 = vsel %vm10169, %v10150, 0.0
        %v10201 = vadd.f32 %v10199, %v10200
        %v10202 = vsel %vm10169, %v10151, 0.0
        %v10203 = vadd.f32 %v10201, %v10202
        %v10204 = vsel %vm10169, %v10152, 0.0
        %v10205 = vadd.f32 %v10203, %v10204
        %v10206 = vrot.slane %v10205, 4
        %v10207 = vadd.f32 %v10205, %v10206
        %v10208 = vrot.slane %v10207, 2
        %v10209 = vadd.f32 %v10207, %v10208
        %v10210 = vrot.slane %v10209, 1
        %v10211 = vadd.f32 %v10209, %v10210
        %v10212 = vsel %vm10169, %v10153, 0.0
        %v10213 = vsel %vm10169, %v10154, 0.0
        %v10214 = vadd.f32 %v10212, %v10213
        %v10215 = vsel %vm10169, %v10155, 0.0
        %v10216 = vadd.f32 %v10214, %v10215
        %v10217 = vsel %vm10169, %v10156, 0.0
        %v10218 = vadd.f32 %v10216, %v10217
        %v10219 = vsel %vm10169, %v10157, 0.0
        %v10220 = vadd.f32 %v10218, %v10219
        %v10221 = vsel %vm10169, %v10158, 0.0
        %v10222 = vadd.f32 %v10220, %v10221
        %v10223 = vsel %vm10169, %v10159, 0.0
        %v10224 = vadd.f32 %v10222, %v10223
        %v10225 = vsel %vm10169, %v10160, 0.0
        %v10226 = vadd.f32 %v10224, %v10225
        %v10227 = vrot.slane %v10226, 4
        %v10228 = vadd.f32 %v10226, %v10227
        %v10229 = vrot.slane %v10228, 2
        %v10230 = vadd.f32 %v10228, %v10229
        %v10231 = vrot.slane %v10230, 1
        %v10232 = vadd.f32 %v10230, %v10231
        %v10233 = vsel %vm10169, %v10161, 0.0
        %v10234 = vsel %vm10169, %v10162, 0.0
        %v10235 = vadd.f32 %v10233, %v10234
        %v10236 = vsel %vm10169, %v10163, 0.0
        %v10237 = vadd.f32 %v10235, %v10236
        %v10238 = vsel %vm10169, %v10164, 0.0
        %v10239 = vadd.f32 %v10237, %v10238
        %v10240 = vsel %vm10169, %v10165, 0.0
        %v10241 = vadd.f32 %v10239, %v10240
        %v10242 = vsel %vm10169, %v10166, 0.0
        %v10243 = vadd.f32 %v10241, %v10242
        %v10244 = vsel %vm10169, %v10167, 0.0
        %v10245 = vadd.f32 %v10243, %v10244
        %v10246 = vsel %vm10169, %v10168, 0.0
        %v10247 = vadd.f32 %v10245, %v10246
        %v10248 = vrot.slane %v10247, 4
        %v10249 = vadd.f32 %v10247, %v10248
        %v10250 = vrot.slane %v10249, 2
        %v10251 = vadd.f32 %v10249, %v10250
        %v10252 = vrot.slane %v10251, 1
        %v10253 = vadd.f32 %v10251, %v10252
        %10258 = vrot.lane.b32.xlu0 %v10190, 122
        %v10259 = vpop.permute.xlu0 %10258
        %10260 = vrot.lane.b32.xlu0 %v10211, 122
        %v10261 = vpop.permute.xlu0 %10260
        %10262 = vrot.lane.b32.xlu0 %v10232, 122
        %v10263 = vpop.permute.xlu0 %10262
        %10264 = vrot.lane.b32.xlu0 %v10253, 122
        %v10265 = vpop.permute.xlu0 %10264
        %v10270 = vadd.f32 %v9597, %v10259
        %v10271 = vadd.f32 %v9598, %v10261
        %v10272 = vadd.f32 %v9599, %v10263
        %v10273 = vadd.f32 %v9600, %v10265
        %10274 = vset.pattern.permute.xlu0 6
        %10275 = vperm.xlu0 %10274, %v6032
        %v10276 = vpop.permute.xlu0 %10275
        %10278 = vset.pattern.permute.xlu0 6
        %10279 = vperm.xlu0 %10278, %v6033
        %v10280 = vpop.permute.xlu0 %10279
        %10282 = vset.pattern.permute.xlu0 6
        %10283 = vperm.xlu0 %10282, %v6034
        %v10284 = vpop.permute.xlu0 %10283
        %10286 = vset.pattern.permute.xlu0 6
        %10287 = vperm.xlu0 %10286, %v6035
        %v10288 = vpop.permute.xlu0 %10287
        %10290 = vset.pattern.permute.xlu0 6
        %10291 = vperm.xlu0 %10290, %v6036
        %v10292 = vpop.permute.xlu0 %10291
        %10294 = vset.pattern.permute.xlu0 6
        %10295 = vperm.xlu0 %10294, %v6037
        %v10296 = vpop.permute.xlu0 %10295
        %10298 = vset.pattern.permute.xlu0 6
        %10299 = vperm.xlu0 %10298, %v6038
        %v10300 = vpop.permute.xlu0 %10299
        %10302 = vset.pattern.permute.xlu0 6
        %10303 = vperm.xlu0 %10302, %v6039
        %v10304 = vpop.permute.xlu0 %10303
        %v10306 = vmul.f32 %v6069, %v10276
        %v10307 = vmul.f32 %v6070, %v10280
        %v10308 = vmul.f32 %v6071, %v10284
        %v10309 = vmul.f32 %v6072, %v10288
        %v10310 = vmul.f32 %v6073, %v10292
        %v10311 = vmul.f32 %v6074, %v10296
        %v10312 = vmul.f32 %v6075, %v10300
        %v10313 = vmul.f32 %v6076, %v10304
        %v10314 = vmul.f32 %v6077, %v10276
        %v10315 = vmul.f32 %v6078, %v10280
        %v10316 = vmul.f32 %v6079, %v10284
        %v10317 = vmul.f32 %v6080, %v10288
        %v10318 = vmul.f32 %v6081, %v10292
        %v10319 = vmul.f32 %v6082, %v10296
        %v10320 = vmul.f32 %v6083, %v10300
        %v10321 = vmul.f32 %v6084, %v10304
        %v10322 = vmul.f32 %v6085, %v10276
        %v10323 = vmul.f32 %v6086, %v10280
        %v10324 = vmul.f32 %v6087, %v10284
        %v10325 = vmul.f32 %v6088, %v10288
        %v10326 = vmul.f32 %v6089, %v10292
        %v10327 = vmul.f32 %v6090, %v10296
        %v10328 = vmul.f32 %v6091, %v10300
        %v10329 = vmul.f32 %v6092, %v10304
        %v10330 = vmul.f32 %v6093, %v10276
        %v10331 = vmul.f32 %v6094, %v10280
        %v10332 = vmul.f32 %v6095, %v10284
        %v10333 = vmul.f32 %v6096, %v10288
        %v10334 = vmul.f32 %v6097, %v10292
        %v10335 = vmul.f32 %v6098, %v10296
        %v10336 = vmul.f32 %v6099, %v10300
        %v10337 = vmul.f32 %v6100, %v10304
        %v10338 = vsel %vm10169, %v10306, 0.0
        %v10339 = vsel %vm10169, %v10307, 0.0
        %v10340 = vadd.f32 %v10338, %v10339
        %v10341 = vsel %vm10169, %v10308, 0.0
        %v10342 = vadd.f32 %v10340, %v10341
        %v10343 = vsel %vm10169, %v10309, 0.0
        %v10344 = vadd.f32 %v10342, %v10343
        %v10345 = vsel %vm10169, %v10310, 0.0
        %v10346 = vadd.f32 %v10344, %v10345
        %v10347 = vsel %vm10169, %v10311, 0.0
        %v10348 = vadd.f32 %v10346, %v10347
        %v10349 = vsel %vm10169, %v10312, 0.0
        %v10350 = vadd.f32 %v10348, %v10349
        %v10351 = vsel %vm10169, %v10313, 0.0
        %v10352 = vadd.f32 %v10350, %v10351
        %v10353 = vrot.slane %v10352, 4
        %v10354 = vadd.f32 %v10352, %v10353
        %v10355 = vrot.slane %v10354, 2
        %v10356 = vadd.f32 %v10354, %v10355
        %v10357 = vrot.slane %v10356, 1
        %v10358 = vadd.f32 %v10356, %v10357
        %v10359 = vsel %vm10169, %v10314, 0.0
        %v10360 = vsel %vm10169, %v10315, 0.0
        %v10361 = vadd.f32 %v10359, %v10360
        %v10362 = vsel %vm10169, %v10316, 0.0
        %v10363 = vadd.f32 %v10361, %v10362
        %v10364 = vsel %vm10169, %v10317, 0.0
        %v10365 = vadd.f32 %v10363, %v10364
        %v10366 = vsel %vm10169, %v10318, 0.0
        %v10367 = vadd.f32 %v10365, %v10366
        %v10368 = vsel %vm10169, %v10319, 0.0
        %v10369 = vadd.f32 %v10367, %v10368
        %v10370 = vsel %vm10169, %v10320, 0.0
        %v10371 = vadd.f32 %v10369, %v10370
        %v10372 = vsel %vm10169, %v10321, 0.0
        %v10373 = vadd.f32 %v10371, %v10372
        %v10374 = vrot.slane %v10373, 4
        %v10375 = vadd.f32 %v10373, %v10374
        %v10376 = vrot.slane %v10375, 2
        %v10377 = vadd.f32 %v10375, %v10376
        %v10378 = vrot.slane %v10377, 1
        %v10379 = vadd.f32 %v10377, %v10378
        %v10380 = vsel %vm10169, %v10322, 0.0
        %v10381 = vsel %vm10169, %v10323, 0.0
        %v10382 = vadd.f32 %v10380, %v10381
        %v10383 = vsel %vm10169, %v10324, 0.0
        %v10384 = vadd.f32 %v10382, %v10383
        %v10385 = vsel %vm10169, %v10325, 0.0
        %v10386 = vadd.f32 %v10384, %v10385
        %v10387 = vsel %vm10169, %v10326, 0.0
        %v10388 = vadd.f32 %v10386, %v10387
        %v10389 = vsel %vm10169, %v10327, 0.0
        %v10390 = vadd.f32 %v10388, %v10389
        %v10391 = vsel %vm10169, %v10328, 0.0
        %v10392 = vadd.f32 %v10390, %v10391
        %v10393 = vsel %vm10169, %v10329, 0.0
        %v10394 = vadd.f32 %v10392, %v10393
        %v10395 = vrot.slane %v10394, 4
        %v10396 = vadd.f32 %v10394, %v10395
        %v10397 = vrot.slane %v10396, 2
        %v10398 = vadd.f32 %v10396, %v10397
        %v10399 = vrot.slane %v10398, 1
        %v10400 = vadd.f32 %v10398, %v10399
        %v10401 = vsel %vm10169, %v10330, 0.0
        %v10402 = vsel %vm10169, %v10331, 0.0
        %v10403 = vadd.f32 %v10401, %v10402
        %v10404 = vsel %vm10169, %v10332, 0.0
        %v10405 = vadd.f32 %v10403, %v10404
        %v10406 = vsel %vm10169, %v10333, 0.0
        %v10407 = vadd.f32 %v10405, %v10406
        %v10408 = vsel %vm10169, %v10334, 0.0
        %v10409 = vadd.f32 %v10407, %v10408
        %v10410 = vsel %vm10169, %v10335, 0.0
        %v10411 = vadd.f32 %v10409, %v10410
        %v10412 = vsel %vm10169, %v10336, 0.0
        %v10413 = vadd.f32 %v10411, %v10412
        %v10414 = vsel %vm10169, %v10337, 0.0
        %v10415 = vadd.f32 %v10413, %v10414
        %v10416 = vrot.slane %v10415, 4
        %v10417 = vadd.f32 %v10415, %v10416
        %v10418 = vrot.slane %v10417, 2
        %v10419 = vadd.f32 %v10417, %v10418
        %v10420 = vrot.slane %v10419, 1
        %v10421 = vadd.f32 %v10419, %v10420
        %10426 = vrot.lane.b32.xlu0 %v10358, 122
        %v10427 = vpop.permute.xlu0 %10426
        %10428 = vrot.lane.b32.xlu0 %v10379, 122
        %v10429 = vpop.permute.xlu0 %10428
        %10430 = vrot.lane.b32.xlu0 %v10400, 122
        %v10431 = vpop.permute.xlu0 %10430
        %10432 = vrot.lane.b32.xlu0 %v10421, 122
        %v10433 = vpop.permute.xlu0 %10432
        %v10438 = vadd.f32 %v9765, %v10427
        %v10439 = vadd.f32 %v9766, %v10429
        %v10440 = vadd.f32 %v9767, %v10431
        %v10441 = vadd.f32 %v9768, %v10433
        %10442 = vset.pattern.permute.xlu0 6
        %10443 = vperm.xlu0 %10442, %v6040
        %v10444 = vpop.permute.xlu0 %10443
        %10446 = vset.pattern.permute.xlu0 6
        %10447 = vperm.xlu0 %10446, %v6041
        %v10448 = vpop.permute.xlu0 %10447
        %10450 = vset.pattern.permute.xlu0 6
        %10451 = vperm.xlu0 %10450, %v6042
        %v10452 = vpop.permute.xlu0 %10451
        %10454 = vset.pattern.permute.xlu0 6
        %10455 = vperm.xlu0 %10454, %v6043
        %v10456 = vpop.permute.xlu0 %10455
        %10458 = vset.pattern.permute.xlu0 6
        %10459 = vperm.xlu0 %10458, %v6044
        %v10460 = vpop.permute.xlu0 %10459
        %10462 = vset.pattern.permute.xlu0 6
        %10463 = vperm.xlu0 %10462, %v6045
        %v10464 = vpop.permute.xlu0 %10463
        %10466 = vset.pattern.permute.xlu0 6
        %10467 = vperm.xlu0 %10466, %v6046
        %v10468 = vpop.permute.xlu0 %10467
        %10470 = vset.pattern.permute.xlu0 6
        %10471 = vperm.xlu0 %10470, %v6047
        %v10472 = vpop.permute.xlu0 %10471
        %v10474 = vmul.f32 %v6069, %v10444
        %v10475 = vmul.f32 %v6070, %v10448
        %v10476 = vmul.f32 %v6071, %v10452
        %v10477 = vmul.f32 %v6072, %v10456
        %v10478 = vmul.f32 %v6073, %v10460
        %v10479 = vmul.f32 %v6074, %v10464
        %v10480 = vmul.f32 %v6075, %v10468
        %v10481 = vmul.f32 %v6076, %v10472
        %v10482 = vmul.f32 %v6077, %v10444
        %v10483 = vmul.f32 %v6078, %v10448
        %v10484 = vmul.f32 %v6079, %v10452
        %v10485 = vmul.f32 %v6080, %v10456
        %v10486 = vmul.f32 %v6081, %v10460
        %v10487 = vmul.f32 %v6082, %v10464
        %v10488 = vmul.f32 %v6083, %v10468
        %v10489 = vmul.f32 %v6084, %v10472
        %v10490 = vmul.f32 %v6085, %v10444
        %v10491 = vmul.f32 %v6086, %v10448
        %v10492 = vmul.f32 %v6087, %v10452
        %v10493 = vmul.f32 %v6088, %v10456
        %v10494 = vmul.f32 %v6089, %v10460
        %v10495 = vmul.f32 %v6090, %v10464
        %v10496 = vmul.f32 %v6091, %v10468
        %v10497 = vmul.f32 %v6092, %v10472
        %v10498 = vmul.f32 %v6093, %v10444
        %v10499 = vmul.f32 %v6094, %v10448
        %v10500 = vmul.f32 %v6095, %v10452
        %v10501 = vmul.f32 %v6096, %v10456
        %v10502 = vmul.f32 %v6097, %v10460
        %v10503 = vmul.f32 %v6098, %v10464
        %v10504 = vmul.f32 %v6099, %v10468
        %v10505 = vmul.f32 %v6100, %v10472
        %v10506 = vsel %vm10169, %v10474, 0.0
        %v10507 = vsel %vm10169, %v10475, 0.0
        %v10508 = vadd.f32 %v10506, %v10507
        %v10509 = vsel %vm10169, %v10476, 0.0
        %v10510 = vadd.f32 %v10508, %v10509
        %v10511 = vsel %vm10169, %v10477, 0.0
        %v10512 = vadd.f32 %v10510, %v10511
        %v10513 = vsel %vm10169, %v10478, 0.0
        %v10514 = vadd.f32 %v10512, %v10513
        %v10515 = vsel %vm10169, %v10479, 0.0
        %v10516 = vadd.f32 %v10514, %v10515
        %v10517 = vsel %vm10169, %v10480, 0.0
        %v10518 = vadd.f32 %v10516, %v10517
        %v10519 = vsel %vm10169, %v10481, 0.0
        %v10520 = vadd.f32 %v10518, %v10519
        %v10521 = vrot.slane %v10520, 4
        %v10522 = vadd.f32 %v10520, %v10521
        %v10523 = vrot.slane %v10522, 2
        %v10524 = vadd.f32 %v10522, %v10523
        %v10525 = vrot.slane %v10524, 1
        %v10526 = vadd.f32 %v10524, %v10525
        %v10527 = vsel %vm10169, %v10482, 0.0
        %v10528 = vsel %vm10169, %v10483, 0.0
        %v10529 = vadd.f32 %v10527, %v10528
        %v10530 = vsel %vm10169, %v10484, 0.0
        %v10531 = vadd.f32 %v10529, %v10530
        %v10532 = vsel %vm10169, %v10485, 0.0
        %v10533 = vadd.f32 %v10531, %v10532
        %v10534 = vsel %vm10169, %v10486, 0.0
        %v10535 = vadd.f32 %v10533, %v10534
        %v10536 = vsel %vm10169, %v10487, 0.0
        %v10537 = vadd.f32 %v10535, %v10536
        %v10538 = vsel %vm10169, %v10488, 0.0
        %v10539 = vadd.f32 %v10537, %v10538
        %v10540 = vsel %vm10169, %v10489, 0.0
        %v10541 = vadd.f32 %v10539, %v10540
        %v10542 = vrot.slane %v10541, 4
        %v10543 = vadd.f32 %v10541, %v10542
        %v10544 = vrot.slane %v10543, 2
        %v10545 = vadd.f32 %v10543, %v10544
        %v10546 = vrot.slane %v10545, 1
        %v10547 = vadd.f32 %v10545, %v10546
        %v10548 = vsel %vm10169, %v10490, 0.0
        %v10549 = vsel %vm10169, %v10491, 0.0
        %v10550 = vadd.f32 %v10548, %v10549
        %v10551 = vsel %vm10169, %v10492, 0.0
        %v10552 = vadd.f32 %v10550, %v10551
        %v10553 = vsel %vm10169, %v10493, 0.0
        %v10554 = vadd.f32 %v10552, %v10553
        %v10555 = vsel %vm10169, %v10494, 0.0
        %v10556 = vadd.f32 %v10554, %v10555
        %v10557 = vsel %vm10169, %v10495, 0.0
        %v10558 = vadd.f32 %v10556, %v10557
        %v10559 = vsel %vm10169, %v10496, 0.0
        %v10560 = vadd.f32 %v10558, %v10559
        %v10561 = vsel %vm10169, %v10497, 0.0
        %v10562 = vadd.f32 %v10560, %v10561
        %v10563 = vrot.slane %v10562, 4
        %v10564 = vadd.f32 %v10562, %v10563
        %v10565 = vrot.slane %v10564, 2
        %v10566 = vadd.f32 %v10564, %v10565
        %v10567 = vrot.slane %v10566, 1
        %v10568 = vadd.f32 %v10566, %v10567
        %v10569 = vsel %vm10169, %v10498, 0.0
        %v10570 = vsel %vm10169, %v10499, 0.0
        %v10571 = vadd.f32 %v10569, %v10570
        %v10572 = vsel %vm10169, %v10500, 0.0
        %v10573 = vadd.f32 %v10571, %v10572
        %v10574 = vsel %vm10169, %v10501, 0.0
        %v10575 = vadd.f32 %v10573, %v10574
        %v10576 = vsel %vm10169, %v10502, 0.0
        %v10577 = vadd.f32 %v10575, %v10576
        %v10578 = vsel %vm10169, %v10503, 0.0
        %v10579 = vadd.f32 %v10577, %v10578
        %v10580 = vsel %vm10169, %v10504, 0.0
        %v10581 = vadd.f32 %v10579, %v10580
        %v10582 = vsel %vm10169, %v10505, 0.0
        %v10583 = vadd.f32 %v10581, %v10582
        %v10584 = vrot.slane %v10583, 4
        %v10585 = vadd.f32 %v10583, %v10584
        %v10586 = vrot.slane %v10585, 2
        %v10587 = vadd.f32 %v10585, %v10586
        %v10588 = vrot.slane %v10587, 1
        %v10589 = vadd.f32 %v10587, %v10588
        %10594 = vrot.lane.b32.xlu0 %v10526, 122
        %v10595 = vpop.permute.xlu0 %10594
        %10596 = vrot.lane.b32.xlu0 %v10547, 122
        %v10597 = vpop.permute.xlu0 %10596
        %10598 = vrot.lane.b32.xlu0 %v10568, 122
        %v10599 = vpop.permute.xlu0 %10598
        %10600 = vrot.lane.b32.xlu0 %v10589, 122
        %v10601 = vpop.permute.xlu0 %10600
        %v10606 = vadd.f32 %v9933, %v10595
        %v10607 = vadd.f32 %v9934, %v10597
        %v10608 = vadd.f32 %v9935, %v10599
        %v10609 = vadd.f32 %v9936, %v10601
        %10610 = vset.pattern.permute.xlu0 6
        %10611 = vperm.xlu0 %10610, %v6048
        %v10612 = vpop.permute.xlu0 %10611
        %10614 = vset.pattern.permute.xlu0 6
        %10615 = vperm.xlu0 %10614, %v6049
        %v10616 = vpop.permute.xlu0 %10615
        %10618 = vset.pattern.permute.xlu0 6
        %10619 = vperm.xlu0 %10618, %v6050
        %v10620 = vpop.permute.xlu0 %10619
        %10622 = vset.pattern.permute.xlu0 6
        %10623 = vperm.xlu0 %10622, %v6051
        %v10624 = vpop.permute.xlu0 %10623
        %10626 = vset.pattern.permute.xlu0 6
        %10627 = vperm.xlu0 %10626, %v6052
        %v10628 = vpop.permute.xlu0 %10627
        %10630 = vset.pattern.permute.xlu0 6
        %10631 = vperm.xlu0 %10630, %v6053
        %v10632 = vpop.permute.xlu0 %10631
        %10634 = vset.pattern.permute.xlu0 6
        %10635 = vperm.xlu0 %10634, %v6054
        %v10636 = vpop.permute.xlu0 %10635
        %10638 = vset.pattern.permute.xlu0 6
        %10639 = vperm.xlu0 %10638, %v6055
        %v10640 = vpop.permute.xlu0 %10639
        %v10642 = vmul.f32 %v6069, %v10612
        %v10643 = vmul.f32 %v6070, %v10616
        %v10644 = vmul.f32 %v6071, %v10620
        %v10645 = vmul.f32 %v6072, %v10624
        %v10646 = vmul.f32 %v6073, %v10628
        %v10647 = vmul.f32 %v6074, %v10632
        %v10648 = vmul.f32 %v6075, %v10636
        %v10649 = vmul.f32 %v6076, %v10640
        %v10650 = vmul.f32 %v6077, %v10612
        %v10651 = vmul.f32 %v6078, %v10616
        %v10652 = vmul.f32 %v6079, %v10620
        %v10653 = vmul.f32 %v6080, %v10624
        %v10654 = vmul.f32 %v6081, %v10628
        %v10655 = vmul.f32 %v6082, %v10632
        %v10656 = vmul.f32 %v6083, %v10636
        %v10657 = vmul.f32 %v6084, %v10640
        %v10658 = vmul.f32 %v6085, %v10612
        %v10659 = vmul.f32 %v6086, %v10616
        %v10660 = vmul.f32 %v6087, %v10620
        %v10661 = vmul.f32 %v6088, %v10624
        %v10662 = vmul.f32 %v6089, %v10628
        %v10663 = vmul.f32 %v6090, %v10632
        %v10664 = vmul.f32 %v6091, %v10636
        %v10665 = vmul.f32 %v6092, %v10640
        %v10666 = vmul.f32 %v6093, %v10612
        %v10667 = vmul.f32 %v6094, %v10616
        %v10668 = vmul.f32 %v6095, %v10620
        %v10669 = vmul.f32 %v6096, %v10624
        %v10670 = vmul.f32 %v6097, %v10628
        %v10671 = vmul.f32 %v6098, %v10632
        %v10672 = vmul.f32 %v6099, %v10636
        %v10673 = vmul.f32 %v6100, %v10640
        %v10674 = vsel %vm10169, %v10642, 0.0
        %v10675 = vsel %vm10169, %v10643, 0.0
        %v10676 = vadd.f32 %v10674, %v10675
        %v10677 = vsel %vm10169, %v10644, 0.0
        %v10678 = vadd.f32 %v10676, %v10677
        %v10679 = vsel %vm10169, %v10645, 0.0
        %v10680 = vadd.f32 %v10678, %v10679
        %v10681 = vsel %vm10169, %v10646, 0.0
        %v10682 = vadd.f32 %v10680, %v10681
        %v10683 = vsel %vm10169, %v10647, 0.0
        %v10684 = vadd.f32 %v10682, %v10683
        %v10685 = vsel %vm10169, %v10648, 0.0
        %v10686 = vadd.f32 %v10684, %v10685
        %v10687 = vsel %vm10169, %v10649, 0.0
        %v10688 = vadd.f32 %v10686, %v10687
        %v10689 = vrot.slane %v10688, 4
        %v10690 = vadd.f32 %v10688, %v10689
        %v10691 = vrot.slane %v10690, 2
        %v10692 = vadd.f32 %v10690, %v10691
        %v10693 = vrot.slane %v10692, 1
        %v10694 = vadd.f32 %v10692, %v10693
        %v10695 = vsel %vm10169, %v10650, 0.0
        %v10696 = vsel %vm10169, %v10651, 0.0
        %v10697 = vadd.f32 %v10695, %v10696
        %v10698 = vsel %vm10169, %v10652, 0.0
        %v10699 = vadd.f32 %v10697, %v10698
        %v10700 = vsel %vm10169, %v10653, 0.0
        %v10701 = vadd.f32 %v10699, %v10700
        %v10702 = vsel %vm10169, %v10654, 0.0
        %v10703 = vadd.f32 %v10701, %v10702
        %v10704 = vsel %vm10169, %v10655, 0.0
        %v10705 = vadd.f32 %v10703, %v10704
        %v10706 = vsel %vm10169, %v10656, 0.0
        %v10707 = vadd.f32 %v10705, %v10706
        %v10708 = vsel %vm10169, %v10657, 0.0
        %v10709 = vadd.f32 %v10707, %v10708
        %v10710 = vrot.slane %v10709, 4
        %v10711 = vadd.f32 %v10709, %v10710
        %v10712 = vrot.slane %v10711, 2
        %v10713 = vadd.f32 %v10711, %v10712
        %v10714 = vrot.slane %v10713, 1
        %v10715 = vadd.f32 %v10713, %v10714
        %v10716 = vsel %vm10169, %v10658, 0.0
        %v10717 = vsel %vm10169, %v10659, 0.0
        %v10718 = vadd.f32 %v10716, %v10717
        %v10719 = vsel %vm10169, %v10660, 0.0
        %v10720 = vadd.f32 %v10718, %v10719
        %v10721 = vsel %vm10169, %v10661, 0.0
        %v10722 = vadd.f32 %v10720, %v10721
        %v10723 = vsel %vm10169, %v10662, 0.0
        %v10724 = vadd.f32 %v10722, %v10723
        %v10725 = vsel %vm10169, %v10663, 0.0
        %v10726 = vadd.f32 %v10724, %v10725
        %v10727 = vsel %vm10169, %v10664, 0.0
        %v10728 = vadd.f32 %v10726, %v10727
        %v10729 = vsel %vm10169, %v10665, 0.0
        %v10730 = vadd.f32 %v10728, %v10729
        %v10731 = vrot.slane %v10730, 4
        %v10732 = vadd.f32 %v10730, %v10731
        %v10733 = vrot.slane %v10732, 2
        %v10734 = vadd.f32 %v10732, %v10733
        %v10735 = vrot.slane %v10734, 1
        %v10736 = vadd.f32 %v10734, %v10735
        %v10737 = vsel %vm10169, %v10666, 0.0
        %v10738 = vsel %vm10169, %v10667, 0.0
        %v10739 = vadd.f32 %v10737, %v10738
        %v10740 = vsel %vm10169, %v10668, 0.0
        %v10741 = vadd.f32 %v10739, %v10740
        %v10742 = vsel %vm10169, %v10669, 0.0
        %v10743 = vadd.f32 %v10741, %v10742
        %v10744 = vsel %vm10169, %v10670, 0.0
        %v10745 = vadd.f32 %v10743, %v10744
        %v10746 = vsel %vm10169, %v10671, 0.0
        %v10747 = vadd.f32 %v10745, %v10746
        %v10748 = vsel %vm10169, %v10672, 0.0
        %v10749 = vadd.f32 %v10747, %v10748
        %v10750 = vsel %vm10169, %v10673, 0.0
        %v10751 = vadd.f32 %v10749, %v10750
        %v10752 = vrot.slane %v10751, 4
        %v10753 = vadd.f32 %v10751, %v10752
        %v10754 = vrot.slane %v10753, 2
        %v10755 = vadd.f32 %v10753, %v10754
        %v10756 = vrot.slane %v10755, 1
        %v10757 = vadd.f32 %v10755, %v10756
        %10762 = vrot.lane.b32.xlu0 %v10694, 122
        %v10763 = vpop.permute.xlu0 %10762
        %10764 = vrot.lane.b32.xlu0 %v10715, 122
        %v10765 = vpop.permute.xlu0 %10764
        %10766 = vrot.lane.b32.xlu0 %v10736, 122
        %v10767 = vpop.permute.xlu0 %10766
        %10768 = vrot.lane.b32.xlu0 %v10757, 122
        %v10769 = vpop.permute.xlu0 %10768
        %v10774 = vadd.f32 %v10101, %v10763
        %v10775 = vadd.f32 %v10102, %v10765
        %v10776 = vadd.f32 %v10103, %v10767
        %v10777 = vadd.f32 %v10104, %v10769
        %vm10778 = vcmask 19456
        %10779 = vst.msk [vmem:[#allocation3] sm:$0xf] %vm10778, 0.0
        %10780 = vst.msk [vmem:[#allocation3 + $0x4] sm:$0xf] %vm10778, 0.0
        %10781 = vst.msk [vmem:[#allocation3 + $0x8] sm:$0xf] %vm10778, 0.0
        %10782 = vst.msk [vmem:[#allocation3 + $0xc] sm:$0xf] %vm10778, 0.0
        %vm10783 = vcmask 175256
        %10784 = vst.msk [vmem:[#allocation3] sm:$0xf] %vm10783, 0.0
        %10785 = vst.msk [vmem:[#allocation3 + $0x4] sm:$0xf] %vm10783, 0.0
        %10786 = vst.msk [vmem:[#allocation3 + $0x8] sm:$0xf] %vm10783, 0.0
        %10787 = vst.msk [vmem:[#allocation3 + $0xc] sm:$0xf] %vm10783, 0.0
        %v10788 = vsel %vm419, 0.0, %v10270
        %v10789 = vsel %vm420, 0.0, %v10271
        %v10790 = vsel %vm421, 0.0, %v10272
        %v10791 = vsel %vm422, 0.0, %v10273
        %v10792 = vmax.f32 %v10788, 0.0
        %v10793 = vmax.f32 %v10789, 0.0
        %v10794 = vmax.f32 %v10790, 0.0
        %v10795 = vmax.f32 %v10791, 0.0
        %v10800 = vlaneseq
        %v10801 = vshrl.u32 %v10800, 7
        %v10802 = vsub.s32 0, %v10801
        %v10803 = vrot.slane %v10792, %v10802
        %v10804 = vlaneseq
        %v10805 = vshrl.u32 %v10804, 7
        %v10806 = vsub.s32 0, %v10805
        %v10807 = vrot.slane %v10793, %v10806
        %v10808 = vlaneseq
        %v10809 = vshrl.u32 %v10808, 7
        %v10810 = vsub.s32 0, %v10809
        %v10811 = vrot.slane %v10794, %v10810
        %v10812 = vlaneseq
        %v10813 = vshrl.u32 %v10812, 7
        %v10814 = vsub.s32 0, %v10813
        %v10815 = vrot.slane %v10795, %v10814
        %v10816 = vsel %vm612, %v10807, %v10803
        %v10817 = vsel %vm614, %v10811, %v10816
        %v10818 = vsel %vm616, %v10815, %v10817
        %10819 = vrot.lane.b32.xlu0 %v10818, 3
        %v10820 = vpop.permute.xlu0 %10819
        %vm10822 = vcmask 150552
        %10823 = vst.msk [vmem:[#allocation3] sm:$0xf] %vm10822, %v10820
        %v10824 = vsel %vm419, 0.0, %v10438
        %v10825 = vsel %vm420, 0.0, %v10439
        %v10826 = vsel %vm421, 0.0, %v10440
        %v10827 = vsel %vm422, 0.0, %v10441
        %v10828 = vmax.f32 %v10824, 0.0
        %v10829 = vmax.f32 %v10825, 0.0
        %v10830 = vmax.f32 %v10826, 0.0
        %v10831 = vmax.f32 %v10827, 0.0
        %v10836 = vlaneseq
        %v10837 = vshrl.u32 %v10836, 7
        %v10838 = vsub.s32 0, %v10837
        %v10839 = vrot.slane %v10828, %v10838
        %v10840 = vlaneseq
        %v10841 = vshrl.u32 %v10840, 7
        %v10842 = vsub.s32 0, %v10841
        %v10843 = vrot.slane %v10829, %v10842
        %v10844 = vlaneseq
        %v10845 = vshrl.u32 %v10844, 7
        %v10846 = vsub.s32 0, %v10845
        %v10847 = vrot.slane %v10830, %v10846
        %v10848 = vlaneseq
        %v10849 = vshrl.u32 %v10848, 7
        %v10850 = vsub.s32 0, %v10849
        %v10851 = vrot.slane %v10831, %v10850
        %v10852 = vsel %vm612, %v10843, %v10839
        %v10853 = vsel %vm614, %v10847, %v10852
        %v10854 = vsel %vm616, %v10851, %v10853
        %10855 = vrot.lane.b32.xlu0 %v10854, 3
        %v10856 = vpop.permute.xlu0 %10855
        %s10858 = scalar_lea.vmem [#allocation3], 4
        %10859 = vst.msk [vmem:[%s10858] sm:$0xf] %vm10822, %v10856
        %v10860 = vsel %vm419, 0.0, %v10606
        %v10861 = vsel %vm420, 0.0, %v10607
        %v10862 = vsel %vm421, 0.0, %v10608
        %v10863 = vsel %vm422, 0.0, %v10609
        %v10864 = vmax.f32 %v10860, 0.0
        %v10865 = vmax.f32 %v10861, 0.0
        %v10866 = vmax.f32 %v10862, 0.0
        %v10867 = vmax.f32 %v10863, 0.0
        %v10872 = vlaneseq
        %v10873 = vshrl.u32 %v10872, 7
        %v10874 = vsub.s32 0, %v10873
        %v10875 = vrot.slane %v10864, %v10874
        %v10876 = vlaneseq
        %v10877 = vshrl.u32 %v10876, 7
        %v10878 = vsub.s32 0, %v10877
        %v10879 = vrot.slane %v10865, %v10878
        %v10880 = vlaneseq
        %v10881 = vshrl.u32 %v10880, 7
        %v10882 = vsub.s32 0, %v10881
        %v10883 = vrot.slane %v10866, %v10882
        %v10884 = vlaneseq
        %v10885 = vshrl.u32 %v10884, 7
        %v10886 = vsub.s32 0, %v10885
        %v10887 = vrot.slane %v10867, %v10886
        %v10888 = vsel %vm612, %v10879, %v10875
        %v10889 = vsel %vm614, %v10883, %v10888
        %v10890 = vsel %vm616, %v10887, %v10889
        %10891 = vrot.lane.b32.xlu0 %v10890, 3
        %v10892 = vpop.permute.xlu0 %10891
        %s10894 = scalar_lea.vmem [#allocation3], 8
        %10895 = vst.msk [vmem:[%s10894] sm:$0xf] %vm10822, %v10892
        %v10896 = vsel %vm419, 0.0, %v10774
        %v10897 = vsel %vm420, 0.0, %v10775
        %v10898 = vsel %vm421, 0.0, %v10776
        %v10899 = vsel %vm422, 0.0, %v10777
        %v10900 = vmax.f32 %v10896, 0.0
        %v10901 = vmax.f32 %v10897, 0.0
        %v10902 = vmax.f32 %v10898, 0.0
        %v10903 = vmax.f32 %v10899, 0.0
        %v10908 = vlaneseq
        %v10909 = vshrl.u32 %v10908, 7
        %v10910 = vsub.s32 0, %v10909
        %v10911 = vrot.slane %v10900, %v10910
        %v10912 = vlaneseq
        %v10913 = vshrl.u32 %v10912, 7
        %v10914 = vsub.s32 0, %v10913
        %v10915 = vrot.slane %v10901, %v10914
        %v10916 = vlaneseq
        %v10917 = vshrl.u32 %v10916, 7
        %v10918 = vsub.s32 0, %v10917
        %v10919 = vrot.slane %v10902, %v10918
        %v10920 = vlaneseq
        %v10921 = vshrl.u32 %v10920, 7
        %v10922 = vsub.s32 0, %v10921
        %v10923 = vrot.slane %v10903, %v10922
        %v10924 = vsel %vm612, %v10915, %v10911
        %v10925 = vsel %vm614, %v10919, %v10924
        %v10926 = vsel %vm616, %v10923, %v10925
        %10927 = vrot.lane.b32.xlu0 %v10926, 3
        %v10928 = vpop.permute.xlu0 %10927
        %s10930 = scalar_lea.vmem [#allocation3], 12
        %10931 = vst.msk [vmem:[%s10930] sm:$0xf] %vm10822, %v10928
        %s10932 = sld [smem:[#allocation4]]
        %v10933 = vstv %s10932
        %v10934 = vadd.f32 %v10933, 0.0
        %v10935 = vld [vmem:[#allocation3] sm:$0xf]
        %v10936 = vld [vmem:[#allocation3 + $0x4] sm:$0xf]
        %v10937 = vld [vmem:[#allocation3 + $0x8] sm:$0xf]
        %v10938 = vld [vmem:[#allocation3 + $0xc] sm:$0xf]
        %v10941 = vunpack.c.l.s4 1966171168
        %v10942 = vunpack.c.0.s8 %v10941
        %v10943 = vlaneseq
        %v10944 = vshrl.u32 %v10943, 7
        %v10945 = vsub.s32 %v10942, %v10944
        %v10946 = vrot.slane %v6056, %v10945
        %v10947 = vcombine.high %v10946, %v10946
        %v10949 = vunpack.c.l.s4 1966171168
        %v10950 = vunpack.c.0.s8 %v10949
        %v10951 = vlaneseq
        %v10952 = vshrl.u32 %v10951, 7
        %v10953 = vsub.s32 %v10950, %v10952
        %v10954 = vrot.slane %v10946, %v10953
        %v10956 = vunpack.c.l.s4 1966171168
        %v10957 = vunpack.c.0.s8 %v10956
        %v10958 = vlaneseq
        %v10959 = vshrl.u32 %v10958, 7
        %v10960 = vsub.s32 %v10957, %v10959
        %v10961 = vrot.slane %v10947, %v10960
        %v10962 = vcombine.high %v10954, %v10954
        %v10963 = vcombine.high %v10961, %v10961
        %v10964 = vlaneseq
        %v10965 = vshrl.u32 %v10964, 7
        %v10966 = vsub.s32 0, %v10965
        %v10967 = vrot.slane %v10954, %v10966
        %v10968 = vlaneseq
        %v10969 = vshrl.u32 %v10968, 7
        %v10970 = vsub.s32 0, %v10969
        %v10971 = vrot.slane %v10961, %v10970
        %v10972 = vlaneseq
        %v10973 = vshrl.u32 %v10972, 7
        %v10974 = vsub.s32 0, %v10973
        %v10975 = vrot.slane %v10962, %v10974
        %v10976 = vlaneseq
        %v10977 = vshrl.u32 %v10976, 7
        %v10978 = vsub.s32 0, %v10977
        %v10979 = vrot.slane %v10963, %v10978
        %10980 = vset.pattern.permute.xlu0 0
        %10981 = vperm.xlu0 %10980, %v10967
        %v10982 = vpop.permute.xlu0 %10981
        %10984 = vset.pattern.permute.xlu0 0
        %10985 = vperm.xlu0 %10984, %v10971
        %v10986 = vpop.permute.xlu0 %10985
        %10988 = vset.pattern.permute.xlu0 0
        %10989 = vperm.xlu0 %10988, %v10975
        %v10990 = vpop.permute.xlu0 %10989
        %10992 = vset.pattern.permute.xlu0 0
        %10993 = vperm.xlu0 %10992, %v10979
        %v10994 = vpop.permute.xlu0 %10993
        %v10996 = vmul.f32 %v10935, %v10982
        %v10997 = vmul.f32 %v10936, %v10986
        %v10998 = vmul.f32 %v10937, %v10990
        %v10999 = vmul.f32 %v10938, %v10994
        %v11000 = vsel %vm619, %v10996, 0.0
        %v11001 = vsel %vm619, %v10997, 0.0
        %v11002 = vadd.f32 %v11000, %v11001
        %v11003 = vsel %vm619, %v10998, 0.0
        %v11004 = vadd.f32 %v11002, %v11003
        %v11005 = vsel %vm619, %v10999, 0.0
        %v11006 = vadd.f32 %v11004, %v11005
        %v11007 = vadd.f32 %v10934, %v11006
        %v11008 = vld [vmem:[#allocation3] sm:$0xf]
        %v11009 = vld [vmem:[#allocation3 + $0x4] sm:$0xf]
        %v11010 = vld [vmem:[#allocation3 + $0x8] sm:$0xf]
        %v11011 = vld [vmem:[#allocation3 + $0xc] sm:$0xf]
        %11012 = vset.pattern.permute.xlu0 1
        %11013 = vperm.xlu0 %11012, %v10967
        %v11014 = vpop.permute.xlu0 %11013
        %11016 = vset.pattern.permute.xlu0 1
        %11017 = vperm.xlu0 %11016, %v10971
        %v11018 = vpop.permute.xlu0 %11017
        %11020 = vset.pattern.permute.xlu0 1
        %11021 = vperm.xlu0 %11020, %v10975
        %v11022 = vpop.permute.xlu0 %11021
        %11024 = vset.pattern.permute.xlu0 1
        %11025 = vperm.xlu0 %11024, %v10979
        %v11026 = vpop.permute.xlu0 %11025
        %v11028 = vmul.f32 %v11008, %v11014
        %v11029 = vmul.f32 %v11009, %v11018
        %v11030 = vmul.f32 %v11010, %v11022
        %v11031 = vmul.f32 %v11011, %v11026
        %vm11032 = vcmask 134152
        %v11033 = vsel %vm11032, %v11028, 0.0
        %v11034 = vsel %vm11032, %v11029, 0.0
        %v11035 = vadd.f32 %v11033, %v11034
        %v11036 = vsel %vm11032, %v11030, 0.0
        %v11037 = vadd.f32 %v11035, %v11036
        %v11038 = vsel %vm11032, %v11031, 0.0
        %v11039 = vadd.f32 %v11037, %v11038
        %11041 = vrot.lane.b32.xlu0 %v11039, 127
        %v11042 = vpop.permute.xlu0 %11041
        %v11044 = vadd.f32 %v11007, %v11042
        %v11045 = vld [vmem:[#allocation3] sm:$0xf]
        %v11046 = vld [vmem:[#allocation3 + $0x4] sm:$0xf]
        %v11047 = vld [vmem:[#allocation3 + $0x8] sm:$0xf]
        %v11048 = vld [vmem:[#allocation3 + $0xc] sm:$0xf]
        %11049 = vset.pattern.permute.xlu0 2
        %11050 = vperm.xlu0 %11049, %v10967
        %v11051 = vpop.permute.xlu0 %11050
        %11053 = vset.pattern.permute.xlu0 2
        %11054 = vperm.xlu0 %11053, %v10971
        %v11055 = vpop.permute.xlu0 %11054
        %11057 = vset.pattern.permute.xlu0 2
        %11058 = vperm.xlu0 %11057, %v10975
        %v11059 = vpop.permute.xlu0 %11058
        %11061 = vset.pattern.permute.xlu0 2
        %11062 = vperm.xlu0 %11061, %v10979
        %v11063 = vpop.permute.xlu0 %11062
        %v11065 = vmul.f32 %v11045, %v11051
        %v11066 = vmul.f32 %v11046, %v11055
        %v11067 = vmul.f32 %v11047, %v11059
        %v11068 = vmul.f32 %v11048, %v11063
        %vm11069 = vcmask 142352
        %v11070 = vsel %vm11069, %v11065, 0.0
        %v11071 = vsel %vm11069, %v11066, 0.0
        %v11072 = vadd.f32 %v11070, %v11071
        %v11073 = vsel %vm11069, %v11067, 0.0
        %v11074 = vadd.f32 %v11072, %v11073
        %v11075 = vsel %vm11069, %v11068, 0.0
        %v11076 = vadd.f32 %v11074, %v11075
        %11078 = vrot.lane.b32.xlu0 %v11076, 126
        %v11079 = vpop.permute.xlu0 %11078
        %v11081 = vadd.f32 %v11044, %v11079
        %v11082 = vld [vmem:[#allocation3] sm:$0xf]
        %v11083 = vld [vmem:[#allocation3 + $0x4] sm:$0xf]
        %v11084 = vld [vmem:[#allocation3 + $0x8] sm:$0xf]
        %v11085 = vld [vmem:[#allocation3 + $0xc] sm:$0xf]
        %11086 = vset.pattern.permute.xlu0 3
        %11087 = vperm.xlu0 %11086, %v10967
        %v11088 = vpop.permute.xlu0 %11087
        %11090 = vset.pattern.permute.xlu0 3
        %11091 = vperm.xlu0 %11090, %v10971
        %v11092 = vpop.permute.xlu0 %11091
        %11094 = vset.pattern.permute.xlu0 3
        %11095 = vperm.xlu0 %11094, %v10975
        %v11096 = vpop.permute.xlu0 %11095
        %11098 = vset.pattern.permute.xlu0 3
        %11099 = vperm.xlu0 %11098, %v10979
        %v11100 = vpop.permute.xlu0 %11099
        %v11102 = vmul.f32 %v11082, %v11088
        %v11103 = vmul.f32 %v11083, %v11092
        %v11104 = vmul.f32 %v11084, %v11096
        %v11105 = vmul.f32 %v11085, %v11100
        %v11106 = vsel %vm10822, %v11102, 0.0
        %v11107 = vsel %vm10822, %v11103, 0.0
        %v11108 = vadd.f32 %v11106, %v11107
        %v11109 = vsel %vm10822, %v11104, 0.0
        %v11110 = vadd.f32 %v11108, %v11109
        %v11111 = vsel %vm10822, %v11105, 0.0
        %v11112 = vadd.f32 %v11110, %v11111
        %11114 = vrot.lane.b32.xlu0 %v11112, 125
        %v11115 = vpop.permute.xlu0 %11114
        %v11117 = vadd.f32 %v11081, %v11115
        %v11118 = vld [vmem:[#allocation3] sm:$0xf]
        %v11119 = vld [vmem:[#allocation3 + $0x4] sm:$0xf]
        %v11120 = vld [vmem:[#allocation3 + $0x8] sm:$0xf]
        %v11121 = vld [vmem:[#allocation3 + $0xc] sm:$0xf]
        %11122 = vset.pattern.permute.xlu0 4
        %11123 = vperm.xlu0 %11122, %v10967
        %v11124 = vpop.permute.xlu0 %11123
        %11126 = vset.pattern.permute.xlu0 4
        %11127 = vperm.xlu0 %11126, %v10971
        %v11128 = vpop.permute.xlu0 %11127
        %11130 = vset.pattern.permute.xlu0 4
        %11131 = vperm.xlu0 %11130, %v10975
        %v11132 = vpop.permute.xlu0 %11131
        %11134 = vset.pattern.permute.xlu0 4
        %11135 = vperm.xlu0 %11134, %v10979
        %v11136 = vpop.permute.xlu0 %11135
        %v11138 = vmul.f32 %v11118, %v11124
        %v11139 = vmul.f32 %v11119, %v11128
        %v11140 = vmul.f32 %v11120, %v11132
        %v11141 = vmul.f32 %v11121, %v11136
        %vm11142 = vcmask 158752
        %v11143 = vsel %vm11142, %v11138, 0.0
        %v11144 = vsel %vm11142, %v11139, 0.0
        %v11145 = vadd.f32 %v11143, %v11144
        %v11146 = vsel %vm11142, %v11140, 0.0
        %v11147 = vadd.f32 %v11145, %v11146
        %v11148 = vsel %vm11142, %v11141, 0.0
        %v11149 = vadd.f32 %v11147, %v11148
        %11151 = vrot.lane.b32.xlu0 %v11149, 124
        %v11152 = vpop.permute.xlu0 %11151
        %v11154 = vadd.f32 %v11117, %v11152
        %v11155 = vld [vmem:[#allocation3] sm:$0xf]
        %v11156 = vld [vmem:[#allocation3 + $0x4] sm:$0xf]
        %v11157 = vld [vmem:[#allocation3 + $0x8] sm:$0xf]
        %v11158 = vld [vmem:[#allocation3 + $0xc] sm:$0xf]
        %11159 = vset.pattern.permute.xlu0 5
        %11160 = vperm.xlu0 %11159, %v10967
        %v11161 = vpop.permute.xlu0 %11160
        %11163 = vset.pattern.permute.xlu0 5
        %11164 = vperm.xlu0 %11163, %v10971
        %v11165 = vpop.permute.xlu0 %11164
        %11167 = vset.pattern.permute.xlu0 5
        %11168 = vperm.xlu0 %11167, %v10975
        %v11169 = vpop.permute.xlu0 %11168
        %11171 = vset.pattern.permute.xlu0 5
        %11172 = vperm.xlu0 %11171, %v10979
        %v11173 = vpop.permute.xlu0 %11172
        %v11175 = vmul.f32 %v11155, %v11161
        %v11176 = vmul.f32 %v11156, %v11165
        %v11177 = vmul.f32 %v11157, %v11169
        %v11178 = vmul.f32 %v11158, %v11173
        %vm11179 = vcmask 166952
        %v11180 = vsel %vm11179, %v11175, 0.0
        %v11181 = vsel %vm11179, %v11176, 0.0
        %v11182 = vadd.f32 %v11180, %v11181
        %v11183 = vsel %vm11179, %v11177, 0.0
        %v11184 = vadd.f32 %v11182, %v11183
        %v11185 = vsel %vm11179, %v11178, 0.0
        %v11186 = vadd.f32 %v11184, %v11185
        %11188 = vrot.lane.b32.xlu0 %v11186, 123
        %v11189 = vpop.permute.xlu0 %11188
        %v11191 = vadd.f32 %v11154, %v11189
        %v11192 = vld [vmem:[#allocation3] sm:$0xf]
        %v11193 = vld [vmem:[#allocation3 + $0x4] sm:$0xf]
        %v11194 = vld [vmem:[#allocation3 + $0x8] sm:$0xf]
        %v11195 = vld [vmem:[#allocation3 + $0xc] sm:$0xf]
        %11196 = vset.pattern.permute.xlu0 6
        %11197 = vperm.xlu0 %11196, %v10967
        %v11198 = vpop.permute.xlu0 %11197
        %11200 = vset.pattern.permute.xlu0 6
        %11201 = vperm.xlu0 %11200, %v10971
        %v11202 = vpop.permute.xlu0 %11201
        %11204 = vset.pattern.permute.xlu0 6
        %11205 = vperm.xlu0 %11204, %v10975
        %v11206 = vpop.permute.xlu0 %11205
        %11208 = vset.pattern.permute.xlu0 6
        %11209 = vperm.xlu0 %11208, %v10979
        %v11210 = vpop.permute.xlu0 %11209
        %v11212 = vmul.f32 %v11192, %v11198
        %v11213 = vmul.f32 %v11193, %v11202
        %v11214 = vmul.f32 %v11194, %v11206
        %v11215 = vmul.f32 %v11195, %v11210
        %vm11216 = vcmask 175152
        %v11217 = vsel %vm11216, %v11212, 0.0
        %v11218 = vsel %vm11216, %v11213, 0.0
        %v11219 = vadd.f32 %v11217, %v11218
        %v11220 = vsel %vm11216, %v11214, 0.0
        %v11221 = vadd.f32 %v11219, %v11220
        %v11222 = vsel %vm11216, %v11215, 0.0
        %v11223 = vadd.f32 %v11221, %v11222
        %11225 = vrot.lane.b32.xlu0 %v11223, 122
        %v11226 = vpop.permute.xlu0 %11225
        %v11228 = vadd.f32 %v11191, %v11226
        %v11230 = vrot.slane %v11228, 1
        %v11231 = vrot.slane %v11228, 2
        %v11232 = vrot.slane %v11228, 3
        %v11237 = vsel %vm419, -10.0, %v11228
        %v11238 = vsel %vm420, -10.0, %v11230
        %v11239 = vsel %vm421, -10.0, %v11231
        %v11240 = vsel %vm422, -10.0, %v11232
        %v11241 = vsub.f32 0.0, %v11237
        %v11242 = vsub.f32 0.0, %v11238
        %v11243 = vsub.f32 0.0, %v11239
        %v11244 = vsub.f32 0.0, %v11240
        %v11245 = vmul.f32 %v11241, 1.442695
        %v11246 = vpow.pop %v11245
        %v11247 = vmul.f32 %v11242, 1.442695
        %v11248 = vpow.pop %v11247
        %v11249 = vmul.f32 %v11243, 1.442695
        %v11250 = vpow.pop %v11249
        %v11251 = vmul.f32 %v11244, 1.442695
        %v11252 = vpow.pop %v11251
        %v11253 = vadd.f32 %v11246, 1.0
        %v11254 = vadd.f32 %v11248, 1.0
        %v11255 = vadd.f32 %v11250, 1.0
        %v11256 = vadd.f32 %v11252, 1.0
        %v11257 = vrcp.pop %v11253
        %v11258 = vmul.f32 1.0, %v11257
        %v11259 = vrcp.pop %v11254
        %v11260 = vmul.f32 1.0, %v11259
        %v11261 = vrcp.pop %v11255
        %v11262 = vmul.f32 1.0, %v11261
        %v11263 = vrcp.pop %v11256
        %v11264 = vmul.f32 1.0, %v11263
        %v11265 = vld [vmem:[#allocation2] sm:$0xff]
        %v11266 = vld [vmem:[#allocation2 + $0x8] sm:$0xff]
        %v11267 = vld [vmem:[#allocation2 + $0x10] sm:$0xff]
        %v11268 = vld [vmem:[#allocation2 + $0x18] sm:$0xff]
        %v11269 = vld [vmem:[#allocation2 + $0x20] sm:$0xff]
        %v11270 = vld [vmem:[#allocation2 + $0x28] sm:$0xff]
        %v11271 = vld [vmem:[#allocation2 + $0x30] sm:$0xff]
        %v11272 = vld [vmem:[#allocation2 + $0x38] sm:$0xff]
        %v11273 = vld [vmem:[#allocation2 + $0x40] sm:$0xff]
        %v11274 = vld [vmem:[#allocation2 + $0x48] sm:$0xff]
        %v11275 = vld [vmem:[#allocation2 + $0x50] sm:$0xff]
        %v11276 = vld [vmem:[#allocation2 + $0x58] sm:$0xff]
        %v11277 = vld [vmem:[#allocation2 + $0x60] sm:$0xff]
        %v11278 = vld [vmem:[#allocation2 + $0x68] sm:$0xff]
        %v11279 = vld [vmem:[#allocation2 + $0x70] sm:$0xff]
        %v11280 = vld [vmem:[#allocation2 + $0x78] sm:$0xff]
        %v11281 = vld [vmem:[#allocation2 + $0x80] sm:$0xff]
        %v11282 = vld [vmem:[#allocation2 + $0x88] sm:$0xff]
        %v11283 = vld [vmem:[#allocation2 + $0x90] sm:$0xff]
        %v11284 = vld [vmem:[#allocation2 + $0x98] sm:$0xff]
        %v11285 = vld [vmem:[#allocation2 + $0xa0] sm:$0xff]
        %v11286 = vld [vmem:[#allocation2 + $0xa8] sm:$0xff]
        %v11287 = vld [vmem:[#allocation2 + $0xb0] sm:$0xff]
        %v11288 = vld [vmem:[#allocation2 + $0xb8] sm:$0xff]
        %v11289 = vld [vmem:[#allocation2 + $0xc0] sm:$0xff]
        %v11290 = vld [vmem:[#allocation2 + $0xc8] sm:$0xff]
        %v11291 = vld [vmem:[#allocation2 + $0xd0] sm:$0xff]
        %v11292 = vld [vmem:[#allocation2 + $0xd8] sm:$0xff]
        %v11293 = vld [vmem:[#allocation2 + $0xe0] sm:$0xff]
        %v11294 = vld [vmem:[#allocation2 + $0xe8] sm:$0xff]
        %v11295 = vld [vmem:[#allocation2 + $0xf0] sm:$0xff]
        %v11296 = vld [vmem:[#allocation2 + $0xf8] sm:$0xff]
        %v11297 = vlaneseq
        %v11298 = vshrl.u32 %v11297, 7
        %v11299 = vsub.s32 0, %v11298
        %v11300 = vrot.slane %v11258, %v11299
        %v11301 = vlaneseq
        %v11302 = vshrl.u32 %v11301, 7
        %v11303 = vsub.s32 0, %v11302
        %v11304 = vrot.slane %v11260, %v11303
        %v11305 = vlaneseq
        %v11306 = vshrl.u32 %v11305, 7
        %v11307 = vsub.s32 0, %v11306
        %v11308 = vrot.slane %v11262, %v11307
        %v11309 = vlaneseq
        %v11310 = vshrl.u32 %v11309, 7
        %v11311 = vsub.s32 0, %v11310
        %v11312 = vrot.slane %v11264, %v11311
        %11317 = vrot.lane.b32.xlu0 %v11300, 3
        %v11318 = vpop.permute.xlu0 %11317
        %11319 = vrot.lane.b32.xlu0 %v11304, 3
        %v11320 = vpop.permute.xlu0 %11319
        %11321 = vrot.lane.b32.xlu0 %v11308, 3
        %v11322 = vpop.permute.xlu0 %11321
        %11323 = vrot.lane.b32.xlu0 %v11312, 3
        %v11324 = vpop.permute.xlu0 %11323
        %v11329 = vmul.f32 %v11265, %v11318
        %v11330 = vmul.f32 %v11266, %v11318
        %v11331 = vmul.f32 %v11267, %v11318
        %v11332 = vmul.f32 %v11268, %v11318
        %v11333 = vmul.f32 %v11269, %v11318
        %v11334 = vmul.f32 %v11270, %v11318
        %v11335 = vmul.f32 %v11271, %v11318
        %v11336 = vmul.f32 %v11272, %v11318
        %v11337 = vmul.f32 %v11273, %v11320
        %v11338 = vmul.f32 %v11274, %v11320
        %v11339 = vmul.f32 %v11275, %v11320
        %v11340 = vmul.f32 %v11276, %v11320
        %v11341 = vmul.f32 %v11277, %v11320
        %v11342 = vmul.f32 %v11278, %v11320
        %v11343 = vmul.f32 %v11279, %v11320
        %v11344 = vmul.f32 %v11280, %v11320
        %v11345 = vmul.f32 %v11281, %v11322
        %v11346 = vmul.f32 %v11282, %v11322
        %v11347 = vmul.f32 %v11283, %v11322
        %v11348 = vmul.f32 %v11284, %v11322
        %v11349 = vmul.f32 %v11285, %v11322
        %v11350 = vmul.f32 %v11286, %v11322
        %v11351 = vmul.f32 %v11287, %v11322
        %v11352 = vmul.f32 %v11288, %v11322
        %v11353 = vmul.f32 %v11289, %v11324
        %v11354 = vmul.f32 %v11290, %v11324
        %v11355 = vmul.f32 %v11291, %v11324
        %v11356 = vmul.f32 %v11292, %v11324
        %v11357 = vmul.f32 %v11293, %v11324
        %v11358 = vmul.f32 %v11294, %v11324
        %v11359 = vmul.f32 %v11295, %v11324
        %v11360 = vmul.f32 %v11296, %v11324
        %11393 = vrot.lane.b32.xlu0 %v11329, 125
        %v11394 = vpop.permute.xlu0 %11393
        %11395 = vrot.lane.b32.xlu0 %v11330, 125
        %v11396 = vpop.permute.xlu0 %11395
        %11397 = vrot.lane.b32.xlu0 %v11331, 125
        %v11398 = vpop.permute.xlu0 %11397
        %11399 = vrot.lane.b32.xlu0 %v11332, 125
        %v11400 = vpop.permute.xlu0 %11399
        %11401 = vrot.lane.b32.xlu0 %v11333, 125
        %v11402 = vpop.permute.xlu0 %11401
        %11403 = vrot.lane.b32.xlu0 %v11334, 125
        %v11404 = vpop.permute.xlu0 %11403
        %11405 = vrot.lane.b32.xlu0 %v11335, 125
        %v11406 = vpop.permute.xlu0 %11405
        %11407 = vrot.lane.b32.xlu0 %v11336, 125
        %v11408 = vpop.permute.xlu0 %11407
        %11409 = vrot.lane.b32.xlu0 %v11337, 125
        %v11410 = vpop.permute.xlu0 %11409
        %11411 = vrot.lane.b32.xlu0 %v11338, 125
        %v11412 = vpop.permute.xlu0 %11411
        %11413 = vrot.lane.b32.xlu0 %v11339, 125
        %v11414 = vpop.permute.xlu0 %11413
        %11415 = vrot.lane.b32.xlu0 %v11340, 125
        %v11416 = vpop.permute.xlu0 %11415
        %11417 = vrot.lane.b32.xlu0 %v11341, 125
        %v11418 = vpop.permute.xlu0 %11417
        %11419 = vrot.lane.b32.xlu0 %v11342, 125
        %v11420 = vpop.permute.xlu0 %11419
        %11421 = vrot.lane.b32.xlu0 %v11343, 125
        %v11422 = vpop.permute.xlu0 %11421
        %11423 = vrot.lane.b32.xlu0 %v11344, 125
        %v11424 = vpop.permute.xlu0 %11423
        %11425 = vrot.lane.b32.xlu0 %v11345, 125
        %v11426 = vpop.permute.xlu0 %11425
        %11427 = vrot.lane.b32.xlu0 %v11346, 125
        %v11428 = vpop.permute.xlu0 %11427
        %11429 = vrot.lane.b32.xlu0 %v11347, 125
        %v11430 = vpop.permute.xlu0 %11429
        %11431 = vrot.lane.b32.xlu0 %v11348, 125
        %v11432 = vpop.permute.xlu0 %11431
        %11433 = vrot.lane.b32.xlu0 %v11349, 125
        %v11434 = vpop.permute.xlu0 %11433
        %11435 = vrot.lane.b32.xlu0 %v11350, 125
        %v11436 = vpop.permute.xlu0 %11435
        %11437 = vrot.lane.b32.xlu0 %v11351, 125
        %v11438 = vpop.permute.xlu0 %11437
        %11439 = vrot.lane.b32.xlu0 %v11352, 125
        %v11440 = vpop.permute.xlu0 %11439
        %11441 = vrot.lane.b32.xlu0 %v11353, 125
        %v11442 = vpop.permute.xlu0 %11441
        %11443 = vrot.lane.b32.xlu0 %v11354, 125
        %v11444 = vpop.permute.xlu0 %11443
        %11445 = vrot.lane.b32.xlu0 %v11355, 125
        %v11446 = vpop.permute.xlu0 %11445
        %11447 = vrot.lane.b32.xlu0 %v11356, 125
        %v11448 = vpop.permute.xlu0 %11447
        %11449 = vrot.lane.b32.xlu0 %v11357, 125
        %v11450 = vpop.permute.xlu0 %11449
        %11451 = vrot.lane.b32.xlu0 %v11358, 125
        %v11452 = vpop.permute.xlu0 %11451
        %11453 = vrot.lane.b32.xlu0 %v11359, 125
        %v11454 = vpop.permute.xlu0 %11453
        %11455 = vrot.lane.b32.xlu0 %v11360, 125
        %v11456 = vpop.permute.xlu0 %11455
        %11489 = vst.msk [vmem:[%s373] sm:$0xff] %vm503, %v11394
        %11490 = vst.msk [vmem:[%s373 + $0x8] sm:$0xff] %vm503, %v11396
        %11491 = vst.msk [vmem:[%s373 + $0x10] sm:$0xff] %vm503, %v11398
        %11492 = vst.msk [vmem:[%s373 + $0x18] sm:$0xff] %vm503, %v11400
        %11493 = vst.msk [vmem:[%s373 + $0x20] sm:$0xff] %vm503, %v11402
        %11494 = vst.msk [vmem:[%s373 + $0x28] sm:$0xff] %vm503, %v11404
        %11495 = vst.msk [vmem:[%s373 + $0x30] sm:$0xff] %vm503, %v11406
        %11496 = vst.msk [vmem:[%s373 + $0x38] sm:$0xff] %vm503, %v11408
        %11497 = vst.msk [vmem:[%s373 + $0x40] sm:$0xff] %vm503, %v11410
        %11498 = vst.msk [vmem:[%s373 + $0x48] sm:$0xff] %vm503, %v11412
        %11499 = vst.msk [vmem:[%s373 + $0x50] sm:$0xff] %vm503, %v11414
        %11500 = vst.msk [vmem:[%s373 + $0x58] sm:$0xff] %vm503, %v11416
        %11501 = vst.msk [vmem:[%s373 + $0x60] sm:$0xff] %vm503, %v11418
        %11502 = vst.msk [vmem:[%s373 + $0x68] sm:$0xff] %vm503, %v11420
        %11503 = vst.msk [vmem:[%s373 + $0x70] sm:$0xff] %vm503, %v11422
        %11504 = vst.msk [vmem:[%s373 + $0x78] sm:$0xff] %vm503, %v11424
        %11505 = vst.msk [vmem:[%s373 + $0x80] sm:$0xff] %vm503, %v11426
        %11506 = vst.msk [vmem:[%s373 + $0x88] sm:$0xff] %vm503, %v11428
        %11507 = vst.msk [vmem:[%s373 + $0x90] sm:$0xff] %vm503, %v11430
        %11508 = vst.msk [vmem:[%s373 + $0x98] sm:$0xff] %vm503, %v11432
        %11509 = vst.msk [vmem:[%s373 + $0xa0] sm:$0xff] %vm503, %v11434
        %11510 = vst.msk [vmem:[%s373 + $0xa8] sm:$0xff] %vm503, %v11436
        %11511 = vst.msk [vmem:[%s373 + $0xb0] sm:$0xff] %vm503, %v11438
        %11512 = vst.msk [vmem:[%s373 + $0xb8] sm:$0xff] %vm503, %v11440
        %11513 = vst.msk [vmem:[%s373 + $0xc0] sm:$0xff] %vm503, %v11442
        %11514 = vst.msk [vmem:[%s373 + $0xc8] sm:$0xff] %vm503, %v11444
        %11515 = vst.msk [vmem:[%s373 + $0xd0] sm:$0xff] %vm503, %v11446
        %11516 = vst.msk [vmem:[%s373 + $0xd8] sm:$0xff] %vm503, %v11448
        %11517 = vst.msk [vmem:[%s373 + $0xe0] sm:$0xff] %vm503, %v11450
        %11518 = vst.msk [vmem:[%s373 + $0xe8] sm:$0xff] %vm503, %v11452
        %11519 = vst.msk [vmem:[%s373 + $0xf0] sm:$0xff] %vm503, %v11454
        %11520 = vst.msk [vmem:[%s373 + $0xf8] sm:$0xff] %vm503, %v11456
        %s11521 = smul.u32 4, %s22
        %p11522 = scmp.lt.s32.totalorder %s11521, 15
        %s11523 = scalar_select %p11522, %s11521, 15
        %s11524 = smul.addr %s11523, 8
        %s11525 = smul.addr %s11524, 8
        %s11526 = scalar_lea.vmem %s9, %s11525
        // Predicated region
        $region61: #{tpu_custom_call.1} parent=55 // pred_check
          %p11527 = pneg %p239
        $region62: #{tpu_custom_call.1} parent=55 // pred_check_branch
          %11529 = sbr.rel (%p11527) target = $region64
        $region63: #{tpu_custom_call.1} parent=55 // pred_region
          %s11530 = smul.u32 4, %s22
        $region64: #{tpu_custom_call.1} parent=55 // pred_fallthru
          _
      $region56: #{tpu_custom_call.1} parent=5 // pred_fallthru
        _
      %p11531 = scmp.le.s32.totalorder 2, %s17
      // Predicated region
      $region65: #{tpu_custom_call.1} parent=5 // pred_check
        %p11532 = pneg %p11531
      $region66: #{tpu_custom_call.1} parent=5 // pred_check_branch
        %11534 = sbr.rel (%p11532) target = $region68
      $region67: #{tpu_custom_call.1} parent=5 // pred_region
        %s11535 = ssub.s32 %s17, 2
        // Predicated region
        $region69: #{tpu_custom_call.1} parent=67 // pred_check
          %p11536 = pneg %p245
        $region70: #{tpu_custom_call.1} parent=67 // pred_check_branch
          %11538 = sbr.rel (%p11536) target = $region72
        $region71: #{tpu_custom_call.1} parent=67 // pred_region
          %s11539 = smul.u32 4, %s23
          %p11540 = scmp.lt.s32.totalorder %s11539, 15
          %s11541 = scalar_select %p11540, %s11539, 15
          %s11542 = smul.addr %s11541, 8
          %s11543 = smul.addr %s11542, 8
          %s11544 = scalar_lea.vmem %s9, %s11543
        $region72: #{tpu_custom_call.1} parent=67 // pred_fallthru
          _
      $region68: #{tpu_custom_call.1} parent=5 // pred_fallthru
        _
    $region6: #{tpu_custom_call.1} parent=1 // loop_footer
      %s21 = sadd.s32 1, %s17
    $region7: #{tpu_custom_call.1} parent=1 // loop_footer_branch
      %16 = sbr.rel target = $region3
    $region8: #{tpu_custom_call.1} parent=1 // loop_exit
      _
    %11545 = vsyncpa [#allocation6], 1
    %s11546 = scalar_lea.sflag [#allocation6], 1
    %11547 = vsyncpa %s11546, 1

</llo_original>
